<compile_context>
chip_gen: v6e
topology: v6e:2x2x1
jax: 0.10.0
libtpu: 0.0.40
codegen_flags: <defaults>
</compile_context>

<pallas_src>
import jax
import jax.numpy as jnp
from jax.experimental import pallas as pl
from jax.experimental.pallas import tpu as pltpu


def _mul_conv1x1_kernel(w_ref, x_ref, o_ref):
    # w_ref: (1, C_out, C_in)  scale-folded weight for this batch element
    # x_ref: (1, C_in, HW)     activations, pixels on the lane axis
    # o_ref: (1, C_out, HW)
    o_ref[0] = jnp.dot(
        w_ref[0],
        x_ref[0],
        preferred_element_type=jnp.float32,
        precision=jax.lax.Precision.HIGHEST,
    ).astype(o_ref.dtype)


@jax.jit
def mul_conv2d_1x1(scale, x, weight):
    """out = Conv2d_1x1(scale * x) with scale of shape (N, C_in, 1, 1)."""
    N, C_in, H, W = x.shape
    C_out = weight.shape[0]
    HW = H * W

    w2d = weight.reshape(C_out, C_in)
    # Fold the per-(batch, channel) scale into the weight: a tiny
    # (N, C_out, C_in) elementwise op, done once, outside the kernel.
    w_scaled = (w2d[None, :, :] * scale.reshape(N, 1, C_in)).astype(x.dtype)
    x3 = x.reshape(N, C_in, HW)  # pure reshape, no transpose / HBM shuffle

    flops = 2 * N * C_out * C_in * HW
    bytes_accessed = (x3.size + w_scaled.size + N * C_out * HW) * x.dtype.itemsize

    out = pl.pallas_call(
        _mul_conv1x1_kernel,
        out_shape=jax.ShapeDtypeStruct((N, C_out, HW), x.dtype),
        grid_spec=pltpu.PrefetchScalarGridSpec(
            num_scalar_prefetch=0,
            grid=(N,),
            in_specs=[
                pl.BlockSpec((1, C_out, C_in), lambda n: (n, 0, 0)),
                pl.BlockSpec((1, C_in, HW), lambda n: (n, 0, 0)),
            ],
            out_specs=pl.BlockSpec((1, C_out, HW), lambda n: (n, 0, 0)),
        ),
        compiler_params=pltpu.CompilerParams(
            dimension_semantics=("parallel",),
        ),
        cost_estimate=pl.CostEstimate(
            flops=flops, transcendentals=0, bytes_accessed=bytes_accessed
        ),
    )(w_scaled, x3)

    return out.reshape(N, C_out, H, W)


if __name__ == "__main__":
    key = jax.random.PRNGKey(0)
    k1, k2, k3 = jax.random.split(key, 3)

    # Shapes from the module spec: x184 (1,640,14,14), x189 (1,640,1,1),
    # Conv2d(640, 160, kernel_size=1, bias=False).
    N, C_in, C_out, H, W = 1, 640, 160, 14, 14
    x184 = jax.random.normal(k1, (N, C_in, H, W), dtype=jnp.float32)
    x189 = jax.random.normal(k2, (N, C_in, 1, 1), dtype=jnp.float32)
    conv_w = jax.random.normal(k3, (C_out, C_in, 1, 1), dtype=jnp.float32) * 0.05

    out = mul_conv2d_1x1(x189, x184, conv_w)
    out = jax.block_until_ready(out)

    # Pure-JAX reference of the module's forward: (scale * x) -> 1x1 conv.
    ref = jnp.einsum(
        "oc,nchw->nohw",
        conv_w.reshape(C_out, C_in),
        x189 * x184,
        precision=jax.lax.Precision.HIGHEST,
    )

    assert out.shape == (N, C_out, H, W), out.shape
    max_err = float(jnp.max(jnp.abs(out - ref)))
    assert jnp.allclose(out, ref, rtol=1e-3, atol=1e-3), f"max abs err {max_err}"
    print("KERNEL_OK")
</pallas_src>

<mosaic_0001>
module attributes {stable_mosaic.version = 11 : i64} {
  func.func @_mul_conv1x1_kernel(%arg0: i32, %arg1: memref<1x160x640xf32, #tpu.memory_space<vmem>>, %arg2: memref<1x640x196xf32, #tpu.memory_space<vmem>>, %arg3: memref<1x160x196xf32, #tpu.memory_space<vmem>>) attributes {dimension_semantics = [#tpu.dimension_semantics<parallel>], iteration_bounds = array<i64: 1>, scalar_prefetch = 0 : i64, scratch_operands = 0 : i64, tpu.core_type = #tpu.core_type<tc>, window_params = [{transform_indices = @transform_0, window_bounds = array<i64: 1, 160, 640>}, {transform_indices = @transform_1, window_bounds = array<i64: 1, 640, 196>}, {transform_indices = @transform_2, window_bounds = array<i64: 1, 160, 196>}]} {
    %c0 = arith.constant 0 : index
    %c0_0 = arith.constant 0 : index
    %c0_1 = arith.constant 0 : index
    %0 = vector.load %arg1[%c0, %c0_0, %c0_1] : memref<1x160x640xf32, #tpu.memory_space<vmem>>, vector<1x160x640xf32>
    %1 = vector.shape_cast %0 : vector<1x160x640xf32> to vector<160x640xf32>
    %c0_2 = arith.constant 0 : index
    %c0_3 = arith.constant 0 : index
    %c0_4 = arith.constant 0 : index
    %2 = vector.load %arg2[%c0_2, %c0_3, %c0_4] : memref<1x640x196xf32, #tpu.memory_space<vmem>>, vector<1x640x196xf32>
    %3 = vector.shape_cast %2 : vector<1x640x196xf32> to vector<640x196xf32>
    %cst = arith.constant dense<0.000000e+00> : vector<160x196xf32>
    %4 = tpu.matmul %1, %3, %cst {dimension_numbers = #tpu.dot_dimension_numbers<[1], [0], [0], [1], [0, 0, 1, 1], [], []>, precision = #tpu.contract_precision<fp32>} : vector<160x640xf32>, vector<640x196xf32>, vector<160x196xf32> -> vector<160x196xf32>
    %c0_5 = arith.constant 0 : index
    %c0_6 = arith.constant 0 : index
    %c0_7 = arith.constant 0 : index
    %5 = vector.load %arg3[%c0_5, %c0_6, %c0_7] : memref<1x160x196xf32, #tpu.memory_space<vmem>>, vector<1x160x196xf32>
    %6 = vector.shape_cast %5 : vector<1x160x196xf32> to vector<160x196xf32>
    %7 = vector.shape_cast %4 : vector<160x196xf32> to vector<1x160x196xf32>
    tpu.vector_store %arg3[%c0_5, %c0_6, %c0_7], %7 {strides = array<i32>} : memref<1x160x196xf32, #tpu.memory_space<vmem>>, vector<1x160x196xf32>,
    return
  }
  func.func @transform_0(%arg0: i32) -> (i32, i32, i32) {
    %c0_i32 = arith.constant 0 : i32
    %c0_i32_0 = arith.constant 0 : i32
    %c0_i32_1 = arith.constant 0 : i32
    return %arg0, %c0_i32, %c0_i32_0 : i32, i32, i32
  }
  func.func @transform_1(%arg0: i32) -> (i32, i32, i32) {
    %c0_i32 = arith.constant 0 : i32
    %c0_i32_0 = arith.constant 0 : i32
    %c0_i32_1 = arith.constant 0 : i32
    return %arg0, %c0_i32, %c0_i32_0 : i32, i32, i32
  }
  func.func @transform_2(%arg0: i32) -> (i32, i32, i32) {
    %c0_i32 = arith.constant 0 : i32
    %c0_i32_0 = arith.constant 0 : i32
    %c0_i32_1 = arith.constant 0 : i32
    return %arg0, %c0_i32, %c0_i32_0 : i32, i32, i32
  }
}

</mosaic_0001>

<llo_original>
// kernel: mul_conv2d_1x1.1
$region0: #{mul_conv2d_1x1.1}
  #allocation0 [shape = 'u32[]', space=smem, size = 0x4, offset = 0x4, fixed_abs, tag = 'smem constant byte address 0x4 - core index']
  #allocation1 [shape = 'u32[144,128]{1,0:T(1,128)}', space=vmem, size = 0x12000, scoped, tag = 'internal scratch']
  %s0 = inlined_call_operand.vmem [shape: f32[1,160,640], index: 0, kind: input, shape index: {}]
  %s1 = inlined_call_operand.vmem [shape: f32[1,640,196], index: 1, kind: input, shape index: {}]
  %s2 = inlined_call_operand.vmem [shape: f32[1,160,196], index: 2, kind: output, shape index: {}]
  %s3 = sld [smem:[#allocation0]]
  $region18: #{mul_conv2d_1x1.1} parent=0
    _
  %s5 = ssub.s32 1, %s3
  %s6 = scalar_select 0, %s5, %s3
  // Predicated region
  $region2: #{mul_conv2d_1x1.1} parent=0 // pred_check
    _
  $region3: #{mul_conv2d_1x1.1} parent=0 // pred_check_branch
    %8 = sbr.rel (0) target = $region5
  $region4: #{mul_conv2d_1x1.1} parent=0 // pred_region
    _
  $region5: #{mul_conv2d_1x1.1} parent=0 // pred_fallthru
    _
  // Predicated region
  $region6: #{mul_conv2d_1x1.1} parent=0 // pred_check
    _
  $region7: #{mul_conv2d_1x1.1} parent=0 // pred_check_branch
    %10 = sbr.rel (0) target = $region9
  $region8: #{mul_conv2d_1x1.1} parent=0 // pred_region
    _
  $region9: #{mul_conv2d_1x1.1} parent=0 // pred_fallthru
    _
  %v11 = vld [vmem:[%s0] sm:$0xff]
  %v12 = vld [vmem:[%s0 + $0x8] sm:$0xff]
  %v13 = vld [vmem:[%s0 + $0x10] sm:$0xff]
  %v14 = vld [vmem:[%s0 + $0x18] sm:$0xff]
  %v15 = vld [vmem:[%s0 + $0x20] sm:$0xff]
  %v16 = vld [vmem:[%s0 + $0x28] sm:$0xff]
  %v17 = vld [vmem:[%s0 + $0x30] sm:$0xff]
  %v18 = vld [vmem:[%s0 + $0x38] sm:$0xff]
  %v19 = vld [vmem:[%s0 + $0x40] sm:$0xff]
  %v20 = vld [vmem:[%s0 + $0x48] sm:$0xff]
  %v21 = vld [vmem:[%s0 + $0x50] sm:$0xff]
  %v22 = vld [vmem:[%s0 + $0x58] sm:$0xff]
  %v23 = vld [vmem:[%s0 + $0x60] sm:$0xff]
  %v24 = vld [vmem:[%s0 + $0x68] sm:$0xff]
  %v25 = vld [vmem:[%s0 + $0x70] sm:$0xff]
  %v26 = vld [vmem:[%s0 + $0x78] sm:$0xff]
  %v27 = vld [vmem:[%s0 + $0x80] sm:$0xff]
  %v28 = vld [vmem:[%s0 + $0x88] sm:$0xff]
  %v29 = vld [vmem:[%s0 + $0x90] sm:$0xff]
  %v30 = vld [vmem:[%s0 + $0x98] sm:$0xff]
  %v31 = vld [vmem:[%s0 + $0xa0] sm:$0xff]
  %v32 = vld [vmem:[%s0 + $0xa8] sm:$0xff]
  %v33 = vld [vmem:[%s0 + $0xb0] sm:$0xff]
  %v34 = vld [vmem:[%s0 + $0xb8] sm:$0xff]
  %v35 = vld [vmem:[%s0 + $0xc0] sm:$0xff]
  %v36 = vld [vmem:[%s0 + $0xc8] sm:$0xff]
  %v37 = vld [vmem:[%s0 + $0xd0] sm:$0xff]
  %v38 = vld [vmem:[%s0 + $0xd8] sm:$0xff]
  %v39 = vld [vmem:[%s0 + $0xe0] sm:$0xff]
  %v40 = vld [vmem:[%s0 + $0xe8] sm:$0xff]
  %v41 = vld [vmem:[%s0 + $0xf0] sm:$0xff]
  %v42 = vld [vmem:[%s0 + $0xf8] sm:$0xff]
  %v43 = vld [vmem:[%s0 + $0x100] sm:$0xff]
  %v44 = vld [vmem:[%s0 + $0x108] sm:$0xff]
  %v45 = vld [vmem:[%s0 + $0x110] sm:$0xff]
  %v46 = vld [vmem:[%s0 + $0x118] sm:$0xff]
  %v47 = vld [vmem:[%s0 + $0x120] sm:$0xff]
  %v48 = vld [vmem:[%s0 + $0x128] sm:$0xff]
  %v49 = vld [vmem:[%s0 + $0x130] sm:$0xff]
  %v50 = vld [vmem:[%s0 + $0x138] sm:$0xff]
  %v51 = vld [vmem:[%s0 + $0x140] sm:$0xff]
  %v52 = vld [vmem:[%s0 + $0x148] sm:$0xff]
  %v53 = vld [vmem:[%s0 + $0x150] sm:$0xff]
  %v54 = vld [vmem:[%s0 + $0x158] sm:$0xff]
  %v55 = vld [vmem:[%s0 + $0x160] sm:$0xff]
  %v56 = vld [vmem:[%s0 + $0x168] sm:$0xff]
  %v57 = vld [vmem:[%s0 + $0x170] sm:$0xff]
  %v58 = vld [vmem:[%s0 + $0x178] sm:$0xff]
  %v59 = vld [vmem:[%s0 + $0x180] sm:$0xff]
  %v60 = vld [vmem:[%s0 + $0x188] sm:$0xff]
  %v61 = vld [vmem:[%s0 + $0x190] sm:$0xff]
  %v62 = vld [vmem:[%s0 + $0x198] sm:$0xff]
  %v63 = vld [vmem:[%s0 + $0x1a0] sm:$0xff]
  %v64 = vld [vmem:[%s0 + $0x1a8] sm:$0xff]
  %v65 = vld [vmem:[%s0 + $0x1b0] sm:$0xff]
  %v66 = vld [vmem:[%s0 + $0x1b8] sm:$0xff]
  %v67 = vld [vmem:[%s0 + $0x1c0] sm:$0xff]
  %v68 = vld [vmem:[%s0 + $0x1c8] sm:$0xff]
  %v69 = vld [vmem:[%s0 + $0x1d0] sm:$0xff]
  %v70 = vld [vmem:[%s0 + $0x1d8] sm:$0xff]
  %v71 = vld [vmem:[%s0 + $0x1e0] sm:$0xff]
  %v72 = vld [vmem:[%s0 + $0x1e8] sm:$0xff]
  %v73 = vld [vmem:[%s0 + $0x1f0] sm:$0xff]
  %v74 = vld [vmem:[%s0 + $0x1f8] sm:$0xff]
  %v75 = vld [vmem:[%s0 + $0x200] sm:$0xff]
  %v76 = vld [vmem:[%s0 + $0x208] sm:$0xff]
  %v77 = vld [vmem:[%s0 + $0x210] sm:$0xff]
  %v78 = vld [vmem:[%s0 + $0x218] sm:$0xff]
  %v79 = vld [vmem:[%s0 + $0x220] sm:$0xff]
  %v80 = vld [vmem:[%s0 + $0x228] sm:$0xff]
  %v81 = vld [vmem:[%s0 + $0x230] sm:$0xff]
  %v82 = vld [vmem:[%s0 + $0x238] sm:$0xff]
  %v83 = vld [vmem:[%s0 + $0x240] sm:$0xff]
  %v84 = vld [vmem:[%s0 + $0x248] sm:$0xff]
  %v85 = vld [vmem:[%s0 + $0x250] sm:$0xff]
  %v86 = vld [vmem:[%s0 + $0x258] sm:$0xff]
  %v87 = vld [vmem:[%s0 + $0x260] sm:$0xff]
  %v88 = vld [vmem:[%s0 + $0x268] sm:$0xff]
  %v89 = vld [vmem:[%s0 + $0x270] sm:$0xff]
  %v90 = vld [vmem:[%s0 + $0x278] sm:$0xff]
  %v91 = vld [vmem:[%s0 + $0x280] sm:$0xff]
  %v92 = vld [vmem:[%s0 + $0x288] sm:$0xff]
  %v93 = vld [vmem:[%s0 + $0x290] sm:$0xff]
  %v94 = vld [vmem:[%s0 + $0x298] sm:$0xff]
  %v95 = vld [vmem:[%s0 + $0x2a0] sm:$0xff]
  %v96 = vld [vmem:[%s0 + $0x2a8] sm:$0xff]
  %v97 = vld [vmem:[%s0 + $0x2b0] sm:$0xff]
  %v98 = vld [vmem:[%s0 + $0x2b8] sm:$0xff]
  %v99 = vld [vmem:[%s0 + $0x2c0] sm:$0xff]
  %v100 = vld [vmem:[%s0 + $0x2c8] sm:$0xff]
  %v101 = vld [vmem:[%s0 + $0x2d0] sm:$0xff]
  %v102 = vld [vmem:[%s0 + $0x2d8] sm:$0xff]
  %v103 = vld [vmem:[%s0 + $0x2e0] sm:$0xff]
  %v104 = vld [vmem:[%s0 + $0x2e8] sm:$0xff]
  %v105 = vld [vmem:[%s0 + $0x2f0] sm:$0xff]
  %v106 = vld [vmem:[%s0 + $0x2f8] sm:$0xff]
  %v107 = vld [vmem:[%s0 + $0x300] sm:$0xff]
  %v108 = vld [vmem:[%s0 + $0x308] sm:$0xff]
  %v109 = vld [vmem:[%s0 + $0x310] sm:$0xff]
  %v110 = vld [vmem:[%s0 + $0x318] sm:$0xff]
  %v111 = vld [vmem:[%s1] sm:$0xff]
  %v112 = vld [vmem:[%s1 + $0x8] sm:$0xff]
  %v113 = vld [vmem:[%s1 + $0x10] sm:$0xff]
  %v114 = vld [vmem:[%s1 + $0x18] sm:$0xff]
  %v115 = vld [vmem:[%s1 + $0x20] sm:$0xff]
  %v116 = vld [vmem:[%s1 + $0x28] sm:$0xff]
  %v117 = vld [vmem:[%s1 + $0x30] sm:$0xff]
  %v118 = vld [vmem:[%s1 + $0x38] sm:$0xff]
  %v119 = vld [vmem:[%s1 + $0x40] sm:$0xff]
  %v120 = vld [vmem:[%s1 + $0x48] sm:$0xff]
  %v121 = vld [vmem:[%s1 + $0x50] sm:$0xff]
  %v122 = vld [vmem:[%s1 + $0x58] sm:$0xff]
  %v123 = vld [vmem:[%s1 + $0x60] sm:$0xff]
  %v124 = vld [vmem:[%s1 + $0x68] sm:$0xff]
  %v125 = vld [vmem:[%s1 + $0x70] sm:$0xff]
  %v126 = vld [vmem:[%s1 + $0x78] sm:$0xff]
  %v127 = vld [vmem:[%s1 + $0x80] sm:$0xff]
  %v128 = vld [vmem:[%s1 + $0x88] sm:$0xff]
  %v129 = vld [vmem:[%s1 + $0x90] sm:$0xff]
  %v130 = vld [vmem:[%s1 + $0x98] sm:$0xff]
  %v131 = vld [vmem:[%s1 + $0xa0] sm:$0xff]
  %v132 = vld [vmem:[%s1 + $0xa8] sm:$0xff]
  %v133 = vld [vmem:[%s1 + $0xb0] sm:$0xff]
  %v134 = vld [vmem:[%s1 + $0xb8] sm:$0xff]
  %v135 = vld [vmem:[%s1 + $0xc0] sm:$0xff]
  %v136 = vld [vmem:[%s1 + $0xc8] sm:$0xff]
  %v137 = vld [vmem:[%s1 + $0xd0] sm:$0xff]
  %v138 = vld [vmem:[%s1 + $0xd8] sm:$0xff]
  %v139 = vld [vmem:[%s1 + $0xe0] sm:$0xff]
  %v140 = vld [vmem:[%s1 + $0xe8] sm:$0xff]
  %v141 = vld [vmem:[%s1 + $0xf0] sm:$0xff]
  %v142 = vld [vmem:[%s1 + $0xf8] sm:$0xff]
  %v143 = vld [vmem:[%s1 + $0x100] sm:$0xff]
  %v144 = vld [vmem:[%s1 + $0x108] sm:$0xff]
  %v145 = vld [vmem:[%s1 + $0x110] sm:$0xff]
  %v146 = vld [vmem:[%s1 + $0x118] sm:$0xff]
  %v147 = vld [vmem:[%s1 + $0x120] sm:$0xff]
  %v148 = vld [vmem:[%s1 + $0x128] sm:$0xff]
  %v149 = vld [vmem:[%s1 + $0x130] sm:$0xff]
  %v150 = vld [vmem:[%s1 + $0x138] sm:$0xff]
  %v151 = vld [vmem:[%s1 + $0x140] sm:$0xff]
  %v152 = vld [vmem:[%s1 + $0x148] sm:$0xff]
  %v153 = vld [vmem:[%s1 + $0x150] sm:$0xff]
  %v154 = vld [vmem:[%s1 + $0x158] sm:$0xff]
  %v155 = vld [vmem:[%s1 + $0x160] sm:$0xff]
  %v156 = vld [vmem:[%s1 + $0x168] sm:$0xff]
  %v157 = vld [vmem:[%s1 + $0x170] sm:$0xff]
  %v158 = vld [vmem:[%s1 + $0x178] sm:$0xff]
  %v159 = vld [vmem:[%s1 + $0x180] sm:$0xff]
  %v160 = vld [vmem:[%s1 + $0x188] sm:$0xff]
  %v161 = vld [vmem:[%s1 + $0x190] sm:$0xff]
  %v162 = vld [vmem:[%s1 + $0x198] sm:$0xff]
  %v163 = vld [vmem:[%s1 + $0x1a0] sm:$0xff]
  %v164 = vld [vmem:[%s1 + $0x1a8] sm:$0xff]
  %v165 = vld [vmem:[%s1 + $0x1b0] sm:$0xff]
  %v166 = vld [vmem:[%s1 + $0x1b8] sm:$0xff]
  %v167 = vld [vmem:[%s1 + $0x1c0] sm:$0xff]
  %v168 = vld [vmem:[%s1 + $0x1c8] sm:$0xff]
  %v169 = vld [vmem:[%s1 + $0x1d0] sm:$0xff]
  %v170 = vld [vmem:[%s1 + $0x1d8] sm:$0xff]
  %v171 = vld [vmem:[%s1 + $0x1e0] sm:$0xff]
  %v172 = vld [vmem:[%s1 + $0x1e8] sm:$0xff]
  %v173 = vld [vmem:[%s1 + $0x1f0] sm:$0xff]
  %v174 = vld [vmem:[%s1 + $0x1f8] sm:$0xff]
  %v175 = vld [vmem:[%s1 + $0x200] sm:$0xff]
  %v176 = vld [vmem:[%s1 + $0x208] sm:$0xff]
  %v177 = vld [vmem:[%s1 + $0x210] sm:$0xff]
  %v178 = vld [vmem:[%s1 + $0x218] sm:$0xff]
  %v179 = vld [vmem:[%s1 + $0x220] sm:$0xff]
  %v180 = vld [vmem:[%s1 + $0x228] sm:$0xff]
  %v181 = vld [vmem:[%s1 + $0x230] sm:$0xff]
  %v182 = vld [vmem:[%s1 + $0x238] sm:$0xff]
  %v183 = vld [vmem:[%s1 + $0x240] sm:$0xff]
  %v184 = vld [vmem:[%s1 + $0x248] sm:$0xff]
  %v185 = vld [vmem:[%s1 + $0x250] sm:$0xff]
  %v186 = vld [vmem:[%s1 + $0x258] sm:$0xff]
  %v187 = vld [vmem:[%s1 + $0x260] sm:$0xff]
  %v188 = vld [vmem:[%s1 + $0x268] sm:$0xff]
  %v189 = vld [vmem:[%s1 + $0x270] sm:$0xff]
  %v190 = vld [vmem:[%s1 + $0x278] sm:$0xff]
  %v191 = vld [vmem:[%s1 + $0x280] sm:$0xff]
  %v192 = vld [vmem:[%s1 + $0x288] sm:$0xff]
  %v193 = vld [vmem:[%s1 + $0x290] sm:$0xff]
  %v194 = vld [vmem:[%s1 + $0x298] sm:$0xff]
  %v195 = vld [vmem:[%s1 + $0x2a0] sm:$0xff]
  %v196 = vld [vmem:[%s1 + $0x2a8] sm:$0xff]
  %v197 = vld [vmem:[%s1 + $0x2b0] sm:$0xff]
  %v198 = vld [vmem:[%s1 + $0x2b8] sm:$0xff]
  %v199 = vld [vmem:[%s1 + $0x2c0] sm:$0xff]
  %v200 = vld [vmem:[%s1 + $0x2c8] sm:$0xff]
  %v201 = vld [vmem:[%s1 + $0x2d0] sm:$0xff]
  %v202 = vld [vmem:[%s1 + $0x2d8] sm:$0xff]
  %v203 = vld [vmem:[%s1 + $0x2e0] sm:$0xff]
  %v204 = vld [vmem:[%s1 + $0x2e8] sm:$0xff]
  %v205 = vld [vmem:[%s1 + $0x2f0] sm:$0xff]
  %v206 = vld [vmem:[%s1 + $0x2f8] sm:$0xff]
  %v207 = vld [vmem:[%s1 + $0x300] sm:$0xff]
  %v208 = vld [vmem:[%s1 + $0x308] sm:$0xff]
  %v209 = vld [vmem:[%s1 + $0x310] sm:$0xff]
  %v210 = vld [vmem:[%s1 + $0x318] sm:$0xff]
  %v211 = vld [vmem:[%s1 + $0x320] sm:$0xff]
  %v212 = vld [vmem:[%s1 + $0x328] sm:$0xff]
  %v213 = vld [vmem:[%s1 + $0x330] sm:$0xff]
  %v214 = vld [vmem:[%s1 + $0x338] sm:$0xff]
  %v215 = vld [vmem:[%s1 + $0x340] sm:$0xff]
  %v216 = vld [vmem:[%s1 + $0x348] sm:$0xff]
  %v217 = vld [vmem:[%s1 + $0x350] sm:$0xff]
  %v218 = vld [vmem:[%s1 + $0x358] sm:$0xff]
  %v219 = vld [vmem:[%s1 + $0x360] sm:$0xff]
  %v220 = vld [vmem:[%s1 + $0x368] sm:$0xff]
  %v221 = vld [vmem:[%s1 + $0x370] sm:$0xff]
  %v222 = vld [vmem:[%s1 + $0x378] sm:$0xff]
  %v223 = vld [vmem:[%s1 + $0x380] sm:$0xff]
  %v224 = vld [vmem:[%s1 + $0x388] sm:$0xff]
  %v225 = vld [vmem:[%s1 + $0x390] sm:$0xff]
  %v226 = vld [vmem:[%s1 + $0x398] sm:$0xff]
  %v227 = vld [vmem:[%s1 + $0x3a0] sm:$0xff]
  %v228 = vld [vmem:[%s1 + $0x3a8] sm:$0xff]
  %v229 = vld [vmem:[%s1 + $0x3b0] sm:$0xff]
  %v230 = vld [vmem:[%s1 + $0x3b8] sm:$0xff]
  %v231 = vld [vmem:[%s1 + $0x3c0] sm:$0xff]
  %v232 = vld [vmem:[%s1 + $0x3c8] sm:$0xff]
  %v233 = vld [vmem:[%s1 + $0x3d0] sm:$0xff]
  %v234 = vld [vmem:[%s1 + $0x3d8] sm:$0xff]
  %v235 = vld [vmem:[%s1 + $0x3e0] sm:$0xff]
  %v236 = vld [vmem:[%s1 + $0x3e8] sm:$0xff]
  %v237 = vld [vmem:[%s1 + $0x3f0] sm:$0xff]
  %v238 = vld [vmem:[%s1 + $0x3f8] sm:$0xff]
  %v239 = vld [vmem:[%s1 + $0x400] sm:$0xff]
  %v240 = vld [vmem:[%s1 + $0x408] sm:$0xff]
  %v241 = vld [vmem:[%s1 + $0x410] sm:$0xff]
  %v242 = vld [vmem:[%s1 + $0x418] sm:$0xff]
  %v243 = vld [vmem:[%s1 + $0x420] sm:$0xff]
  %v244 = vld [vmem:[%s1 + $0x428] sm:$0xff]
  %v245 = vld [vmem:[%s1 + $0x430] sm:$0xff]
  %v246 = vld [vmem:[%s1 + $0x438] sm:$0xff]
  %v247 = vld [vmem:[%s1 + $0x440] sm:$0xff]
  %v248 = vld [vmem:[%s1 + $0x448] sm:$0xff]
  %v249 = vld [vmem:[%s1 + $0x450] sm:$0xff]
  %v250 = vld [vmem:[%s1 + $0x458] sm:$0xff]
  %v251 = vld [vmem:[%s1 + $0x460] sm:$0xff]
  %v252 = vld [vmem:[%s1 + $0x468] sm:$0xff]
  %v253 = vld [vmem:[%s1 + $0x470] sm:$0xff]
  %v254 = vld [vmem:[%s1 + $0x478] sm:$0xff]
  %v255 = vld [vmem:[%s1 + $0x480] sm:$0xff]
  %v256 = vld [vmem:[%s1 + $0x488] sm:$0xff]
  %v257 = vld [vmem:[%s1 + $0x490] sm:$0xff]
  %v258 = vld [vmem:[%s1 + $0x498] sm:$0xff]
  %v259 = vld [vmem:[%s1 + $0x4a0] sm:$0xff]
  %v260 = vld [vmem:[%s1 + $0x4a8] sm:$0xff]
  %v261 = vld [vmem:[%s1 + $0x4b0] sm:$0xff]
  %v262 = vld [vmem:[%s1 + $0x4b8] sm:$0xff]
  %v263 = vld [vmem:[%s1 + $0x4c0] sm:$0xff]
  %v264 = vld [vmem:[%s1 + $0x4c8] sm:$0xff]
  %v265 = vld [vmem:[%s1 + $0x4d0] sm:$0xff]
  %v266 = vld [vmem:[%s1 + $0x4d8] sm:$0xff]
  %v267 = vld [vmem:[%s1 + $0x4e0] sm:$0xff]
  %v268 = vld [vmem:[%s1 + $0x4e8] sm:$0xff]
  %v269 = vld [vmem:[%s1 + $0x4f0] sm:$0xff]
  %v270 = vld [vmem:[%s1 + $0x4f8] sm:$0xff]
  %v271 = vand.u32 %v142, 4294901760
  %272 = vmatprep.subr.mxu0 %v271
  %v273 = vand.u32 %v141, 4294901760
  %274 = vmatpush1.msra.mxu0 %v273
  %v275 = vand.u32 %v140, 4294901760
  %276 = vmatprep.subr.mxu0 %v275
  %v277 = vand.u32 %v139, 4294901760
  %278 = vmatpush1.msra.mxu0 %v277
  %v279 = vand.u32 %v138, 4294901760
  %280 = vmatprep.subr.mxu0 %v279
  %v281 = vand.u32 %v137, 4294901760
  %282 = vmatpush1.msra.mxu0 %v281
  %v283 = vand.u32 %v136, 4294901760
  %284 = vmatprep.subr.mxu0 %v283
  %v285 = vand.u32 %v135, 4294901760
  %286 = vmatpush1.msra.mxu0 %v285
  %v287 = vand.u32 %v134, 4294901760
  %288 = vmatprep.subr.mxu0 %v287
  %v289 = vand.u32 %v133, 4294901760
  %290 = vmatpush1.msra.mxu0 %v289
  %v291 = vand.u32 %v132, 4294901760
  %292 = vmatprep.subr.mxu0 %v291
  %v293 = vand.u32 %v131, 4294901760
  %294 = vmatpush1.msra.mxu0 %v293
  %v295 = vand.u32 %v130, 4294901760
  %296 = vmatprep.subr.mxu0 %v295
  %v297 = vand.u32 %v129, 4294901760
  %298 = vmatpush1.msra.mxu0 %v297
  %v299 = vand.u32 %v128, 4294901760
  %300 = vmatprep.subr.mxu0 %v299
  %v301 = vand.u32 %v127, 4294901760
  %302 = vmatpush1.msra.mxu0 %v301
  %v303 = vand.u32 %v126, 4294901760
  %304 = vmatprep.subr.mxu0 %v303
  %v305 = vand.u32 %v125, 4294901760
  %306 = vmatpush1.msra.mxu0 %v305
  %v307 = vand.u32 %v124, 4294901760
  %308 = vmatprep.subr.mxu0 %v307
  %v309 = vand.u32 %v123, 4294901760
  %310 = vmatpush1.msra.mxu0 %v309
  %v311 = vand.u32 %v122, 4294901760
  %312 = vmatprep.subr.mxu0 %v311
  %v313 = vand.u32 %v121, 4294901760
  %314 = vmatpush1.msra.mxu0 %v313
  %v315 = vand.u32 %v120, 4294901760
  %316 = vmatprep.subr.mxu0 %v315
  %v317 = vand.u32 %v119, 4294901760
  %318 = vmatpush1.msra.mxu0 %v317
  %v319 = vand.u32 %v118, 4294901760
  %320 = vmatprep.subr.mxu0 %v319
  %v321 = vand.u32 %v117, 4294901760
  %322 = vmatpush1.msra.mxu0 %v321
  %v323 = vand.u32 %v116, 4294901760
  %324 = vmatprep.subr.mxu0 %v323
  %v325 = vand.u32 %v115, 4294901760
  %326 = vmatpush1.msra.mxu0 %v325
  %v327 = vand.u32 %v114, 4294901760
  %328 = vmatprep.subr.mxu0 %v327
  %v329 = vand.u32 %v113, 4294901760
  %330 = vmatpush1.msra.mxu0 %v329
  %v331 = vand.u32 %v112, 4294901760
  %332 = vmatprep.subr.mxu0 %v331
  %v333 = vand.u32 %v111, 4294901760
  %334 = vmatpush1.msra.mxu0 %v333
  %v335 = vand.u32 %v174, 4294901760
  %336 = vmatprep.subr.mxu0 %v335
  %v337 = vand.u32 %v173, 4294901760
  %338 = vmatpush2.msra.mxu0 %v337
  %v339 = vand.u32 %v172, 4294901760
  %340 = vmatprep.subr.mxu0 %v339
  %v341 = vand.u32 %v171, 4294901760
  %342 = vmatpush2.msra.mxu0 %v341
  %v343 = vand.u32 %v170, 4294901760
  %344 = vmatprep.subr.mxu0 %v343
  %v345 = vand.u32 %v169, 4294901760
  %346 = vmatpush2.msra.mxu0 %v345
  %v347 = vand.u32 %v168, 4294901760
  %348 = vmatprep.subr.mxu0 %v347
  %v349 = vand.u32 %v167, 4294901760
  %350 = vmatpush2.msra.mxu0 %v349
  %v351 = vand.u32 %v166, 4294901760
  %352 = vmatprep.subr.mxu0 %v351
  %v353 = vand.u32 %v165, 4294901760
  %354 = vmatpush2.msra.mxu0 %v353
  %v355 = vand.u32 %v164, 4294901760
  %356 = vmatprep.subr.mxu0 %v355
  %v357 = vand.u32 %v163, 4294901760
  %358 = vmatpush2.msra.mxu0 %v357
  %v359 = vand.u32 %v162, 4294901760
  %360 = vmatprep.subr.mxu0 %v359
  %v361 = vand.u32 %v161, 4294901760
  %362 = vmatpush2.msra.mxu0 %v361
  %v363 = vand.u32 %v160, 4294901760
  %364 = vmatprep.subr.mxu0 %v363
  %v365 = vand.u32 %v159, 4294901760
  %366 = vmatpush2.msra.mxu0 %v365
  %v367 = vand.u32 %v158, 4294901760
  %368 = vmatprep.subr.mxu0 %v367
  %v369 = vand.u32 %v157, 4294901760
  %370 = vmatpush2.msra.mxu0 %v369
  %v371 = vand.u32 %v156, 4294901760
  %372 = vmatprep.subr.mxu0 %v371
  %v373 = vand.u32 %v155, 4294901760
  %374 = vmatpush2.msra.mxu0 %v373
  %v375 = vand.u32 %v154, 4294901760
  %376 = vmatprep.subr.mxu0 %v375
  %v377 = vand.u32 %v153, 4294901760
  %378 = vmatpush2.msra.mxu0 %v377
  %v379 = vand.u32 %v152, 4294901760
  %380 = vmatprep.subr.mxu0 %v379
  %v381 = vand.u32 %v151, 4294901760
  %382 = vmatpush2.msra.mxu0 %v381
  %v383 = vand.u32 %v150, 4294901760
  %384 = vmatprep.subr.mxu0 %v383
  %v385 = vand.u32 %v149, 4294901760
  %386 = vmatpush2.msra.mxu0 %v385
  %v387 = vand.u32 %v148, 4294901760
  %388 = vmatprep.subr.mxu0 %v387
  %v389 = vand.u32 %v147, 4294901760
  %390 = vmatpush2.msra.mxu0 %v389
  %v391 = vand.u32 %v146, 4294901760
  %392 = vmatprep.subr.mxu0 %v391
  %v393 = vand.u32 %v145, 4294901760
  %394 = vmatpush2.msra.mxu0 %v393
  %v395 = vand.u32 %v144, 4294901760
  %396 = vmatprep.subr.mxu0 %v395
  %v397 = vand.u32 %v143, 4294901760
  %398 = vmatpush2.msra.mxu0 %v397
  %v399 = vand.u32 %v12, 4294901760
  %v400 = vsub.f32 %v12, %v399
  %v401 = vand.u32 %v400, 4294901760
  %v402 = vsub.f32 %v400, %v401
  %v403 = vand.u32 %v402, 4294901760
  %404 = vmatprep.mubr.f32.mxu0 %v403
  %v405 = vand.u32 %v11, 4294901760
  %v406 = vsub.f32 %v11, %v405
  %v407 = vand.u32 %v406, 4294901760
  %v408 = vsub.f32 %v406, %v407
  %v409 = vand.u32 %v408, 4294901760
  %410 = vmatmul.mubr.f32.gmra.mxu0 %v409
  %v411 = vpop.f32.mrf.mxu0
  %v412 = vadd.f32 0.0, %v411
  %v413 = vpop.f32.mrf.mxu0
  %v414 = vadd.f32 0.0, %v413
  %v415 = vand.u32 %v17, 4294901760
  %v416 = vsub.f32 %v17, %v415
  %v417 = vand.u32 %v416, 4294901760
  %v418 = vsub.f32 %v416, %v417
  %v419 = vand.u32 %v418, 4294901760
  %420 = vmatprep.mubr.f32.mxu0 %v419
  %v421 = vand.u32 %v16, 4294901760
  %v422 = vsub.f32 %v16, %v421
  %v423 = vand.u32 %v422, 4294901760
  %v424 = vsub.f32 %v422, %v423
  %v425 = vand.u32 %v424, 4294901760
  %426 = vmatmul.mubr.f32.gmra.mxu0 %v425
  %v427 = vpop.f32.mrf.mxu0
  %v428 = vadd.f32 0.0, %v427
  %v429 = vpop.f32.mrf.mxu0
  %v430 = vadd.f32 0.0, %v429
  %v431 = vand.u32 %v22, 4294901760
  %v432 = vsub.f32 %v22, %v431
  %v433 = vand.u32 %v432, 4294901760
  %v434 = vsub.f32 %v432, %v433
  %v435 = vand.u32 %v434, 4294901760
  %436 = vmatprep.mubr.f32.mxu0 %v435
  %v437 = vand.u32 %v21, 4294901760
  %v438 = vsub.f32 %v21, %v437
  %v439 = vand.u32 %v438, 4294901760
  %v440 = vsub.f32 %v438, %v439
  %v441 = vand.u32 %v440, 4294901760
  %442 = vmatmul.mubr.f32.gmra.mxu0 %v441
  %v443 = vpop.f32.mrf.mxu0
  %v444 = vadd.f32 0.0, %v443
  %v445 = vpop.f32.mrf.mxu0
  %v446 = vadd.f32 0.0, %v445
  %v447 = vand.u32 %v27, 4294901760
  %v448 = vsub.f32 %v27, %v447
  %v449 = vand.u32 %v448, 4294901760
  %v450 = vsub.f32 %v448, %v449
  %v451 = vand.u32 %v450, 4294901760
  %452 = vmatprep.mubr.f32.mxu0 %v451
  %v453 = vand.u32 %v26, 4294901760
  %v454 = vsub.f32 %v26, %v453
  %v455 = vand.u32 %v454, 4294901760
  %v456 = vsub.f32 %v454, %v455
  %v457 = vand.u32 %v456, 4294901760
  %458 = vmatmul.mubr.f32.gmra.mxu0 %v457
  %v459 = vpop.f32.mrf.mxu0
  %v460 = vadd.f32 0.0, %v459
  %v461 = vpop.f32.mrf.mxu0
  %v462 = vadd.f32 0.0, %v461
  %v463 = vand.u32 %v32, 4294901760
  %v464 = vsub.f32 %v32, %v463
  %v465 = vand.u32 %v464, 4294901760
  %v466 = vsub.f32 %v464, %v465
  %v467 = vand.u32 %v466, 4294901760
  %468 = vmatprep.mubr.f32.mxu0 %v467
  %v469 = vand.u32 %v31, 4294901760
  %v470 = vsub.f32 %v31, %v469
  %v471 = vand.u32 %v470, 4294901760
  %v472 = vsub.f32 %v470, %v471
  %v473 = vand.u32 %v472, 4294901760
  %474 = vmatmul.mubr.f32.gmra.mxu0 %v473
  %v475 = vpop.f32.mrf.mxu0
  %v476 = vadd.f32 0.0, %v475
  %v477 = vpop.f32.mrf.mxu0
  %v478 = vadd.f32 0.0, %v477
  %v479 = vand.u32 %v37, 4294901760
  %v480 = vsub.f32 %v37, %v479
  %v481 = vand.u32 %v480, 4294901760
  %v482 = vsub.f32 %v480, %v481
  %v483 = vand.u32 %v482, 4294901760
  %484 = vmatprep.mubr.f32.mxu0 %v483
  %v485 = vand.u32 %v36, 4294901760
  %v486 = vsub.f32 %v36, %v485
  %v487 = vand.u32 %v486, 4294901760
  %v488 = vsub.f32 %v486, %v487
  %v489 = vand.u32 %v488, 4294901760
  %490 = vmatmul.mubr.f32.gmra.mxu0 %v489
  %v491 = vpop.f32.mrf.mxu0
  %v492 = vadd.f32 0.0, %v491
  %v493 = vpop.f32.mrf.mxu0
  %v494 = vadd.f32 0.0, %v493
  %v495 = vand.u32 %v42, 4294901760
  %v496 = vsub.f32 %v42, %v495
  %v497 = vand.u32 %v496, 4294901760
  %v498 = vsub.f32 %v496, %v497
  %v499 = vand.u32 %v498, 4294901760
  %500 = vmatprep.mubr.f32.mxu0 %v499
  %v501 = vand.u32 %v41, 4294901760
  %v502 = vsub.f32 %v41, %v501
  %v503 = vand.u32 %v502, 4294901760
  %v504 = vsub.f32 %v502, %v503
  %v505 = vand.u32 %v504, 4294901760
  %506 = vmatmul.mubr.f32.gmra.mxu0 %v505
  %v507 = vpop.f32.mrf.mxu0
  %v508 = vadd.f32 0.0, %v507
  %v509 = vpop.f32.mrf.mxu0
  %v510 = vadd.f32 0.0, %v509
  %v511 = vand.u32 %v47, 4294901760
  %v512 = vsub.f32 %v47, %v511
  %v513 = vand.u32 %v512, 4294901760
  %v514 = vsub.f32 %v512, %v513
  %v515 = vand.u32 %v514, 4294901760
  %516 = vmatprep.mubr.f32.mxu0 %v515
  %v517 = vand.u32 %v46, 4294901760
  %v518 = vsub.f32 %v46, %v517
  %v519 = vand.u32 %v518, 4294901760
  %v520 = vsub.f32 %v518, %v519
  %v521 = vand.u32 %v520, 4294901760
  %522 = vmatmul.mubr.f32.gmra.mxu0 %v521
  %v523 = vpop.f32.mrf.mxu0
  %v524 = vadd.f32 0.0, %v523
  %v525 = vpop.f32.mrf.mxu0
  %v526 = vadd.f32 0.0, %v525
  %v527 = vand.u32 %v52, 4294901760
  %v528 = vsub.f32 %v52, %v527
  %v529 = vand.u32 %v528, 4294901760
  %v530 = vsub.f32 %v528, %v529
  %v531 = vand.u32 %v530, 4294901760
  %532 = vmatprep.mubr.f32.mxu0 %v531
  %v533 = vand.u32 %v51, 4294901760
  %v534 = vsub.f32 %v51, %v533
  %v535 = vand.u32 %v534, 4294901760
  %v536 = vsub.f32 %v534, %v535
  %v537 = vand.u32 %v536, 4294901760
  %538 = vmatmul.mubr.f32.gmra.mxu0 %v537
  %v539 = vpop.f32.mrf.mxu0
  %v540 = vadd.f32 0.0, %v539
  %v541 = vpop.f32.mrf.mxu0
  %v542 = vadd.f32 0.0, %v541
  %v543 = vand.u32 %v57, 4294901760
  %v544 = vsub.f32 %v57, %v543
  %v545 = vand.u32 %v544, 4294901760
  %v546 = vsub.f32 %v544, %v545
  %v547 = vand.u32 %v546, 4294901760
  %548 = vmatprep.mubr.f32.mxu0 %v547
  %v549 = vand.u32 %v56, 4294901760
  %v550 = vsub.f32 %v56, %v549
  %v551 = vand.u32 %v550, 4294901760
  %v552 = vsub.f32 %v550, %v551
  %v553 = vand.u32 %v552, 4294901760
  %554 = vmatmul.mubr.f32.gmra.mxu0 %v553
  %v555 = vpop.f32.mrf.mxu0
  %v556 = vadd.f32 0.0, %v555
  %v557 = vpop.f32.mrf.mxu0
  %v558 = vadd.f32 0.0, %v557
  %v559 = vand.u32 %v62, 4294901760
  %v560 = vsub.f32 %v62, %v559
  %v561 = vand.u32 %v560, 4294901760
  %v562 = vsub.f32 %v560, %v561
  %v563 = vand.u32 %v562, 4294901760
  %564 = vmatprep.mubr.f32.mxu0 %v563
  %v565 = vand.u32 %v61, 4294901760
  %v566 = vsub.f32 %v61, %v565
  %v567 = vand.u32 %v566, 4294901760
  %v568 = vsub.f32 %v566, %v567
  %v569 = vand.u32 %v568, 4294901760
  %570 = vmatmul.mubr.f32.gmra.mxu0 %v569
  %v571 = vpop.f32.mrf.mxu0
  %v572 = vadd.f32 0.0, %v571
  %v573 = vpop.f32.mrf.mxu0
  %v574 = vadd.f32 0.0, %v573
  %v575 = vand.u32 %v67, 4294901760
  %v576 = vsub.f32 %v67, %v575
  %v577 = vand.u32 %v576, 4294901760
  %v578 = vsub.f32 %v576, %v577
  %v579 = vand.u32 %v578, 4294901760
  %580 = vmatprep.mubr.f32.mxu0 %v579
  %v581 = vand.u32 %v66, 4294901760
  %v582 = vsub.f32 %v66, %v581
  %v583 = vand.u32 %v582, 4294901760
  %v584 = vsub.f32 %v582, %v583
  %v585 = vand.u32 %v584, 4294901760
  %586 = vmatmul.mubr.f32.gmra.mxu0 %v585
  %v587 = vpop.f32.mrf.mxu0
  %v588 = vadd.f32 0.0, %v587
  %v589 = vpop.f32.mrf.mxu0
  %v590 = vadd.f32 0.0, %v589
  %v591 = vand.u32 %v72, 4294901760
  %v592 = vsub.f32 %v72, %v591
  %v593 = vand.u32 %v592, 4294901760
  %v594 = vsub.f32 %v592, %v593
  %v595 = vand.u32 %v594, 4294901760
  %596 = vmatprep.mubr.f32.mxu0 %v595
  %v597 = vand.u32 %v71, 4294901760
  %v598 = vsub.f32 %v71, %v597
  %v599 = vand.u32 %v598, 4294901760
  %v600 = vsub.f32 %v598, %v599
  %v601 = vand.u32 %v600, 4294901760
  %602 = vmatmul.mubr.f32.gmra.mxu0 %v601
  %v603 = vpop.f32.mrf.mxu0
  %v604 = vadd.f32 0.0, %v603
  %v605 = vpop.f32.mrf.mxu0
  %v606 = vadd.f32 0.0, %v605
  %v607 = vand.u32 %v77, 4294901760
  %v608 = vsub.f32 %v77, %v607
  %v609 = vand.u32 %v608, 4294901760
  %v610 = vsub.f32 %v608, %v609
  %v611 = vand.u32 %v610, 4294901760
  %612 = vmatprep.mubr.f32.mxu0 %v611
  %v613 = vand.u32 %v76, 4294901760
  %v614 = vsub.f32 %v76, %v613
  %v615 = vand.u32 %v614, 4294901760
  %v616 = vsub.f32 %v614, %v615
  %v617 = vand.u32 %v616, 4294901760
  %618 = vmatmul.mubr.f32.gmra.mxu0 %v617
  %v619 = vpop.f32.mrf.mxu0
  %v620 = vadd.f32 0.0, %v619
  %v621 = vpop.f32.mrf.mxu0
  %v622 = vadd.f32 0.0, %v621
  %v623 = vand.u32 %v82, 4294901760
  %v624 = vsub.f32 %v82, %v623
  %v625 = vand.u32 %v624, 4294901760
  %v626 = vsub.f32 %v624, %v625
  %v627 = vand.u32 %v626, 4294901760
  %628 = vmatprep.mubr.f32.mxu0 %v627
  %v629 = vand.u32 %v81, 4294901760
  %v630 = vsub.f32 %v81, %v629
  %v631 = vand.u32 %v630, 4294901760
  %v632 = vsub.f32 %v630, %v631
  %v633 = vand.u32 %v632, 4294901760
  %634 = vmatmul.mubr.f32.gmra.mxu0 %v633
  %v635 = vpop.f32.mrf.mxu0
  %v636 = vadd.f32 0.0, %v635
  %v637 = vpop.f32.mrf.mxu0
  %v638 = vadd.f32 0.0, %v637
  %v639 = vand.u32 %v87, 4294901760
  %v640 = vsub.f32 %v87, %v639
  %v641 = vand.u32 %v640, 4294901760
  %v642 = vsub.f32 %v640, %v641
  %v643 = vand.u32 %v642, 4294901760
  %644 = vmatprep.mubr.f32.mxu0 %v643
  %v645 = vand.u32 %v86, 4294901760
  %v646 = vsub.f32 %v86, %v645
  %v647 = vand.u32 %v646, 4294901760
  %v648 = vsub.f32 %v646, %v647
  %v649 = vand.u32 %v648, 4294901760
  %650 = vmatmul.mubr.f32.gmra.mxu0 %v649
  %v651 = vpop.f32.mrf.mxu0
  %v652 = vadd.f32 0.0, %v651
  %v653 = vpop.f32.mrf.mxu0
  %v654 = vadd.f32 0.0, %v653
  %v655 = vand.u32 %v92, 4294901760
  %v656 = vsub.f32 %v92, %v655
  %v657 = vand.u32 %v656, 4294901760
  %v658 = vsub.f32 %v656, %v657
  %v659 = vand.u32 %v658, 4294901760
  %660 = vmatprep.mubr.f32.mxu0 %v659
  %v661 = vand.u32 %v91, 4294901760
  %v662 = vsub.f32 %v91, %v661
  %v663 = vand.u32 %v662, 4294901760
  %v664 = vsub.f32 %v662, %v663
  %v665 = vand.u32 %v664, 4294901760
  %666 = vmatmul.mubr.f32.gmra.mxu0 %v665
  %v667 = vpop.f32.mrf.mxu0
  %v668 = vadd.f32 0.0, %v667
  %v669 = vpop.f32.mrf.mxu0
  %v670 = vadd.f32 0.0, %v669
  %v671 = vand.u32 %v97, 4294901760
  %v672 = vsub.f32 %v97, %v671
  %v673 = vand.u32 %v672, 4294901760
  %v674 = vsub.f32 %v672, %v673
  %v675 = vand.u32 %v674, 4294901760
  %676 = vmatprep.mubr.f32.mxu0 %v675
  %v677 = vand.u32 %v96, 4294901760
  %v678 = vsub.f32 %v96, %v677
  %v679 = vand.u32 %v678, 4294901760
  %v680 = vsub.f32 %v678, %v679
  %v681 = vand.u32 %v680, 4294901760
  %682 = vmatmul.mubr.f32.gmra.mxu0 %v681
  %v683 = vpop.f32.mrf.mxu0
  %v684 = vadd.f32 0.0, %v683
  %v685 = vpop.f32.mrf.mxu0
  %v686 = vadd.f32 0.0, %v685
  %v687 = vand.u32 %v102, 4294901760
  %v688 = vsub.f32 %v102, %v687
  %v689 = vand.u32 %v688, 4294901760
  %v690 = vsub.f32 %v688, %v689
  %v691 = vand.u32 %v690, 4294901760
  %692 = vmatprep.mubr.f32.mxu0 %v691
  %v693 = vand.u32 %v101, 4294901760
  %v694 = vsub.f32 %v101, %v693
  %v695 = vand.u32 %v694, 4294901760
  %v696 = vsub.f32 %v694, %v695
  %v697 = vand.u32 %v696, 4294901760
  %698 = vmatmul.mubr.f32.gmra.mxu0 %v697
  %v699 = vpop.f32.mrf.mxu0
  %v700 = vadd.f32 0.0, %v699
  %v701 = vpop.f32.mrf.mxu0
  %v702 = vadd.f32 0.0, %v701
  %v703 = vand.u32 %v107, 4294901760
  %v704 = vsub.f32 %v107, %v703
  %v705 = vand.u32 %v704, 4294901760
  %v706 = vsub.f32 %v704, %v705
  %v707 = vand.u32 %v706, 4294901760
  %708 = vmatprep.mubr.f32.mxu0 %v707
  %v709 = vand.u32 %v106, 4294901760
  %v710 = vsub.f32 %v106, %v709
  %v711 = vand.u32 %v710, 4294901760
  %v712 = vsub.f32 %v710, %v711
  %v713 = vand.u32 %v712, 4294901760
  %714 = vmatmul.mubr.f32.gmra.mxu0 %v713
  %v715 = vpop.f32.mrf.mxu0
  %v716 = vadd.f32 0.0, %v715
  %v717 = vpop.f32.mrf.mxu0
  %v718 = vadd.f32 0.0, %v717
  %719 = vdwg.mxu0
  %v720 = vand.u32 %v142, 4294901760
  %v721 = vsub.f32 %v142, %v720
  %v722 = vand.u32 %v721, 4294901760
  %v723 = vsub.f32 %v721, %v722
  %v724 = vand.u32 %v723, 4294901760
  %725 = vmatprep.subr.mxu0 %v724
  %v726 = vand.u32 %v141, 4294901760
  %v727 = vsub.f32 %v141, %v726
  %v728 = vand.u32 %v727, 4294901760
  %v729 = vsub.f32 %v727, %v728
  %v730 = vand.u32 %v729, 4294901760
  %731 = vmatpush1.msra.mxu0 %v730
  %v732 = vand.u32 %v140, 4294901760
  %v733 = vsub.f32 %v140, %v732
  %v734 = vand.u32 %v733, 4294901760
  %v735 = vsub.f32 %v733, %v734
  %v736 = vand.u32 %v735, 4294901760
  %737 = vmatprep.subr.mxu0 %v736
  %v738 = vand.u32 %v139, 4294901760
  %v739 = vsub.f32 %v139, %v738
  %v740 = vand.u32 %v739, 4294901760
  %v741 = vsub.f32 %v739, %v740
  %v742 = vand.u32 %v741, 4294901760
  %743 = vmatpush1.msra.mxu0 %v742
  %v744 = vand.u32 %v138, 4294901760
  %v745 = vsub.f32 %v138, %v744
  %v746 = vand.u32 %v745, 4294901760
  %v747 = vsub.f32 %v745, %v746
  %v748 = vand.u32 %v747, 4294901760
  %749 = vmatprep.subr.mxu0 %v748
  %v750 = vand.u32 %v137, 4294901760
  %v751 = vsub.f32 %v137, %v750
  %v752 = vand.u32 %v751, 4294901760
  %v753 = vsub.f32 %v751, %v752
  %v754 = vand.u32 %v753, 4294901760
  %755 = vmatpush1.msra.mxu0 %v754
  %v756 = vand.u32 %v136, 4294901760
  %v757 = vsub.f32 %v136, %v756
  %v758 = vand.u32 %v757, 4294901760
  %v759 = vsub.f32 %v757, %v758
  %v760 = vand.u32 %v759, 4294901760
  %761 = vmatprep.subr.mxu0 %v760
  %v762 = vand.u32 %v135, 4294901760
  %v763 = vsub.f32 %v135, %v762
  %v764 = vand.u32 %v763, 4294901760
  %v765 = vsub.f32 %v763, %v764
  %v766 = vand.u32 %v765, 4294901760
  %767 = vmatpush1.msra.mxu0 %v766
  %v768 = vand.u32 %v134, 4294901760
  %v769 = vsub.f32 %v134, %v768
  %v770 = vand.u32 %v769, 4294901760
  %v771 = vsub.f32 %v769, %v770
  %v772 = vand.u32 %v771, 4294901760
  %773 = vmatprep.subr.mxu0 %v772
  %v774 = vand.u32 %v133, 4294901760
  %v775 = vsub.f32 %v133, %v774
  %v776 = vand.u32 %v775, 4294901760
  %v777 = vsub.f32 %v775, %v776
  %v778 = vand.u32 %v777, 4294901760
  %779 = vmatpush1.msra.mxu0 %v778
  %v780 = vand.u32 %v132, 4294901760
  %v781 = vsub.f32 %v132, %v780
  %v782 = vand.u32 %v781, 4294901760
  %v783 = vsub.f32 %v781, %v782
  %v784 = vand.u32 %v783, 4294901760
  %785 = vmatprep.subr.mxu0 %v784
  %v786 = vand.u32 %v131, 4294901760
  %v787 = vsub.f32 %v131, %v786
  %v788 = vand.u32 %v787, 4294901760
  %v789 = vsub.f32 %v787, %v788
  %v790 = vand.u32 %v789, 4294901760
  %791 = vmatpush1.msra.mxu0 %v790
  %v792 = vand.u32 %v130, 4294901760
  %v793 = vsub.f32 %v130, %v792
  %v794 = vand.u32 %v793, 4294901760
  %v795 = vsub.f32 %v793, %v794
  %v796 = vand.u32 %v795, 4294901760
  %797 = vmatprep.subr.mxu0 %v796
  %v798 = vand.u32 %v129, 4294901760
  %v799 = vsub.f32 %v129, %v798
  %v800 = vand.u32 %v799, 4294901760
  %v801 = vsub.f32 %v799, %v800
  %v802 = vand.u32 %v801, 4294901760
  %803 = vmatpush1.msra.mxu0 %v802
  %v804 = vand.u32 %v128, 4294901760
  %v805 = vsub.f32 %v128, %v804
  %v806 = vand.u32 %v805, 4294901760
  %v807 = vsub.f32 %v805, %v806
  %v808 = vand.u32 %v807, 4294901760
  %809 = vmatprep.subr.mxu0 %v808
  %v810 = vand.u32 %v127, 4294901760
  %v811 = vsub.f32 %v127, %v810
  %v812 = vand.u32 %v811, 4294901760
  %v813 = vsub.f32 %v811, %v812
  %v814 = vand.u32 %v813, 4294901760
  %815 = vmatpush1.msra.mxu0 %v814
  %v816 = vand.u32 %v126, 4294901760
  %v817 = vsub.f32 %v126, %v816
  %v818 = vand.u32 %v817, 4294901760
  %v819 = vsub.f32 %v817, %v818
  %v820 = vand.u32 %v819, 4294901760
  %821 = vmatprep.subr.mxu0 %v820
  %v822 = vand.u32 %v125, 4294901760
  %v823 = vsub.f32 %v125, %v822
  %v824 = vand.u32 %v823, 4294901760
  %v825 = vsub.f32 %v823, %v824
  %v826 = vand.u32 %v825, 4294901760
  %827 = vmatpush1.msra.mxu0 %v826
  %v828 = vand.u32 %v124, 4294901760
  %v829 = vsub.f32 %v124, %v828
  %v830 = vand.u32 %v829, 4294901760
  %v831 = vsub.f32 %v829, %v830
  %v832 = vand.u32 %v831, 4294901760
  %833 = vmatprep.subr.mxu0 %v832
  %v834 = vand.u32 %v123, 4294901760
  %v835 = vsub.f32 %v123, %v834
  %v836 = vand.u32 %v835, 4294901760
  %v837 = vsub.f32 %v835, %v836
  %v838 = vand.u32 %v837, 4294901760
  %839 = vmatpush1.msra.mxu0 %v838
  %v840 = vand.u32 %v122, 4294901760
  %v841 = vsub.f32 %v122, %v840
  %v842 = vand.u32 %v841, 4294901760
  %v843 = vsub.f32 %v841, %v842
  %v844 = vand.u32 %v843, 4294901760
  %845 = vmatprep.subr.mxu0 %v844
  %v846 = vand.u32 %v121, 4294901760
  %v847 = vsub.f32 %v121, %v846
  %v848 = vand.u32 %v847, 4294901760
  %v849 = vsub.f32 %v847, %v848
  %v850 = vand.u32 %v849, 4294901760
  %851 = vmatpush1.msra.mxu0 %v850
  %v852 = vand.u32 %v120, 4294901760
  %v853 = vsub.f32 %v120, %v852
  %v854 = vand.u32 %v853, 4294901760
  %v855 = vsub.f32 %v853, %v854
  %v856 = vand.u32 %v855, 4294901760
  %857 = vmatprep.subr.mxu0 %v856
  %v858 = vand.u32 %v119, 4294901760
  %v859 = vsub.f32 %v119, %v858
  %v860 = vand.u32 %v859, 4294901760
  %v861 = vsub.f32 %v859, %v860
  %v862 = vand.u32 %v861, 4294901760
  %863 = vmatpush1.msra.mxu0 %v862
  %v864 = vand.u32 %v118, 4294901760
  %v865 = vsub.f32 %v118, %v864
  %v866 = vand.u32 %v865, 4294901760
  %v867 = vsub.f32 %v865, %v866
  %v868 = vand.u32 %v867, 4294901760
  %869 = vmatprep.subr.mxu0 %v868
  %v870 = vand.u32 %v117, 4294901760
  %v871 = vsub.f32 %v117, %v870
  %v872 = vand.u32 %v871, 4294901760
  %v873 = vsub.f32 %v871, %v872
  %v874 = vand.u32 %v873, 4294901760
  %875 = vmatpush1.msra.mxu0 %v874
  %v876 = vand.u32 %v116, 4294901760
  %v877 = vsub.f32 %v116, %v876
  %v878 = vand.u32 %v877, 4294901760
  %v879 = vsub.f32 %v877, %v878
  %v880 = vand.u32 %v879, 4294901760
  %881 = vmatprep.subr.mxu0 %v880
  %v882 = vand.u32 %v115, 4294901760
  %v883 = vsub.f32 %v115, %v882
  %v884 = vand.u32 %v883, 4294901760
  %v885 = vsub.f32 %v883, %v884
  %v886 = vand.u32 %v885, 4294901760
  %887 = vmatpush1.msra.mxu0 %v886
  %v888 = vand.u32 %v114, 4294901760
  %v889 = vsub.f32 %v114, %v888
  %v890 = vand.u32 %v889, 4294901760
  %v891 = vsub.f32 %v889, %v890
  %v892 = vand.u32 %v891, 4294901760
  %893 = vmatprep.subr.mxu0 %v892
  %v894 = vand.u32 %v113, 4294901760
  %v895 = vsub.f32 %v113, %v894
  %v896 = vand.u32 %v895, 4294901760
  %v897 = vsub.f32 %v895, %v896
  %v898 = vand.u32 %v897, 4294901760
  %899 = vmatpush1.msra.mxu0 %v898
  %v900 = vand.u32 %v112, 4294901760
  %v901 = vsub.f32 %v112, %v900
  %v902 = vand.u32 %v901, 4294901760
  %v903 = vsub.f32 %v901, %v902
  %v904 = vand.u32 %v903, 4294901760
  %905 = vmatprep.subr.mxu0 %v904
  %v906 = vand.u32 %v111, 4294901760
  %v907 = vsub.f32 %v111, %v906
  %v908 = vand.u32 %v907, 4294901760
  %v909 = vsub.f32 %v907, %v908
  %v910 = vand.u32 %v909, 4294901760
  %911 = vmatpush1.msra.mxu0 %v910
  %v912 = vand.u32 %v174, 4294901760
  %v913 = vsub.f32 %v174, %v912
  %v914 = vand.u32 %v913, 4294901760
  %v915 = vsub.f32 %v913, %v914
  %v916 = vand.u32 %v915, 4294901760
  %917 = vmatprep.subr.mxu0 %v916
  %v918 = vand.u32 %v173, 4294901760
  %v919 = vsub.f32 %v173, %v918
  %v920 = vand.u32 %v919, 4294901760
  %v921 = vsub.f32 %v919, %v920
  %v922 = vand.u32 %v921, 4294901760
  %923 = vmatpush2.msra.mxu0 %v922
  %v924 = vand.u32 %v172, 4294901760
  %v925 = vsub.f32 %v172, %v924
  %v926 = vand.u32 %v925, 4294901760
  %v927 = vsub.f32 %v925, %v926
  %v928 = vand.u32 %v927, 4294901760
  %929 = vmatprep.subr.mxu0 %v928
  %v930 = vand.u32 %v171, 4294901760
  %v931 = vsub.f32 %v171, %v930
  %v932 = vand.u32 %v931, 4294901760
  %v933 = vsub.f32 %v931, %v932
  %v934 = vand.u32 %v933, 4294901760
  %935 = vmatpush2.msra.mxu0 %v934
  %v936 = vand.u32 %v170, 4294901760
  %v937 = vsub.f32 %v170, %v936
  %v938 = vand.u32 %v937, 4294901760
  %v939 = vsub.f32 %v937, %v938
  %v940 = vand.u32 %v939, 4294901760
  %941 = vmatprep.subr.mxu0 %v940
  %v942 = vand.u32 %v169, 4294901760
  %v943 = vsub.f32 %v169, %v942
  %v944 = vand.u32 %v943, 4294901760
  %v945 = vsub.f32 %v943, %v944
  %v946 = vand.u32 %v945, 4294901760
  %947 = vmatpush2.msra.mxu0 %v946
  %v948 = vand.u32 %v168, 4294901760
  %v949 = vsub.f32 %v168, %v948
  %v950 = vand.u32 %v949, 4294901760
  %v951 = vsub.f32 %v949, %v950
  %v952 = vand.u32 %v951, 4294901760
  %953 = vmatprep.subr.mxu0 %v952
  %v954 = vand.u32 %v167, 4294901760
  %v955 = vsub.f32 %v167, %v954
  %v956 = vand.u32 %v955, 4294901760
  %v957 = vsub.f32 %v955, %v956
  %v958 = vand.u32 %v957, 4294901760
  %959 = vmatpush2.msra.mxu0 %v958
  %v960 = vand.u32 %v166, 4294901760
  %v961 = vsub.f32 %v166, %v960
  %v962 = vand.u32 %v961, 4294901760
  %v963 = vsub.f32 %v961, %v962
  %v964 = vand.u32 %v963, 4294901760
  %965 = vmatprep.subr.mxu0 %v964
  %v966 = vand.u32 %v165, 4294901760
  %v967 = vsub.f32 %v165, %v966
  %v968 = vand.u32 %v967, 4294901760
  %v969 = vsub.f32 %v967, %v968
  %v970 = vand.u32 %v969, 4294901760
  %971 = vmatpush2.msra.mxu0 %v970
  %v972 = vand.u32 %v164, 4294901760
  %v973 = vsub.f32 %v164, %v972
  %v974 = vand.u32 %v973, 4294901760
  %v975 = vsub.f32 %v973, %v974
  %v976 = vand.u32 %v975, 4294901760
  %977 = vmatprep.subr.mxu0 %v976
  %v978 = vand.u32 %v163, 4294901760
  %v979 = vsub.f32 %v163, %v978
  %v980 = vand.u32 %v979, 4294901760
  %v981 = vsub.f32 %v979, %v980
  %v982 = vand.u32 %v981, 4294901760
  %983 = vmatpush2.msra.mxu0 %v982
  %v984 = vand.u32 %v162, 4294901760
  %v985 = vsub.f32 %v162, %v984
  %v986 = vand.u32 %v985, 4294901760
  %v987 = vsub.f32 %v985, %v986
  %v988 = vand.u32 %v987, 4294901760
  %989 = vmatprep.subr.mxu0 %v988
  %v990 = vand.u32 %v161, 4294901760
  %v991 = vsub.f32 %v161, %v990
  %v992 = vand.u32 %v991, 4294901760
  %v993 = vsub.f32 %v991, %v992
  %v994 = vand.u32 %v993, 4294901760
  %995 = vmatpush2.msra.mxu0 %v994
  %v996 = vand.u32 %v160, 4294901760
  %v997 = vsub.f32 %v160, %v996
  %v998 = vand.u32 %v997, 4294901760
  %v999 = vsub.f32 %v997, %v998
  %v1000 = vand.u32 %v999, 4294901760
  %1001 = vmatprep.subr.mxu0 %v1000
  %v1002 = vand.u32 %v159, 4294901760
  %v1003 = vsub.f32 %v159, %v1002
  %v1004 = vand.u32 %v1003, 4294901760
  %v1005 = vsub.f32 %v1003, %v1004
  %v1006 = vand.u32 %v1005, 4294901760
  %1007 = vmatpush2.msra.mxu0 %v1006
  %v1008 = vand.u32 %v158, 4294901760
  %v1009 = vsub.f32 %v158, %v1008
  %v1010 = vand.u32 %v1009, 4294901760
  %v1011 = vsub.f32 %v1009, %v1010
  %v1012 = vand.u32 %v1011, 4294901760
  %1013 = vmatprep.subr.mxu0 %v1012
  %v1014 = vand.u32 %v157, 4294901760
  %v1015 = vsub.f32 %v157, %v1014
  %v1016 = vand.u32 %v1015, 4294901760
  %v1017 = vsub.f32 %v1015, %v1016
  %v1018 = vand.u32 %v1017, 4294901760
  %1019 = vmatpush2.msra.mxu0 %v1018
  %v1020 = vand.u32 %v156, 4294901760
  %v1021 = vsub.f32 %v156, %v1020
  %v1022 = vand.u32 %v1021, 4294901760
  %v1023 = vsub.f32 %v1021, %v1022
  %v1024 = vand.u32 %v1023, 4294901760
  %1025 = vmatprep.subr.mxu0 %v1024
  %v1026 = vand.u32 %v155, 4294901760
  %v1027 = vsub.f32 %v155, %v1026
  %v1028 = vand.u32 %v1027, 4294901760
  %v1029 = vsub.f32 %v1027, %v1028
  %v1030 = vand.u32 %v1029, 4294901760
  %1031 = vmatpush2.msra.mxu0 %v1030
  %v1032 = vand.u32 %v154, 4294901760
  %v1033 = vsub.f32 %v154, %v1032
  %v1034 = vand.u32 %v1033, 4294901760
  %v1035 = vsub.f32 %v1033, %v1034
  %v1036 = vand.u32 %v1035, 4294901760
  %1037 = vmatprep.subr.mxu0 %v1036
  %v1038 = vand.u32 %v153, 4294901760
  %v1039 = vsub.f32 %v153, %v1038
  %v1040 = vand.u32 %v1039, 4294901760
  %v1041 = vsub.f32 %v1039, %v1040
  %v1042 = vand.u32 %v1041, 4294901760
  %1043 = vmatpush2.msra.mxu0 %v1042
  %v1044 = vand.u32 %v152, 4294901760
  %v1045 = vsub.f32 %v152, %v1044
  %v1046 = vand.u32 %v1045, 4294901760
  %v1047 = vsub.f32 %v1045, %v1046
  %v1048 = vand.u32 %v1047, 4294901760
  %1049 = vmatprep.subr.mxu0 %v1048
  %v1050 = vand.u32 %v151, 4294901760
  %v1051 = vsub.f32 %v151, %v1050
  %v1052 = vand.u32 %v1051, 4294901760
  %v1053 = vsub.f32 %v1051, %v1052
  %v1054 = vand.u32 %v1053, 4294901760
  %1055 = vmatpush2.msra.mxu0 %v1054
  %v1056 = vand.u32 %v150, 4294901760
  %v1057 = vsub.f32 %v150, %v1056
  %v1058 = vand.u32 %v1057, 4294901760
  %v1059 = vsub.f32 %v1057, %v1058
  %v1060 = vand.u32 %v1059, 4294901760
  %1061 = vmatprep.subr.mxu0 %v1060
  %v1062 = vand.u32 %v149, 4294901760
  %v1063 = vsub.f32 %v149, %v1062
  %v1064 = vand.u32 %v1063, 4294901760
  %v1065 = vsub.f32 %v1063, %v1064
  %v1066 = vand.u32 %v1065, 4294901760
  %1067 = vmatpush2.msra.mxu0 %v1066
  %v1068 = vand.u32 %v148, 4294901760
  %v1069 = vsub.f32 %v148, %v1068
  %v1070 = vand.u32 %v1069, 4294901760
  %v1071 = vsub.f32 %v1069, %v1070
  %v1072 = vand.u32 %v1071, 4294901760
  %1073 = vmatprep.subr.mxu0 %v1072
  %v1074 = vand.u32 %v147, 4294901760
  %v1075 = vsub.f32 %v147, %v1074
  %v1076 = vand.u32 %v1075, 4294901760
  %v1077 = vsub.f32 %v1075, %v1076
  %v1078 = vand.u32 %v1077, 4294901760
  %1079 = vmatpush2.msra.mxu0 %v1078
  %v1080 = vand.u32 %v146, 4294901760
  %v1081 = vsub.f32 %v146, %v1080
  %v1082 = vand.u32 %v1081, 4294901760
  %v1083 = vsub.f32 %v1081, %v1082
  %v1084 = vand.u32 %v1083, 4294901760
  %1085 = vmatprep.subr.mxu0 %v1084
  %v1086 = vand.u32 %v145, 4294901760
  %v1087 = vsub.f32 %v145, %v1086
  %v1088 = vand.u32 %v1087, 4294901760
  %v1089 = vsub.f32 %v1087, %v1088
  %v1090 = vand.u32 %v1089, 4294901760
  %1091 = vmatpush2.msra.mxu0 %v1090
  %v1092 = vand.u32 %v144, 4294901760
  %v1093 = vsub.f32 %v144, %v1092
  %v1094 = vand.u32 %v1093, 4294901760
  %v1095 = vsub.f32 %v1093, %v1094
  %v1096 = vand.u32 %v1095, 4294901760
  %1097 = vmatprep.subr.mxu0 %v1096
  %v1098 = vand.u32 %v143, 4294901760
  %v1099 = vsub.f32 %v143, %v1098
  %v1100 = vand.u32 %v1099, 4294901760
  %v1101 = vsub.f32 %v1099, %v1100
  %v1102 = vand.u32 %v1101, 4294901760
  %1103 = vmatpush2.msra.mxu0 %v1102
  %v1104 = vand.u32 %v12, 4294901760
  %1105 = vmatprep.mubr.f32.mxu0 %v1104
  %v1106 = vand.u32 %v11, 4294901760
  %1107 = vmatmul.mubr.f32.gmra.mxu0 %v1106
  %v1108 = vpop.f32.mrf.mxu0
  %v1109 = vadd.f32 %v412, %v1108
  %v1110 = vpop.f32.mrf.mxu0
  %v1111 = vadd.f32 %v414, %v1110
  %v1112 = vand.u32 %v17, 4294901760
  %1113 = vmatprep.mubr.f32.mxu0 %v1112
  %v1114 = vand.u32 %v16, 4294901760
  %1115 = vmatmul.mubr.f32.gmra.mxu0 %v1114
  %v1116 = vpop.f32.mrf.mxu0
  %v1117 = vadd.f32 %v428, %v1116
  %v1118 = vpop.f32.mrf.mxu0
  %v1119 = vadd.f32 %v430, %v1118
  %v1120 = vand.u32 %v22, 4294901760
  %1121 = vmatprep.mubr.f32.mxu0 %v1120
  %v1122 = vand.u32 %v21, 4294901760
  %1123 = vmatmul.mubr.f32.gmra.mxu0 %v1122
  %v1124 = vpop.f32.mrf.mxu0
  %v1125 = vadd.f32 %v444, %v1124
  %v1126 = vpop.f32.mrf.mxu0
  %v1127 = vadd.f32 %v446, %v1126
  %v1128 = vand.u32 %v27, 4294901760
  %1129 = vmatprep.mubr.f32.mxu0 %v1128
  %v1130 = vand.u32 %v26, 4294901760
  %1131 = vmatmul.mubr.f32.gmra.mxu0 %v1130
  %v1132 = vpop.f32.mrf.mxu0
  %v1133 = vadd.f32 %v460, %v1132
  %v1134 = vpop.f32.mrf.mxu0
  %v1135 = vadd.f32 %v462, %v1134
  %v1136 = vand.u32 %v32, 4294901760
  %1137 = vmatprep.mubr.f32.mxu0 %v1136
  %v1138 = vand.u32 %v31, 4294901760
  %1139 = vmatmul.mubr.f32.gmra.mxu0 %v1138
  %v1140 = vpop.f32.mrf.mxu0
  %v1141 = vadd.f32 %v476, %v1140
  %v1142 = vpop.f32.mrf.mxu0
  %v1143 = vadd.f32 %v478, %v1142
  %v1144 = vand.u32 %v37, 4294901760
  %1145 = vmatprep.mubr.f32.mxu0 %v1144
  %v1146 = vand.u32 %v36, 4294901760
  %1147 = vmatmul.mubr.f32.gmra.mxu0 %v1146
  %v1148 = vpop.f32.mrf.mxu0
  %v1149 = vadd.f32 %v492, %v1148
  %v1150 = vpop.f32.mrf.mxu0
  %v1151 = vadd.f32 %v494, %v1150
  %v1152 = vand.u32 %v42, 4294901760
  %1153 = vmatprep.mubr.f32.mxu0 %v1152
  %v1154 = vand.u32 %v41, 4294901760
  %1155 = vmatmul.mubr.f32.gmra.mxu0 %v1154
  %v1156 = vpop.f32.mrf.mxu0
  %v1157 = vadd.f32 %v508, %v1156
  %v1158 = vpop.f32.mrf.mxu0
  %v1159 = vadd.f32 %v510, %v1158
  %v1160 = vand.u32 %v47, 4294901760
  %1161 = vmatprep.mubr.f32.mxu0 %v1160
  %v1162 = vand.u32 %v46, 4294901760
  %1163 = vmatmul.mubr.f32.gmra.mxu0 %v1162
  %v1164 = vpop.f32.mrf.mxu0
  %v1165 = vadd.f32 %v524, %v1164
  %v1166 = vpop.f32.mrf.mxu0
  %v1167 = vadd.f32 %v526, %v1166
  %v1168 = vand.u32 %v52, 4294901760
  %1169 = vmatprep.mubr.f32.mxu0 %v1168
  %v1170 = vand.u32 %v51, 4294901760
  %1171 = vmatmul.mubr.f32.gmra.mxu0 %v1170
  %v1172 = vpop.f32.mrf.mxu0
  %v1173 = vadd.f32 %v540, %v1172
  %v1174 = vpop.f32.mrf.mxu0
  %v1175 = vadd.f32 %v542, %v1174
  %v1176 = vand.u32 %v57, 4294901760
  %1177 = vmatprep.mubr.f32.mxu0 %v1176
  %v1178 = vand.u32 %v56, 4294901760
  %1179 = vmatmul.mubr.f32.gmra.mxu0 %v1178
  %v1180 = vpop.f32.mrf.mxu0
  %v1181 = vadd.f32 %v556, %v1180
  %v1182 = vpop.f32.mrf.mxu0
  %v1183 = vadd.f32 %v558, %v1182
  %v1184 = vand.u32 %v62, 4294901760
  %1185 = vmatprep.mubr.f32.mxu0 %v1184
  %v1186 = vand.u32 %v61, 4294901760
  %1187 = vmatmul.mubr.f32.gmra.mxu0 %v1186
  %v1188 = vpop.f32.mrf.mxu0
  %v1189 = vadd.f32 %v572, %v1188
  %v1190 = vpop.f32.mrf.mxu0
  %v1191 = vadd.f32 %v574, %v1190
  %v1192 = vand.u32 %v67, 4294901760
  %1193 = vmatprep.mubr.f32.mxu0 %v1192
  %v1194 = vand.u32 %v66, 4294901760
  %1195 = vmatmul.mubr.f32.gmra.mxu0 %v1194
  %v1196 = vpop.f32.mrf.mxu0
  %v1197 = vadd.f32 %v588, %v1196
  %v1198 = vpop.f32.mrf.mxu0
  %v1199 = vadd.f32 %v590, %v1198
  %v1200 = vand.u32 %v72, 4294901760
  %1201 = vmatprep.mubr.f32.mxu0 %v1200
  %v1202 = vand.u32 %v71, 4294901760
  %1203 = vmatmul.mubr.f32.gmra.mxu0 %v1202
  %v1204 = vpop.f32.mrf.mxu0
  %v1205 = vadd.f32 %v604, %v1204
  %v1206 = vpop.f32.mrf.mxu0
  %v1207 = vadd.f32 %v606, %v1206
  %v1208 = vand.u32 %v77, 4294901760
  %1209 = vmatprep.mubr.f32.mxu0 %v1208
  %v1210 = vand.u32 %v76, 4294901760
  %1211 = vmatmul.mubr.f32.gmra.mxu0 %v1210
  %v1212 = vpop.f32.mrf.mxu0
  %v1213 = vadd.f32 %v620, %v1212
  %v1214 = vpop.f32.mrf.mxu0
  %v1215 = vadd.f32 %v622, %v1214
  %v1216 = vand.u32 %v82, 4294901760
  %1217 = vmatprep.mubr.f32.mxu0 %v1216
  %v1218 = vand.u32 %v81, 4294901760
  %1219 = vmatmul.mubr.f32.gmra.mxu0 %v1218
  %v1220 = vpop.f32.mrf.mxu0
  %v1221 = vadd.f32 %v636, %v1220
  %v1222 = vpop.f32.mrf.mxu0
  %v1223 = vadd.f32 %v638, %v1222
  %v1224 = vand.u32 %v87, 4294901760
  %1225 = vmatprep.mubr.f32.mxu0 %v1224
  %v1226 = vand.u32 %v86, 4294901760
  %1227 = vmatmul.mubr.f32.gmra.mxu0 %v1226
  %v1228 = vpop.f32.mrf.mxu0
  %v1229 = vadd.f32 %v652, %v1228
  %v1230 = vpop.f32.mrf.mxu0
  %v1231 = vadd.f32 %v654, %v1230
  %v1232 = vand.u32 %v92, 4294901760
  %1233 = vmatprep.mubr.f32.mxu0 %v1232
  %v1234 = vand.u32 %v91, 4294901760
  %1235 = vmatmul.mubr.f32.gmra.mxu0 %v1234
  %v1236 = vpop.f32.mrf.mxu0
  %v1237 = vadd.f32 %v668, %v1236
  %v1238 = vpop.f32.mrf.mxu0
  %v1239 = vadd.f32 %v670, %v1238
  %v1240 = vand.u32 %v97, 4294901760
  %1241 = vmatprep.mubr.f32.mxu0 %v1240
  %v1242 = vand.u32 %v96, 4294901760
  %1243 = vmatmul.mubr.f32.gmra.mxu0 %v1242
  %v1244 = vpop.f32.mrf.mxu0
  %v1245 = vadd.f32 %v684, %v1244
  %v1246 = vpop.f32.mrf.mxu0
  %v1247 = vadd.f32 %v686, %v1246
  %v1248 = vand.u32 %v102, 4294901760
  %1249 = vmatprep.mubr.f32.mxu0 %v1248
  %v1250 = vand.u32 %v101, 4294901760
  %1251 = vmatmul.mubr.f32.gmra.mxu0 %v1250
  %v1252 = vpop.f32.mrf.mxu0
  %v1253 = vadd.f32 %v700, %v1252
  %v1254 = vpop.f32.mrf.mxu0
  %v1255 = vadd.f32 %v702, %v1254
  %v1256 = vand.u32 %v107, 4294901760
  %1257 = vmatprep.mubr.f32.mxu0 %v1256
  %v1258 = vand.u32 %v106, 4294901760
  %1259 = vmatmul.mubr.f32.gmra.mxu0 %v1258
  %v1260 = vpop.f32.mrf.mxu0
  %v1261 = vadd.f32 %v716, %v1260
  %v1262 = vpop.f32.mrf.mxu0
  %v1263 = vadd.f32 %v718, %v1262
  %1264 = vdwg.mxu0
  %v1265 = vand.u32 %v142, 4294901760
  %v1266 = vsub.f32 %v142, %v1265
  %1267 = vmatprep.subr.mxu0 %v1266
  %v1268 = vand.u32 %v141, 4294901760
  %v1269 = vsub.f32 %v141, %v1268
  %1270 = vmatpush1.msra.mxu0 %v1269
  %v1271 = vand.u32 %v140, 4294901760
  %v1272 = vsub.f32 %v140, %v1271
  %1273 = vmatprep.subr.mxu0 %v1272
  %v1274 = vand.u32 %v139, 4294901760
  %v1275 = vsub.f32 %v139, %v1274
  %1276 = vmatpush1.msra.mxu0 %v1275
  %v1277 = vand.u32 %v138, 4294901760
  %v1278 = vsub.f32 %v138, %v1277
  %1279 = vmatprep.subr.mxu0 %v1278
  %v1280 = vand.u32 %v137, 4294901760
  %v1281 = vsub.f32 %v137, %v1280
  %1282 = vmatpush1.msra.mxu0 %v1281
  %v1283 = vand.u32 %v136, 4294901760
  %v1284 = vsub.f32 %v136, %v1283
  %1285 = vmatprep.subr.mxu0 %v1284
  %v1286 = vand.u32 %v135, 4294901760
  %v1287 = vsub.f32 %v135, %v1286
  %1288 = vmatpush1.msra.mxu0 %v1287
  %v1289 = vand.u32 %v134, 4294901760
  %v1290 = vsub.f32 %v134, %v1289
  %1291 = vmatprep.subr.mxu0 %v1290
  %v1292 = vand.u32 %v133, 4294901760
  %v1293 = vsub.f32 %v133, %v1292
  %1294 = vmatpush1.msra.mxu0 %v1293
  %v1295 = vand.u32 %v132, 4294901760
  %v1296 = vsub.f32 %v132, %v1295
  %1297 = vmatprep.subr.mxu0 %v1296
  %v1298 = vand.u32 %v131, 4294901760
  %v1299 = vsub.f32 %v131, %v1298
  %1300 = vmatpush1.msra.mxu0 %v1299
  %v1301 = vand.u32 %v130, 4294901760
  %v1302 = vsub.f32 %v130, %v1301
  %1303 = vmatprep.subr.mxu0 %v1302
  %v1304 = vand.u32 %v129, 4294901760
  %v1305 = vsub.f32 %v129, %v1304
  %1306 = vmatpush1.msra.mxu0 %v1305
  %v1307 = vand.u32 %v128, 4294901760
  %v1308 = vsub.f32 %v128, %v1307
  %1309 = vmatprep.subr.mxu0 %v1308
  %v1310 = vand.u32 %v127, 4294901760
  %v1311 = vsub.f32 %v127, %v1310
  %1312 = vmatpush1.msra.mxu0 %v1311
  %v1313 = vand.u32 %v126, 4294901760
  %v1314 = vsub.f32 %v126, %v1313
  %1315 = vmatprep.subr.mxu0 %v1314
  %v1316 = vand.u32 %v125, 4294901760
  %v1317 = vsub.f32 %v125, %v1316
  %1318 = vmatpush1.msra.mxu0 %v1317
  %v1319 = vand.u32 %v124, 4294901760
  %v1320 = vsub.f32 %v124, %v1319
  %1321 = vmatprep.subr.mxu0 %v1320
  %v1322 = vand.u32 %v123, 4294901760
  %v1323 = vsub.f32 %v123, %v1322
  %1324 = vmatpush1.msra.mxu0 %v1323
  %v1325 = vand.u32 %v122, 4294901760
  %v1326 = vsub.f32 %v122, %v1325
  %1327 = vmatprep.subr.mxu0 %v1326
  %v1328 = vand.u32 %v121, 4294901760
  %v1329 = vsub.f32 %v121, %v1328
  %1330 = vmatpush1.msra.mxu0 %v1329
  %v1331 = vand.u32 %v120, 4294901760
  %v1332 = vsub.f32 %v120, %v1331
  %1333 = vmatprep.subr.mxu0 %v1332
  %v1334 = vand.u32 %v119, 4294901760
  %v1335 = vsub.f32 %v119, %v1334
  %1336 = vmatpush1.msra.mxu0 %v1335
  %v1337 = vand.u32 %v118, 4294901760
  %v1338 = vsub.f32 %v118, %v1337
  %1339 = vmatprep.subr.mxu0 %v1338
  %v1340 = vand.u32 %v117, 4294901760
  %v1341 = vsub.f32 %v117, %v1340
  %1342 = vmatpush1.msra.mxu0 %v1341
  %v1343 = vand.u32 %v116, 4294901760
  %v1344 = vsub.f32 %v116, %v1343
  %1345 = vmatprep.subr.mxu0 %v1344
  %v1346 = vand.u32 %v115, 4294901760
  %v1347 = vsub.f32 %v115, %v1346
  %1348 = vmatpush1.msra.mxu0 %v1347
  %v1349 = vand.u32 %v114, 4294901760
  %v1350 = vsub.f32 %v114, %v1349
  %1351 = vmatprep.subr.mxu0 %v1350
  %v1352 = vand.u32 %v113, 4294901760
  %v1353 = vsub.f32 %v113, %v1352
  %1354 = vmatpush1.msra.mxu0 %v1353
  %v1355 = vand.u32 %v112, 4294901760
  %v1356 = vsub.f32 %v112, %v1355
  %1357 = vmatprep.subr.mxu0 %v1356
  %v1358 = vand.u32 %v111, 4294901760
  %v1359 = vsub.f32 %v111, %v1358
  %1360 = vmatpush1.msra.mxu0 %v1359
  %v1361 = vand.u32 %v174, 4294901760
  %v1362 = vsub.f32 %v174, %v1361
  %1363 = vmatprep.subr.mxu0 %v1362
  %v1364 = vand.u32 %v173, 4294901760
  %v1365 = vsub.f32 %v173, %v1364
  %1366 = vmatpush2.msra.mxu0 %v1365
  %v1367 = vand.u32 %v172, 4294901760
  %v1368 = vsub.f32 %v172, %v1367
  %1369 = vmatprep.subr.mxu0 %v1368
  %v1370 = vand.u32 %v171, 4294901760
  %v1371 = vsub.f32 %v171, %v1370
  %1372 = vmatpush2.msra.mxu0 %v1371
  %v1373 = vand.u32 %v170, 4294901760
  %v1374 = vsub.f32 %v170, %v1373
  %1375 = vmatprep.subr.mxu0 %v1374
  %v1376 = vand.u32 %v169, 4294901760
  %v1377 = vsub.f32 %v169, %v1376
  %1378 = vmatpush2.msra.mxu0 %v1377
  %v1379 = vand.u32 %v168, 4294901760
  %v1380 = vsub.f32 %v168, %v1379
  %1381 = vmatprep.subr.mxu0 %v1380
  %v1382 = vand.u32 %v167, 4294901760
  %v1383 = vsub.f32 %v167, %v1382
  %1384 = vmatpush2.msra.mxu0 %v1383
  %v1385 = vand.u32 %v166, 4294901760
  %v1386 = vsub.f32 %v166, %v1385
  %1387 = vmatprep.subr.mxu0 %v1386
  %v1388 = vand.u32 %v165, 4294901760
  %v1389 = vsub.f32 %v165, %v1388
  %1390 = vmatpush2.msra.mxu0 %v1389
  %v1391 = vand.u32 %v164, 4294901760
  %v1392 = vsub.f32 %v164, %v1391
  %1393 = vmatprep.subr.mxu0 %v1392
  %v1394 = vand.u32 %v163, 4294901760
  %v1395 = vsub.f32 %v163, %v1394
  %1396 = vmatpush2.msra.mxu0 %v1395
  %v1397 = vand.u32 %v162, 4294901760
  %v1398 = vsub.f32 %v162, %v1397
  %1399 = vmatprep.subr.mxu0 %v1398
  %v1400 = vand.u32 %v161, 4294901760
  %v1401 = vsub.f32 %v161, %v1400
  %1402 = vmatpush2.msra.mxu0 %v1401
  %v1403 = vand.u32 %v160, 4294901760
  %v1404 = vsub.f32 %v160, %v1403
  %1405 = vmatprep.subr.mxu0 %v1404
  %v1406 = vand.u32 %v159, 4294901760
  %v1407 = vsub.f32 %v159, %v1406
  %1408 = vmatpush2.msra.mxu0 %v1407
  %v1409 = vand.u32 %v158, 4294901760
  %v1410 = vsub.f32 %v158, %v1409
  %1411 = vmatprep.subr.mxu0 %v1410
  %v1412 = vand.u32 %v157, 4294901760
  %v1413 = vsub.f32 %v157, %v1412
  %1414 = vmatpush2.msra.mxu0 %v1413
  %v1415 = vand.u32 %v156, 4294901760
  %v1416 = vsub.f32 %v156, %v1415
  %1417 = vmatprep.subr.mxu0 %v1416
  %v1418 = vand.u32 %v155, 4294901760
  %v1419 = vsub.f32 %v155, %v1418
  %1420 = vmatpush2.msra.mxu0 %v1419
  %v1421 = vand.u32 %v154, 4294901760
  %v1422 = vsub.f32 %v154, %v1421
  %1423 = vmatprep.subr.mxu0 %v1422
  %v1424 = vand.u32 %v153, 4294901760
  %v1425 = vsub.f32 %v153, %v1424
  %1426 = vmatpush2.msra.mxu0 %v1425
  %v1427 = vand.u32 %v152, 4294901760
  %v1428 = vsub.f32 %v152, %v1427
  %1429 = vmatprep.subr.mxu0 %v1428
  %v1430 = vand.u32 %v151, 4294901760
  %v1431 = vsub.f32 %v151, %v1430
  %1432 = vmatpush2.msra.mxu0 %v1431
  %v1433 = vand.u32 %v150, 4294901760
  %v1434 = vsub.f32 %v150, %v1433
  %1435 = vmatprep.subr.mxu0 %v1434
  %v1436 = vand.u32 %v149, 4294901760
  %v1437 = vsub.f32 %v149, %v1436
  %1438 = vmatpush2.msra.mxu0 %v1437
  %v1439 = vand.u32 %v148, 4294901760
  %v1440 = vsub.f32 %v148, %v1439
  %1441 = vmatprep.subr.mxu0 %v1440
  %v1442 = vand.u32 %v147, 4294901760
  %v1443 = vsub.f32 %v147, %v1442
  %1444 = vmatpush2.msra.mxu0 %v1443
  %v1445 = vand.u32 %v146, 4294901760
  %v1446 = vsub.f32 %v146, %v1445
  %1447 = vmatprep.subr.mxu0 %v1446
  %v1448 = vand.u32 %v145, 4294901760
  %v1449 = vsub.f32 %v145, %v1448
  %1450 = vmatpush2.msra.mxu0 %v1449
  %v1451 = vand.u32 %v144, 4294901760
  %v1452 = vsub.f32 %v144, %v1451
  %1453 = vmatprep.subr.mxu0 %v1452
  %v1454 = vand.u32 %v143, 4294901760
  %v1455 = vsub.f32 %v143, %v1454
  %1456 = vmatpush2.msra.mxu0 %v1455
  %v1457 = vand.u32 %v12, 4294901760
  %v1458 = vsub.f32 %v12, %v1457
  %1459 = vmatprep.mubr.f32.mxu0 %v1458
  %v1460 = vand.u32 %v11, 4294901760
  %v1461 = vsub.f32 %v11, %v1460
  %1462 = vmatmul.mubr.f32.gmra.mxu0 %v1461
  %v1463 = vpop.f32.mrf.mxu0
  %v1464 = vadd.f32 %v1109, %v1463
  %v1465 = vpop.f32.mrf.mxu0
  %v1466 = vadd.f32 %v1111, %v1465
  %v1467 = vand.u32 %v17, 4294901760
  %v1468 = vsub.f32 %v17, %v1467
  %1469 = vmatprep.mubr.f32.mxu0 %v1468
  %v1470 = vand.u32 %v16, 4294901760
  %v1471 = vsub.f32 %v16, %v1470
  %1472 = vmatmul.mubr.f32.gmra.mxu0 %v1471
  %v1473 = vpop.f32.mrf.mxu0
  %v1474 = vadd.f32 %v1117, %v1473
  %v1475 = vpop.f32.mrf.mxu0
  %v1476 = vadd.f32 %v1119, %v1475
  %v1477 = vand.u32 %v22, 4294901760
  %v1478 = vsub.f32 %v22, %v1477
  %1479 = vmatprep.mubr.f32.mxu0 %v1478
  %v1480 = vand.u32 %v21, 4294901760
  %v1481 = vsub.f32 %v21, %v1480
  %1482 = vmatmul.mubr.f32.gmra.mxu0 %v1481
  %v1483 = vpop.f32.mrf.mxu0
  %v1484 = vadd.f32 %v1125, %v1483
  %v1485 = vpop.f32.mrf.mxu0
  %v1486 = vadd.f32 %v1127, %v1485
  %v1487 = vand.u32 %v27, 4294901760
  %v1488 = vsub.f32 %v27, %v1487
  %1489 = vmatprep.mubr.f32.mxu0 %v1488
  %v1490 = vand.u32 %v26, 4294901760
  %v1491 = vsub.f32 %v26, %v1490
  %1492 = vmatmul.mubr.f32.gmra.mxu0 %v1491
  %v1493 = vpop.f32.mrf.mxu0
  %v1494 = vadd.f32 %v1133, %v1493
  %v1495 = vpop.f32.mrf.mxu0
  %v1496 = vadd.f32 %v1135, %v1495
  %v1497 = vand.u32 %v32, 4294901760
  %v1498 = vsub.f32 %v32, %v1497
  %1499 = vmatprep.mubr.f32.mxu0 %v1498
  %v1500 = vand.u32 %v31, 4294901760
  %v1501 = vsub.f32 %v31, %v1500
  %1502 = vmatmul.mubr.f32.gmra.mxu0 %v1501
  %v1503 = vpop.f32.mrf.mxu0
  %v1504 = vadd.f32 %v1141, %v1503
  %v1505 = vpop.f32.mrf.mxu0
  %v1506 = vadd.f32 %v1143, %v1505
  %v1507 = vand.u32 %v37, 4294901760
  %v1508 = vsub.f32 %v37, %v1507
  %1509 = vmatprep.mubr.f32.mxu0 %v1508
  %v1510 = vand.u32 %v36, 4294901760
  %v1511 = vsub.f32 %v36, %v1510
  %1512 = vmatmul.mubr.f32.gmra.mxu0 %v1511
  %v1513 = vpop.f32.mrf.mxu0
  %v1514 = vadd.f32 %v1149, %v1513
  %v1515 = vpop.f32.mrf.mxu0
  %v1516 = vadd.f32 %v1151, %v1515
  %v1517 = vand.u32 %v42, 4294901760
  %v1518 = vsub.f32 %v42, %v1517
  %1519 = vmatprep.mubr.f32.mxu0 %v1518
  %v1520 = vand.u32 %v41, 4294901760
  %v1521 = vsub.f32 %v41, %v1520
  %1522 = vmatmul.mubr.f32.gmra.mxu0 %v1521
  %v1523 = vpop.f32.mrf.mxu0
  %v1524 = vadd.f32 %v1157, %v1523
  %v1525 = vpop.f32.mrf.mxu0
  %v1526 = vadd.f32 %v1159, %v1525
  %v1527 = vand.u32 %v47, 4294901760
  %v1528 = vsub.f32 %v47, %v1527
  %1529 = vmatprep.mubr.f32.mxu0 %v1528
  %v1530 = vand.u32 %v46, 4294901760
  %v1531 = vsub.f32 %v46, %v1530
  %1532 = vmatmul.mubr.f32.gmra.mxu0 %v1531
  %v1533 = vpop.f32.mrf.mxu0
  %v1534 = vadd.f32 %v1165, %v1533
  %v1535 = vpop.f32.mrf.mxu0
  %v1536 = vadd.f32 %v1167, %v1535
  %v1537 = vand.u32 %v52, 4294901760
  %v1538 = vsub.f32 %v52, %v1537
  %1539 = vmatprep.mubr.f32.mxu0 %v1538
  %v1540 = vand.u32 %v51, 4294901760
  %v1541 = vsub.f32 %v51, %v1540
  %1542 = vmatmul.mubr.f32.gmra.mxu0 %v1541
  %v1543 = vpop.f32.mrf.mxu0
  %v1544 = vadd.f32 %v1173, %v1543
  %v1545 = vpop.f32.mrf.mxu0
  %v1546 = vadd.f32 %v1175, %v1545
  %v1547 = vand.u32 %v57, 4294901760
  %v1548 = vsub.f32 %v57, %v1547
  %1549 = vmatprep.mubr.f32.mxu0 %v1548
  %v1550 = vand.u32 %v56, 4294901760
  %v1551 = vsub.f32 %v56, %v1550
  %1552 = vmatmul.mubr.f32.gmra.mxu0 %v1551
  %v1553 = vpop.f32.mrf.mxu0
  %v1554 = vadd.f32 %v1181, %v1553
  %v1555 = vpop.f32.mrf.mxu0
  %v1556 = vadd.f32 %v1183, %v1555
  %v1557 = vand.u32 %v62, 4294901760
  %v1558 = vsub.f32 %v62, %v1557
  %1559 = vmatprep.mubr.f32.mxu0 %v1558
  %v1560 = vand.u32 %v61, 4294901760
  %v1561 = vsub.f32 %v61, %v1560
  %1562 = vmatmul.mubr.f32.gmra.mxu0 %v1561
  %v1563 = vpop.f32.mrf.mxu0
  %v1564 = vadd.f32 %v1189, %v1563
  %v1565 = vpop.f32.mrf.mxu0
  %v1566 = vadd.f32 %v1191, %v1565
  %v1567 = vand.u32 %v67, 4294901760
  %v1568 = vsub.f32 %v67, %v1567
  %1569 = vmatprep.mubr.f32.mxu0 %v1568
  %v1570 = vand.u32 %v66, 4294901760
  %v1571 = vsub.f32 %v66, %v1570
  %1572 = vmatmul.mubr.f32.gmra.mxu0 %v1571
  %v1573 = vpop.f32.mrf.mxu0
  %v1574 = vadd.f32 %v1197, %v1573
  %v1575 = vpop.f32.mrf.mxu0
  %v1576 = vadd.f32 %v1199, %v1575
  %v1577 = vand.u32 %v72, 4294901760
  %v1578 = vsub.f32 %v72, %v1577
  %1579 = vmatprep.mubr.f32.mxu0 %v1578
  %v1580 = vand.u32 %v71, 4294901760
  %v1581 = vsub.f32 %v71, %v1580
  %1582 = vmatmul.mubr.f32.gmra.mxu0 %v1581
  %v1583 = vpop.f32.mrf.mxu0
  %v1584 = vadd.f32 %v1205, %v1583
  %v1585 = vpop.f32.mrf.mxu0
  %v1586 = vadd.f32 %v1207, %v1585
  %v1587 = vand.u32 %v77, 4294901760
  %v1588 = vsub.f32 %v77, %v1587
  %1589 = vmatprep.mubr.f32.mxu0 %v1588
  %v1590 = vand.u32 %v76, 4294901760
  %v1591 = vsub.f32 %v76, %v1590
  %1592 = vmatmul.mubr.f32.gmra.mxu0 %v1591
  %v1593 = vpop.f32.mrf.mxu0
  %v1594 = vadd.f32 %v1213, %v1593
  %v1595 = vpop.f32.mrf.mxu0
  %v1596 = vadd.f32 %v1215, %v1595
  %v1597 = vand.u32 %v82, 4294901760
  %v1598 = vsub.f32 %v82, %v1597
  %1599 = vmatprep.mubr.f32.mxu0 %v1598
  %v1600 = vand.u32 %v81, 4294901760
  %v1601 = vsub.f32 %v81, %v1600
  %1602 = vmatmul.mubr.f32.gmra.mxu0 %v1601
  %v1603 = vpop.f32.mrf.mxu0
  %v1604 = vadd.f32 %v1221, %v1603
  %v1605 = vpop.f32.mrf.mxu0
  %v1606 = vadd.f32 %v1223, %v1605
  %v1607 = vand.u32 %v87, 4294901760
  %v1608 = vsub.f32 %v87, %v1607
  %1609 = vmatprep.mubr.f32.mxu0 %v1608
  %v1610 = vand.u32 %v86, 4294901760
  %v1611 = vsub.f32 %v86, %v1610
  %1612 = vmatmul.mubr.f32.gmra.mxu0 %v1611
  %v1613 = vpop.f32.mrf.mxu0
  %v1614 = vadd.f32 %v1229, %v1613
  %v1615 = vpop.f32.mrf.mxu0
  %v1616 = vadd.f32 %v1231, %v1615
  %v1617 = vand.u32 %v92, 4294901760
  %v1618 = vsub.f32 %v92, %v1617
  %1619 = vmatprep.mubr.f32.mxu0 %v1618
  %v1620 = vand.u32 %v91, 4294901760
  %v1621 = vsub.f32 %v91, %v1620
  %1622 = vmatmul.mubr.f32.gmra.mxu0 %v1621
  %v1623 = vpop.f32.mrf.mxu0
  %v1624 = vadd.f32 %v1237, %v1623
  %v1625 = vpop.f32.mrf.mxu0
  %v1626 = vadd.f32 %v1239, %v1625
  %v1627 = vand.u32 %v97, 4294901760
  %v1628 = vsub.f32 %v97, %v1627
  %1629 = vmatprep.mubr.f32.mxu0 %v1628
  %v1630 = vand.u32 %v96, 4294901760
  %v1631 = vsub.f32 %v96, %v1630
  %1632 = vmatmul.mubr.f32.gmra.mxu0 %v1631
  %v1633 = vpop.f32.mrf.mxu0
  %v1634 = vadd.f32 %v1245, %v1633
  %v1635 = vpop.f32.mrf.mxu0
  %v1636 = vadd.f32 %v1247, %v1635
  %v1637 = vand.u32 %v102, 4294901760
  %v1638 = vsub.f32 %v102, %v1637
  %1639 = vmatprep.mubr.f32.mxu0 %v1638
  %v1640 = vand.u32 %v101, 4294901760
  %v1641 = vsub.f32 %v101, %v1640
  %1642 = vmatmul.mubr.f32.gmra.mxu0 %v1641
  %v1643 = vpop.f32.mrf.mxu0
  %v1644 = vadd.f32 %v1253, %v1643
  %v1645 = vpop.f32.mrf.mxu0
  %v1646 = vadd.f32 %v1255, %v1645
  %v1647 = vand.u32 %v107, 4294901760
  %v1648 = vsub.f32 %v107, %v1647
  %1649 = vmatprep.mubr.f32.mxu0 %v1648
  %v1650 = vand.u32 %v106, 4294901760
  %v1651 = vsub.f32 %v106, %v1650
  %1652 = vmatmul.mubr.f32.gmra.mxu0 %v1651
  %v1653 = vpop.f32.mrf.mxu0
  %v1654 = vadd.f32 %v1261, %v1653
  %v1655 = vpop.f32.mrf.mxu0
  %v1656 = vadd.f32 %v1263, %v1655
  %1657 = vdwg.mxu0
  %v1658 = vand.u32 %v142, 4294901760
  %1659 = vmatprep.subr.mxu0 %v1658
  %v1660 = vand.u32 %v141, 4294901760
  %1661 = vmatpush1.msra.mxu0 %v1660
  %v1662 = vand.u32 %v140, 4294901760
  %1663 = vmatprep.subr.mxu0 %v1662
  %v1664 = vand.u32 %v139, 4294901760
  %1665 = vmatpush1.msra.mxu0 %v1664
  %v1666 = vand.u32 %v138, 4294901760
  %1667 = vmatprep.subr.mxu0 %v1666
  %v1668 = vand.u32 %v137, 4294901760
  %1669 = vmatpush1.msra.mxu0 %v1668
  %v1670 = vand.u32 %v136, 4294901760
  %1671 = vmatprep.subr.mxu0 %v1670
  %v1672 = vand.u32 %v135, 4294901760
  %1673 = vmatpush1.msra.mxu0 %v1672
  %v1674 = vand.u32 %v134, 4294901760
  %1675 = vmatprep.subr.mxu0 %v1674
  %v1676 = vand.u32 %v133, 4294901760
  %1677 = vmatpush1.msra.mxu0 %v1676
  %v1678 = vand.u32 %v132, 4294901760
  %1679 = vmatprep.subr.mxu0 %v1678
  %v1680 = vand.u32 %v131, 4294901760
  %1681 = vmatpush1.msra.mxu0 %v1680
  %v1682 = vand.u32 %v130, 4294901760
  %1683 = vmatprep.subr.mxu0 %v1682
  %v1684 = vand.u32 %v129, 4294901760
  %1685 = vmatpush1.msra.mxu0 %v1684
  %v1686 = vand.u32 %v128, 4294901760
  %1687 = vmatprep.subr.mxu0 %v1686
  %v1688 = vand.u32 %v127, 4294901760
  %1689 = vmatpush1.msra.mxu0 %v1688
  %v1690 = vand.u32 %v126, 4294901760
  %1691 = vmatprep.subr.mxu0 %v1690
  %v1692 = vand.u32 %v125, 4294901760
  %1693 = vmatpush1.msra.mxu0 %v1692
  %v1694 = vand.u32 %v124, 4294901760
  %1695 = vmatprep.subr.mxu0 %v1694
  %v1696 = vand.u32 %v123, 4294901760
  %1697 = vmatpush1.msra.mxu0 %v1696
  %v1698 = vand.u32 %v122, 4294901760
  %1699 = vmatprep.subr.mxu0 %v1698
  %v1700 = vand.u32 %v121, 4294901760
  %1701 = vmatpush1.msra.mxu0 %v1700
  %v1702 = vand.u32 %v120, 4294901760
  %1703 = vmatprep.subr.mxu0 %v1702
  %v1704 = vand.u32 %v119, 4294901760
  %1705 = vmatpush1.msra.mxu0 %v1704
  %v1706 = vand.u32 %v118, 4294901760
  %1707 = vmatprep.subr.mxu0 %v1706
  %v1708 = vand.u32 %v117, 4294901760
  %1709 = vmatpush1.msra.mxu0 %v1708
  %v1710 = vand.u32 %v116, 4294901760
  %1711 = vmatprep.subr.mxu0 %v1710
  %v1712 = vand.u32 %v115, 4294901760
  %1713 = vmatpush1.msra.mxu0 %v1712
  %v1714 = vand.u32 %v114, 4294901760
  %1715 = vmatprep.subr.mxu0 %v1714
  %v1716 = vand.u32 %v113, 4294901760
  %1717 = vmatpush1.msra.mxu0 %v1716
  %v1718 = vand.u32 %v112, 4294901760
  %1719 = vmatprep.subr.mxu0 %v1718
  %v1720 = vand.u32 %v111, 4294901760
  %1721 = vmatpush1.msra.mxu0 %v1720
  %v1722 = vand.u32 %v174, 4294901760
  %1723 = vmatprep.subr.mxu0 %v1722
  %v1724 = vand.u32 %v173, 4294901760
  %1725 = vmatpush2.msra.mxu0 %v1724
  %v1726 = vand.u32 %v172, 4294901760
  %1727 = vmatprep.subr.mxu0 %v1726
  %v1728 = vand.u32 %v171, 4294901760
  %1729 = vmatpush2.msra.mxu0 %v1728
  %v1730 = vand.u32 %v170, 4294901760
  %1731 = vmatprep.subr.mxu0 %v1730
  %v1732 = vand.u32 %v169, 4294901760
  %1733 = vmatpush2.msra.mxu0 %v1732
  %v1734 = vand.u32 %v168, 4294901760
  %1735 = vmatprep.subr.mxu0 %v1734
  %v1736 = vand.u32 %v167, 4294901760
  %1737 = vmatpush2.msra.mxu0 %v1736
  %v1738 = vand.u32 %v166, 4294901760
  %1739 = vmatprep.subr.mxu0 %v1738
  %v1740 = vand.u32 %v165, 4294901760
  %1741 = vmatpush2.msra.mxu0 %v1740
  %v1742 = vand.u32 %v164, 4294901760
  %1743 = vmatprep.subr.mxu0 %v1742
  %v1744 = vand.u32 %v163, 4294901760
  %1745 = vmatpush2.msra.mxu0 %v1744
  %v1746 = vand.u32 %v162, 4294901760
  %1747 = vmatprep.subr.mxu0 %v1746
  %v1748 = vand.u32 %v161, 4294901760
  %1749 = vmatpush2.msra.mxu0 %v1748
  %v1750 = vand.u32 %v160, 4294901760
  %1751 = vmatprep.subr.mxu0 %v1750
  %v1752 = vand.u32 %v159, 4294901760
  %1753 = vmatpush2.msra.mxu0 %v1752
  %v1754 = vand.u32 %v158, 4294901760
  %1755 = vmatprep.subr.mxu0 %v1754
  %v1756 = vand.u32 %v157, 4294901760
  %1757 = vmatpush2.msra.mxu0 %v1756
  %v1758 = vand.u32 %v156, 4294901760
  %1759 = vmatprep.subr.mxu0 %v1758
  %v1760 = vand.u32 %v155, 4294901760
  %1761 = vmatpush2.msra.mxu0 %v1760
  %v1762 = vand.u32 %v154, 4294901760
  %1763 = vmatprep.subr.mxu0 %v1762
  %v1764 = vand.u32 %v153, 4294901760
  %1765 = vmatpush2.msra.mxu0 %v1764
  %v1766 = vand.u32 %v152, 4294901760
  %1767 = vmatprep.subr.mxu0 %v1766
  %v1768 = vand.u32 %v151, 4294901760
  %1769 = vmatpush2.msra.mxu0 %v1768
  %v1770 = vand.u32 %v150, 4294901760
  %1771 = vmatprep.subr.mxu0 %v1770
  %v1772 = vand.u32 %v149, 4294901760
  %1773 = vmatpush2.msra.mxu0 %v1772
  %v1774 = vand.u32 %v148, 4294901760
  %1775 = vmatprep.subr.mxu0 %v1774
  %v1776 = vand.u32 %v147, 4294901760
  %1777 = vmatpush2.msra.mxu0 %v1776
  %v1778 = vand.u32 %v146, 4294901760
  %1779 = vmatprep.subr.mxu0 %v1778
  %v1780 = vand.u32 %v145, 4294901760
  %1781 = vmatpush2.msra.mxu0 %v1780
  %v1782 = vand.u32 %v144, 4294901760
  %1783 = vmatprep.subr.mxu0 %v1782
  %v1784 = vand.u32 %v143, 4294901760
  %1785 = vmatpush2.msra.mxu0 %v1784
  %v1786 = vand.u32 %v12, 4294901760
  %v1787 = vsub.f32 %v12, %v1786
  %v1788 = vand.u32 %v1787, 4294901760
  %1789 = vmatprep.mubr.f32.mxu0 %v1788
  %v1790 = vand.u32 %v11, 4294901760
  %v1791 = vsub.f32 %v11, %v1790
  %v1792 = vand.u32 %v1791, 4294901760
  %1793 = vmatmul.mubr.f32.gmra.mxu0 %v1792
  %v1794 = vpop.f32.mrf.mxu0
  %v1795 = vadd.f32 %v1464, %v1794
  %v1796 = vpop.f32.mrf.mxu0
  %v1797 = vadd.f32 %v1466, %v1796
  %v1798 = vand.u32 %v17, 4294901760
  %v1799 = vsub.f32 %v17, %v1798
  %v1800 = vand.u32 %v1799, 4294901760
  %1801 = vmatprep.mubr.f32.mxu0 %v1800
  %v1802 = vand.u32 %v16, 4294901760
  %v1803 = vsub.f32 %v16, %v1802
  %v1804 = vand.u32 %v1803, 4294901760
  %1805 = vmatmul.mubr.f32.gmra.mxu0 %v1804
  %v1806 = vpop.f32.mrf.mxu0
  %v1807 = vadd.f32 %v1474, %v1806
  %v1808 = vpop.f32.mrf.mxu0
  %v1809 = vadd.f32 %v1476, %v1808
  %v1810 = vand.u32 %v22, 4294901760
  %v1811 = vsub.f32 %v22, %v1810
  %v1812 = vand.u32 %v1811, 4294901760
  %1813 = vmatprep.mubr.f32.mxu0 %v1812
  %v1814 = vand.u32 %v21, 4294901760
  %v1815 = vsub.f32 %v21, %v1814
  %v1816 = vand.u32 %v1815, 4294901760
  %1817 = vmatmul.mubr.f32.gmra.mxu0 %v1816
  %v1818 = vpop.f32.mrf.mxu0
  %v1819 = vadd.f32 %v1484, %v1818
  %v1820 = vpop.f32.mrf.mxu0
  %v1821 = vadd.f32 %v1486, %v1820
  %v1822 = vand.u32 %v27, 4294901760
  %v1823 = vsub.f32 %v27, %v1822
  %v1824 = vand.u32 %v1823, 4294901760
  %1825 = vmatprep.mubr.f32.mxu0 %v1824
  %v1826 = vand.u32 %v26, 4294901760
  %v1827 = vsub.f32 %v26, %v1826
  %v1828 = vand.u32 %v1827, 4294901760
  %1829 = vmatmul.mubr.f32.gmra.mxu0 %v1828
  %v1830 = vpop.f32.mrf.mxu0
  %v1831 = vadd.f32 %v1494, %v1830
  %v1832 = vpop.f32.mrf.mxu0
  %v1833 = vadd.f32 %v1496, %v1832
  %v1834 = vand.u32 %v32, 4294901760
  %v1835 = vsub.f32 %v32, %v1834
  %v1836 = vand.u32 %v1835, 4294901760
  %1837 = vmatprep.mubr.f32.mxu0 %v1836
  %v1838 = vand.u32 %v31, 4294901760
  %v1839 = vsub.f32 %v31, %v1838
  %v1840 = vand.u32 %v1839, 4294901760
  %1841 = vmatmul.mubr.f32.gmra.mxu0 %v1840
  %v1842 = vpop.f32.mrf.mxu0
  %v1843 = vadd.f32 %v1504, %v1842
  %v1844 = vpop.f32.mrf.mxu0
  %v1845 = vadd.f32 %v1506, %v1844
  %v1846 = vand.u32 %v37, 4294901760
  %v1847 = vsub.f32 %v37, %v1846
  %v1848 = vand.u32 %v1847, 4294901760
  %1849 = vmatprep.mubr.f32.mxu0 %v1848
  %v1850 = vand.u32 %v36, 4294901760
  %v1851 = vsub.f32 %v36, %v1850
  %v1852 = vand.u32 %v1851, 4294901760
  %1853 = vmatmul.mubr.f32.gmra.mxu0 %v1852
  %v1854 = vpop.f32.mrf.mxu0
  %v1855 = vadd.f32 %v1514, %v1854
  %v1856 = vpop.f32.mrf.mxu0
  %v1857 = vadd.f32 %v1516, %v1856
  %v1858 = vand.u32 %v42, 4294901760
  %v1859 = vsub.f32 %v42, %v1858
  %v1860 = vand.u32 %v1859, 4294901760
  %1861 = vmatprep.mubr.f32.mxu0 %v1860
  %v1862 = vand.u32 %v41, 4294901760
  %v1863 = vsub.f32 %v41, %v1862
  %v1864 = vand.u32 %v1863, 4294901760
  %1865 = vmatmul.mubr.f32.gmra.mxu0 %v1864
  %v1866 = vpop.f32.mrf.mxu0
  %v1867 = vadd.f32 %v1524, %v1866
  %v1868 = vpop.f32.mrf.mxu0
  %v1869 = vadd.f32 %v1526, %v1868
  %v1870 = vand.u32 %v47, 4294901760
  %v1871 = vsub.f32 %v47, %v1870
  %v1872 = vand.u32 %v1871, 4294901760
  %1873 = vmatprep.mubr.f32.mxu0 %v1872
  %v1874 = vand.u32 %v46, 4294901760
  %v1875 = vsub.f32 %v46, %v1874
  %v1876 = vand.u32 %v1875, 4294901760
  %1877 = vmatmul.mubr.f32.gmra.mxu0 %v1876
  %v1878 = vpop.f32.mrf.mxu0
  %v1879 = vadd.f32 %v1534, %v1878
  %v1880 = vpop.f32.mrf.mxu0
  %v1881 = vadd.f32 %v1536, %v1880
  %v1882 = vand.u32 %v52, 4294901760
  %v1883 = vsub.f32 %v52, %v1882
  %v1884 = vand.u32 %v1883, 4294901760
  %1885 = vmatprep.mubr.f32.mxu0 %v1884
  %v1886 = vand.u32 %v51, 4294901760
  %v1887 = vsub.f32 %v51, %v1886
  %v1888 = vand.u32 %v1887, 4294901760
  %1889 = vmatmul.mubr.f32.gmra.mxu0 %v1888
  %v1890 = vpop.f32.mrf.mxu0
  %v1891 = vadd.f32 %v1544, %v1890
  %v1892 = vpop.f32.mrf.mxu0
  %v1893 = vadd.f32 %v1546, %v1892
  %v1894 = vand.u32 %v57, 4294901760
  %v1895 = vsub.f32 %v57, %v1894
  %v1896 = vand.u32 %v1895, 4294901760
  %1897 = vmatprep.mubr.f32.mxu0 %v1896
  %v1898 = vand.u32 %v56, 4294901760
  %v1899 = vsub.f32 %v56, %v1898
  %v1900 = vand.u32 %v1899, 4294901760
  %1901 = vmatmul.mubr.f32.gmra.mxu0 %v1900
  %v1902 = vpop.f32.mrf.mxu0
  %v1903 = vadd.f32 %v1554, %v1902
  %v1904 = vpop.f32.mrf.mxu0
  %v1905 = vadd.f32 %v1556, %v1904
  %v1906 = vand.u32 %v62, 4294901760
  %v1907 = vsub.f32 %v62, %v1906
  %v1908 = vand.u32 %v1907, 4294901760
  %1909 = vmatprep.mubr.f32.mxu0 %v1908
  %v1910 = vand.u32 %v61, 4294901760
  %v1911 = vsub.f32 %v61, %v1910
  %v1912 = vand.u32 %v1911, 4294901760
  %1913 = vmatmul.mubr.f32.gmra.mxu0 %v1912
  %v1914 = vpop.f32.mrf.mxu0
  %v1915 = vadd.f32 %v1564, %v1914
  %v1916 = vpop.f32.mrf.mxu0
  %v1917 = vadd.f32 %v1566, %v1916
  %v1918 = vand.u32 %v67, 4294901760
  %v1919 = vsub.f32 %v67, %v1918
  %v1920 = vand.u32 %v1919, 4294901760
  %1921 = vmatprep.mubr.f32.mxu0 %v1920
  %v1922 = vand.u32 %v66, 4294901760
  %v1923 = vsub.f32 %v66, %v1922
  %v1924 = vand.u32 %v1923, 4294901760
  %1925 = vmatmul.mubr.f32.gmra.mxu0 %v1924
  %v1926 = vpop.f32.mrf.mxu0
  %v1927 = vadd.f32 %v1574, %v1926
  %v1928 = vpop.f32.mrf.mxu0
  %v1929 = vadd.f32 %v1576, %v1928
  %v1930 = vand.u32 %v72, 4294901760
  %v1931 = vsub.f32 %v72, %v1930
  %v1932 = vand.u32 %v1931, 4294901760
  %1933 = vmatprep.mubr.f32.mxu0 %v1932
  %v1934 = vand.u32 %v71, 4294901760
  %v1935 = vsub.f32 %v71, %v1934
  %v1936 = vand.u32 %v1935, 4294901760
  %1937 = vmatmul.mubr.f32.gmra.mxu0 %v1936
  %v1938 = vpop.f32.mrf.mxu0
  %v1939 = vadd.f32 %v1584, %v1938
  %v1940 = vpop.f32.mrf.mxu0
  %v1941 = vadd.f32 %v1586, %v1940
  %v1942 = vand.u32 %v77, 4294901760
  %v1943 = vsub.f32 %v77, %v1942
  %v1944 = vand.u32 %v1943, 4294901760
  %1945 = vmatprep.mubr.f32.mxu0 %v1944
  %v1946 = vand.u32 %v76, 4294901760
  %v1947 = vsub.f32 %v76, %v1946
  %v1948 = vand.u32 %v1947, 4294901760
  %1949 = vmatmul.mubr.f32.gmra.mxu0 %v1948
  %v1950 = vpop.f32.mrf.mxu0
  %v1951 = vadd.f32 %v1594, %v1950
  %v1952 = vpop.f32.mrf.mxu0
  %v1953 = vadd.f32 %v1596, %v1952
  %v1954 = vand.u32 %v82, 4294901760
  %v1955 = vsub.f32 %v82, %v1954
  %v1956 = vand.u32 %v1955, 4294901760
  %1957 = vmatprep.mubr.f32.mxu0 %v1956
  %v1958 = vand.u32 %v81, 4294901760
  %v1959 = vsub.f32 %v81, %v1958
  %v1960 = vand.u32 %v1959, 4294901760
  %1961 = vmatmul.mubr.f32.gmra.mxu0 %v1960
  %v1962 = vpop.f32.mrf.mxu0
  %v1963 = vadd.f32 %v1604, %v1962
  %v1964 = vpop.f32.mrf.mxu0
  %v1965 = vadd.f32 %v1606, %v1964
  %v1966 = vand.u32 %v87, 4294901760
  %v1967 = vsub.f32 %v87, %v1966
  %v1968 = vand.u32 %v1967, 4294901760
  %1969 = vmatprep.mubr.f32.mxu0 %v1968
  %v1970 = vand.u32 %v86, 4294901760
  %v1971 = vsub.f32 %v86, %v1970
  %v1972 = vand.u32 %v1971, 4294901760
  %1973 = vmatmul.mubr.f32.gmra.mxu0 %v1972
  %v1974 = vpop.f32.mrf.mxu0
  %v1975 = vadd.f32 %v1614, %v1974
  %v1976 = vpop.f32.mrf.mxu0
  %v1977 = vadd.f32 %v1616, %v1976
  %v1978 = vand.u32 %v92, 4294901760
  %v1979 = vsub.f32 %v92, %v1978
  %v1980 = vand.u32 %v1979, 4294901760
  %1981 = vmatprep.mubr.f32.mxu0 %v1980
  %v1982 = vand.u32 %v91, 4294901760
  %v1983 = vsub.f32 %v91, %v1982
  %v1984 = vand.u32 %v1983, 4294901760
  %1985 = vmatmul.mubr.f32.gmra.mxu0 %v1984
  %v1986 = vpop.f32.mrf.mxu0
  %v1987 = vadd.f32 %v1624, %v1986
  %v1988 = vpop.f32.mrf.mxu0
  %v1989 = vadd.f32 %v1626, %v1988
  %v1990 = vand.u32 %v97, 4294901760
  %v1991 = vsub.f32 %v97, %v1990
  %v1992 = vand.u32 %v1991, 4294901760
  %1993 = vmatprep.mubr.f32.mxu0 %v1992
  %v1994 = vand.u32 %v96, 4294901760
  %v1995 = vsub.f32 %v96, %v1994
  %v1996 = vand.u32 %v1995, 4294901760
  %1997 = vmatmul.mubr.f32.gmra.mxu0 %v1996
  %v1998 = vpop.f32.mrf.mxu0
  %v1999 = vadd.f32 %v1634, %v1998
  %v2000 = vpop.f32.mrf.mxu0
  %v2001 = vadd.f32 %v1636, %v2000
  %v2002 = vand.u32 %v102, 4294901760
  %v2003 = vsub.f32 %v102, %v2002
  %v2004 = vand.u32 %v2003, 4294901760
  %2005 = vmatprep.mubr.f32.mxu0 %v2004
  %v2006 = vand.u32 %v101, 4294901760
  %v2007 = vsub.f32 %v101, %v2006
  %v2008 = vand.u32 %v2007, 4294901760
  %2009 = vmatmul.mubr.f32.gmra.mxu0 %v2008
  %v2010 = vpop.f32.mrf.mxu0
  %v2011 = vadd.f32 %v1644, %v2010
  %v2012 = vpop.f32.mrf.mxu0
  %v2013 = vadd.f32 %v1646, %v2012
  %v2014 = vand.u32 %v107, 4294901760
  %v2015 = vsub.f32 %v107, %v2014
  %v2016 = vand.u32 %v2015, 4294901760
  %2017 = vmatprep.mubr.f32.mxu0 %v2016
  %v2018 = vand.u32 %v106, 4294901760
  %v2019 = vsub.f32 %v106, %v2018
  %v2020 = vand.u32 %v2019, 4294901760
  %2021 = vmatmul.mubr.f32.gmra.mxu0 %v2020
  %v2022 = vpop.f32.mrf.mxu0
  %v2023 = vadd.f32 %v1654, %v2022
  %v2024 = vpop.f32.mrf.mxu0
  %v2025 = vadd.f32 %v1656, %v2024
  %2026 = vdwg.mxu0
  %v2027 = vand.u32 %v142, 4294901760
  %v2028 = vsub.f32 %v142, %v2027
  %v2029 = vand.u32 %v2028, 4294901760
  %2030 = vmatprep.subr.mxu0 %v2029
  %v2031 = vand.u32 %v141, 4294901760
  %v2032 = vsub.f32 %v141, %v2031
  %v2033 = vand.u32 %v2032, 4294901760
  %2034 = vmatpush1.msra.mxu0 %v2033
  %v2035 = vand.u32 %v140, 4294901760
  %v2036 = vsub.f32 %v140, %v2035
  %v2037 = vand.u32 %v2036, 4294901760
  %2038 = vmatprep.subr.mxu0 %v2037
  %v2039 = vand.u32 %v139, 4294901760
  %v2040 = vsub.f32 %v139, %v2039
  %v2041 = vand.u32 %v2040, 4294901760
  %2042 = vmatpush1.msra.mxu0 %v2041
  %v2043 = vand.u32 %v138, 4294901760
  %v2044 = vsub.f32 %v138, %v2043
  %v2045 = vand.u32 %v2044, 4294901760
  %2046 = vmatprep.subr.mxu0 %v2045
  %v2047 = vand.u32 %v137, 4294901760
  %v2048 = vsub.f32 %v137, %v2047
  %v2049 = vand.u32 %v2048, 4294901760
  %2050 = vmatpush1.msra.mxu0 %v2049
  %v2051 = vand.u32 %v136, 4294901760
  %v2052 = vsub.f32 %v136, %v2051
  %v2053 = vand.u32 %v2052, 4294901760
  %2054 = vmatprep.subr.mxu0 %v2053
  %v2055 = vand.u32 %v135, 4294901760
  %v2056 = vsub.f32 %v135, %v2055
  %v2057 = vand.u32 %v2056, 4294901760
  %2058 = vmatpush1.msra.mxu0 %v2057
  %v2059 = vand.u32 %v134, 4294901760
  %v2060 = vsub.f32 %v134, %v2059
  %v2061 = vand.u32 %v2060, 4294901760
  %2062 = vmatprep.subr.mxu0 %v2061
  %v2063 = vand.u32 %v133, 4294901760
  %v2064 = vsub.f32 %v133, %v2063
  %v2065 = vand.u32 %v2064, 4294901760
  %2066 = vmatpush1.msra.mxu0 %v2065
  %v2067 = vand.u32 %v132, 4294901760
  %v2068 = vsub.f32 %v132, %v2067
  %v2069 = vand.u32 %v2068, 4294901760
  %2070 = vmatprep.subr.mxu0 %v2069
  %v2071 = vand.u32 %v131, 4294901760
  %v2072 = vsub.f32 %v131, %v2071
  %v2073 = vand.u32 %v2072, 4294901760
  %2074 = vmatpush1.msra.mxu0 %v2073
  %v2075 = vand.u32 %v130, 4294901760
  %v2076 = vsub.f32 %v130, %v2075
  %v2077 = vand.u32 %v2076, 4294901760
  %2078 = vmatprep.subr.mxu0 %v2077
  %v2079 = vand.u32 %v129, 4294901760
  %v2080 = vsub.f32 %v129, %v2079
  %v2081 = vand.u32 %v2080, 4294901760
  %2082 = vmatpush1.msra.mxu0 %v2081
  %v2083 = vand.u32 %v128, 4294901760
  %v2084 = vsub.f32 %v128, %v2083
  %v2085 = vand.u32 %v2084, 4294901760
  %2086 = vmatprep.subr.mxu0 %v2085
  %v2087 = vand.u32 %v127, 4294901760
  %v2088 = vsub.f32 %v127, %v2087
  %v2089 = vand.u32 %v2088, 4294901760
  %2090 = vmatpush1.msra.mxu0 %v2089
  %v2091 = vand.u32 %v126, 4294901760
  %v2092 = vsub.f32 %v126, %v2091
  %v2093 = vand.u32 %v2092, 4294901760
  %2094 = vmatprep.subr.mxu0 %v2093
  %v2095 = vand.u32 %v125, 4294901760
  %v2096 = vsub.f32 %v125, %v2095
  %v2097 = vand.u32 %v2096, 4294901760
  %2098 = vmatpush1.msra.mxu0 %v2097
  %v2099 = vand.u32 %v124, 4294901760
  %v2100 = vsub.f32 %v124, %v2099
  %v2101 = vand.u32 %v2100, 4294901760
  %2102 = vmatprep.subr.mxu0 %v2101
  %v2103 = vand.u32 %v123, 4294901760
  %v2104 = vsub.f32 %v123, %v2103
  %v2105 = vand.u32 %v2104, 4294901760
  %2106 = vmatpush1.msra.mxu0 %v2105
  %v2107 = vand.u32 %v122, 4294901760
  %v2108 = vsub.f32 %v122, %v2107
  %v2109 = vand.u32 %v2108, 4294901760
  %2110 = vmatprep.subr.mxu0 %v2109
  %v2111 = vand.u32 %v121, 4294901760
  %v2112 = vsub.f32 %v121, %v2111
  %v2113 = vand.u32 %v2112, 4294901760
  %2114 = vmatpush1.msra.mxu0 %v2113
  %v2115 = vand.u32 %v120, 4294901760
  %v2116 = vsub.f32 %v120, %v2115
  %v2117 = vand.u32 %v2116, 4294901760
  %2118 = vmatprep.subr.mxu0 %v2117
  %v2119 = vand.u32 %v119, 4294901760
  %v2120 = vsub.f32 %v119, %v2119
  %v2121 = vand.u32 %v2120, 4294901760
  %2122 = vmatpush1.msra.mxu0 %v2121
  %v2123 = vand.u32 %v118, 4294901760
  %v2124 = vsub.f32 %v118, %v2123
  %v2125 = vand.u32 %v2124, 4294901760
  %2126 = vmatprep.subr.mxu0 %v2125
  %v2127 = vand.u32 %v117, 4294901760
  %v2128 = vsub.f32 %v117, %v2127
  %v2129 = vand.u32 %v2128, 4294901760
  %2130 = vmatpush1.msra.mxu0 %v2129
  %v2131 = vand.u32 %v116, 4294901760
  %v2132 = vsub.f32 %v116, %v2131
  %v2133 = vand.u32 %v2132, 4294901760
  %2134 = vmatprep.subr.mxu0 %v2133
  %v2135 = vand.u32 %v115, 4294901760
  %v2136 = vsub.f32 %v115, %v2135
  %v2137 = vand.u32 %v2136, 4294901760
  %2138 = vmatpush1.msra.mxu0 %v2137
  %v2139 = vand.u32 %v114, 4294901760
  %v2140 = vsub.f32 %v114, %v2139
  %v2141 = vand.u32 %v2140, 4294901760
  %2142 = vmatprep.subr.mxu0 %v2141
  %v2143 = vand.u32 %v113, 4294901760
  %v2144 = vsub.f32 %v113, %v2143
  %v2145 = vand.u32 %v2144, 4294901760
  %2146 = vmatpush1.msra.mxu0 %v2145
  %v2147 = vand.u32 %v112, 4294901760
  %v2148 = vsub.f32 %v112, %v2147
  %v2149 = vand.u32 %v2148, 4294901760
  %2150 = vmatprep.subr.mxu0 %v2149
  %v2151 = vand.u32 %v111, 4294901760
  %v2152 = vsub.f32 %v111, %v2151
  %v2153 = vand.u32 %v2152, 4294901760
  %2154 = vmatpush1.msra.mxu0 %v2153
  %v2155 = vand.u32 %v174, 4294901760
  %v2156 = vsub.f32 %v174, %v2155
  %v2157 = vand.u32 %v2156, 4294901760
  %2158 = vmatprep.subr.mxu0 %v2157
  %v2159 = vand.u32 %v173, 4294901760
  %v2160 = vsub.f32 %v173, %v2159
  %v2161 = vand.u32 %v2160, 4294901760
  %2162 = vmatpush2.msra.mxu0 %v2161
  %v2163 = vand.u32 %v172, 4294901760
  %v2164 = vsub.f32 %v172, %v2163
  %v2165 = vand.u32 %v2164, 4294901760
  %2166 = vmatprep.subr.mxu0 %v2165
  %v2167 = vand.u32 %v171, 4294901760
  %v2168 = vsub.f32 %v171, %v2167
  %v2169 = vand.u32 %v2168, 4294901760
  %2170 = vmatpush2.msra.mxu0 %v2169
  %v2171 = vand.u32 %v170, 4294901760
  %v2172 = vsub.f32 %v170, %v2171
  %v2173 = vand.u32 %v2172, 4294901760
  %2174 = vmatprep.subr.mxu0 %v2173
  %v2175 = vand.u32 %v169, 4294901760
  %v2176 = vsub.f32 %v169, %v2175
  %v2177 = vand.u32 %v2176, 4294901760
  %2178 = vmatpush2.msra.mxu0 %v2177
  %v2179 = vand.u32 %v168, 4294901760
  %v2180 = vsub.f32 %v168, %v2179
  %v2181 = vand.u32 %v2180, 4294901760
  %2182 = vmatprep.subr.mxu0 %v2181
  %v2183 = vand.u32 %v167, 4294901760
  %v2184 = vsub.f32 %v167, %v2183
  %v2185 = vand.u32 %v2184, 4294901760
  %2186 = vmatpush2.msra.mxu0 %v2185
  %v2187 = vand.u32 %v166, 4294901760
  %v2188 = vsub.f32 %v166, %v2187
  %v2189 = vand.u32 %v2188, 4294901760
  %2190 = vmatprep.subr.mxu0 %v2189
  %v2191 = vand.u32 %v165, 4294901760
  %v2192 = vsub.f32 %v165, %v2191
  %v2193 = vand.u32 %v2192, 4294901760
  %2194 = vmatpush2.msra.mxu0 %v2193
  %v2195 = vand.u32 %v164, 4294901760
  %v2196 = vsub.f32 %v164, %v2195
  %v2197 = vand.u32 %v2196, 4294901760
  %2198 = vmatprep.subr.mxu0 %v2197
  %v2199 = vand.u32 %v163, 4294901760
  %v2200 = vsub.f32 %v163, %v2199
  %v2201 = vand.u32 %v2200, 4294901760
  %2202 = vmatpush2.msra.mxu0 %v2201
  %v2203 = vand.u32 %v162, 4294901760
  %v2204 = vsub.f32 %v162, %v2203
  %v2205 = vand.u32 %v2204, 4294901760
  %2206 = vmatprep.subr.mxu0 %v2205
  %v2207 = vand.u32 %v161, 4294901760
  %v2208 = vsub.f32 %v161, %v2207
  %v2209 = vand.u32 %v2208, 4294901760
  %2210 = vmatpush2.msra.mxu0 %v2209
  %v2211 = vand.u32 %v160, 4294901760
  %v2212 = vsub.f32 %v160, %v2211
  %v2213 = vand.u32 %v2212, 4294901760
  %2214 = vmatprep.subr.mxu0 %v2213
  %v2215 = vand.u32 %v159, 4294901760
  %v2216 = vsub.f32 %v159, %v2215
  %v2217 = vand.u32 %v2216, 4294901760
  %2218 = vmatpush2.msra.mxu0 %v2217
  %v2219 = vand.u32 %v158, 4294901760
  %v2220 = vsub.f32 %v158, %v2219
  %v2221 = vand.u32 %v2220, 4294901760
  %2222 = vmatprep.subr.mxu0 %v2221
  %v2223 = vand.u32 %v157, 4294901760
  %v2224 = vsub.f32 %v157, %v2223
  %v2225 = vand.u32 %v2224, 4294901760
  %2226 = vmatpush2.msra.mxu0 %v2225
  %v2227 = vand.u32 %v156, 4294901760
  %v2228 = vsub.f32 %v156, %v2227
  %v2229 = vand.u32 %v2228, 4294901760
  %2230 = vmatprep.subr.mxu0 %v2229
  %v2231 = vand.u32 %v155, 4294901760
  %v2232 = vsub.f32 %v155, %v2231
  %v2233 = vand.u32 %v2232, 4294901760
  %2234 = vmatpush2.msra.mxu0 %v2233
  %v2235 = vand.u32 %v154, 4294901760
  %v2236 = vsub.f32 %v154, %v2235
  %v2237 = vand.u32 %v2236, 4294901760
  %2238 = vmatprep.subr.mxu0 %v2237
  %v2239 = vand.u32 %v153, 4294901760
  %v2240 = vsub.f32 %v153, %v2239
  %v2241 = vand.u32 %v2240, 4294901760
  %2242 = vmatpush2.msra.mxu0 %v2241
  %v2243 = vand.u32 %v152, 4294901760
  %v2244 = vsub.f32 %v152, %v2243
  %v2245 = vand.u32 %v2244, 4294901760
  %2246 = vmatprep.subr.mxu0 %v2245
  %v2247 = vand.u32 %v151, 4294901760
  %v2248 = vsub.f32 %v151, %v2247
  %v2249 = vand.u32 %v2248, 4294901760
  %2250 = vmatpush2.msra.mxu0 %v2249
  %v2251 = vand.u32 %v150, 4294901760
  %v2252 = vsub.f32 %v150, %v2251
  %v2253 = vand.u32 %v2252, 4294901760
  %2254 = vmatprep.subr.mxu0 %v2253
  %v2255 = vand.u32 %v149, 4294901760
  %v2256 = vsub.f32 %v149, %v2255
  %v2257 = vand.u32 %v2256, 4294901760
  %2258 = vmatpush2.msra.mxu0 %v2257
  %v2259 = vand.u32 %v148, 4294901760
  %v2260 = vsub.f32 %v148, %v2259
  %v2261 = vand.u32 %v2260, 4294901760
  %2262 = vmatprep.subr.mxu0 %v2261
  %v2263 = vand.u32 %v147, 4294901760
  %v2264 = vsub.f32 %v147, %v2263
  %v2265 = vand.u32 %v2264, 4294901760
  %2266 = vmatpush2.msra.mxu0 %v2265
  %v2267 = vand.u32 %v146, 4294901760
  %v2268 = vsub.f32 %v146, %v2267
  %v2269 = vand.u32 %v2268, 4294901760
  %2270 = vmatprep.subr.mxu0 %v2269
  %v2271 = vand.u32 %v145, 4294901760
  %v2272 = vsub.f32 %v145, %v2271
  %v2273 = vand.u32 %v2272, 4294901760
  %2274 = vmatpush2.msra.mxu0 %v2273
  %v2275 = vand.u32 %v144, 4294901760
  %v2276 = vsub.f32 %v144, %v2275
  %v2277 = vand.u32 %v2276, 4294901760
  %2278 = vmatprep.subr.mxu0 %v2277
  %v2279 = vand.u32 %v143, 4294901760
  %v2280 = vsub.f32 %v143, %v2279
  %v2281 = vand.u32 %v2280, 4294901760
  %2282 = vmatpush2.msra.mxu0 %v2281
  %v2283 = vand.u32 %v12, 4294901760
  %2284 = vmatprep.mubr.f32.mxu0 %v2283
  %v2285 = vand.u32 %v11, 4294901760
  %2286 = vmatmul.mubr.f32.gmra.mxu0 %v2285
  %v2287 = vpop.f32.mrf.mxu0
  %v2288 = vadd.f32 %v1795, %v2287
  %v2289 = vpop.f32.mrf.mxu0
  %v2290 = vadd.f32 %v1797, %v2289
  %v2291 = vand.u32 %v17, 4294901760
  %2292 = vmatprep.mubr.f32.mxu0 %v2291
  %v2293 = vand.u32 %v16, 4294901760
  %2294 = vmatmul.mubr.f32.gmra.mxu0 %v2293
  %v2295 = vpop.f32.mrf.mxu0
  %v2296 = vadd.f32 %v1807, %v2295
  %v2297 = vpop.f32.mrf.mxu0
  %v2298 = vadd.f32 %v1809, %v2297
  %v2299 = vand.u32 %v22, 4294901760
  %2300 = vmatprep.mubr.f32.mxu0 %v2299
  %v2301 = vand.u32 %v21, 4294901760
  %2302 = vmatmul.mubr.f32.gmra.mxu0 %v2301
  %v2303 = vpop.f32.mrf.mxu0
  %v2304 = vadd.f32 %v1819, %v2303
  %v2305 = vpop.f32.mrf.mxu0
  %v2306 = vadd.f32 %v1821, %v2305
  %v2307 = vand.u32 %v27, 4294901760
  %2308 = vmatprep.mubr.f32.mxu0 %v2307
  %v2309 = vand.u32 %v26, 4294901760
  %2310 = vmatmul.mubr.f32.gmra.mxu0 %v2309
  %v2311 = vpop.f32.mrf.mxu0
  %v2312 = vadd.f32 %v1831, %v2311
  %v2313 = vpop.f32.mrf.mxu0
  %v2314 = vadd.f32 %v1833, %v2313
  %v2315 = vand.u32 %v32, 4294901760
  %2316 = vmatprep.mubr.f32.mxu0 %v2315
  %v2317 = vand.u32 %v31, 4294901760
  %2318 = vmatmul.mubr.f32.gmra.mxu0 %v2317
  %v2319 = vpop.f32.mrf.mxu0
  %v2320 = vadd.f32 %v1843, %v2319
  %v2321 = vpop.f32.mrf.mxu0
  %v2322 = vadd.f32 %v1845, %v2321
  %v2323 = vand.u32 %v37, 4294901760
  %2324 = vmatprep.mubr.f32.mxu0 %v2323
  %v2325 = vand.u32 %v36, 4294901760
  %2326 = vmatmul.mubr.f32.gmra.mxu0 %v2325
  %v2327 = vpop.f32.mrf.mxu0
  %v2328 = vadd.f32 %v1855, %v2327
  %v2329 = vpop.f32.mrf.mxu0
  %v2330 = vadd.f32 %v1857, %v2329
  %v2331 = vand.u32 %v42, 4294901760
  %2332 = vmatprep.mubr.f32.mxu0 %v2331
  %v2333 = vand.u32 %v41, 4294901760
  %2334 = vmatmul.mubr.f32.gmra.mxu0 %v2333
  %v2335 = vpop.f32.mrf.mxu0
  %v2336 = vadd.f32 %v1867, %v2335
  %v2337 = vpop.f32.mrf.mxu0
  %v2338 = vadd.f32 %v1869, %v2337
  %v2339 = vand.u32 %v47, 4294901760
  %2340 = vmatprep.mubr.f32.mxu0 %v2339
  %v2341 = vand.u32 %v46, 4294901760
  %2342 = vmatmul.mubr.f32.gmra.mxu0 %v2341
  %v2343 = vpop.f32.mrf.mxu0
  %v2344 = vadd.f32 %v1879, %v2343
  %v2345 = vpop.f32.mrf.mxu0
  %v2346 = vadd.f32 %v1881, %v2345
  %v2347 = vand.u32 %v52, 4294901760
  %2348 = vmatprep.mubr.f32.mxu0 %v2347
  %v2349 = vand.u32 %v51, 4294901760
  %2350 = vmatmul.mubr.f32.gmra.mxu0 %v2349
  %v2351 = vpop.f32.mrf.mxu0
  %v2352 = vadd.f32 %v1891, %v2351
  %v2353 = vpop.f32.mrf.mxu0
  %v2354 = vadd.f32 %v1893, %v2353
  %v2355 = vand.u32 %v57, 4294901760
  %2356 = vmatprep.mubr.f32.mxu0 %v2355
  %v2357 = vand.u32 %v56, 4294901760
  %2358 = vmatmul.mubr.f32.gmra.mxu0 %v2357
  %v2359 = vpop.f32.mrf.mxu0
  %v2360 = vadd.f32 %v1903, %v2359
  %v2361 = vpop.f32.mrf.mxu0
  %v2362 = vadd.f32 %v1905, %v2361
  %v2363 = vand.u32 %v62, 4294901760
  %2364 = vmatprep.mubr.f32.mxu0 %v2363
  %v2365 = vand.u32 %v61, 4294901760
  %2366 = vmatmul.mubr.f32.gmra.mxu0 %v2365
  %v2367 = vpop.f32.mrf.mxu0
  %v2368 = vadd.f32 %v1915, %v2367
  %v2369 = vpop.f32.mrf.mxu0
  %v2370 = vadd.f32 %v1917, %v2369
  %v2371 = vand.u32 %v67, 4294901760
  %2372 = vmatprep.mubr.f32.mxu0 %v2371
  %v2373 = vand.u32 %v66, 4294901760
  %2374 = vmatmul.mubr.f32.gmra.mxu0 %v2373
  %v2375 = vpop.f32.mrf.mxu0
  %v2376 = vadd.f32 %v1927, %v2375
  %v2377 = vpop.f32.mrf.mxu0
  %v2378 = vadd.f32 %v1929, %v2377
  %v2379 = vand.u32 %v72, 4294901760
  %2380 = vmatprep.mubr.f32.mxu0 %v2379
  %v2381 = vand.u32 %v71, 4294901760
  %2382 = vmatmul.mubr.f32.gmra.mxu0 %v2381
  %v2383 = vpop.f32.mrf.mxu0
  %v2384 = vadd.f32 %v1939, %v2383
  %v2385 = vpop.f32.mrf.mxu0
  %v2386 = vadd.f32 %v1941, %v2385
  %v2387 = vand.u32 %v77, 4294901760
  %2388 = vmatprep.mubr.f32.mxu0 %v2387
  %v2389 = vand.u32 %v76, 4294901760
  %2390 = vmatmul.mubr.f32.gmra.mxu0 %v2389
  %v2391 = vpop.f32.mrf.mxu0
  %v2392 = vadd.f32 %v1951, %v2391
  %v2393 = vpop.f32.mrf.mxu0
  %v2394 = vadd.f32 %v1953, %v2393
  %v2395 = vand.u32 %v82, 4294901760
  %2396 = vmatprep.mubr.f32.mxu0 %v2395
  %v2397 = vand.u32 %v81, 4294901760
  %2398 = vmatmul.mubr.f32.gmra.mxu0 %v2397
  %v2399 = vpop.f32.mrf.mxu0
  %v2400 = vadd.f32 %v1963, %v2399
  %v2401 = vpop.f32.mrf.mxu0
  %v2402 = vadd.f32 %v1965, %v2401
  %v2403 = vand.u32 %v87, 4294901760
  %2404 = vmatprep.mubr.f32.mxu0 %v2403
  %v2405 = vand.u32 %v86, 4294901760
  %2406 = vmatmul.mubr.f32.gmra.mxu0 %v2405
  %v2407 = vpop.f32.mrf.mxu0
  %v2408 = vadd.f32 %v1975, %v2407
  %v2409 = vpop.f32.mrf.mxu0
  %v2410 = vadd.f32 %v1977, %v2409
  %v2411 = vand.u32 %v92, 4294901760
  %2412 = vmatprep.mubr.f32.mxu0 %v2411
  %v2413 = vand.u32 %v91, 4294901760
  %2414 = vmatmul.mubr.f32.gmra.mxu0 %v2413
  %v2415 = vpop.f32.mrf.mxu0
  %v2416 = vadd.f32 %v1987, %v2415
  %v2417 = vpop.f32.mrf.mxu0
  %v2418 = vadd.f32 %v1989, %v2417
  %v2419 = vand.u32 %v97, 4294901760
  %2420 = vmatprep.mubr.f32.mxu0 %v2419
  %v2421 = vand.u32 %v96, 4294901760
  %2422 = vmatmul.mubr.f32.gmra.mxu0 %v2421
  %v2423 = vpop.f32.mrf.mxu0
  %v2424 = vadd.f32 %v1999, %v2423
  %v2425 = vpop.f32.mrf.mxu0
  %v2426 = vadd.f32 %v2001, %v2425
  %v2427 = vand.u32 %v102, 4294901760
  %2428 = vmatprep.mubr.f32.mxu0 %v2427
  %v2429 = vand.u32 %v101, 4294901760
  %2430 = vmatmul.mubr.f32.gmra.mxu0 %v2429
  %v2431 = vpop.f32.mrf.mxu0
  %v2432 = vadd.f32 %v2011, %v2431
  %v2433 = vpop.f32.mrf.mxu0
  %v2434 = vadd.f32 %v2013, %v2433
  %v2435 = vand.u32 %v107, 4294901760
  %2436 = vmatprep.mubr.f32.mxu0 %v2435
  %v2437 = vand.u32 %v106, 4294901760
  %2438 = vmatmul.mubr.f32.gmra.mxu0 %v2437
  %v2439 = vpop.f32.mrf.mxu0
  %v2440 = vadd.f32 %v2023, %v2439
  %v2441 = vpop.f32.mrf.mxu0
  %v2442 = vadd.f32 %v2025, %v2441
  %2443 = vdwg.mxu0
  %v2444 = vand.u32 %v142, 4294901760
  %2445 = vmatprep.subr.mxu0 %v2444
  %v2446 = vand.u32 %v141, 4294901760
  %2447 = vmatpush1.msra.mxu0 %v2446
  %v2448 = vand.u32 %v140, 4294901760
  %2449 = vmatprep.subr.mxu0 %v2448
  %v2450 = vand.u32 %v139, 4294901760
  %2451 = vmatpush1.msra.mxu0 %v2450
  %v2452 = vand.u32 %v138, 4294901760
  %2453 = vmatprep.subr.mxu0 %v2452
  %v2454 = vand.u32 %v137, 4294901760
  %2455 = vmatpush1.msra.mxu0 %v2454
  %v2456 = vand.u32 %v136, 4294901760
  %2457 = vmatprep.subr.mxu0 %v2456
  %v2458 = vand.u32 %v135, 4294901760
  %2459 = vmatpush1.msra.mxu0 %v2458
  %v2460 = vand.u32 %v134, 4294901760
  %2461 = vmatprep.subr.mxu0 %v2460
  %v2462 = vand.u32 %v133, 4294901760
  %2463 = vmatpush1.msra.mxu0 %v2462
  %v2464 = vand.u32 %v132, 4294901760
  %2465 = vmatprep.subr.mxu0 %v2464
  %v2466 = vand.u32 %v131, 4294901760
  %2467 = vmatpush1.msra.mxu0 %v2466
  %v2468 = vand.u32 %v130, 4294901760
  %2469 = vmatprep.subr.mxu0 %v2468
  %v2470 = vand.u32 %v129, 4294901760
  %2471 = vmatpush1.msra.mxu0 %v2470
  %v2472 = vand.u32 %v128, 4294901760
  %2473 = vmatprep.subr.mxu0 %v2472
  %v2474 = vand.u32 %v127, 4294901760
  %2475 = vmatpush1.msra.mxu0 %v2474
  %v2476 = vand.u32 %v126, 4294901760
  %2477 = vmatprep.subr.mxu0 %v2476
  %v2478 = vand.u32 %v125, 4294901760
  %2479 = vmatpush1.msra.mxu0 %v2478
  %v2480 = vand.u32 %v124, 4294901760
  %2481 = vmatprep.subr.mxu0 %v2480
  %v2482 = vand.u32 %v123, 4294901760
  %2483 = vmatpush1.msra.mxu0 %v2482
  %v2484 = vand.u32 %v122, 4294901760
  %2485 = vmatprep.subr.mxu0 %v2484
  %v2486 = vand.u32 %v121, 4294901760
  %2487 = vmatpush1.msra.mxu0 %v2486
  %v2488 = vand.u32 %v120, 4294901760
  %2489 = vmatprep.subr.mxu0 %v2488
  %v2490 = vand.u32 %v119, 4294901760
  %2491 = vmatpush1.msra.mxu0 %v2490
  %v2492 = vand.u32 %v118, 4294901760
  %2493 = vmatprep.subr.mxu0 %v2492
  %v2494 = vand.u32 %v117, 4294901760
  %2495 = vmatpush1.msra.mxu0 %v2494
  %v2496 = vand.u32 %v116, 4294901760
  %2497 = vmatprep.subr.mxu0 %v2496
  %v2498 = vand.u32 %v115, 4294901760
  %2499 = vmatpush1.msra.mxu0 %v2498
  %v2500 = vand.u32 %v114, 4294901760
  %2501 = vmatprep.subr.mxu0 %v2500
  %v2502 = vand.u32 %v113, 4294901760
  %2503 = vmatpush1.msra.mxu0 %v2502
  %v2504 = vand.u32 %v112, 4294901760
  %2505 = vmatprep.subr.mxu0 %v2504
  %v2506 = vand.u32 %v111, 4294901760
  %2507 = vmatpush1.msra.mxu0 %v2506
  %v2508 = vand.u32 %v174, 4294901760
  %2509 = vmatprep.subr.mxu0 %v2508
  %v2510 = vand.u32 %v173, 4294901760
  %2511 = vmatpush2.msra.mxu0 %v2510
  %v2512 = vand.u32 %v172, 4294901760
  %2513 = vmatprep.subr.mxu0 %v2512
  %v2514 = vand.u32 %v171, 4294901760
  %2515 = vmatpush2.msra.mxu0 %v2514
  %v2516 = vand.u32 %v170, 4294901760
  %2517 = vmatprep.subr.mxu0 %v2516
  %v2518 = vand.u32 %v169, 4294901760
  %2519 = vmatpush2.msra.mxu0 %v2518
  %v2520 = vand.u32 %v168, 4294901760
  %2521 = vmatprep.subr.mxu0 %v2520
  %v2522 = vand.u32 %v167, 4294901760
  %2523 = vmatpush2.msra.mxu0 %v2522
  %v2524 = vand.u32 %v166, 4294901760
  %2525 = vmatprep.subr.mxu0 %v2524
  %v2526 = vand.u32 %v165, 4294901760
  %2527 = vmatpush2.msra.mxu0 %v2526
  %v2528 = vand.u32 %v164, 4294901760
  %2529 = vmatprep.subr.mxu0 %v2528
  %v2530 = vand.u32 %v163, 4294901760
  %2531 = vmatpush2.msra.mxu0 %v2530
  %v2532 = vand.u32 %v162, 4294901760
  %2533 = vmatprep.subr.mxu0 %v2532
  %v2534 = vand.u32 %v161, 4294901760
  %2535 = vmatpush2.msra.mxu0 %v2534
  %v2536 = vand.u32 %v160, 4294901760
  %2537 = vmatprep.subr.mxu0 %v2536
  %v2538 = vand.u32 %v159, 4294901760
  %2539 = vmatpush2.msra.mxu0 %v2538
  %v2540 = vand.u32 %v158, 4294901760
  %2541 = vmatprep.subr.mxu0 %v2540
  %v2542 = vand.u32 %v157, 4294901760
  %2543 = vmatpush2.msra.mxu0 %v2542
  %v2544 = vand.u32 %v156, 4294901760
  %2545 = vmatprep.subr.mxu0 %v2544
  %v2546 = vand.u32 %v155, 4294901760
  %2547 = vmatpush2.msra.mxu0 %v2546
  %v2548 = vand.u32 %v154, 4294901760
  %2549 = vmatprep.subr.mxu0 %v2548
  %v2550 = vand.u32 %v153, 4294901760
  %2551 = vmatpush2.msra.mxu0 %v2550
  %v2552 = vand.u32 %v152, 4294901760
  %2553 = vmatprep.subr.mxu0 %v2552
  %v2554 = vand.u32 %v151, 4294901760
  %2555 = vmatpush2.msra.mxu0 %v2554
  %v2556 = vand.u32 %v150, 4294901760
  %2557 = vmatprep.subr.mxu0 %v2556
  %v2558 = vand.u32 %v149, 4294901760
  %2559 = vmatpush2.msra.mxu0 %v2558
  %v2560 = vand.u32 %v148, 4294901760
  %2561 = vmatprep.subr.mxu0 %v2560
  %v2562 = vand.u32 %v147, 4294901760
  %2563 = vmatpush2.msra.mxu0 %v2562
  %v2564 = vand.u32 %v146, 4294901760
  %2565 = vmatprep.subr.mxu0 %v2564
  %v2566 = vand.u32 %v145, 4294901760
  %2567 = vmatpush2.msra.mxu0 %v2566
  %v2568 = vand.u32 %v144, 4294901760
  %2569 = vmatprep.subr.mxu0 %v2568
  %v2570 = vand.u32 %v143, 4294901760
  %2571 = vmatpush2.msra.mxu0 %v2570
  %v2572 = vand.u32 %v12, 4294901760
  %2573 = vmatprep.mubr.f32.mxu0 %v2572
  %v2574 = vand.u32 %v11, 4294901760
  %2575 = vmatmul.mubr.f32.gmra.mxu0 %v2574
  %v2576 = vpop.f32.mrf.mxu0
  %v2577 = vadd.f32 %v2288, %v2576
  %v2578 = vpop.f32.mrf.mxu0
  %v2579 = vadd.f32 %v2290, %v2578
  %v2580 = vand.u32 %v17, 4294901760
  %2581 = vmatprep.mubr.f32.mxu0 %v2580
  %v2582 = vand.u32 %v16, 4294901760
  %2583 = vmatmul.mubr.f32.gmra.mxu0 %v2582
  %v2584 = vpop.f32.mrf.mxu0
  %v2585 = vadd.f32 %v2296, %v2584
  %v2586 = vpop.f32.mrf.mxu0
  %v2587 = vadd.f32 %v2298, %v2586
  %v2588 = vand.u32 %v22, 4294901760
  %2589 = vmatprep.mubr.f32.mxu0 %v2588
  %v2590 = vand.u32 %v21, 4294901760
  %2591 = vmatmul.mubr.f32.gmra.mxu0 %v2590
  %v2592 = vpop.f32.mrf.mxu0
  %v2593 = vadd.f32 %v2304, %v2592
  %v2594 = vpop.f32.mrf.mxu0
  %v2595 = vadd.f32 %v2306, %v2594
  %v2596 = vand.u32 %v27, 4294901760
  %2597 = vmatprep.mubr.f32.mxu0 %v2596
  %v2598 = vand.u32 %v26, 4294901760
  %2599 = vmatmul.mubr.f32.gmra.mxu0 %v2598
  %v2600 = vpop.f32.mrf.mxu0
  %v2601 = vadd.f32 %v2312, %v2600
  %v2602 = vpop.f32.mrf.mxu0
  %v2603 = vadd.f32 %v2314, %v2602
  %v2604 = vand.u32 %v32, 4294901760
  %2605 = vmatprep.mubr.f32.mxu0 %v2604
  %v2606 = vand.u32 %v31, 4294901760
  %2607 = vmatmul.mubr.f32.gmra.mxu0 %v2606
  %v2608 = vpop.f32.mrf.mxu0
  %v2609 = vadd.f32 %v2320, %v2608
  %v2610 = vpop.f32.mrf.mxu0
  %v2611 = vadd.f32 %v2322, %v2610
  %v2612 = vand.u32 %v37, 4294901760
  %2613 = vmatprep.mubr.f32.mxu0 %v2612
  %v2614 = vand.u32 %v36, 4294901760
  %2615 = vmatmul.mubr.f32.gmra.mxu0 %v2614
  %v2616 = vpop.f32.mrf.mxu0
  %v2617 = vadd.f32 %v2328, %v2616
  %v2618 = vpop.f32.mrf.mxu0
  %v2619 = vadd.f32 %v2330, %v2618
  %v2620 = vand.u32 %v42, 4294901760
  %2621 = vmatprep.mubr.f32.mxu0 %v2620
  %v2622 = vand.u32 %v41, 4294901760
  %2623 = vmatmul.mubr.f32.gmra.mxu0 %v2622
  %v2624 = vpop.f32.mrf.mxu0
  %v2625 = vadd.f32 %v2336, %v2624
  %v2626 = vpop.f32.mrf.mxu0
  %v2627 = vadd.f32 %v2338, %v2626
  %v2628 = vand.u32 %v47, 4294901760
  %2629 = vmatprep.mubr.f32.mxu0 %v2628
  %v2630 = vand.u32 %v46, 4294901760
  %2631 = vmatmul.mubr.f32.gmra.mxu0 %v2630
  %v2632 = vpop.f32.mrf.mxu0
  %v2633 = vadd.f32 %v2344, %v2632
  %v2634 = vpop.f32.mrf.mxu0
  %v2635 = vadd.f32 %v2346, %v2634
  %v2636 = vand.u32 %v52, 4294901760
  %2637 = vmatprep.mubr.f32.mxu0 %v2636
  %v2638 = vand.u32 %v51, 4294901760
  %2639 = vmatmul.mubr.f32.gmra.mxu0 %v2638
  %v2640 = vpop.f32.mrf.mxu0
  %v2641 = vadd.f32 %v2352, %v2640
  %v2642 = vpop.f32.mrf.mxu0
  %v2643 = vadd.f32 %v2354, %v2642
  %v2644 = vand.u32 %v57, 4294901760
  %2645 = vmatprep.mubr.f32.mxu0 %v2644
  %v2646 = vand.u32 %v56, 4294901760
  %2647 = vmatmul.mubr.f32.gmra.mxu0 %v2646
  %v2648 = vpop.f32.mrf.mxu0
  %v2649 = vadd.f32 %v2360, %v2648
  %v2650 = vpop.f32.mrf.mxu0
  %v2651 = vadd.f32 %v2362, %v2650
  %v2652 = vand.u32 %v62, 4294901760
  %2653 = vmatprep.mubr.f32.mxu0 %v2652
  %v2654 = vand.u32 %v61, 4294901760
  %2655 = vmatmul.mubr.f32.gmra.mxu0 %v2654
  %v2656 = vpop.f32.mrf.mxu0
  %v2657 = vadd.f32 %v2368, %v2656
  %v2658 = vpop.f32.mrf.mxu0
  %v2659 = vadd.f32 %v2370, %v2658
  %v2660 = vand.u32 %v67, 4294901760
  %2661 = vmatprep.mubr.f32.mxu0 %v2660
  %v2662 = vand.u32 %v66, 4294901760
  %2663 = vmatmul.mubr.f32.gmra.mxu0 %v2662
  %v2664 = vpop.f32.mrf.mxu0
  %v2665 = vadd.f32 %v2376, %v2664
  %v2666 = vpop.f32.mrf.mxu0
  %v2667 = vadd.f32 %v2378, %v2666
  %v2668 = vand.u32 %v72, 4294901760
  %2669 = vmatprep.mubr.f32.mxu0 %v2668
  %v2670 = vand.u32 %v71, 4294901760
  %2671 = vmatmul.mubr.f32.gmra.mxu0 %v2670
  %v2672 = vpop.f32.mrf.mxu0
  %v2673 = vadd.f32 %v2384, %v2672
  %v2674 = vpop.f32.mrf.mxu0
  %v2675 = vadd.f32 %v2386, %v2674
  %v2676 = vand.u32 %v77, 4294901760
  %2677 = vmatprep.mubr.f32.mxu0 %v2676
  %v2678 = vand.u32 %v76, 4294901760
  %2679 = vmatmul.mubr.f32.gmra.mxu0 %v2678
  %v2680 = vpop.f32.mrf.mxu0
  %v2681 = vadd.f32 %v2392, %v2680
  %v2682 = vpop.f32.mrf.mxu0
  %v2683 = vadd.f32 %v2394, %v2682
  %v2684 = vand.u32 %v82, 4294901760
  %2685 = vmatprep.mubr.f32.mxu0 %v2684
  %v2686 = vand.u32 %v81, 4294901760
  %2687 = vmatmul.mubr.f32.gmra.mxu0 %v2686
  %v2688 = vpop.f32.mrf.mxu0
  %v2689 = vadd.f32 %v2400, %v2688
  %v2690 = vpop.f32.mrf.mxu0
  %v2691 = vadd.f32 %v2402, %v2690
  %v2692 = vand.u32 %v87, 4294901760
  %2693 = vmatprep.mubr.f32.mxu0 %v2692
  %v2694 = vand.u32 %v86, 4294901760
  %2695 = vmatmul.mubr.f32.gmra.mxu0 %v2694
  %v2696 = vpop.f32.mrf.mxu0
  %v2697 = vadd.f32 %v2408, %v2696
  %v2698 = vpop.f32.mrf.mxu0
  %v2699 = vadd.f32 %v2410, %v2698
  %v2700 = vand.u32 %v92, 4294901760
  %2701 = vmatprep.mubr.f32.mxu0 %v2700
  %v2702 = vand.u32 %v91, 4294901760
  %2703 = vmatmul.mubr.f32.gmra.mxu0 %v2702
  %v2704 = vpop.f32.mrf.mxu0
  %v2705 = vadd.f32 %v2416, %v2704
  %v2706 = vpop.f32.mrf.mxu0
  %v2707 = vadd.f32 %v2418, %v2706
  %v2708 = vand.u32 %v97, 4294901760
  %2709 = vmatprep.mubr.f32.mxu0 %v2708
  %v2710 = vand.u32 %v96, 4294901760
  %2711 = vmatmul.mubr.f32.gmra.mxu0 %v2710
  %v2712 = vpop.f32.mrf.mxu0
  %v2713 = vadd.f32 %v2424, %v2712
  %v2714 = vpop.f32.mrf.mxu0
  %v2715 = vadd.f32 %v2426, %v2714
  %v2716 = vand.u32 %v102, 4294901760
  %2717 = vmatprep.mubr.f32.mxu0 %v2716
  %v2718 = vand.u32 %v101, 4294901760
  %2719 = vmatmul.mubr.f32.gmra.mxu0 %v2718
  %v2720 = vpop.f32.mrf.mxu0
  %v2721 = vadd.f32 %v2432, %v2720
  %v2722 = vpop.f32.mrf.mxu0
  %v2723 = vadd.f32 %v2434, %v2722
  %v2724 = vand.u32 %v107, 4294901760
  %2725 = vmatprep.mubr.f32.mxu0 %v2724
  %v2726 = vand.u32 %v106, 4294901760
  %2727 = vmatmul.mubr.f32.gmra.mxu0 %v2726
  %v2728 = vpop.f32.mrf.mxu0
  %v2729 = vadd.f32 %v2440, %v2728
  %v2730 = vpop.f32.mrf.mxu0
  %v2731 = vadd.f32 %v2442, %v2730
  %2732 = vdwg.mxu0
  %v2733 = vand.u32 %v206, 4294901760
  %2734 = vmatprep.subr.mxu0 %v2733
  %v2735 = vand.u32 %v205, 4294901760
  %2736 = vmatpush1.msra.mxu0 %v2735
  %v2737 = vand.u32 %v204, 4294901760
  %2738 = vmatprep.subr.mxu0 %v2737
  %v2739 = vand.u32 %v203, 4294901760
  %2740 = vmatpush1.msra.mxu0 %v2739
  %v2741 = vand.u32 %v202, 4294901760
  %2742 = vmatprep.subr.mxu0 %v2741
  %v2743 = vand.u32 %v201, 4294901760
  %2744 = vmatpush1.msra.mxu0 %v2743
  %v2745 = vand.u32 %v200, 4294901760
  %2746 = vmatprep.subr.mxu0 %v2745
  %v2747 = vand.u32 %v199, 4294901760
  %2748 = vmatpush1.msra.mxu0 %v2747
  %v2749 = vand.u32 %v198, 4294901760
  %2750 = vmatprep.subr.mxu0 %v2749
  %v2751 = vand.u32 %v197, 4294901760
  %2752 = vmatpush1.msra.mxu0 %v2751
  %v2753 = vand.u32 %v196, 4294901760
  %2754 = vmatprep.subr.mxu0 %v2753
  %v2755 = vand.u32 %v195, 4294901760
  %2756 = vmatpush1.msra.mxu0 %v2755
  %v2757 = vand.u32 %v194, 4294901760
  %2758 = vmatprep.subr.mxu0 %v2757
  %v2759 = vand.u32 %v193, 4294901760
  %2760 = vmatpush1.msra.mxu0 %v2759
  %v2761 = vand.u32 %v192, 4294901760
  %2762 = vmatprep.subr.mxu0 %v2761
  %v2763 = vand.u32 %v191, 4294901760
  %2764 = vmatpush1.msra.mxu0 %v2763
  %v2765 = vand.u32 %v190, 4294901760
  %2766 = vmatprep.subr.mxu0 %v2765
  %v2767 = vand.u32 %v189, 4294901760
  %2768 = vmatpush1.msra.mxu0 %v2767
  %v2769 = vand.u32 %v188, 4294901760
  %2770 = vmatprep.subr.mxu0 %v2769
  %v2771 = vand.u32 %v187, 4294901760
  %2772 = vmatpush1.msra.mxu0 %v2771
  %v2773 = vand.u32 %v186, 4294901760
  %2774 = vmatprep.subr.mxu0 %v2773
  %v2775 = vand.u32 %v185, 4294901760
  %2776 = vmatpush1.msra.mxu0 %v2775
  %v2777 = vand.u32 %v184, 4294901760
  %2778 = vmatprep.subr.mxu0 %v2777
  %v2779 = vand.u32 %v183, 4294901760
  %2780 = vmatpush1.msra.mxu0 %v2779
  %v2781 = vand.u32 %v182, 4294901760
  %2782 = vmatprep.subr.mxu0 %v2781
  %v2783 = vand.u32 %v181, 4294901760
  %2784 = vmatpush1.msra.mxu0 %v2783
  %v2785 = vand.u32 %v180, 4294901760
  %2786 = vmatprep.subr.mxu0 %v2785
  %v2787 = vand.u32 %v179, 4294901760
  %2788 = vmatpush1.msra.mxu0 %v2787
  %v2789 = vand.u32 %v178, 4294901760
  %2790 = vmatprep.subr.mxu0 %v2789
  %v2791 = vand.u32 %v177, 4294901760
  %2792 = vmatpush1.msra.mxu0 %v2791
  %v2793 = vand.u32 %v176, 4294901760
  %2794 = vmatprep.subr.mxu0 %v2793
  %v2795 = vand.u32 %v175, 4294901760
  %2796 = vmatpush1.msra.mxu0 %v2795
  %v2797 = vand.u32 %v238, 4294901760
  %2798 = vmatprep.subr.mxu0 %v2797
  %v2799 = vand.u32 %v237, 4294901760
  %2800 = vmatpush2.msra.mxu0 %v2799
  %v2801 = vand.u32 %v236, 4294901760
  %2802 = vmatprep.subr.mxu0 %v2801
  %v2803 = vand.u32 %v235, 4294901760
  %2804 = vmatpush2.msra.mxu0 %v2803
  %v2805 = vand.u32 %v234, 4294901760
  %2806 = vmatprep.subr.mxu0 %v2805
  %v2807 = vand.u32 %v233, 4294901760
  %2808 = vmatpush2.msra.mxu0 %v2807
  %v2809 = vand.u32 %v232, 4294901760
  %2810 = vmatprep.subr.mxu0 %v2809
  %v2811 = vand.u32 %v231, 4294901760
  %2812 = vmatpush2.msra.mxu0 %v2811
  %v2813 = vand.u32 %v230, 4294901760
  %2814 = vmatprep.subr.mxu0 %v2813
  %v2815 = vand.u32 %v229, 4294901760
  %2816 = vmatpush2.msra.mxu0 %v2815
  %v2817 = vand.u32 %v228, 4294901760
  %2818 = vmatprep.subr.mxu0 %v2817
  %v2819 = vand.u32 %v227, 4294901760
  %2820 = vmatpush2.msra.mxu0 %v2819
  %v2821 = vand.u32 %v226, 4294901760
  %2822 = vmatprep.subr.mxu0 %v2821
  %v2823 = vand.u32 %v225, 4294901760
  %2824 = vmatpush2.msra.mxu0 %v2823
  %v2825 = vand.u32 %v224, 4294901760
  %2826 = vmatprep.subr.mxu0 %v2825
  %v2827 = vand.u32 %v223, 4294901760
  %2828 = vmatpush2.msra.mxu0 %v2827
  %v2829 = vand.u32 %v222, 4294901760
  %2830 = vmatprep.subr.mxu0 %v2829
  %v2831 = vand.u32 %v221, 4294901760
  %2832 = vmatpush2.msra.mxu0 %v2831
  %v2833 = vand.u32 %v220, 4294901760
  %2834 = vmatprep.subr.mxu0 %v2833
  %v2835 = vand.u32 %v219, 4294901760
  %2836 = vmatpush2.msra.mxu0 %v2835
  %v2837 = vand.u32 %v218, 4294901760
  %2838 = vmatprep.subr.mxu0 %v2837
  %v2839 = vand.u32 %v217, 4294901760
  %2840 = vmatpush2.msra.mxu0 %v2839
  %v2841 = vand.u32 %v216, 4294901760
  %2842 = vmatprep.subr.mxu0 %v2841
  %v2843 = vand.u32 %v215, 4294901760
  %2844 = vmatpush2.msra.mxu0 %v2843
  %v2845 = vand.u32 %v214, 4294901760
  %2846 = vmatprep.subr.mxu0 %v2845
  %v2847 = vand.u32 %v213, 4294901760
  %2848 = vmatpush2.msra.mxu0 %v2847
  %v2849 = vand.u32 %v212, 4294901760
  %2850 = vmatprep.subr.mxu0 %v2849
  %v2851 = vand.u32 %v211, 4294901760
  %2852 = vmatpush2.msra.mxu0 %v2851
  %v2853 = vand.u32 %v210, 4294901760
  %2854 = vmatprep.subr.mxu0 %v2853
  %v2855 = vand.u32 %v209, 4294901760
  %2856 = vmatpush2.msra.mxu0 %v2855
  %v2857 = vand.u32 %v208, 4294901760
  %2858 = vmatprep.subr.mxu0 %v2857
  %v2859 = vand.u32 %v207, 4294901760
  %2860 = vmatpush2.msra.mxu0 %v2859
  %v2861 = vand.u32 %v14, 4294901760
  %v2862 = vsub.f32 %v14, %v2861
  %v2863 = vand.u32 %v2862, 4294901760
  %v2864 = vsub.f32 %v2862, %v2863
  %v2865 = vand.u32 %v2864, 4294901760
  %2866 = vmatprep.mubr.f32.mxu0 %v2865
  %v2867 = vand.u32 %v13, 4294901760
  %v2868 = vsub.f32 %v13, %v2867
  %v2869 = vand.u32 %v2868, 4294901760
  %v2870 = vsub.f32 %v2868, %v2869
  %v2871 = vand.u32 %v2870, 4294901760
  %2872 = vmatmul.mubr.f32.gmra.mxu0 %v2871
  %v2873 = vpop.f32.mrf.mxu0
  %v2874 = vadd.f32 %v2577, %v2873
  %v2875 = vpop.f32.mrf.mxu0
  %v2876 = vadd.f32 %v2579, %v2875
  %v2877 = vand.u32 %v19, 4294901760
  %v2878 = vsub.f32 %v19, %v2877
  %v2879 = vand.u32 %v2878, 4294901760
  %v2880 = vsub.f32 %v2878, %v2879
  %v2881 = vand.u32 %v2880, 4294901760
  %2882 = vmatprep.mubr.f32.mxu0 %v2881
  %v2883 = vand.u32 %v18, 4294901760
  %v2884 = vsub.f32 %v18, %v2883
  %v2885 = vand.u32 %v2884, 4294901760
  %v2886 = vsub.f32 %v2884, %v2885
  %v2887 = vand.u32 %v2886, 4294901760
  %2888 = vmatmul.mubr.f32.gmra.mxu0 %v2887
  %v2889 = vpop.f32.mrf.mxu0
  %v2890 = vadd.f32 %v2585, %v2889
  %v2891 = vpop.f32.mrf.mxu0
  %v2892 = vadd.f32 %v2587, %v2891
  %v2893 = vand.u32 %v24, 4294901760
  %v2894 = vsub.f32 %v24, %v2893
  %v2895 = vand.u32 %v2894, 4294901760
  %v2896 = vsub.f32 %v2894, %v2895
  %v2897 = vand.u32 %v2896, 4294901760
  %2898 = vmatprep.mubr.f32.mxu0 %v2897
  %v2899 = vand.u32 %v23, 4294901760
  %v2900 = vsub.f32 %v23, %v2899
  %v2901 = vand.u32 %v2900, 4294901760
  %v2902 = vsub.f32 %v2900, %v2901
  %v2903 = vand.u32 %v2902, 4294901760
  %2904 = vmatmul.mubr.f32.gmra.mxu0 %v2903
  %v2905 = vpop.f32.mrf.mxu0
  %v2906 = vadd.f32 %v2593, %v2905
  %v2907 = vpop.f32.mrf.mxu0
  %v2908 = vadd.f32 %v2595, %v2907
  %v2909 = vand.u32 %v29, 4294901760
  %v2910 = vsub.f32 %v29, %v2909
  %v2911 = vand.u32 %v2910, 4294901760
  %v2912 = vsub.f32 %v2910, %v2911
  %v2913 = vand.u32 %v2912, 4294901760
  %2914 = vmatprep.mubr.f32.mxu0 %v2913
  %v2915 = vand.u32 %v28, 4294901760
  %v2916 = vsub.f32 %v28, %v2915
  %v2917 = vand.u32 %v2916, 4294901760
  %v2918 = vsub.f32 %v2916, %v2917
  %v2919 = vand.u32 %v2918, 4294901760
  %2920 = vmatmul.mubr.f32.gmra.mxu0 %v2919
  %v2921 = vpop.f32.mrf.mxu0
  %v2922 = vadd.f32 %v2601, %v2921
  %v2923 = vpop.f32.mrf.mxu0
  %v2924 = vadd.f32 %v2603, %v2923
  %v2925 = vand.u32 %v34, 4294901760
  %v2926 = vsub.f32 %v34, %v2925
  %v2927 = vand.u32 %v2926, 4294901760
  %v2928 = vsub.f32 %v2926, %v2927
  %v2929 = vand.u32 %v2928, 4294901760
  %2930 = vmatprep.mubr.f32.mxu0 %v2929
  %v2931 = vand.u32 %v33, 4294901760
  %v2932 = vsub.f32 %v33, %v2931
  %v2933 = vand.u32 %v2932, 4294901760
  %v2934 = vsub.f32 %v2932, %v2933
  %v2935 = vand.u32 %v2934, 4294901760
  %2936 = vmatmul.mubr.f32.gmra.mxu0 %v2935
  %v2937 = vpop.f32.mrf.mxu0
  %v2938 = vadd.f32 %v2609, %v2937
  %v2939 = vpop.f32.mrf.mxu0
  %v2940 = vadd.f32 %v2611, %v2939
  %v2941 = vand.u32 %v39, 4294901760
  %v2942 = vsub.f32 %v39, %v2941
  %v2943 = vand.u32 %v2942, 4294901760
  %v2944 = vsub.f32 %v2942, %v2943
  %v2945 = vand.u32 %v2944, 4294901760
  %2946 = vmatprep.mubr.f32.mxu0 %v2945
  %v2947 = vand.u32 %v38, 4294901760
  %v2948 = vsub.f32 %v38, %v2947
  %v2949 = vand.u32 %v2948, 4294901760
  %v2950 = vsub.f32 %v2948, %v2949
  %v2951 = vand.u32 %v2950, 4294901760
  %2952 = vmatmul.mubr.f32.gmra.mxu0 %v2951
  %v2953 = vpop.f32.mrf.mxu0
  %v2954 = vadd.f32 %v2617, %v2953
  %v2955 = vpop.f32.mrf.mxu0
  %v2956 = vadd.f32 %v2619, %v2955
  %v2957 = vand.u32 %v44, 4294901760
  %v2958 = vsub.f32 %v44, %v2957
  %v2959 = vand.u32 %v2958, 4294901760
  %v2960 = vsub.f32 %v2958, %v2959
  %v2961 = vand.u32 %v2960, 4294901760
  %2962 = vmatprep.mubr.f32.mxu0 %v2961
  %v2963 = vand.u32 %v43, 4294901760
  %v2964 = vsub.f32 %v43, %v2963
  %v2965 = vand.u32 %v2964, 4294901760
  %v2966 = vsub.f32 %v2964, %v2965
  %v2967 = vand.u32 %v2966, 4294901760
  %2968 = vmatmul.mubr.f32.gmra.mxu0 %v2967
  %v2969 = vpop.f32.mrf.mxu0
  %v2970 = vadd.f32 %v2625, %v2969
  %v2971 = vpop.f32.mrf.mxu0
  %v2972 = vadd.f32 %v2627, %v2971
  %v2973 = vand.u32 %v49, 4294901760
  %v2974 = vsub.f32 %v49, %v2973
  %v2975 = vand.u32 %v2974, 4294901760
  %v2976 = vsub.f32 %v2974, %v2975
  %v2977 = vand.u32 %v2976, 4294901760
  %2978 = vmatprep.mubr.f32.mxu0 %v2977
  %v2979 = vand.u32 %v48, 4294901760
  %v2980 = vsub.f32 %v48, %v2979
  %v2981 = vand.u32 %v2980, 4294901760
  %v2982 = vsub.f32 %v2980, %v2981
  %v2983 = vand.u32 %v2982, 4294901760
  %2984 = vmatmul.mubr.f32.gmra.mxu0 %v2983
  %v2985 = vpop.f32.mrf.mxu0
  %v2986 = vadd.f32 %v2633, %v2985
  %v2987 = vpop.f32.mrf.mxu0
  %v2988 = vadd.f32 %v2635, %v2987
  %v2989 = vand.u32 %v54, 4294901760
  %v2990 = vsub.f32 %v54, %v2989
  %v2991 = vand.u32 %v2990, 4294901760
  %v2992 = vsub.f32 %v2990, %v2991
  %v2993 = vand.u32 %v2992, 4294901760
  %2994 = vmatprep.mubr.f32.mxu0 %v2993
  %v2995 = vand.u32 %v53, 4294901760
  %v2996 = vsub.f32 %v53, %v2995
  %v2997 = vand.u32 %v2996, 4294901760
  %v2998 = vsub.f32 %v2996, %v2997
  %v2999 = vand.u32 %v2998, 4294901760
  %3000 = vmatmul.mubr.f32.gmra.mxu0 %v2999
  %v3001 = vpop.f32.mrf.mxu0
  %v3002 = vadd.f32 %v2641, %v3001
  %v3003 = vpop.f32.mrf.mxu0
  %v3004 = vadd.f32 %v2643, %v3003
  %v3005 = vand.u32 %v59, 4294901760
  %v3006 = vsub.f32 %v59, %v3005
  %v3007 = vand.u32 %v3006, 4294901760
  %v3008 = vsub.f32 %v3006, %v3007
  %v3009 = vand.u32 %v3008, 4294901760
  %3010 = vmatprep.mubr.f32.mxu0 %v3009
  %v3011 = vand.u32 %v58, 4294901760
  %v3012 = vsub.f32 %v58, %v3011
  %v3013 = vand.u32 %v3012, 4294901760
  %v3014 = vsub.f32 %v3012, %v3013
  %v3015 = vand.u32 %v3014, 4294901760
  %3016 = vmatmul.mubr.f32.gmra.mxu0 %v3015
  %v3017 = vpop.f32.mrf.mxu0
  %v3018 = vadd.f32 %v2649, %v3017
  %v3019 = vpop.f32.mrf.mxu0
  %v3020 = vadd.f32 %v2651, %v3019
  %v3021 = vand.u32 %v64, 4294901760
  %v3022 = vsub.f32 %v64, %v3021
  %v3023 = vand.u32 %v3022, 4294901760
  %v3024 = vsub.f32 %v3022, %v3023
  %v3025 = vand.u32 %v3024, 4294901760
  %3026 = vmatprep.mubr.f32.mxu0 %v3025
  %v3027 = vand.u32 %v63, 4294901760
  %v3028 = vsub.f32 %v63, %v3027
  %v3029 = vand.u32 %v3028, 4294901760
  %v3030 = vsub.f32 %v3028, %v3029
  %v3031 = vand.u32 %v3030, 4294901760
  %3032 = vmatmul.mubr.f32.gmra.mxu0 %v3031
  %v3033 = vpop.f32.mrf.mxu0
  %v3034 = vadd.f32 %v2657, %v3033
  %v3035 = vpop.f32.mrf.mxu0
  %v3036 = vadd.f32 %v2659, %v3035
  %v3037 = vand.u32 %v69, 4294901760
  %v3038 = vsub.f32 %v69, %v3037
  %v3039 = vand.u32 %v3038, 4294901760
  %v3040 = vsub.f32 %v3038, %v3039
  %v3041 = vand.u32 %v3040, 4294901760
  %3042 = vmatprep.mubr.f32.mxu0 %v3041
  %v3043 = vand.u32 %v68, 4294901760
  %v3044 = vsub.f32 %v68, %v3043
  %v3045 = vand.u32 %v3044, 4294901760
  %v3046 = vsub.f32 %v3044, %v3045
  %v3047 = vand.u32 %v3046, 4294901760
  %3048 = vmatmul.mubr.f32.gmra.mxu0 %v3047
  %v3049 = vpop.f32.mrf.mxu0
  %v3050 = vadd.f32 %v2665, %v3049
  %v3051 = vpop.f32.mrf.mxu0
  %v3052 = vadd.f32 %v2667, %v3051
  %v3053 = vand.u32 %v74, 4294901760
  %v3054 = vsub.f32 %v74, %v3053
  %v3055 = vand.u32 %v3054, 4294901760
  %v3056 = vsub.f32 %v3054, %v3055
  %v3057 = vand.u32 %v3056, 4294901760
  %3058 = vmatprep.mubr.f32.mxu0 %v3057
  %v3059 = vand.u32 %v73, 4294901760
  %v3060 = vsub.f32 %v73, %v3059
  %v3061 = vand.u32 %v3060, 4294901760
  %v3062 = vsub.f32 %v3060, %v3061
  %v3063 = vand.u32 %v3062, 4294901760
  %3064 = vmatmul.mubr.f32.gmra.mxu0 %v3063
  %v3065 = vpop.f32.mrf.mxu0
  %v3066 = vadd.f32 %v2673, %v3065
  %v3067 = vpop.f32.mrf.mxu0
  %v3068 = vadd.f32 %v2675, %v3067
  %v3069 = vand.u32 %v79, 4294901760
  %v3070 = vsub.f32 %v79, %v3069
  %v3071 = vand.u32 %v3070, 4294901760
  %v3072 = vsub.f32 %v3070, %v3071
  %v3073 = vand.u32 %v3072, 4294901760
  %3074 = vmatprep.mubr.f32.mxu0 %v3073
  %v3075 = vand.u32 %v78, 4294901760
  %v3076 = vsub.f32 %v78, %v3075
  %v3077 = vand.u32 %v3076, 4294901760
  %v3078 = vsub.f32 %v3076, %v3077
  %v3079 = vand.u32 %v3078, 4294901760
  %3080 = vmatmul.mubr.f32.gmra.mxu0 %v3079
  %v3081 = vpop.f32.mrf.mxu0
  %v3082 = vadd.f32 %v2681, %v3081
  %v3083 = vpop.f32.mrf.mxu0
  %v3084 = vadd.f32 %v2683, %v3083
  %v3085 = vand.u32 %v84, 4294901760
  %v3086 = vsub.f32 %v84, %v3085
  %v3087 = vand.u32 %v3086, 4294901760
  %v3088 = vsub.f32 %v3086, %v3087
  %v3089 = vand.u32 %v3088, 4294901760
  %3090 = vmatprep.mubr.f32.mxu0 %v3089
  %v3091 = vand.u32 %v83, 4294901760
  %v3092 = vsub.f32 %v83, %v3091
  %v3093 = vand.u32 %v3092, 4294901760
  %v3094 = vsub.f32 %v3092, %v3093
  %v3095 = vand.u32 %v3094, 4294901760
  %3096 = vmatmul.mubr.f32.gmra.mxu0 %v3095
  %v3097 = vpop.f32.mrf.mxu0
  %v3098 = vadd.f32 %v2689, %v3097
  %v3099 = vpop.f32.mrf.mxu0
  %v3100 = vadd.f32 %v2691, %v3099
  %v3101 = vand.u32 %v89, 4294901760
  %v3102 = vsub.f32 %v89, %v3101
  %v3103 = vand.u32 %v3102, 4294901760
  %v3104 = vsub.f32 %v3102, %v3103
  %v3105 = vand.u32 %v3104, 4294901760
  %3106 = vmatprep.mubr.f32.mxu0 %v3105
  %v3107 = vand.u32 %v88, 4294901760
  %v3108 = vsub.f32 %v88, %v3107
  %v3109 = vand.u32 %v3108, 4294901760
  %v3110 = vsub.f32 %v3108, %v3109
  %v3111 = vand.u32 %v3110, 4294901760
  %3112 = vmatmul.mubr.f32.gmra.mxu0 %v3111
  %v3113 = vpop.f32.mrf.mxu0
  %v3114 = vadd.f32 %v2697, %v3113
  %v3115 = vpop.f32.mrf.mxu0
  %v3116 = vadd.f32 %v2699, %v3115
  %v3117 = vand.u32 %v94, 4294901760
  %v3118 = vsub.f32 %v94, %v3117
  %v3119 = vand.u32 %v3118, 4294901760
  %v3120 = vsub.f32 %v3118, %v3119
  %v3121 = vand.u32 %v3120, 4294901760
  %3122 = vmatprep.mubr.f32.mxu0 %v3121
  %v3123 = vand.u32 %v93, 4294901760
  %v3124 = vsub.f32 %v93, %v3123
  %v3125 = vand.u32 %v3124, 4294901760
  %v3126 = vsub.f32 %v3124, %v3125
  %v3127 = vand.u32 %v3126, 4294901760
  %3128 = vmatmul.mubr.f32.gmra.mxu0 %v3127
  %v3129 = vpop.f32.mrf.mxu0
  %v3130 = vadd.f32 %v2705, %v3129
  %v3131 = vpop.f32.mrf.mxu0
  %v3132 = vadd.f32 %v2707, %v3131
  %v3133 = vand.u32 %v99, 4294901760
  %v3134 = vsub.f32 %v99, %v3133
  %v3135 = vand.u32 %v3134, 4294901760
  %v3136 = vsub.f32 %v3134, %v3135
  %v3137 = vand.u32 %v3136, 4294901760
  %3138 = vmatprep.mubr.f32.mxu0 %v3137
  %v3139 = vand.u32 %v98, 4294901760
  %v3140 = vsub.f32 %v98, %v3139
  %v3141 = vand.u32 %v3140, 4294901760
  %v3142 = vsub.f32 %v3140, %v3141
  %v3143 = vand.u32 %v3142, 4294901760
  %3144 = vmatmul.mubr.f32.gmra.mxu0 %v3143
  %v3145 = vpop.f32.mrf.mxu0
  %v3146 = vadd.f32 %v2713, %v3145
  %v3147 = vpop.f32.mrf.mxu0
  %v3148 = vadd.f32 %v2715, %v3147
  %v3149 = vand.u32 %v104, 4294901760
  %v3150 = vsub.f32 %v104, %v3149
  %v3151 = vand.u32 %v3150, 4294901760
  %v3152 = vsub.f32 %v3150, %v3151
  %v3153 = vand.u32 %v3152, 4294901760
  %3154 = vmatprep.mubr.f32.mxu0 %v3153
  %v3155 = vand.u32 %v103, 4294901760
  %v3156 = vsub.f32 %v103, %v3155
  %v3157 = vand.u32 %v3156, 4294901760
  %v3158 = vsub.f32 %v3156, %v3157
  %v3159 = vand.u32 %v3158, 4294901760
  %3160 = vmatmul.mubr.f32.gmra.mxu0 %v3159
  %v3161 = vpop.f32.mrf.mxu0
  %v3162 = vadd.f32 %v2721, %v3161
  %v3163 = vpop.f32.mrf.mxu0
  %v3164 = vadd.f32 %v2723, %v3163
  %v3165 = vand.u32 %v109, 4294901760
  %v3166 = vsub.f32 %v109, %v3165
  %v3167 = vand.u32 %v3166, 4294901760
  %v3168 = vsub.f32 %v3166, %v3167
  %v3169 = vand.u32 %v3168, 4294901760
  %3170 = vmatprep.mubr.f32.mxu0 %v3169
  %v3171 = vand.u32 %v108, 4294901760
  %v3172 = vsub.f32 %v108, %v3171
  %v3173 = vand.u32 %v3172, 4294901760
  %v3174 = vsub.f32 %v3172, %v3173
  %v3175 = vand.u32 %v3174, 4294901760
  %3176 = vmatmul.mubr.f32.gmra.mxu0 %v3175
  %v3177 = vpop.f32.mrf.mxu0
  %v3178 = vadd.f32 %v2729, %v3177
  %v3179 = vpop.f32.mrf.mxu0
  %v3180 = vadd.f32 %v2731, %v3179
  %3181 = vdwg.mxu0
  %v3182 = vand.u32 %v206, 4294901760
  %v3183 = vsub.f32 %v206, %v3182
  %v3184 = vand.u32 %v3183, 4294901760
  %v3185 = vsub.f32 %v3183, %v3184
  %v3186 = vand.u32 %v3185, 4294901760
  %3187 = vmatprep.subr.mxu0 %v3186
  %v3188 = vand.u32 %v205, 4294901760
  %v3189 = vsub.f32 %v205, %v3188
  %v3190 = vand.u32 %v3189, 4294901760
  %v3191 = vsub.f32 %v3189, %v3190
  %v3192 = vand.u32 %v3191, 4294901760
  %3193 = vmatpush1.msra.mxu0 %v3192
  %v3194 = vand.u32 %v204, 4294901760
  %v3195 = vsub.f32 %v204, %v3194
  %v3196 = vand.u32 %v3195, 4294901760
  %v3197 = vsub.f32 %v3195, %v3196
  %v3198 = vand.u32 %v3197, 4294901760
  %3199 = vmatprep.subr.mxu0 %v3198
  %v3200 = vand.u32 %v203, 4294901760
  %v3201 = vsub.f32 %v203, %v3200
  %v3202 = vand.u32 %v3201, 4294901760
  %v3203 = vsub.f32 %v3201, %v3202
  %v3204 = vand.u32 %v3203, 4294901760
  %3205 = vmatpush1.msra.mxu0 %v3204
  %v3206 = vand.u32 %v202, 4294901760
  %v3207 = vsub.f32 %v202, %v3206
  %v3208 = vand.u32 %v3207, 4294901760
  %v3209 = vsub.f32 %v3207, %v3208
  %v3210 = vand.u32 %v3209, 4294901760
  %3211 = vmatprep.subr.mxu0 %v3210
  %v3212 = vand.u32 %v201, 4294901760
  %v3213 = vsub.f32 %v201, %v3212
  %v3214 = vand.u32 %v3213, 4294901760
  %v3215 = vsub.f32 %v3213, %v3214
  %v3216 = vand.u32 %v3215, 4294901760
  %3217 = vmatpush1.msra.mxu0 %v3216
  %v3218 = vand.u32 %v200, 4294901760
  %v3219 = vsub.f32 %v200, %v3218
  %v3220 = vand.u32 %v3219, 4294901760
  %v3221 = vsub.f32 %v3219, %v3220
  %v3222 = vand.u32 %v3221, 4294901760
  %3223 = vmatprep.subr.mxu0 %v3222
  %v3224 = vand.u32 %v199, 4294901760
  %v3225 = vsub.f32 %v199, %v3224
  %v3226 = vand.u32 %v3225, 4294901760
  %v3227 = vsub.f32 %v3225, %v3226
  %v3228 = vand.u32 %v3227, 4294901760
  %3229 = vmatpush1.msra.mxu0 %v3228
  %v3230 = vand.u32 %v198, 4294901760
  %v3231 = vsub.f32 %v198, %v3230
  %v3232 = vand.u32 %v3231, 4294901760
  %v3233 = vsub.f32 %v3231, %v3232
  %v3234 = vand.u32 %v3233, 4294901760
  %3235 = vmatprep.subr.mxu0 %v3234
  %v3236 = vand.u32 %v197, 4294901760
  %v3237 = vsub.f32 %v197, %v3236
  %v3238 = vand.u32 %v3237, 4294901760
  %v3239 = vsub.f32 %v3237, %v3238
  %v3240 = vand.u32 %v3239, 4294901760
  %3241 = vmatpush1.msra.mxu0 %v3240
  %v3242 = vand.u32 %v196, 4294901760
  %v3243 = vsub.f32 %v196, %v3242
  %v3244 = vand.u32 %v3243, 4294901760
  %v3245 = vsub.f32 %v3243, %v3244
  %v3246 = vand.u32 %v3245, 4294901760
  %3247 = vmatprep.subr.mxu0 %v3246
  %v3248 = vand.u32 %v195, 4294901760
  %v3249 = vsub.f32 %v195, %v3248
  %v3250 = vand.u32 %v3249, 4294901760
  %v3251 = vsub.f32 %v3249, %v3250
  %v3252 = vand.u32 %v3251, 4294901760
  %3253 = vmatpush1.msra.mxu0 %v3252
  %v3254 = vand.u32 %v194, 4294901760
  %v3255 = vsub.f32 %v194, %v3254
  %v3256 = vand.u32 %v3255, 4294901760
  %v3257 = vsub.f32 %v3255, %v3256
  %v3258 = vand.u32 %v3257, 4294901760
  %3259 = vmatprep.subr.mxu0 %v3258
  %v3260 = vand.u32 %v193, 4294901760
  %v3261 = vsub.f32 %v193, %v3260
  %v3262 = vand.u32 %v3261, 4294901760
  %v3263 = vsub.f32 %v3261, %v3262
  %v3264 = vand.u32 %v3263, 4294901760
  %3265 = vmatpush1.msra.mxu0 %v3264
  %v3266 = vand.u32 %v192, 4294901760
  %v3267 = vsub.f32 %v192, %v3266
  %v3268 = vand.u32 %v3267, 4294901760
  %v3269 = vsub.f32 %v3267, %v3268
  %v3270 = vand.u32 %v3269, 4294901760
  %3271 = vmatprep.subr.mxu0 %v3270
  %v3272 = vand.u32 %v191, 4294901760
  %v3273 = vsub.f32 %v191, %v3272
  %v3274 = vand.u32 %v3273, 4294901760
  %v3275 = vsub.f32 %v3273, %v3274
  %v3276 = vand.u32 %v3275, 4294901760
  %3277 = vmatpush1.msra.mxu0 %v3276
  %v3278 = vand.u32 %v190, 4294901760
  %v3279 = vsub.f32 %v190, %v3278
  %v3280 = vand.u32 %v3279, 4294901760
  %v3281 = vsub.f32 %v3279, %v3280
  %v3282 = vand.u32 %v3281, 4294901760
  %3283 = vmatprep.subr.mxu0 %v3282
  %v3284 = vand.u32 %v189, 4294901760
  %v3285 = vsub.f32 %v189, %v3284
  %v3286 = vand.u32 %v3285, 4294901760
  %v3287 = vsub.f32 %v3285, %v3286
  %v3288 = vand.u32 %v3287, 4294901760
  %3289 = vmatpush1.msra.mxu0 %v3288
  %v3290 = vand.u32 %v188, 4294901760
  %v3291 = vsub.f32 %v188, %v3290
  %v3292 = vand.u32 %v3291, 4294901760
  %v3293 = vsub.f32 %v3291, %v3292
  %v3294 = vand.u32 %v3293, 4294901760
  %3295 = vmatprep.subr.mxu0 %v3294
  %v3296 = vand.u32 %v187, 4294901760
  %v3297 = vsub.f32 %v187, %v3296
  %v3298 = vand.u32 %v3297, 4294901760
  %v3299 = vsub.f32 %v3297, %v3298
  %v3300 = vand.u32 %v3299, 4294901760
  %3301 = vmatpush1.msra.mxu0 %v3300
  %v3302 = vand.u32 %v186, 4294901760
  %v3303 = vsub.f32 %v186, %v3302
  %v3304 = vand.u32 %v3303, 4294901760
  %v3305 = vsub.f32 %v3303, %v3304
  %v3306 = vand.u32 %v3305, 4294901760
  %3307 = vmatprep.subr.mxu0 %v3306
  %v3308 = vand.u32 %v185, 4294901760
  %v3309 = vsub.f32 %v185, %v3308
  %v3310 = vand.u32 %v3309, 4294901760
  %v3311 = vsub.f32 %v3309, %v3310
  %v3312 = vand.u32 %v3311, 4294901760
  %3313 = vmatpush1.msra.mxu0 %v3312
  %v3314 = vand.u32 %v184, 4294901760
  %v3315 = vsub.f32 %v184, %v3314
  %v3316 = vand.u32 %v3315, 4294901760
  %v3317 = vsub.f32 %v3315, %v3316
  %v3318 = vand.u32 %v3317, 4294901760
  %3319 = vmatprep.subr.mxu0 %v3318
  %v3320 = vand.u32 %v183, 4294901760
  %v3321 = vsub.f32 %v183, %v3320
  %v3322 = vand.u32 %v3321, 4294901760
  %v3323 = vsub.f32 %v3321, %v3322
  %v3324 = vand.u32 %v3323, 4294901760
  %3325 = vmatpush1.msra.mxu0 %v3324
  %v3326 = vand.u32 %v182, 4294901760
  %v3327 = vsub.f32 %v182, %v3326
  %v3328 = vand.u32 %v3327, 4294901760
  %v3329 = vsub.f32 %v3327, %v3328
  %v3330 = vand.u32 %v3329, 4294901760
  %3331 = vmatprep.subr.mxu0 %v3330
  %v3332 = vand.u32 %v181, 4294901760
  %v3333 = vsub.f32 %v181, %v3332
  %v3334 = vand.u32 %v3333, 4294901760
  %v3335 = vsub.f32 %v3333, %v3334
  %v3336 = vand.u32 %v3335, 4294901760
  %3337 = vmatpush1.msra.mxu0 %v3336
  %v3338 = vand.u32 %v180, 4294901760
  %v3339 = vsub.f32 %v180, %v3338
  %v3340 = vand.u32 %v3339, 4294901760
  %v3341 = vsub.f32 %v3339, %v3340
  %v3342 = vand.u32 %v3341, 4294901760
  %3343 = vmatprep.subr.mxu0 %v3342
  %v3344 = vand.u32 %v179, 4294901760
  %v3345 = vsub.f32 %v179, %v3344
  %v3346 = vand.u32 %v3345, 4294901760
  %v3347 = vsub.f32 %v3345, %v3346
  %v3348 = vand.u32 %v3347, 4294901760
  %3349 = vmatpush1.msra.mxu0 %v3348
  %v3350 = vand.u32 %v178, 4294901760
  %v3351 = vsub.f32 %v178, %v3350
  %v3352 = vand.u32 %v3351, 4294901760
  %v3353 = vsub.f32 %v3351, %v3352
  %v3354 = vand.u32 %v3353, 4294901760
  %3355 = vmatprep.subr.mxu0 %v3354
  %v3356 = vand.u32 %v177, 4294901760
  %v3357 = vsub.f32 %v177, %v3356
  %v3358 = vand.u32 %v3357, 4294901760
  %v3359 = vsub.f32 %v3357, %v3358
  %v3360 = vand.u32 %v3359, 4294901760
  %3361 = vmatpush1.msra.mxu0 %v3360
  %v3362 = vand.u32 %v176, 4294901760
  %v3363 = vsub.f32 %v176, %v3362
  %v3364 = vand.u32 %v3363, 4294901760
  %v3365 = vsub.f32 %v3363, %v3364
  %v3366 = vand.u32 %v3365, 4294901760
  %3367 = vmatprep.subr.mxu0 %v3366
  %v3368 = vand.u32 %v175, 4294901760
  %v3369 = vsub.f32 %v175, %v3368
  %v3370 = vand.u32 %v3369, 4294901760
  %v3371 = vsub.f32 %v3369, %v3370
  %v3372 = vand.u32 %v3371, 4294901760
  %3373 = vmatpush1.msra.mxu0 %v3372
  %v3374 = vand.u32 %v238, 4294901760
  %v3375 = vsub.f32 %v238, %v3374
  %v3376 = vand.u32 %v3375, 4294901760
  %v3377 = vsub.f32 %v3375, %v3376
  %v3378 = vand.u32 %v3377, 4294901760
  %3379 = vmatprep.subr.mxu0 %v3378
  %v3380 = vand.u32 %v237, 4294901760
  %v3381 = vsub.f32 %v237, %v3380
  %v3382 = vand.u32 %v3381, 4294901760
  %v3383 = vsub.f32 %v3381, %v3382
  %v3384 = vand.u32 %v3383, 4294901760
  %3385 = vmatpush2.msra.mxu0 %v3384
  %v3386 = vand.u32 %v236, 4294901760
  %v3387 = vsub.f32 %v236, %v3386
  %v3388 = vand.u32 %v3387, 4294901760
  %v3389 = vsub.f32 %v3387, %v3388
  %v3390 = vand.u32 %v3389, 4294901760
  %3391 = vmatprep.subr.mxu0 %v3390
  %v3392 = vand.u32 %v235, 4294901760
  %v3393 = vsub.f32 %v235, %v3392
  %v3394 = vand.u32 %v3393, 4294901760
  %v3395 = vsub.f32 %v3393, %v3394
  %v3396 = vand.u32 %v3395, 4294901760
  %3397 = vmatpush2.msra.mxu0 %v3396
  %v3398 = vand.u32 %v234, 4294901760
  %v3399 = vsub.f32 %v234, %v3398
  %v3400 = vand.u32 %v3399, 4294901760
  %v3401 = vsub.f32 %v3399, %v3400
  %v3402 = vand.u32 %v3401, 4294901760
  %3403 = vmatprep.subr.mxu0 %v3402
  %v3404 = vand.u32 %v233, 4294901760
  %v3405 = vsub.f32 %v233, %v3404
  %v3406 = vand.u32 %v3405, 4294901760
  %v3407 = vsub.f32 %v3405, %v3406
  %v3408 = vand.u32 %v3407, 4294901760
  %3409 = vmatpush2.msra.mxu0 %v3408
  %v3410 = vand.u32 %v232, 4294901760
  %v3411 = vsub.f32 %v232, %v3410
  %v3412 = vand.u32 %v3411, 4294901760
  %v3413 = vsub.f32 %v3411, %v3412
  %v3414 = vand.u32 %v3413, 4294901760
  %3415 = vmatprep.subr.mxu0 %v3414
  %v3416 = vand.u32 %v231, 4294901760
  %v3417 = vsub.f32 %v231, %v3416
  %v3418 = vand.u32 %v3417, 4294901760
  %v3419 = vsub.f32 %v3417, %v3418
  %v3420 = vand.u32 %v3419, 4294901760
  %3421 = vmatpush2.msra.mxu0 %v3420
  %v3422 = vand.u32 %v230, 4294901760
  %v3423 = vsub.f32 %v230, %v3422
  %v3424 = vand.u32 %v3423, 4294901760
  %v3425 = vsub.f32 %v3423, %v3424
  %v3426 = vand.u32 %v3425, 4294901760
  %3427 = vmatprep.subr.mxu0 %v3426
  %v3428 = vand.u32 %v229, 4294901760
  %v3429 = vsub.f32 %v229, %v3428
  %v3430 = vand.u32 %v3429, 4294901760
  %v3431 = vsub.f32 %v3429, %v3430
  %v3432 = vand.u32 %v3431, 4294901760
  %3433 = vmatpush2.msra.mxu0 %v3432
  %v3434 = vand.u32 %v228, 4294901760
  %v3435 = vsub.f32 %v228, %v3434
  %v3436 = vand.u32 %v3435, 4294901760
  %v3437 = vsub.f32 %v3435, %v3436
  %v3438 = vand.u32 %v3437, 4294901760
  %3439 = vmatprep.subr.mxu0 %v3438
  %v3440 = vand.u32 %v227, 4294901760
  %v3441 = vsub.f32 %v227, %v3440
  %v3442 = vand.u32 %v3441, 4294901760
  %v3443 = vsub.f32 %v3441, %v3442
  %v3444 = vand.u32 %v3443, 4294901760
  %3445 = vmatpush2.msra.mxu0 %v3444
  %v3446 = vand.u32 %v226, 4294901760
  %v3447 = vsub.f32 %v226, %v3446
  %v3448 = vand.u32 %v3447, 4294901760
  %v3449 = vsub.f32 %v3447, %v3448
  %v3450 = vand.u32 %v3449, 4294901760
  %3451 = vmatprep.subr.mxu0 %v3450
  %v3452 = vand.u32 %v225, 4294901760
  %v3453 = vsub.f32 %v225, %v3452
  %v3454 = vand.u32 %v3453, 4294901760
  %v3455 = vsub.f32 %v3453, %v3454
  %v3456 = vand.u32 %v3455, 4294901760
  %3457 = vmatpush2.msra.mxu0 %v3456
  %v3458 = vand.u32 %v224, 4294901760
  %v3459 = vsub.f32 %v224, %v3458
  %v3460 = vand.u32 %v3459, 4294901760
  %v3461 = vsub.f32 %v3459, %v3460
  %v3462 = vand.u32 %v3461, 4294901760
  %3463 = vmatprep.subr.mxu0 %v3462
  %v3464 = vand.u32 %v223, 4294901760
  %v3465 = vsub.f32 %v223, %v3464
  %v3466 = vand.u32 %v3465, 4294901760
  %v3467 = vsub.f32 %v3465, %v3466
  %v3468 = vand.u32 %v3467, 4294901760
  %3469 = vmatpush2.msra.mxu0 %v3468
  %v3470 = vand.u32 %v222, 4294901760
  %v3471 = vsub.f32 %v222, %v3470
  %v3472 = vand.u32 %v3471, 4294901760
  %v3473 = vsub.f32 %v3471, %v3472
  %v3474 = vand.u32 %v3473, 4294901760
  %3475 = vmatprep.subr.mxu0 %v3474
  %v3476 = vand.u32 %v221, 4294901760
  %v3477 = vsub.f32 %v221, %v3476
  %v3478 = vand.u32 %v3477, 4294901760
  %v3479 = vsub.f32 %v3477, %v3478
  %v3480 = vand.u32 %v3479, 4294901760
  %3481 = vmatpush2.msra.mxu0 %v3480
  %v3482 = vand.u32 %v220, 4294901760
  %v3483 = vsub.f32 %v220, %v3482
  %v3484 = vand.u32 %v3483, 4294901760
  %v3485 = vsub.f32 %v3483, %v3484
  %v3486 = vand.u32 %v3485, 4294901760
  %3487 = vmatprep.subr.mxu0 %v3486
  %v3488 = vand.u32 %v219, 4294901760
  %v3489 = vsub.f32 %v219, %v3488
  %v3490 = vand.u32 %v3489, 4294901760
  %v3491 = vsub.f32 %v3489, %v3490
  %v3492 = vand.u32 %v3491, 4294901760
  %3493 = vmatpush2.msra.mxu0 %v3492
  %v3494 = vand.u32 %v218, 4294901760
  %v3495 = vsub.f32 %v218, %v3494
  %v3496 = vand.u32 %v3495, 4294901760
  %v3497 = vsub.f32 %v3495, %v3496
  %v3498 = vand.u32 %v3497, 4294901760
  %3499 = vmatprep.subr.mxu0 %v3498
  %v3500 = vand.u32 %v217, 4294901760
  %v3501 = vsub.f32 %v217, %v3500
  %v3502 = vand.u32 %v3501, 4294901760
  %v3503 = vsub.f32 %v3501, %v3502
  %v3504 = vand.u32 %v3503, 4294901760
  %3505 = vmatpush2.msra.mxu0 %v3504
  %v3506 = vand.u32 %v216, 4294901760
  %v3507 = vsub.f32 %v216, %v3506
  %v3508 = vand.u32 %v3507, 4294901760
  %v3509 = vsub.f32 %v3507, %v3508
  %v3510 = vand.u32 %v3509, 4294901760
  %3511 = vmatprep.subr.mxu0 %v3510
  %v3512 = vand.u32 %v215, 4294901760
  %v3513 = vsub.f32 %v215, %v3512
  %v3514 = vand.u32 %v3513, 4294901760
  %v3515 = vsub.f32 %v3513, %v3514
  %v3516 = vand.u32 %v3515, 4294901760
  %3517 = vmatpush2.msra.mxu0 %v3516
  %v3518 = vand.u32 %v214, 4294901760
  %v3519 = vsub.f32 %v214, %v3518
  %v3520 = vand.u32 %v3519, 4294901760
  %v3521 = vsub.f32 %v3519, %v3520
  %v3522 = vand.u32 %v3521, 4294901760
  %3523 = vmatprep.subr.mxu0 %v3522
  %v3524 = vand.u32 %v213, 4294901760
  %v3525 = vsub.f32 %v213, %v3524
  %v3526 = vand.u32 %v3525, 4294901760
  %v3527 = vsub.f32 %v3525, %v3526
  %v3528 = vand.u32 %v3527, 4294901760
  %3529 = vmatpush2.msra.mxu0 %v3528
  %v3530 = vand.u32 %v212, 4294901760
  %v3531 = vsub.f32 %v212, %v3530
  %v3532 = vand.u32 %v3531, 4294901760
  %v3533 = vsub.f32 %v3531, %v3532
  %v3534 = vand.u32 %v3533, 4294901760
  %3535 = vmatprep.subr.mxu0 %v3534
  %v3536 = vand.u32 %v211, 4294901760
  %v3537 = vsub.f32 %v211, %v3536
  %v3538 = vand.u32 %v3537, 4294901760
  %v3539 = vsub.f32 %v3537, %v3538
  %v3540 = vand.u32 %v3539, 4294901760
  %3541 = vmatpush2.msra.mxu0 %v3540
  %v3542 = vand.u32 %v210, 4294901760
  %v3543 = vsub.f32 %v210, %v3542
  %v3544 = vand.u32 %v3543, 4294901760
  %v3545 = vsub.f32 %v3543, %v3544
  %v3546 = vand.u32 %v3545, 4294901760
  %3547 = vmatprep.subr.mxu0 %v3546
  %v3548 = vand.u32 %v209, 4294901760
  %v3549 = vsub.f32 %v209, %v3548
  %v3550 = vand.u32 %v3549, 4294901760
  %v3551 = vsub.f32 %v3549, %v3550
  %v3552 = vand.u32 %v3551, 4294901760
  %3553 = vmatpush2.msra.mxu0 %v3552
  %v3554 = vand.u32 %v208, 4294901760
  %v3555 = vsub.f32 %v208, %v3554
  %v3556 = vand.u32 %v3555, 4294901760
  %v3557 = vsub.f32 %v3555, %v3556
  %v3558 = vand.u32 %v3557, 4294901760
  %3559 = vmatprep.subr.mxu0 %v3558
  %v3560 = vand.u32 %v207, 4294901760
  %v3561 = vsub.f32 %v207, %v3560
  %v3562 = vand.u32 %v3561, 4294901760
  %v3563 = vsub.f32 %v3561, %v3562
  %v3564 = vand.u32 %v3563, 4294901760
  %3565 = vmatpush2.msra.mxu0 %v3564
  %v3566 = vand.u32 %v14, 4294901760
  %3567 = vmatprep.mubr.f32.mxu0 %v3566
  %v3568 = vand.u32 %v13, 4294901760
  %3569 = vmatmul.mubr.f32.gmra.mxu0 %v3568
  %v3570 = vpop.f32.mrf.mxu0
  %v3571 = vadd.f32 %v2874, %v3570
  %v3572 = vpop.f32.mrf.mxu0
  %v3573 = vadd.f32 %v2876, %v3572
  %v3574 = vand.u32 %v19, 4294901760
  %3575 = vmatprep.mubr.f32.mxu0 %v3574
  %v3576 = vand.u32 %v18, 4294901760
  %3577 = vmatmul.mubr.f32.gmra.mxu0 %v3576
  %v3578 = vpop.f32.mrf.mxu0
  %v3579 = vadd.f32 %v2890, %v3578
  %v3580 = vpop.f32.mrf.mxu0
  %v3581 = vadd.f32 %v2892, %v3580
  %v3582 = vand.u32 %v24, 4294901760
  %3583 = vmatprep.mubr.f32.mxu0 %v3582
  %v3584 = vand.u32 %v23, 4294901760
  %3585 = vmatmul.mubr.f32.gmra.mxu0 %v3584
  %v3586 = vpop.f32.mrf.mxu0
  %v3587 = vadd.f32 %v2906, %v3586
  %v3588 = vpop.f32.mrf.mxu0
  %v3589 = vadd.f32 %v2908, %v3588
  %v3590 = vand.u32 %v29, 4294901760
  %3591 = vmatprep.mubr.f32.mxu0 %v3590
  %v3592 = vand.u32 %v28, 4294901760
  %3593 = vmatmul.mubr.f32.gmra.mxu0 %v3592
  %v3594 = vpop.f32.mrf.mxu0
  %v3595 = vadd.f32 %v2922, %v3594
  %v3596 = vpop.f32.mrf.mxu0
  %v3597 = vadd.f32 %v2924, %v3596
  %v3598 = vand.u32 %v34, 4294901760
  %3599 = vmatprep.mubr.f32.mxu0 %v3598
  %v3600 = vand.u32 %v33, 4294901760
  %3601 = vmatmul.mubr.f32.gmra.mxu0 %v3600
  %v3602 = vpop.f32.mrf.mxu0
  %v3603 = vadd.f32 %v2938, %v3602
  %v3604 = vpop.f32.mrf.mxu0
  %v3605 = vadd.f32 %v2940, %v3604
  %v3606 = vand.u32 %v39, 4294901760
  %3607 = vmatprep.mubr.f32.mxu0 %v3606
  %v3608 = vand.u32 %v38, 4294901760
  %3609 = vmatmul.mubr.f32.gmra.mxu0 %v3608
  %v3610 = vpop.f32.mrf.mxu0
  %v3611 = vadd.f32 %v2954, %v3610
  %v3612 = vpop.f32.mrf.mxu0
  %v3613 = vadd.f32 %v2956, %v3612
  %v3614 = vand.u32 %v44, 4294901760
  %3615 = vmatprep.mubr.f32.mxu0 %v3614
  %v3616 = vand.u32 %v43, 4294901760
  %3617 = vmatmul.mubr.f32.gmra.mxu0 %v3616
  %v3618 = vpop.f32.mrf.mxu0
  %v3619 = vadd.f32 %v2970, %v3618
  %v3620 = vpop.f32.mrf.mxu0
  %v3621 = vadd.f32 %v2972, %v3620
  %v3622 = vand.u32 %v49, 4294901760
  %3623 = vmatprep.mubr.f32.mxu0 %v3622
  %v3624 = vand.u32 %v48, 4294901760
  %3625 = vmatmul.mubr.f32.gmra.mxu0 %v3624
  %v3626 = vpop.f32.mrf.mxu0
  %v3627 = vadd.f32 %v2986, %v3626
  %v3628 = vpop.f32.mrf.mxu0
  %v3629 = vadd.f32 %v2988, %v3628
  %v3630 = vand.u32 %v54, 4294901760
  %3631 = vmatprep.mubr.f32.mxu0 %v3630
  %v3632 = vand.u32 %v53, 4294901760
  %3633 = vmatmul.mubr.f32.gmra.mxu0 %v3632
  %v3634 = vpop.f32.mrf.mxu0
  %v3635 = vadd.f32 %v3002, %v3634
  %v3636 = vpop.f32.mrf.mxu0
  %v3637 = vadd.f32 %v3004, %v3636
  %v3638 = vand.u32 %v59, 4294901760
  %3639 = vmatprep.mubr.f32.mxu0 %v3638
  %v3640 = vand.u32 %v58, 4294901760
  %3641 = vmatmul.mubr.f32.gmra.mxu0 %v3640
  %v3642 = vpop.f32.mrf.mxu0
  %v3643 = vadd.f32 %v3018, %v3642
  %v3644 = vpop.f32.mrf.mxu0
  %v3645 = vadd.f32 %v3020, %v3644
  %v3646 = vand.u32 %v64, 4294901760
  %3647 = vmatprep.mubr.f32.mxu0 %v3646
  %v3648 = vand.u32 %v63, 4294901760
  %3649 = vmatmul.mubr.f32.gmra.mxu0 %v3648
  %v3650 = vpop.f32.mrf.mxu0
  %v3651 = vadd.f32 %v3034, %v3650
  %v3652 = vpop.f32.mrf.mxu0
  %v3653 = vadd.f32 %v3036, %v3652
  %v3654 = vand.u32 %v69, 4294901760
  %3655 = vmatprep.mubr.f32.mxu0 %v3654
  %v3656 = vand.u32 %v68, 4294901760
  %3657 = vmatmul.mubr.f32.gmra.mxu0 %v3656
  %v3658 = vpop.f32.mrf.mxu0
  %v3659 = vadd.f32 %v3050, %v3658
  %v3660 = vpop.f32.mrf.mxu0
  %v3661 = vadd.f32 %v3052, %v3660
  %v3662 = vand.u32 %v74, 4294901760
  %3663 = vmatprep.mubr.f32.mxu0 %v3662
  %v3664 = vand.u32 %v73, 4294901760
  %3665 = vmatmul.mubr.f32.gmra.mxu0 %v3664
  %v3666 = vpop.f32.mrf.mxu0
  %v3667 = vadd.f32 %v3066, %v3666
  %v3668 = vpop.f32.mrf.mxu0
  %v3669 = vadd.f32 %v3068, %v3668
  %v3670 = vand.u32 %v79, 4294901760
  %3671 = vmatprep.mubr.f32.mxu0 %v3670
  %v3672 = vand.u32 %v78, 4294901760
  %3673 = vmatmul.mubr.f32.gmra.mxu0 %v3672
  %v3674 = vpop.f32.mrf.mxu0
  %v3675 = vadd.f32 %v3082, %v3674
  %v3676 = vpop.f32.mrf.mxu0
  %v3677 = vadd.f32 %v3084, %v3676
  %v3678 = vand.u32 %v84, 4294901760
  %3679 = vmatprep.mubr.f32.mxu0 %v3678
  %v3680 = vand.u32 %v83, 4294901760
  %3681 = vmatmul.mubr.f32.gmra.mxu0 %v3680
  %v3682 = vpop.f32.mrf.mxu0
  %v3683 = vadd.f32 %v3098, %v3682
  %v3684 = vpop.f32.mrf.mxu0
  %v3685 = vadd.f32 %v3100, %v3684
  %v3686 = vand.u32 %v89, 4294901760
  %3687 = vmatprep.mubr.f32.mxu0 %v3686
  %v3688 = vand.u32 %v88, 4294901760
  %3689 = vmatmul.mubr.f32.gmra.mxu0 %v3688
  %v3690 = vpop.f32.mrf.mxu0
  %v3691 = vadd.f32 %v3114, %v3690
  %v3692 = vpop.f32.mrf.mxu0
  %v3693 = vadd.f32 %v3116, %v3692
  %v3694 = vand.u32 %v94, 4294901760
  %3695 = vmatprep.mubr.f32.mxu0 %v3694
  %v3696 = vand.u32 %v93, 4294901760
  %3697 = vmatmul.mubr.f32.gmra.mxu0 %v3696
  %v3698 = vpop.f32.mrf.mxu0
  %v3699 = vadd.f32 %v3130, %v3698
  %v3700 = vpop.f32.mrf.mxu0
  %v3701 = vadd.f32 %v3132, %v3700
  %v3702 = vand.u32 %v99, 4294901760
  %3703 = vmatprep.mubr.f32.mxu0 %v3702
  %v3704 = vand.u32 %v98, 4294901760
  %3705 = vmatmul.mubr.f32.gmra.mxu0 %v3704
  %v3706 = vpop.f32.mrf.mxu0
  %v3707 = vadd.f32 %v3146, %v3706
  %v3708 = vpop.f32.mrf.mxu0
  %v3709 = vadd.f32 %v3148, %v3708
  %v3710 = vand.u32 %v104, 4294901760
  %3711 = vmatprep.mubr.f32.mxu0 %v3710
  %v3712 = vand.u32 %v103, 4294901760
  %3713 = vmatmul.mubr.f32.gmra.mxu0 %v3712
  %v3714 = vpop.f32.mrf.mxu0
  %v3715 = vadd.f32 %v3162, %v3714
  %v3716 = vpop.f32.mrf.mxu0
  %v3717 = vadd.f32 %v3164, %v3716
  %v3718 = vand.u32 %v109, 4294901760
  %3719 = vmatprep.mubr.f32.mxu0 %v3718
  %v3720 = vand.u32 %v108, 4294901760
  %3721 = vmatmul.mubr.f32.gmra.mxu0 %v3720
  %v3722 = vpop.f32.mrf.mxu0
  %v3723 = vadd.f32 %v3178, %v3722
  %v3724 = vpop.f32.mrf.mxu0
  %v3725 = vadd.f32 %v3180, %v3724
  %3726 = vdwg.mxu0
  %v3727 = vand.u32 %v206, 4294901760
  %v3728 = vsub.f32 %v206, %v3727
  %3729 = vmatprep.subr.mxu0 %v3728
  %v3730 = vand.u32 %v205, 4294901760
  %v3731 = vsub.f32 %v205, %v3730
  %3732 = vmatpush1.msra.mxu0 %v3731
  %v3733 = vand.u32 %v204, 4294901760
  %v3734 = vsub.f32 %v204, %v3733
  %3735 = vmatprep.subr.mxu0 %v3734
  %v3736 = vand.u32 %v203, 4294901760
  %v3737 = vsub.f32 %v203, %v3736
  %3738 = vmatpush1.msra.mxu0 %v3737
  %v3739 = vand.u32 %v202, 4294901760
  %v3740 = vsub.f32 %v202, %v3739
  %3741 = vmatprep.subr.mxu0 %v3740
  %v3742 = vand.u32 %v201, 4294901760
  %v3743 = vsub.f32 %v201, %v3742
  %3744 = vmatpush1.msra.mxu0 %v3743
  %v3745 = vand.u32 %v200, 4294901760
  %v3746 = vsub.f32 %v200, %v3745
  %3747 = vmatprep.subr.mxu0 %v3746
  %v3748 = vand.u32 %v199, 4294901760
  %v3749 = vsub.f32 %v199, %v3748
  %3750 = vmatpush1.msra.mxu0 %v3749
  %v3751 = vand.u32 %v198, 4294901760
  %v3752 = vsub.f32 %v198, %v3751
  %3753 = vmatprep.subr.mxu0 %v3752
  %v3754 = vand.u32 %v197, 4294901760
  %v3755 = vsub.f32 %v197, %v3754
  %3756 = vmatpush1.msra.mxu0 %v3755
  %v3757 = vand.u32 %v196, 4294901760
  %v3758 = vsub.f32 %v196, %v3757
  %3759 = vmatprep.subr.mxu0 %v3758
  %v3760 = vand.u32 %v195, 4294901760
  %v3761 = vsub.f32 %v195, %v3760
  %3762 = vmatpush1.msra.mxu0 %v3761
  %v3763 = vand.u32 %v194, 4294901760
  %v3764 = vsub.f32 %v194, %v3763
  %3765 = vmatprep.subr.mxu0 %v3764
  %v3766 = vand.u32 %v193, 4294901760
  %v3767 = vsub.f32 %v193, %v3766
  %3768 = vmatpush1.msra.mxu0 %v3767
  %v3769 = vand.u32 %v192, 4294901760
  %v3770 = vsub.f32 %v192, %v3769
  %3771 = vmatprep.subr.mxu0 %v3770
  %v3772 = vand.u32 %v191, 4294901760
  %v3773 = vsub.f32 %v191, %v3772
  %3774 = vmatpush1.msra.mxu0 %v3773
  %v3775 = vand.u32 %v190, 4294901760
  %v3776 = vsub.f32 %v190, %v3775
  %3777 = vmatprep.subr.mxu0 %v3776
  %v3778 = vand.u32 %v189, 4294901760
  %v3779 = vsub.f32 %v189, %v3778
  %3780 = vmatpush1.msra.mxu0 %v3779
  %v3781 = vand.u32 %v188, 4294901760
  %v3782 = vsub.f32 %v188, %v3781
  %3783 = vmatprep.subr.mxu0 %v3782
  %v3784 = vand.u32 %v187, 4294901760
  %v3785 = vsub.f32 %v187, %v3784
  %3786 = vmatpush1.msra.mxu0 %v3785
  %v3787 = vand.u32 %v186, 4294901760
  %v3788 = vsub.f32 %v186, %v3787
  %3789 = vmatprep.subr.mxu0 %v3788
  %v3790 = vand.u32 %v185, 4294901760
  %v3791 = vsub.f32 %v185, %v3790
  %3792 = vmatpush1.msra.mxu0 %v3791
  %v3793 = vand.u32 %v184, 4294901760
  %v3794 = vsub.f32 %v184, %v3793
  %3795 = vmatprep.subr.mxu0 %v3794
  %v3796 = vand.u32 %v183, 4294901760
  %v3797 = vsub.f32 %v183, %v3796
  %3798 = vmatpush1.msra.mxu0 %v3797
  %v3799 = vand.u32 %v182, 4294901760
  %v3800 = vsub.f32 %v182, %v3799
  %3801 = vmatprep.subr.mxu0 %v3800
  %v3802 = vand.u32 %v181, 4294901760
  %v3803 = vsub.f32 %v181, %v3802
  %3804 = vmatpush1.msra.mxu0 %v3803
  %v3805 = vand.u32 %v180, 4294901760
  %v3806 = vsub.f32 %v180, %v3805
  %3807 = vmatprep.subr.mxu0 %v3806
  %v3808 = vand.u32 %v179, 4294901760
  %v3809 = vsub.f32 %v179, %v3808
  %3810 = vmatpush1.msra.mxu0 %v3809
  %v3811 = vand.u32 %v178, 4294901760
  %v3812 = vsub.f32 %v178, %v3811
  %3813 = vmatprep.subr.mxu0 %v3812
  %v3814 = vand.u32 %v177, 4294901760
  %v3815 = vsub.f32 %v177, %v3814
  %3816 = vmatpush1.msra.mxu0 %v3815
  %v3817 = vand.u32 %v176, 4294901760
  %v3818 = vsub.f32 %v176, %v3817
  %3819 = vmatprep.subr.mxu0 %v3818
  %v3820 = vand.u32 %v175, 4294901760
  %v3821 = vsub.f32 %v175, %v3820
  %3822 = vmatpush1.msra.mxu0 %v3821
  %v3823 = vand.u32 %v238, 4294901760
  %v3824 = vsub.f32 %v238, %v3823
  %3825 = vmatprep.subr.mxu0 %v3824
  %v3826 = vand.u32 %v237, 4294901760
  %v3827 = vsub.f32 %v237, %v3826
  %3828 = vmatpush2.msra.mxu0 %v3827
  %v3829 = vand.u32 %v236, 4294901760
  %v3830 = vsub.f32 %v236, %v3829
  %3831 = vmatprep.subr.mxu0 %v3830
  %v3832 = vand.u32 %v235, 4294901760
  %v3833 = vsub.f32 %v235, %v3832
  %3834 = vmatpush2.msra.mxu0 %v3833
  %v3835 = vand.u32 %v234, 4294901760
  %v3836 = vsub.f32 %v234, %v3835
  %3837 = vmatprep.subr.mxu0 %v3836
  %v3838 = vand.u32 %v233, 4294901760
  %v3839 = vsub.f32 %v233, %v3838
  %3840 = vmatpush2.msra.mxu0 %v3839
  %v3841 = vand.u32 %v232, 4294901760
  %v3842 = vsub.f32 %v232, %v3841
  %3843 = vmatprep.subr.mxu0 %v3842
  %v3844 = vand.u32 %v231, 4294901760
  %v3845 = vsub.f32 %v231, %v3844
  %3846 = vmatpush2.msra.mxu0 %v3845
  %v3847 = vand.u32 %v230, 4294901760
  %v3848 = vsub.f32 %v230, %v3847
  %3849 = vmatprep.subr.mxu0 %v3848
  %v3850 = vand.u32 %v229, 4294901760
  %v3851 = vsub.f32 %v229, %v3850
  %3852 = vmatpush2.msra.mxu0 %v3851
  %v3853 = vand.u32 %v228, 4294901760
  %v3854 = vsub.f32 %v228, %v3853
  %3855 = vmatprep.subr.mxu0 %v3854
  %v3856 = vand.u32 %v227, 4294901760
  %v3857 = vsub.f32 %v227, %v3856
  %3858 = vmatpush2.msra.mxu0 %v3857
  %v3859 = vand.u32 %v226, 4294901760
  %v3860 = vsub.f32 %v226, %v3859
  %3861 = vmatprep.subr.mxu0 %v3860
  %v3862 = vand.u32 %v225, 4294901760
  %v3863 = vsub.f32 %v225, %v3862
  %3864 = vmatpush2.msra.mxu0 %v3863
  %v3865 = vand.u32 %v224, 4294901760
  %v3866 = vsub.f32 %v224, %v3865
  %3867 = vmatprep.subr.mxu0 %v3866
  %v3868 = vand.u32 %v223, 4294901760
  %v3869 = vsub.f32 %v223, %v3868
  %3870 = vmatpush2.msra.mxu0 %v3869
  %v3871 = vand.u32 %v222, 4294901760
  %v3872 = vsub.f32 %v222, %v3871
  %3873 = vmatprep.subr.mxu0 %v3872
  %v3874 = vand.u32 %v221, 4294901760
  %v3875 = vsub.f32 %v221, %v3874
  %3876 = vmatpush2.msra.mxu0 %v3875
  %v3877 = vand.u32 %v220, 4294901760
  %v3878 = vsub.f32 %v220, %v3877
  %3879 = vmatprep.subr.mxu0 %v3878
  %v3880 = vand.u32 %v219, 4294901760
  %v3881 = vsub.f32 %v219, %v3880
  %3882 = vmatpush2.msra.mxu0 %v3881
  %v3883 = vand.u32 %v218, 4294901760
  %v3884 = vsub.f32 %v218, %v3883
  %3885 = vmatprep.subr.mxu0 %v3884
  %v3886 = vand.u32 %v217, 4294901760
  %v3887 = vsub.f32 %v217, %v3886
  %3888 = vmatpush2.msra.mxu0 %v3887
  %v3889 = vand.u32 %v216, 4294901760
  %v3890 = vsub.f32 %v216, %v3889
  %3891 = vmatprep.subr.mxu0 %v3890
  %v3892 = vand.u32 %v215, 4294901760
  %v3893 = vsub.f32 %v215, %v3892
  %3894 = vmatpush2.msra.mxu0 %v3893
  %v3895 = vand.u32 %v214, 4294901760
  %v3896 = vsub.f32 %v214, %v3895
  %3897 = vmatprep.subr.mxu0 %v3896
  %v3898 = vand.u32 %v213, 4294901760
  %v3899 = vsub.f32 %v213, %v3898
  %3900 = vmatpush2.msra.mxu0 %v3899
  %v3901 = vand.u32 %v212, 4294901760
  %v3902 = vsub.f32 %v212, %v3901
  %3903 = vmatprep.subr.mxu0 %v3902
  %v3904 = vand.u32 %v211, 4294901760
  %v3905 = vsub.f32 %v211, %v3904
  %3906 = vmatpush2.msra.mxu0 %v3905
  %v3907 = vand.u32 %v210, 4294901760
  %v3908 = vsub.f32 %v210, %v3907
  %3909 = vmatprep.subr.mxu0 %v3908
  %v3910 = vand.u32 %v209, 4294901760
  %v3911 = vsub.f32 %v209, %v3910
  %3912 = vmatpush2.msra.mxu0 %v3911
  %v3913 = vand.u32 %v208, 4294901760
  %v3914 = vsub.f32 %v208, %v3913
  %3915 = vmatprep.subr.mxu0 %v3914
  %v3916 = vand.u32 %v207, 4294901760
  %v3917 = vsub.f32 %v207, %v3916
  %3918 = vmatpush2.msra.mxu0 %v3917
  %v3919 = vand.u32 %v14, 4294901760
  %v3920 = vsub.f32 %v14, %v3919
  %3921 = vmatprep.mubr.f32.mxu0 %v3920
  %v3922 = vand.u32 %v13, 4294901760
  %v3923 = vsub.f32 %v13, %v3922
  %3924 = vmatmul.mubr.f32.gmra.mxu0 %v3923
  %v3925 = vpop.f32.mrf.mxu0
  %v3926 = vadd.f32 %v3571, %v3925
  %v3927 = vpop.f32.mrf.mxu0
  %v3928 = vadd.f32 %v3573, %v3927
  %v3929 = vand.u32 %v19, 4294901760
  %v3930 = vsub.f32 %v19, %v3929
  %3931 = vmatprep.mubr.f32.mxu0 %v3930
  %v3932 = vand.u32 %v18, 4294901760
  %v3933 = vsub.f32 %v18, %v3932
  %3934 = vmatmul.mubr.f32.gmra.mxu0 %v3933
  %v3935 = vpop.f32.mrf.mxu0
  %v3936 = vadd.f32 %v3579, %v3935
  %v3937 = vpop.f32.mrf.mxu0
  %v3938 = vadd.f32 %v3581, %v3937
  %v3939 = vand.u32 %v24, 4294901760
  %v3940 = vsub.f32 %v24, %v3939
  %3941 = vmatprep.mubr.f32.mxu0 %v3940
  %v3942 = vand.u32 %v23, 4294901760
  %v3943 = vsub.f32 %v23, %v3942
  %3944 = vmatmul.mubr.f32.gmra.mxu0 %v3943
  %v3945 = vpop.f32.mrf.mxu0
  %v3946 = vadd.f32 %v3587, %v3945
  %v3947 = vpop.f32.mrf.mxu0
  %v3948 = vadd.f32 %v3589, %v3947
  %v3949 = vand.u32 %v29, 4294901760
  %v3950 = vsub.f32 %v29, %v3949
  %3951 = vmatprep.mubr.f32.mxu0 %v3950
  %v3952 = vand.u32 %v28, 4294901760
  %v3953 = vsub.f32 %v28, %v3952
  %3954 = vmatmul.mubr.f32.gmra.mxu0 %v3953
  %v3955 = vpop.f32.mrf.mxu0
  %v3956 = vadd.f32 %v3595, %v3955
  %v3957 = vpop.f32.mrf.mxu0
  %v3958 = vadd.f32 %v3597, %v3957
  %v3959 = vand.u32 %v34, 4294901760
  %v3960 = vsub.f32 %v34, %v3959
  %3961 = vmatprep.mubr.f32.mxu0 %v3960
  %v3962 = vand.u32 %v33, 4294901760
  %v3963 = vsub.f32 %v33, %v3962
  %3964 = vmatmul.mubr.f32.gmra.mxu0 %v3963
  %v3965 = vpop.f32.mrf.mxu0
  %v3966 = vadd.f32 %v3603, %v3965
  %v3967 = vpop.f32.mrf.mxu0
  %v3968 = vadd.f32 %v3605, %v3967
  %v3969 = vand.u32 %v39, 4294901760
  %v3970 = vsub.f32 %v39, %v3969
  %3971 = vmatprep.mubr.f32.mxu0 %v3970
  %v3972 = vand.u32 %v38, 4294901760
  %v3973 = vsub.f32 %v38, %v3972
  %3974 = vmatmul.mubr.f32.gmra.mxu0 %v3973
  %v3975 = vpop.f32.mrf.mxu0
  %v3976 = vadd.f32 %v3611, %v3975
  %v3977 = vpop.f32.mrf.mxu0
  %v3978 = vadd.f32 %v3613, %v3977
  %v3979 = vand.u32 %v44, 4294901760
  %v3980 = vsub.f32 %v44, %v3979
  %3981 = vmatprep.mubr.f32.mxu0 %v3980
  %v3982 = vand.u32 %v43, 4294901760
  %v3983 = vsub.f32 %v43, %v3982
  %3984 = vmatmul.mubr.f32.gmra.mxu0 %v3983
  %v3985 = vpop.f32.mrf.mxu0
  %v3986 = vadd.f32 %v3619, %v3985
  %v3987 = vpop.f32.mrf.mxu0
  %v3988 = vadd.f32 %v3621, %v3987
  %v3989 = vand.u32 %v49, 4294901760
  %v3990 = vsub.f32 %v49, %v3989
  %3991 = vmatprep.mubr.f32.mxu0 %v3990
  %v3992 = vand.u32 %v48, 4294901760
  %v3993 = vsub.f32 %v48, %v3992
  %3994 = vmatmul.mubr.f32.gmra.mxu0 %v3993
  %v3995 = vpop.f32.mrf.mxu0
  %v3996 = vadd.f32 %v3627, %v3995
  %v3997 = vpop.f32.mrf.mxu0
  %v3998 = vadd.f32 %v3629, %v3997
  %v3999 = vand.u32 %v54, 4294901760
  %v4000 = vsub.f32 %v54, %v3999
  %4001 = vmatprep.mubr.f32.mxu0 %v4000
  %v4002 = vand.u32 %v53, 4294901760
  %v4003 = vsub.f32 %v53, %v4002
  %4004 = vmatmul.mubr.f32.gmra.mxu0 %v4003
  %v4005 = vpop.f32.mrf.mxu0
  %v4006 = vadd.f32 %v3635, %v4005
  %v4007 = vpop.f32.mrf.mxu0
  %v4008 = vadd.f32 %v3637, %v4007
  %v4009 = vand.u32 %v59, 4294901760
  %v4010 = vsub.f32 %v59, %v4009
  %4011 = vmatprep.mubr.f32.mxu0 %v4010
  %v4012 = vand.u32 %v58, 4294901760
  %v4013 = vsub.f32 %v58, %v4012
  %4014 = vmatmul.mubr.f32.gmra.mxu0 %v4013
  %v4015 = vpop.f32.mrf.mxu0
  %v4016 = vadd.f32 %v3643, %v4015
  %v4017 = vpop.f32.mrf.mxu0
  %v4018 = vadd.f32 %v3645, %v4017
  %v4019 = vand.u32 %v64, 4294901760
  %v4020 = vsub.f32 %v64, %v4019
  %4021 = vmatprep.mubr.f32.mxu0 %v4020
  %v4022 = vand.u32 %v63, 4294901760
  %v4023 = vsub.f32 %v63, %v4022
  %4024 = vmatmul.mubr.f32.gmra.mxu0 %v4023
  %v4025 = vpop.f32.mrf.mxu0
  %v4026 = vadd.f32 %v3651, %v4025
  %v4027 = vpop.f32.mrf.mxu0
  %v4028 = vadd.f32 %v3653, %v4027
  %v4029 = vand.u32 %v69, 4294901760
  %v4030 = vsub.f32 %v69, %v4029
  %4031 = vmatprep.mubr.f32.mxu0 %v4030
  %v4032 = vand.u32 %v68, 4294901760
  %v4033 = vsub.f32 %v68, %v4032
  %4034 = vmatmul.mubr.f32.gmra.mxu0 %v4033
  %v4035 = vpop.f32.mrf.mxu0
  %v4036 = vadd.f32 %v3659, %v4035
  %v4037 = vpop.f32.mrf.mxu0
  %v4038 = vadd.f32 %v3661, %v4037
  %v4039 = vand.u32 %v74, 4294901760
  %v4040 = vsub.f32 %v74, %v4039
  %4041 = vmatprep.mubr.f32.mxu0 %v4040
  %v4042 = vand.u32 %v73, 4294901760
  %v4043 = vsub.f32 %v73, %v4042
  %4044 = vmatmul.mubr.f32.gmra.mxu0 %v4043
  %v4045 = vpop.f32.mrf.mxu0
  %v4046 = vadd.f32 %v3667, %v4045
  %v4047 = vpop.f32.mrf.mxu0
  %v4048 = vadd.f32 %v3669, %v4047
  %v4049 = vand.u32 %v79, 4294901760
  %v4050 = vsub.f32 %v79, %v4049
  %4051 = vmatprep.mubr.f32.mxu0 %v4050
  %v4052 = vand.u32 %v78, 4294901760
  %v4053 = vsub.f32 %v78, %v4052
  %4054 = vmatmul.mubr.f32.gmra.mxu0 %v4053
  %v4055 = vpop.f32.mrf.mxu0
  %v4056 = vadd.f32 %v3675, %v4055
  %v4057 = vpop.f32.mrf.mxu0
  %v4058 = vadd.f32 %v3677, %v4057
  %v4059 = vand.u32 %v84, 4294901760
  %v4060 = vsub.f32 %v84, %v4059
  %4061 = vmatprep.mubr.f32.mxu0 %v4060
  %v4062 = vand.u32 %v83, 4294901760
  %v4063 = vsub.f32 %v83, %v4062
  %4064 = vmatmul.mubr.f32.gmra.mxu0 %v4063
  %v4065 = vpop.f32.mrf.mxu0
  %v4066 = vadd.f32 %v3683, %v4065
  %v4067 = vpop.f32.mrf.mxu0
  %v4068 = vadd.f32 %v3685, %v4067
  %v4069 = vand.u32 %v89, 4294901760
  %v4070 = vsub.f32 %v89, %v4069
  %4071 = vmatprep.mubr.f32.mxu0 %v4070
  %v4072 = vand.u32 %v88, 4294901760
  %v4073 = vsub.f32 %v88, %v4072
  %4074 = vmatmul.mubr.f32.gmra.mxu0 %v4073
  %v4075 = vpop.f32.mrf.mxu0
  %v4076 = vadd.f32 %v3691, %v4075
  %v4077 = vpop.f32.mrf.mxu0
  %v4078 = vadd.f32 %v3693, %v4077
  %v4079 = vand.u32 %v94, 4294901760
  %v4080 = vsub.f32 %v94, %v4079
  %4081 = vmatprep.mubr.f32.mxu0 %v4080
  %v4082 = vand.u32 %v93, 4294901760
  %v4083 = vsub.f32 %v93, %v4082
  %4084 = vmatmul.mubr.f32.gmra.mxu0 %v4083
  %v4085 = vpop.f32.mrf.mxu0
  %v4086 = vadd.f32 %v3699, %v4085
  %v4087 = vpop.f32.mrf.mxu0
  %v4088 = vadd.f32 %v3701, %v4087
  %v4089 = vand.u32 %v99, 4294901760
  %v4090 = vsub.f32 %v99, %v4089
  %4091 = vmatprep.mubr.f32.mxu0 %v4090
  %v4092 = vand.u32 %v98, 4294901760
  %v4093 = vsub.f32 %v98, %v4092
  %4094 = vmatmul.mubr.f32.gmra.mxu0 %v4093
  %v4095 = vpop.f32.mrf.mxu0
  %v4096 = vadd.f32 %v3707, %v4095
  %v4097 = vpop.f32.mrf.mxu0
  %v4098 = vadd.f32 %v3709, %v4097
  %v4099 = vand.u32 %v104, 4294901760
  %v4100 = vsub.f32 %v104, %v4099
  %4101 = vmatprep.mubr.f32.mxu0 %v4100
  %v4102 = vand.u32 %v103, 4294901760
  %v4103 = vsub.f32 %v103, %v4102
  %4104 = vmatmul.mubr.f32.gmra.mxu0 %v4103
  %v4105 = vpop.f32.mrf.mxu0
  %v4106 = vadd.f32 %v3715, %v4105
  %v4107 = vpop.f32.mrf.mxu0
  %v4108 = vadd.f32 %v3717, %v4107
  %v4109 = vand.u32 %v109, 4294901760
  %v4110 = vsub.f32 %v109, %v4109
  %4111 = vmatprep.mubr.f32.mxu0 %v4110
  %v4112 = vand.u32 %v108, 4294901760
  %v4113 = vsub.f32 %v108, %v4112
  %4114 = vmatmul.mubr.f32.gmra.mxu0 %v4113
  %v4115 = vpop.f32.mrf.mxu0
  %v4116 = vadd.f32 %v3723, %v4115
  %v4117 = vpop.f32.mrf.mxu0
  %v4118 = vadd.f32 %v3725, %v4117
  %4119 = vdwg.mxu0
  %v4120 = vand.u32 %v206, 4294901760
  %4121 = vmatprep.subr.mxu0 %v4120
  %v4122 = vand.u32 %v205, 4294901760
  %4123 = vmatpush1.msra.mxu0 %v4122
  %v4124 = vand.u32 %v204, 4294901760
  %4125 = vmatprep.subr.mxu0 %v4124
  %v4126 = vand.u32 %v203, 4294901760
  %4127 = vmatpush1.msra.mxu0 %v4126
  %v4128 = vand.u32 %v202, 4294901760
  %4129 = vmatprep.subr.mxu0 %v4128
  %v4130 = vand.u32 %v201, 4294901760
  %4131 = vmatpush1.msra.mxu0 %v4130
  %v4132 = vand.u32 %v200, 4294901760
  %4133 = vmatprep.subr.mxu0 %v4132
  %v4134 = vand.u32 %v199, 4294901760
  %4135 = vmatpush1.msra.mxu0 %v4134
  %v4136 = vand.u32 %v198, 4294901760
  %4137 = vmatprep.subr.mxu0 %v4136
  %v4138 = vand.u32 %v197, 4294901760
  %4139 = vmatpush1.msra.mxu0 %v4138
  %v4140 = vand.u32 %v196, 4294901760
  %4141 = vmatprep.subr.mxu0 %v4140
  %v4142 = vand.u32 %v195, 4294901760
  %4143 = vmatpush1.msra.mxu0 %v4142
  %v4144 = vand.u32 %v194, 4294901760
  %4145 = vmatprep.subr.mxu0 %v4144
  %v4146 = vand.u32 %v193, 4294901760
  %4147 = vmatpush1.msra.mxu0 %v4146
  %v4148 = vand.u32 %v192, 4294901760
  %4149 = vmatprep.subr.mxu0 %v4148
  %v4150 = vand.u32 %v191, 4294901760
  %4151 = vmatpush1.msra.mxu0 %v4150
  %v4152 = vand.u32 %v190, 4294901760
  %4153 = vmatprep.subr.mxu0 %v4152
  %v4154 = vand.u32 %v189, 4294901760
  %4155 = vmatpush1.msra.mxu0 %v4154
  %v4156 = vand.u32 %v188, 4294901760
  %4157 = vmatprep.subr.mxu0 %v4156
  %v4158 = vand.u32 %v187, 4294901760
  %4159 = vmatpush1.msra.mxu0 %v4158
  %v4160 = vand.u32 %v186, 4294901760
  %4161 = vmatprep.subr.mxu0 %v4160
  %v4162 = vand.u32 %v185, 4294901760
  %4163 = vmatpush1.msra.mxu0 %v4162
  %v4164 = vand.u32 %v184, 4294901760
  %4165 = vmatprep.subr.mxu0 %v4164
  %v4166 = vand.u32 %v183, 4294901760
  %4167 = vmatpush1.msra.mxu0 %v4166
  %v4168 = vand.u32 %v182, 4294901760
  %4169 = vmatprep.subr.mxu0 %v4168
  %v4170 = vand.u32 %v181, 4294901760
  %4171 = vmatpush1.msra.mxu0 %v4170
  %v4172 = vand.u32 %v180, 4294901760
  %4173 = vmatprep.subr.mxu0 %v4172
  %v4174 = vand.u32 %v179, 4294901760
  %4175 = vmatpush1.msra.mxu0 %v4174
  %v4176 = vand.u32 %v178, 4294901760
  %4177 = vmatprep.subr.mxu0 %v4176
  %v4178 = vand.u32 %v177, 4294901760
  %4179 = vmatpush1.msra.mxu0 %v4178
  %v4180 = vand.u32 %v176, 4294901760
  %4181 = vmatprep.subr.mxu0 %v4180
  %v4182 = vand.u32 %v175, 4294901760
  %4183 = vmatpush1.msra.mxu0 %v4182
  %v4184 = vand.u32 %v238, 4294901760
  %4185 = vmatprep.subr.mxu0 %v4184
  %v4186 = vand.u32 %v237, 4294901760
  %4187 = vmatpush2.msra.mxu0 %v4186
  %v4188 = vand.u32 %v236, 4294901760
  %4189 = vmatprep.subr.mxu0 %v4188
  %v4190 = vand.u32 %v235, 4294901760
  %4191 = vmatpush2.msra.mxu0 %v4190
  %v4192 = vand.u32 %v234, 4294901760
  %4193 = vmatprep.subr.mxu0 %v4192
  %v4194 = vand.u32 %v233, 4294901760
  %4195 = vmatpush2.msra.mxu0 %v4194
  %v4196 = vand.u32 %v232, 4294901760
  %4197 = vmatprep.subr.mxu0 %v4196
  %v4198 = vand.u32 %v231, 4294901760
  %4199 = vmatpush2.msra.mxu0 %v4198
  %v4200 = vand.u32 %v230, 4294901760
  %4201 = vmatprep.subr.mxu0 %v4200
  %v4202 = vand.u32 %v229, 4294901760
  %4203 = vmatpush2.msra.mxu0 %v4202
  %v4204 = vand.u32 %v228, 4294901760
  %4205 = vmatprep.subr.mxu0 %v4204
  %v4206 = vand.u32 %v227, 4294901760
  %4207 = vmatpush2.msra.mxu0 %v4206
  %v4208 = vand.u32 %v226, 4294901760
  %4209 = vmatprep.subr.mxu0 %v4208
  %v4210 = vand.u32 %v225, 4294901760
  %4211 = vmatpush2.msra.mxu0 %v4210
  %v4212 = vand.u32 %v224, 4294901760
  %4213 = vmatprep.subr.mxu0 %v4212
  %v4214 = vand.u32 %v223, 4294901760
  %4215 = vmatpush2.msra.mxu0 %v4214
  %v4216 = vand.u32 %v222, 4294901760
  %4217 = vmatprep.subr.mxu0 %v4216
  %v4218 = vand.u32 %v221, 4294901760
  %4219 = vmatpush2.msra.mxu0 %v4218
  %v4220 = vand.u32 %v220, 4294901760
  %4221 = vmatprep.subr.mxu0 %v4220
  %v4222 = vand.u32 %v219, 4294901760
  %4223 = vmatpush2.msra.mxu0 %v4222
  %v4224 = vand.u32 %v218, 4294901760
  %4225 = vmatprep.subr.mxu0 %v4224
  %v4226 = vand.u32 %v217, 4294901760
  %4227 = vmatpush2.msra.mxu0 %v4226
  %v4228 = vand.u32 %v216, 4294901760
  %4229 = vmatprep.subr.mxu0 %v4228
  %v4230 = vand.u32 %v215, 4294901760
  %4231 = vmatpush2.msra.mxu0 %v4230
  %v4232 = vand.u32 %v214, 4294901760
  %4233 = vmatprep.subr.mxu0 %v4232
  %v4234 = vand.u32 %v213, 4294901760
  %4235 = vmatpush2.msra.mxu0 %v4234
  %v4236 = vand.u32 %v212, 4294901760
  %4237 = vmatprep.subr.mxu0 %v4236
  %v4238 = vand.u32 %v211, 4294901760
  %4239 = vmatpush2.msra.mxu0 %v4238
  %v4240 = vand.u32 %v210, 4294901760
  %4241 = vmatprep.subr.mxu0 %v4240
  %v4242 = vand.u32 %v209, 4294901760
  %4243 = vmatpush2.msra.mxu0 %v4242
  %v4244 = vand.u32 %v208, 4294901760
  %4245 = vmatprep.subr.mxu0 %v4244
  %v4246 = vand.u32 %v207, 4294901760
  %4247 = vmatpush2.msra.mxu0 %v4246
  %v4248 = vand.u32 %v14, 4294901760
  %v4249 = vsub.f32 %v14, %v4248
  %v4250 = vand.u32 %v4249, 4294901760
  %4251 = vmatprep.mubr.f32.mxu0 %v4250
  %v4252 = vand.u32 %v13, 4294901760
  %v4253 = vsub.f32 %v13, %v4252
  %v4254 = vand.u32 %v4253, 4294901760
  %4255 = vmatmul.mubr.f32.gmra.mxu0 %v4254
  %v4256 = vpop.f32.mrf.mxu0
  %v4257 = vadd.f32 %v3926, %v4256
  %v4258 = vpop.f32.mrf.mxu0
  %v4259 = vadd.f32 %v3928, %v4258
  %v4260 = vand.u32 %v19, 4294901760
  %v4261 = vsub.f32 %v19, %v4260
  %v4262 = vand.u32 %v4261, 4294901760
  %4263 = vmatprep.mubr.f32.mxu0 %v4262
  %v4264 = vand.u32 %v18, 4294901760
  %v4265 = vsub.f32 %v18, %v4264
  %v4266 = vand.u32 %v4265, 4294901760
  %4267 = vmatmul.mubr.f32.gmra.mxu0 %v4266
  %v4268 = vpop.f32.mrf.mxu0
  %v4269 = vadd.f32 %v3936, %v4268
  %v4270 = vpop.f32.mrf.mxu0
  %v4271 = vadd.f32 %v3938, %v4270
  %v4272 = vand.u32 %v24, 4294901760
  %v4273 = vsub.f32 %v24, %v4272
  %v4274 = vand.u32 %v4273, 4294901760
  %4275 = vmatprep.mubr.f32.mxu0 %v4274
  %v4276 = vand.u32 %v23, 4294901760
  %v4277 = vsub.f32 %v23, %v4276
  %v4278 = vand.u32 %v4277, 4294901760
  %4279 = vmatmul.mubr.f32.gmra.mxu0 %v4278
  %v4280 = vpop.f32.mrf.mxu0
  %v4281 = vadd.f32 %v3946, %v4280
  %v4282 = vpop.f32.mrf.mxu0
  %v4283 = vadd.f32 %v3948, %v4282
  %v4284 = vand.u32 %v29, 4294901760
  %v4285 = vsub.f32 %v29, %v4284
  %v4286 = vand.u32 %v4285, 4294901760
  %4287 = vmatprep.mubr.f32.mxu0 %v4286
  %v4288 = vand.u32 %v28, 4294901760
  %v4289 = vsub.f32 %v28, %v4288
  %v4290 = vand.u32 %v4289, 4294901760
  %4291 = vmatmul.mubr.f32.gmra.mxu0 %v4290
  %v4292 = vpop.f32.mrf.mxu0
  %v4293 = vadd.f32 %v3956, %v4292
  %v4294 = vpop.f32.mrf.mxu0
  %v4295 = vadd.f32 %v3958, %v4294
  %v4296 = vand.u32 %v34, 4294901760
  %v4297 = vsub.f32 %v34, %v4296
  %v4298 = vand.u32 %v4297, 4294901760
  %4299 = vmatprep.mubr.f32.mxu0 %v4298
  %v4300 = vand.u32 %v33, 4294901760
  %v4301 = vsub.f32 %v33, %v4300
  %v4302 = vand.u32 %v4301, 4294901760
  %4303 = vmatmul.mubr.f32.gmra.mxu0 %v4302
  %v4304 = vpop.f32.mrf.mxu0
  %v4305 = vadd.f32 %v3966, %v4304
  %v4306 = vpop.f32.mrf.mxu0
  %v4307 = vadd.f32 %v3968, %v4306
  %v4308 = vand.u32 %v39, 4294901760
  %v4309 = vsub.f32 %v39, %v4308
  %v4310 = vand.u32 %v4309, 4294901760
  %4311 = vmatprep.mubr.f32.mxu0 %v4310
  %v4312 = vand.u32 %v38, 4294901760
  %v4313 = vsub.f32 %v38, %v4312
  %v4314 = vand.u32 %v4313, 4294901760
  %4315 = vmatmul.mubr.f32.gmra.mxu0 %v4314
  %v4316 = vpop.f32.mrf.mxu0
  %v4317 = vadd.f32 %v3976, %v4316
  %v4318 = vpop.f32.mrf.mxu0
  %v4319 = vadd.f32 %v3978, %v4318
  %v4320 = vand.u32 %v44, 4294901760
  %v4321 = vsub.f32 %v44, %v4320
  %v4322 = vand.u32 %v4321, 4294901760
  %4323 = vmatprep.mubr.f32.mxu0 %v4322
  %v4324 = vand.u32 %v43, 4294901760
  %v4325 = vsub.f32 %v43, %v4324
  %v4326 = vand.u32 %v4325, 4294901760
  %4327 = vmatmul.mubr.f32.gmra.mxu0 %v4326
  %v4328 = vpop.f32.mrf.mxu0
  %v4329 = vadd.f32 %v3986, %v4328
  %v4330 = vpop.f32.mrf.mxu0
  %v4331 = vadd.f32 %v3988, %v4330
  %v4332 = vand.u32 %v49, 4294901760
  %v4333 = vsub.f32 %v49, %v4332
  %v4334 = vand.u32 %v4333, 4294901760
  %4335 = vmatprep.mubr.f32.mxu0 %v4334
  %v4336 = vand.u32 %v48, 4294901760
  %v4337 = vsub.f32 %v48, %v4336
  %v4338 = vand.u32 %v4337, 4294901760
  %4339 = vmatmul.mubr.f32.gmra.mxu0 %v4338
  %v4340 = vpop.f32.mrf.mxu0
  %v4341 = vadd.f32 %v3996, %v4340
  %v4342 = vpop.f32.mrf.mxu0
  %v4343 = vadd.f32 %v3998, %v4342
  %v4344 = vand.u32 %v54, 4294901760
  %v4345 = vsub.f32 %v54, %v4344
  %v4346 = vand.u32 %v4345, 4294901760
  %4347 = vmatprep.mubr.f32.mxu0 %v4346
  %v4348 = vand.u32 %v53, 4294901760
  %v4349 = vsub.f32 %v53, %v4348
  %v4350 = vand.u32 %v4349, 4294901760
  %4351 = vmatmul.mubr.f32.gmra.mxu0 %v4350
  %v4352 = vpop.f32.mrf.mxu0
  %v4353 = vadd.f32 %v4006, %v4352
  %v4354 = vpop.f32.mrf.mxu0
  %v4355 = vadd.f32 %v4008, %v4354
  %v4356 = vand.u32 %v59, 4294901760
  %v4357 = vsub.f32 %v59, %v4356
  %v4358 = vand.u32 %v4357, 4294901760
  %4359 = vmatprep.mubr.f32.mxu0 %v4358
  %v4360 = vand.u32 %v58, 4294901760
  %v4361 = vsub.f32 %v58, %v4360
  %v4362 = vand.u32 %v4361, 4294901760
  %4363 = vmatmul.mubr.f32.gmra.mxu0 %v4362
  %v4364 = vpop.f32.mrf.mxu0
  %v4365 = vadd.f32 %v4016, %v4364
  %v4366 = vpop.f32.mrf.mxu0
  %v4367 = vadd.f32 %v4018, %v4366
  %v4368 = vand.u32 %v64, 4294901760
  %v4369 = vsub.f32 %v64, %v4368
  %v4370 = vand.u32 %v4369, 4294901760
  %4371 = vmatprep.mubr.f32.mxu0 %v4370
  %v4372 = vand.u32 %v63, 4294901760
  %v4373 = vsub.f32 %v63, %v4372
  %v4374 = vand.u32 %v4373, 4294901760
  %4375 = vmatmul.mubr.f32.gmra.mxu0 %v4374
  %v4376 = vpop.f32.mrf.mxu0
  %v4377 = vadd.f32 %v4026, %v4376
  %v4378 = vpop.f32.mrf.mxu0
  %v4379 = vadd.f32 %v4028, %v4378
  %v4380 = vand.u32 %v69, 4294901760
  %v4381 = vsub.f32 %v69, %v4380
  %v4382 = vand.u32 %v4381, 4294901760
  %4383 = vmatprep.mubr.f32.mxu0 %v4382
  %v4384 = vand.u32 %v68, 4294901760
  %v4385 = vsub.f32 %v68, %v4384
  %v4386 = vand.u32 %v4385, 4294901760
  %4387 = vmatmul.mubr.f32.gmra.mxu0 %v4386
  %v4388 = vpop.f32.mrf.mxu0
  %v4389 = vadd.f32 %v4036, %v4388
  %v4390 = vpop.f32.mrf.mxu0
  %v4391 = vadd.f32 %v4038, %v4390
  %v4392 = vand.u32 %v74, 4294901760
  %v4393 = vsub.f32 %v74, %v4392
  %v4394 = vand.u32 %v4393, 4294901760
  %4395 = vmatprep.mubr.f32.mxu0 %v4394
  %v4396 = vand.u32 %v73, 4294901760
  %v4397 = vsub.f32 %v73, %v4396
  %v4398 = vand.u32 %v4397, 4294901760
  %4399 = vmatmul.mubr.f32.gmra.mxu0 %v4398
  %v4400 = vpop.f32.mrf.mxu0
  %v4401 = vadd.f32 %v4046, %v4400
  %v4402 = vpop.f32.mrf.mxu0
  %v4403 = vadd.f32 %v4048, %v4402
  %v4404 = vand.u32 %v79, 4294901760
  %v4405 = vsub.f32 %v79, %v4404
  %v4406 = vand.u32 %v4405, 4294901760
  %4407 = vmatprep.mubr.f32.mxu0 %v4406
  %v4408 = vand.u32 %v78, 4294901760
  %v4409 = vsub.f32 %v78, %v4408
  %v4410 = vand.u32 %v4409, 4294901760
  %4411 = vmatmul.mubr.f32.gmra.mxu0 %v4410
  %v4412 = vpop.f32.mrf.mxu0
  %v4413 = vadd.f32 %v4056, %v4412
  %v4414 = vpop.f32.mrf.mxu0
  %v4415 = vadd.f32 %v4058, %v4414
  %v4416 = vand.u32 %v84, 4294901760
  %v4417 = vsub.f32 %v84, %v4416
  %v4418 = vand.u32 %v4417, 4294901760
  %4419 = vmatprep.mubr.f32.mxu0 %v4418
  %v4420 = vand.u32 %v83, 4294901760
  %v4421 = vsub.f32 %v83, %v4420
  %v4422 = vand.u32 %v4421, 4294901760
  %4423 = vmatmul.mubr.f32.gmra.mxu0 %v4422
  %v4424 = vpop.f32.mrf.mxu0
  %v4425 = vadd.f32 %v4066, %v4424
  %v4426 = vpop.f32.mrf.mxu0
  %v4427 = vadd.f32 %v4068, %v4426
  %v4428 = vand.u32 %v89, 4294901760
  %v4429 = vsub.f32 %v89, %v4428
  %v4430 = vand.u32 %v4429, 4294901760
  %4431 = vmatprep.mubr.f32.mxu0 %v4430
  %v4432 = vand.u32 %v88, 4294901760
  %v4433 = vsub.f32 %v88, %v4432
  %v4434 = vand.u32 %v4433, 4294901760
  %4435 = vmatmul.mubr.f32.gmra.mxu0 %v4434
  %v4436 = vpop.f32.mrf.mxu0
  %v4437 = vadd.f32 %v4076, %v4436
  %v4438 = vpop.f32.mrf.mxu0
  %v4439 = vadd.f32 %v4078, %v4438
  %v4440 = vand.u32 %v94, 4294901760
  %v4441 = vsub.f32 %v94, %v4440
  %v4442 = vand.u32 %v4441, 4294901760
  %4443 = vmatprep.mubr.f32.mxu0 %v4442
  %v4444 = vand.u32 %v93, 4294901760
  %v4445 = vsub.f32 %v93, %v4444
  %v4446 = vand.u32 %v4445, 4294901760
  %4447 = vmatmul.mubr.f32.gmra.mxu0 %v4446
  %v4448 = vpop.f32.mrf.mxu0
  %v4449 = vadd.f32 %v4086, %v4448
  %v4450 = vpop.f32.mrf.mxu0
  %v4451 = vadd.f32 %v4088, %v4450
  %v4452 = vand.u32 %v99, 4294901760
  %v4453 = vsub.f32 %v99, %v4452
  %v4454 = vand.u32 %v4453, 4294901760
  %4455 = vmatprep.mubr.f32.mxu0 %v4454
  %v4456 = vand.u32 %v98, 4294901760
  %v4457 = vsub.f32 %v98, %v4456
  %v4458 = vand.u32 %v4457, 4294901760
  %4459 = vmatmul.mubr.f32.gmra.mxu0 %v4458
  %v4460 = vpop.f32.mrf.mxu0
  %v4461 = vadd.f32 %v4096, %v4460
  %v4462 = vpop.f32.mrf.mxu0
  %v4463 = vadd.f32 %v4098, %v4462
  %v4464 = vand.u32 %v104, 4294901760
  %v4465 = vsub.f32 %v104, %v4464
  %v4466 = vand.u32 %v4465, 4294901760
  %4467 = vmatprep.mubr.f32.mxu0 %v4466
  %v4468 = vand.u32 %v103, 4294901760
  %v4469 = vsub.f32 %v103, %v4468
  %v4470 = vand.u32 %v4469, 4294901760
  %4471 = vmatmul.mubr.f32.gmra.mxu0 %v4470
  %v4472 = vpop.f32.mrf.mxu0
  %v4473 = vadd.f32 %v4106, %v4472
  %v4474 = vpop.f32.mrf.mxu0
  %v4475 = vadd.f32 %v4108, %v4474
  %v4476 = vand.u32 %v109, 4294901760
  %v4477 = vsub.f32 %v109, %v4476
  %v4478 = vand.u32 %v4477, 4294901760
  %4479 = vmatprep.mubr.f32.mxu0 %v4478
  %v4480 = vand.u32 %v108, 4294901760
  %v4481 = vsub.f32 %v108, %v4480
  %v4482 = vand.u32 %v4481, 4294901760
  %4483 = vmatmul.mubr.f32.gmra.mxu0 %v4482
  %v4484 = vpop.f32.mrf.mxu0
  %v4485 = vadd.f32 %v4116, %v4484
  %v4486 = vpop.f32.mrf.mxu0
  %v4487 = vadd.f32 %v4118, %v4486
  %4488 = vdwg.mxu0
  %v4489 = vand.u32 %v206, 4294901760
  %v4490 = vsub.f32 %v206, %v4489
  %v4491 = vand.u32 %v4490, 4294901760
  %4492 = vmatprep.subr.mxu0 %v4491
  %v4493 = vand.u32 %v205, 4294901760
  %v4494 = vsub.f32 %v205, %v4493
  %v4495 = vand.u32 %v4494, 4294901760
  %4496 = vmatpush1.msra.mxu0 %v4495
  %v4497 = vand.u32 %v204, 4294901760
  %v4498 = vsub.f32 %v204, %v4497
  %v4499 = vand.u32 %v4498, 4294901760
  %4500 = vmatprep.subr.mxu0 %v4499
  %v4501 = vand.u32 %v203, 4294901760
  %v4502 = vsub.f32 %v203, %v4501
  %v4503 = vand.u32 %v4502, 4294901760
  %4504 = vmatpush1.msra.mxu0 %v4503
  %v4505 = vand.u32 %v202, 4294901760
  %v4506 = vsub.f32 %v202, %v4505
  %v4507 = vand.u32 %v4506, 4294901760
  %4508 = vmatprep.subr.mxu0 %v4507
  %v4509 = vand.u32 %v201, 4294901760
  %v4510 = vsub.f32 %v201, %v4509
  %v4511 = vand.u32 %v4510, 4294901760
  %4512 = vmatpush1.msra.mxu0 %v4511
  %v4513 = vand.u32 %v200, 4294901760
  %v4514 = vsub.f32 %v200, %v4513
  %v4515 = vand.u32 %v4514, 4294901760
  %4516 = vmatprep.subr.mxu0 %v4515
  %v4517 = vand.u32 %v199, 4294901760
  %v4518 = vsub.f32 %v199, %v4517
  %v4519 = vand.u32 %v4518, 4294901760
  %4520 = vmatpush1.msra.mxu0 %v4519
  %v4521 = vand.u32 %v198, 4294901760
  %v4522 = vsub.f32 %v198, %v4521
  %v4523 = vand.u32 %v4522, 4294901760
  %4524 = vmatprep.subr.mxu0 %v4523
  %v4525 = vand.u32 %v197, 4294901760
  %v4526 = vsub.f32 %v197, %v4525
  %v4527 = vand.u32 %v4526, 4294901760
  %4528 = vmatpush1.msra.mxu0 %v4527
  %v4529 = vand.u32 %v196, 4294901760
  %v4530 = vsub.f32 %v196, %v4529
  %v4531 = vand.u32 %v4530, 4294901760
  %4532 = vmatprep.subr.mxu0 %v4531
  %v4533 = vand.u32 %v195, 4294901760
  %v4534 = vsub.f32 %v195, %v4533
  %v4535 = vand.u32 %v4534, 4294901760
  %4536 = vmatpush1.msra.mxu0 %v4535
  %v4537 = vand.u32 %v194, 4294901760
  %v4538 = vsub.f32 %v194, %v4537
  %v4539 = vand.u32 %v4538, 4294901760
  %4540 = vmatprep.subr.mxu0 %v4539
  %v4541 = vand.u32 %v193, 4294901760
  %v4542 = vsub.f32 %v193, %v4541
  %v4543 = vand.u32 %v4542, 4294901760
  %4544 = vmatpush1.msra.mxu0 %v4543
  %v4545 = vand.u32 %v192, 4294901760
  %v4546 = vsub.f32 %v192, %v4545
  %v4547 = vand.u32 %v4546, 4294901760
  %4548 = vmatprep.subr.mxu0 %v4547
  %v4549 = vand.u32 %v191, 4294901760
  %v4550 = vsub.f32 %v191, %v4549
  %v4551 = vand.u32 %v4550, 4294901760
  %4552 = vmatpush1.msra.mxu0 %v4551
  %v4553 = vand.u32 %v190, 4294901760
  %v4554 = vsub.f32 %v190, %v4553
  %v4555 = vand.u32 %v4554, 4294901760
  %4556 = vmatprep.subr.mxu0 %v4555
  %v4557 = vand.u32 %v189, 4294901760
  %v4558 = vsub.f32 %v189, %v4557
  %v4559 = vand.u32 %v4558, 4294901760
  %4560 = vmatpush1.msra.mxu0 %v4559
  %v4561 = vand.u32 %v188, 4294901760
  %v4562 = vsub.f32 %v188, %v4561
  %v4563 = vand.u32 %v4562, 4294901760
  %4564 = vmatprep.subr.mxu0 %v4563
  %v4565 = vand.u32 %v187, 4294901760
  %v4566 = vsub.f32 %v187, %v4565
  %v4567 = vand.u32 %v4566, 4294901760
  %4568 = vmatpush1.msra.mxu0 %v4567
  %v4569 = vand.u32 %v186, 4294901760
  %v4570 = vsub.f32 %v186, %v4569
  %v4571 = vand.u32 %v4570, 4294901760
  %4572 = vmatprep.subr.mxu0 %v4571
  %v4573 = vand.u32 %v185, 4294901760
  %v4574 = vsub.f32 %v185, %v4573
  %v4575 = vand.u32 %v4574, 4294901760
  %4576 = vmatpush1.msra.mxu0 %v4575
  %v4577 = vand.u32 %v184, 4294901760
  %v4578 = vsub.f32 %v184, %v4577
  %v4579 = vand.u32 %v4578, 4294901760
  %4580 = vmatprep.subr.mxu0 %v4579
  %v4581 = vand.u32 %v183, 4294901760
  %v4582 = vsub.f32 %v183, %v4581
  %v4583 = vand.u32 %v4582, 4294901760
  %4584 = vmatpush1.msra.mxu0 %v4583
  %v4585 = vand.u32 %v182, 4294901760
  %v4586 = vsub.f32 %v182, %v4585
  %v4587 = vand.u32 %v4586, 4294901760
  %4588 = vmatprep.subr.mxu0 %v4587
  %v4589 = vand.u32 %v181, 4294901760
  %v4590 = vsub.f32 %v181, %v4589
  %v4591 = vand.u32 %v4590, 4294901760
  %4592 = vmatpush1.msra.mxu0 %v4591
  %v4593 = vand.u32 %v180, 4294901760
  %v4594 = vsub.f32 %v180, %v4593
  %v4595 = vand.u32 %v4594, 4294901760
  %4596 = vmatprep.subr.mxu0 %v4595
  %v4597 = vand.u32 %v179, 4294901760
  %v4598 = vsub.f32 %v179, %v4597
  %v4599 = vand.u32 %v4598, 4294901760
  %4600 = vmatpush1.msra.mxu0 %v4599
  %v4601 = vand.u32 %v178, 4294901760
  %v4602 = vsub.f32 %v178, %v4601
  %v4603 = vand.u32 %v4602, 4294901760
  %4604 = vmatprep.subr.mxu0 %v4603
  %v4605 = vand.u32 %v177, 4294901760
  %v4606 = vsub.f32 %v177, %v4605
  %v4607 = vand.u32 %v4606, 4294901760
  %4608 = vmatpush1.msra.mxu0 %v4607
  %v4609 = vand.u32 %v176, 4294901760
  %v4610 = vsub.f32 %v176, %v4609
  %v4611 = vand.u32 %v4610, 4294901760
  %4612 = vmatprep.subr.mxu0 %v4611
  %v4613 = vand.u32 %v175, 4294901760
  %v4614 = vsub.f32 %v175, %v4613
  %v4615 = vand.u32 %v4614, 4294901760
  %4616 = vmatpush1.msra.mxu0 %v4615
  %v4617 = vand.u32 %v238, 4294901760
  %v4618 = vsub.f32 %v238, %v4617
  %v4619 = vand.u32 %v4618, 4294901760
  %4620 = vmatprep.subr.mxu0 %v4619
  %v4621 = vand.u32 %v237, 4294901760
  %v4622 = vsub.f32 %v237, %v4621
  %v4623 = vand.u32 %v4622, 4294901760
  %4624 = vmatpush2.msra.mxu0 %v4623
  %v4625 = vand.u32 %v236, 4294901760
  %v4626 = vsub.f32 %v236, %v4625
  %v4627 = vand.u32 %v4626, 4294901760
  %4628 = vmatprep.subr.mxu0 %v4627
  %v4629 = vand.u32 %v235, 4294901760
  %v4630 = vsub.f32 %v235, %v4629
  %v4631 = vand.u32 %v4630, 4294901760
  %4632 = vmatpush2.msra.mxu0 %v4631
  %v4633 = vand.u32 %v234, 4294901760
  %v4634 = vsub.f32 %v234, %v4633
  %v4635 = vand.u32 %v4634, 4294901760
  %4636 = vmatprep.subr.mxu0 %v4635
  %v4637 = vand.u32 %v233, 4294901760
  %v4638 = vsub.f32 %v233, %v4637
  %v4639 = vand.u32 %v4638, 4294901760
  %4640 = vmatpush2.msra.mxu0 %v4639
  %v4641 = vand.u32 %v232, 4294901760
  %v4642 = vsub.f32 %v232, %v4641
  %v4643 = vand.u32 %v4642, 4294901760
  %4644 = vmatprep.subr.mxu0 %v4643
  %v4645 = vand.u32 %v231, 4294901760
  %v4646 = vsub.f32 %v231, %v4645
  %v4647 = vand.u32 %v4646, 4294901760
  %4648 = vmatpush2.msra.mxu0 %v4647
  %v4649 = vand.u32 %v230, 4294901760
  %v4650 = vsub.f32 %v230, %v4649
  %v4651 = vand.u32 %v4650, 4294901760
  %4652 = vmatprep.subr.mxu0 %v4651
  %v4653 = vand.u32 %v229, 4294901760
  %v4654 = vsub.f32 %v229, %v4653
  %v4655 = vand.u32 %v4654, 4294901760
  %4656 = vmatpush2.msra.mxu0 %v4655
  %v4657 = vand.u32 %v228, 4294901760
  %v4658 = vsub.f32 %v228, %v4657
  %v4659 = vand.u32 %v4658, 4294901760
  %4660 = vmatprep.subr.mxu0 %v4659
  %v4661 = vand.u32 %v227, 4294901760
  %v4662 = vsub.f32 %v227, %v4661
  %v4663 = vand.u32 %v4662, 4294901760
  %4664 = vmatpush2.msra.mxu0 %v4663
  %v4665 = vand.u32 %v226, 4294901760
  %v4666 = vsub.f32 %v226, %v4665
  %v4667 = vand.u32 %v4666, 4294901760
  %4668 = vmatprep.subr.mxu0 %v4667
  %v4669 = vand.u32 %v225, 4294901760
  %v4670 = vsub.f32 %v225, %v4669
  %v4671 = vand.u32 %v4670, 4294901760
  %4672 = vmatpush2.msra.mxu0 %v4671
  %v4673 = vand.u32 %v224, 4294901760
  %v4674 = vsub.f32 %v224, %v4673
  %v4675 = vand.u32 %v4674, 4294901760
  %4676 = vmatprep.subr.mxu0 %v4675
  %v4677 = vand.u32 %v223, 4294901760
  %v4678 = vsub.f32 %v223, %v4677
  %v4679 = vand.u32 %v4678, 4294901760
  %4680 = vmatpush2.msra.mxu0 %v4679
  %v4681 = vand.u32 %v222, 4294901760
  %v4682 = vsub.f32 %v222, %v4681
  %v4683 = vand.u32 %v4682, 4294901760
  %4684 = vmatprep.subr.mxu0 %v4683
  %v4685 = vand.u32 %v221, 4294901760
  %v4686 = vsub.f32 %v221, %v4685
  %v4687 = vand.u32 %v4686, 4294901760
  %4688 = vmatpush2.msra.mxu0 %v4687
  %v4689 = vand.u32 %v220, 4294901760
  %v4690 = vsub.f32 %v220, %v4689
  %v4691 = vand.u32 %v4690, 4294901760
  %4692 = vmatprep.subr.mxu0 %v4691
  %v4693 = vand.u32 %v219, 4294901760
  %v4694 = vsub.f32 %v219, %v4693
  %v4695 = vand.u32 %v4694, 4294901760
  %4696 = vmatpush2.msra.mxu0 %v4695
  %v4697 = vand.u32 %v218, 4294901760
  %v4698 = vsub.f32 %v218, %v4697
  %v4699 = vand.u32 %v4698, 4294901760
  %4700 = vmatprep.subr.mxu0 %v4699
  %v4701 = vand.u32 %v217, 4294901760
  %v4702 = vsub.f32 %v217, %v4701
  %v4703 = vand.u32 %v4702, 4294901760
  %4704 = vmatpush2.msra.mxu0 %v4703
  %v4705 = vand.u32 %v216, 4294901760
  %v4706 = vsub.f32 %v216, %v4705
  %v4707 = vand.u32 %v4706, 4294901760
  %4708 = vmatprep.subr.mxu0 %v4707
  %v4709 = vand.u32 %v215, 4294901760
  %v4710 = vsub.f32 %v215, %v4709
  %v4711 = vand.u32 %v4710, 4294901760
  %4712 = vmatpush2.msra.mxu0 %v4711
  %v4713 = vand.u32 %v214, 4294901760
  %v4714 = vsub.f32 %v214, %v4713
  %v4715 = vand.u32 %v4714, 4294901760
  %4716 = vmatprep.subr.mxu0 %v4715
  %v4717 = vand.u32 %v213, 4294901760
  %v4718 = vsub.f32 %v213, %v4717
  %v4719 = vand.u32 %v4718, 4294901760
  %4720 = vmatpush2.msra.mxu0 %v4719
  %v4721 = vand.u32 %v212, 4294901760
  %v4722 = vsub.f32 %v212, %v4721
  %v4723 = vand.u32 %v4722, 4294901760
  %4724 = vmatprep.subr.mxu0 %v4723
  %v4725 = vand.u32 %v211, 4294901760
  %v4726 = vsub.f32 %v211, %v4725
  %v4727 = vand.u32 %v4726, 4294901760
  %4728 = vmatpush2.msra.mxu0 %v4727
  %v4729 = vand.u32 %v210, 4294901760
  %v4730 = vsub.f32 %v210, %v4729
  %v4731 = vand.u32 %v4730, 4294901760
  %4732 = vmatprep.subr.mxu0 %v4731
  %v4733 = vand.u32 %v209, 4294901760
  %v4734 = vsub.f32 %v209, %v4733
  %v4735 = vand.u32 %v4734, 4294901760
  %4736 = vmatpush2.msra.mxu0 %v4735
  %v4737 = vand.u32 %v208, 4294901760
  %v4738 = vsub.f32 %v208, %v4737
  %v4739 = vand.u32 %v4738, 4294901760
  %4740 = vmatprep.subr.mxu0 %v4739
  %v4741 = vand.u32 %v207, 4294901760
  %v4742 = vsub.f32 %v207, %v4741
  %v4743 = vand.u32 %v4742, 4294901760
  %4744 = vmatpush2.msra.mxu0 %v4743
  %v4745 = vand.u32 %v14, 4294901760
  %4746 = vmatprep.mubr.f32.mxu0 %v4745
  %v4747 = vand.u32 %v13, 4294901760
  %4748 = vmatmul.mubr.f32.gmra.mxu0 %v4747
  %v4749 = vpop.f32.mrf.mxu0
  %v4750 = vadd.f32 %v4257, %v4749
  %v4751 = vpop.f32.mrf.mxu0
  %v4752 = vadd.f32 %v4259, %v4751
  %v4753 = vand.u32 %v19, 4294901760
  %4754 = vmatprep.mubr.f32.mxu0 %v4753
  %v4755 = vand.u32 %v18, 4294901760
  %4756 = vmatmul.mubr.f32.gmra.mxu0 %v4755
  %v4757 = vpop.f32.mrf.mxu0
  %v4758 = vadd.f32 %v4269, %v4757
  %v4759 = vpop.f32.mrf.mxu0
  %v4760 = vadd.f32 %v4271, %v4759
  %v4761 = vand.u32 %v24, 4294901760
  %4762 = vmatprep.mubr.f32.mxu0 %v4761
  %v4763 = vand.u32 %v23, 4294901760
  %4764 = vmatmul.mubr.f32.gmra.mxu0 %v4763
  %v4765 = vpop.f32.mrf.mxu0
  %v4766 = vadd.f32 %v4281, %v4765
  %v4767 = vpop.f32.mrf.mxu0
  %v4768 = vadd.f32 %v4283, %v4767
  %v4769 = vand.u32 %v29, 4294901760
  %4770 = vmatprep.mubr.f32.mxu0 %v4769
  %v4771 = vand.u32 %v28, 4294901760
  %4772 = vmatmul.mubr.f32.gmra.mxu0 %v4771
  %v4773 = vpop.f32.mrf.mxu0
  %v4774 = vadd.f32 %v4293, %v4773
  %v4775 = vpop.f32.mrf.mxu0
  %v4776 = vadd.f32 %v4295, %v4775
  %v4777 = vand.u32 %v34, 4294901760
  %4778 = vmatprep.mubr.f32.mxu0 %v4777
  %v4779 = vand.u32 %v33, 4294901760
  %4780 = vmatmul.mubr.f32.gmra.mxu0 %v4779
  %v4781 = vpop.f32.mrf.mxu0
  %v4782 = vadd.f32 %v4305, %v4781
  %v4783 = vpop.f32.mrf.mxu0
  %v4784 = vadd.f32 %v4307, %v4783
  %v4785 = vand.u32 %v39, 4294901760
  %4786 = vmatprep.mubr.f32.mxu0 %v4785
  %v4787 = vand.u32 %v38, 4294901760
  %4788 = vmatmul.mubr.f32.gmra.mxu0 %v4787
  %v4789 = vpop.f32.mrf.mxu0
  %v4790 = vadd.f32 %v4317, %v4789
  %v4791 = vpop.f32.mrf.mxu0
  %v4792 = vadd.f32 %v4319, %v4791
  %v4793 = vand.u32 %v44, 4294901760
  %4794 = vmatprep.mubr.f32.mxu0 %v4793
  %v4795 = vand.u32 %v43, 4294901760
  %4796 = vmatmul.mubr.f32.gmra.mxu0 %v4795
  %v4797 = vpop.f32.mrf.mxu0
  %v4798 = vadd.f32 %v4329, %v4797
  %v4799 = vpop.f32.mrf.mxu0
  %v4800 = vadd.f32 %v4331, %v4799
  %v4801 = vand.u32 %v49, 4294901760
  %4802 = vmatprep.mubr.f32.mxu0 %v4801
  %v4803 = vand.u32 %v48, 4294901760
  %4804 = vmatmul.mubr.f32.gmra.mxu0 %v4803
  %v4805 = vpop.f32.mrf.mxu0
  %v4806 = vadd.f32 %v4341, %v4805
  %v4807 = vpop.f32.mrf.mxu0
  %v4808 = vadd.f32 %v4343, %v4807
  %v4809 = vand.u32 %v54, 4294901760
  %4810 = vmatprep.mubr.f32.mxu0 %v4809
  %v4811 = vand.u32 %v53, 4294901760
  %4812 = vmatmul.mubr.f32.gmra.mxu0 %v4811
  %v4813 = vpop.f32.mrf.mxu0
  %v4814 = vadd.f32 %v4353, %v4813
  %v4815 = vpop.f32.mrf.mxu0
  %v4816 = vadd.f32 %v4355, %v4815
  %v4817 = vand.u32 %v59, 4294901760
  %4818 = vmatprep.mubr.f32.mxu0 %v4817
  %v4819 = vand.u32 %v58, 4294901760
  %4820 = vmatmul.mubr.f32.gmra.mxu0 %v4819
  %v4821 = vpop.f32.mrf.mxu0
  %v4822 = vadd.f32 %v4365, %v4821
  %v4823 = vpop.f32.mrf.mxu0
  %v4824 = vadd.f32 %v4367, %v4823
  %v4825 = vand.u32 %v64, 4294901760
  %4826 = vmatprep.mubr.f32.mxu0 %v4825
  %v4827 = vand.u32 %v63, 4294901760
  %4828 = vmatmul.mubr.f32.gmra.mxu0 %v4827
  %v4829 = vpop.f32.mrf.mxu0
  %v4830 = vadd.f32 %v4377, %v4829
  %v4831 = vpop.f32.mrf.mxu0
  %v4832 = vadd.f32 %v4379, %v4831
  %v4833 = vand.u32 %v69, 4294901760
  %4834 = vmatprep.mubr.f32.mxu0 %v4833
  %v4835 = vand.u32 %v68, 4294901760
  %4836 = vmatmul.mubr.f32.gmra.mxu0 %v4835
  %v4837 = vpop.f32.mrf.mxu0
  %v4838 = vadd.f32 %v4389, %v4837
  %v4839 = vpop.f32.mrf.mxu0
  %v4840 = vadd.f32 %v4391, %v4839
  %v4841 = vand.u32 %v74, 4294901760
  %4842 = vmatprep.mubr.f32.mxu0 %v4841
  %v4843 = vand.u32 %v73, 4294901760
  %4844 = vmatmul.mubr.f32.gmra.mxu0 %v4843
  %v4845 = vpop.f32.mrf.mxu0
  %v4846 = vadd.f32 %v4401, %v4845
  %v4847 = vpop.f32.mrf.mxu0
  %v4848 = vadd.f32 %v4403, %v4847
  %v4849 = vand.u32 %v79, 4294901760
  %4850 = vmatprep.mubr.f32.mxu0 %v4849
  %v4851 = vand.u32 %v78, 4294901760
  %4852 = vmatmul.mubr.f32.gmra.mxu0 %v4851
  %v4853 = vpop.f32.mrf.mxu0
  %v4854 = vadd.f32 %v4413, %v4853
  %v4855 = vpop.f32.mrf.mxu0
  %v4856 = vadd.f32 %v4415, %v4855
  %v4857 = vand.u32 %v84, 4294901760
  %4858 = vmatprep.mubr.f32.mxu0 %v4857
  %v4859 = vand.u32 %v83, 4294901760
  %4860 = vmatmul.mubr.f32.gmra.mxu0 %v4859
  %v4861 = vpop.f32.mrf.mxu0
  %v4862 = vadd.f32 %v4425, %v4861
  %v4863 = vpop.f32.mrf.mxu0
  %v4864 = vadd.f32 %v4427, %v4863
  %v4865 = vand.u32 %v89, 4294901760
  %4866 = vmatprep.mubr.f32.mxu0 %v4865
  %v4867 = vand.u32 %v88, 4294901760
  %4868 = vmatmul.mubr.f32.gmra.mxu0 %v4867
  %v4869 = vpop.f32.mrf.mxu0
  %v4870 = vadd.f32 %v4437, %v4869
  %v4871 = vpop.f32.mrf.mxu0
  %v4872 = vadd.f32 %v4439, %v4871
  %v4873 = vand.u32 %v94, 4294901760
  %4874 = vmatprep.mubr.f32.mxu0 %v4873
  %v4875 = vand.u32 %v93, 4294901760
  %4876 = vmatmul.mubr.f32.gmra.mxu0 %v4875
  %v4877 = vpop.f32.mrf.mxu0
  %v4878 = vadd.f32 %v4449, %v4877
  %v4879 = vpop.f32.mrf.mxu0
  %v4880 = vadd.f32 %v4451, %v4879
  %v4881 = vand.u32 %v99, 4294901760
  %4882 = vmatprep.mubr.f32.mxu0 %v4881
  %v4883 = vand.u32 %v98, 4294901760
  %4884 = vmatmul.mubr.f32.gmra.mxu0 %v4883
  %v4885 = vpop.f32.mrf.mxu0
  %v4886 = vadd.f32 %v4461, %v4885
  %v4887 = vpop.f32.mrf.mxu0
  %v4888 = vadd.f32 %v4463, %v4887
  %v4889 = vand.u32 %v104, 4294901760
  %4890 = vmatprep.mubr.f32.mxu0 %v4889
  %v4891 = vand.u32 %v103, 4294901760
  %4892 = vmatmul.mubr.f32.gmra.mxu0 %v4891
  %v4893 = vpop.f32.mrf.mxu0
  %v4894 = vadd.f32 %v4473, %v4893
  %v4895 = vpop.f32.mrf.mxu0
  %v4896 = vadd.f32 %v4475, %v4895
  %v4897 = vand.u32 %v109, 4294901760
  %4898 = vmatprep.mubr.f32.mxu0 %v4897
  %v4899 = vand.u32 %v108, 4294901760
  %4900 = vmatmul.mubr.f32.gmra.mxu0 %v4899
  %v4901 = vpop.f32.mrf.mxu0
  %v4902 = vadd.f32 %v4485, %v4901
  %v4903 = vpop.f32.mrf.mxu0
  %v4904 = vadd.f32 %v4487, %v4903
  %4905 = vdwg.mxu0
  %v4906 = vand.u32 %v206, 4294901760
  %4907 = vmatprep.subr.mxu0 %v4906
  %v4908 = vand.u32 %v205, 4294901760
  %4909 = vmatpush1.msra.mxu0 %v4908
  %v4910 = vand.u32 %v204, 4294901760
  %4911 = vmatprep.subr.mxu0 %v4910
  %v4912 = vand.u32 %v203, 4294901760
  %4913 = vmatpush1.msra.mxu0 %v4912
  %v4914 = vand.u32 %v202, 4294901760
  %4915 = vmatprep.subr.mxu0 %v4914
  %v4916 = vand.u32 %v201, 4294901760
  %4917 = vmatpush1.msra.mxu0 %v4916
  %v4918 = vand.u32 %v200, 4294901760
  %4919 = vmatprep.subr.mxu0 %v4918
  %v4920 = vand.u32 %v199, 4294901760
  %4921 = vmatpush1.msra.mxu0 %v4920
  %v4922 = vand.u32 %v198, 4294901760
  %4923 = vmatprep.subr.mxu0 %v4922
  %v4924 = vand.u32 %v197, 4294901760
  %4925 = vmatpush1.msra.mxu0 %v4924
  %v4926 = vand.u32 %v196, 4294901760
  %4927 = vmatprep.subr.mxu0 %v4926
  %v4928 = vand.u32 %v195, 4294901760
  %4929 = vmatpush1.msra.mxu0 %v4928
  %v4930 = vand.u32 %v194, 4294901760
  %4931 = vmatprep.subr.mxu0 %v4930
  %v4932 = vand.u32 %v193, 4294901760
  %4933 = vmatpush1.msra.mxu0 %v4932
  %v4934 = vand.u32 %v192, 4294901760
  %4935 = vmatprep.subr.mxu0 %v4934
  %v4936 = vand.u32 %v191, 4294901760
  %4937 = vmatpush1.msra.mxu0 %v4936
  %v4938 = vand.u32 %v190, 4294901760
  %4939 = vmatprep.subr.mxu0 %v4938
  %v4940 = vand.u32 %v189, 4294901760
  %4941 = vmatpush1.msra.mxu0 %v4940
  %v4942 = vand.u32 %v188, 4294901760
  %4943 = vmatprep.subr.mxu0 %v4942
  %v4944 = vand.u32 %v187, 4294901760
  %4945 = vmatpush1.msra.mxu0 %v4944
  %v4946 = vand.u32 %v186, 4294901760
  %4947 = vmatprep.subr.mxu0 %v4946
  %v4948 = vand.u32 %v185, 4294901760
  %4949 = vmatpush1.msra.mxu0 %v4948
  %v4950 = vand.u32 %v184, 4294901760
  %4951 = vmatprep.subr.mxu0 %v4950
  %v4952 = vand.u32 %v183, 4294901760
  %4953 = vmatpush1.msra.mxu0 %v4952
  %v4954 = vand.u32 %v182, 4294901760
  %4955 = vmatprep.subr.mxu0 %v4954
  %v4956 = vand.u32 %v181, 4294901760
  %4957 = vmatpush1.msra.mxu0 %v4956
  %v4958 = vand.u32 %v180, 4294901760
  %4959 = vmatprep.subr.mxu0 %v4958
  %v4960 = vand.u32 %v179, 4294901760
  %4961 = vmatpush1.msra.mxu0 %v4960
  %v4962 = vand.u32 %v178, 4294901760
  %4963 = vmatprep.subr.mxu0 %v4962
  %v4964 = vand.u32 %v177, 4294901760
  %4965 = vmatpush1.msra.mxu0 %v4964
  %v4966 = vand.u32 %v176, 4294901760
  %4967 = vmatprep.subr.mxu0 %v4966
  %v4968 = vand.u32 %v175, 4294901760
  %4969 = vmatpush1.msra.mxu0 %v4968
  %v4970 = vand.u32 %v238, 4294901760
  %4971 = vmatprep.subr.mxu0 %v4970
  %v4972 = vand.u32 %v237, 4294901760
  %4973 = vmatpush2.msra.mxu0 %v4972
  %v4974 = vand.u32 %v236, 4294901760
  %4975 = vmatprep.subr.mxu0 %v4974
  %v4976 = vand.u32 %v235, 4294901760
  %4977 = vmatpush2.msra.mxu0 %v4976
  %v4978 = vand.u32 %v234, 4294901760
  %4979 = vmatprep.subr.mxu0 %v4978
  %v4980 = vand.u32 %v233, 4294901760
  %4981 = vmatpush2.msra.mxu0 %v4980
  %v4982 = vand.u32 %v232, 4294901760
  %4983 = vmatprep.subr.mxu0 %v4982
  %v4984 = vand.u32 %v231, 4294901760
  %4985 = vmatpush2.msra.mxu0 %v4984
  %v4986 = vand.u32 %v230, 4294901760
  %4987 = vmatprep.subr.mxu0 %v4986
  %v4988 = vand.u32 %v229, 4294901760
  %4989 = vmatpush2.msra.mxu0 %v4988
  %v4990 = vand.u32 %v228, 4294901760
  %4991 = vmatprep.subr.mxu0 %v4990
  %v4992 = vand.u32 %v227, 4294901760
  %4993 = vmatpush2.msra.mxu0 %v4992
  %v4994 = vand.u32 %v226, 4294901760
  %4995 = vmatprep.subr.mxu0 %v4994
  %v4996 = vand.u32 %v225, 4294901760
  %4997 = vmatpush2.msra.mxu0 %v4996
  %v4998 = vand.u32 %v224, 4294901760
  %4999 = vmatprep.subr.mxu0 %v4998
  %v5000 = vand.u32 %v223, 4294901760
  %5001 = vmatpush2.msra.mxu0 %v5000
  %v5002 = vand.u32 %v222, 4294901760
  %5003 = vmatprep.subr.mxu0 %v5002
  %v5004 = vand.u32 %v221, 4294901760
  %5005 = vmatpush2.msra.mxu0 %v5004
  %v5006 = vand.u32 %v220, 4294901760
  %5007 = vmatprep.subr.mxu0 %v5006
  %v5008 = vand.u32 %v219, 4294901760
  %5009 = vmatpush2.msra.mxu0 %v5008
  %v5010 = vand.u32 %v218, 4294901760
  %5011 = vmatprep.subr.mxu0 %v5010
  %v5012 = vand.u32 %v217, 4294901760
  %5013 = vmatpush2.msra.mxu0 %v5012
  %v5014 = vand.u32 %v216, 4294901760
  %5015 = vmatprep.subr.mxu0 %v5014
  %v5016 = vand.u32 %v215, 4294901760
  %5017 = vmatpush2.msra.mxu0 %v5016
  %v5018 = vand.u32 %v214, 4294901760
  %5019 = vmatprep.subr.mxu0 %v5018
  %v5020 = vand.u32 %v213, 4294901760
  %5021 = vmatpush2.msra.mxu0 %v5020
  %v5022 = vand.u32 %v212, 4294901760
  %5023 = vmatprep.subr.mxu0 %v5022
  %v5024 = vand.u32 %v211, 4294901760
  %5025 = vmatpush2.msra.mxu0 %v5024
  %v5026 = vand.u32 %v210, 4294901760
  %5027 = vmatprep.subr.mxu0 %v5026
  %v5028 = vand.u32 %v209, 4294901760
  %5029 = vmatpush2.msra.mxu0 %v5028
  %v5030 = vand.u32 %v208, 4294901760
  %5031 = vmatprep.subr.mxu0 %v5030
  %v5032 = vand.u32 %v207, 4294901760
  %5033 = vmatpush2.msra.mxu0 %v5032
  %v5034 = vand.u32 %v14, 4294901760
  %5035 = vmatprep.mubr.f32.mxu0 %v5034
  %v5036 = vand.u32 %v13, 4294901760
  %5037 = vmatmul.mubr.f32.gmra.mxu0 %v5036
  %v5038 = vpop.f32.mrf.mxu0
  %v5039 = vadd.f32 %v4750, %v5038
  %v5040 = vpop.f32.mrf.mxu0
  %v5041 = vadd.f32 %v4752, %v5040
  %v5042 = vand.u32 %v19, 4294901760
  %5043 = vmatprep.mubr.f32.mxu0 %v5042
  %v5044 = vand.u32 %v18, 4294901760
  %5045 = vmatmul.mubr.f32.gmra.mxu0 %v5044
  %v5046 = vpop.f32.mrf.mxu0
  %v5047 = vadd.f32 %v4758, %v5046
  %v5048 = vpop.f32.mrf.mxu0
  %v5049 = vadd.f32 %v4760, %v5048
  %v5050 = vand.u32 %v24, 4294901760
  %5051 = vmatprep.mubr.f32.mxu0 %v5050
  %v5052 = vand.u32 %v23, 4294901760
  %5053 = vmatmul.mubr.f32.gmra.mxu0 %v5052
  %v5054 = vpop.f32.mrf.mxu0
  %v5055 = vadd.f32 %v4766, %v5054
  %v5056 = vpop.f32.mrf.mxu0
  %v5057 = vadd.f32 %v4768, %v5056
  %v5058 = vand.u32 %v29, 4294901760
  %5059 = vmatprep.mubr.f32.mxu0 %v5058
  %v5060 = vand.u32 %v28, 4294901760
  %5061 = vmatmul.mubr.f32.gmra.mxu0 %v5060
  %v5062 = vpop.f32.mrf.mxu0
  %v5063 = vadd.f32 %v4774, %v5062
  %v5064 = vpop.f32.mrf.mxu0
  %v5065 = vadd.f32 %v4776, %v5064
  %v5066 = vand.u32 %v34, 4294901760
  %5067 = vmatprep.mubr.f32.mxu0 %v5066
  %v5068 = vand.u32 %v33, 4294901760
  %5069 = vmatmul.mubr.f32.gmra.mxu0 %v5068
  %v5070 = vpop.f32.mrf.mxu0
  %v5071 = vadd.f32 %v4782, %v5070
  %v5072 = vpop.f32.mrf.mxu0
  %v5073 = vadd.f32 %v4784, %v5072
  %v5074 = vand.u32 %v39, 4294901760
  %5075 = vmatprep.mubr.f32.mxu0 %v5074
  %v5076 = vand.u32 %v38, 4294901760
  %5077 = vmatmul.mubr.f32.gmra.mxu0 %v5076
  %v5078 = vpop.f32.mrf.mxu0
  %v5079 = vadd.f32 %v4790, %v5078
  %v5080 = vpop.f32.mrf.mxu0
  %v5081 = vadd.f32 %v4792, %v5080
  %v5082 = vand.u32 %v44, 4294901760
  %5083 = vmatprep.mubr.f32.mxu0 %v5082
  %v5084 = vand.u32 %v43, 4294901760
  %5085 = vmatmul.mubr.f32.gmra.mxu0 %v5084
  %v5086 = vpop.f32.mrf.mxu0
  %v5087 = vadd.f32 %v4798, %v5086
  %v5088 = vpop.f32.mrf.mxu0
  %v5089 = vadd.f32 %v4800, %v5088
  %v5090 = vand.u32 %v49, 4294901760
  %5091 = vmatprep.mubr.f32.mxu0 %v5090
  %v5092 = vand.u32 %v48, 4294901760
  %5093 = vmatmul.mubr.f32.gmra.mxu0 %v5092
  %v5094 = vpop.f32.mrf.mxu0
  %v5095 = vadd.f32 %v4806, %v5094
  %v5096 = vpop.f32.mrf.mxu0
  %v5097 = vadd.f32 %v4808, %v5096
  %v5098 = vand.u32 %v54, 4294901760
  %5099 = vmatprep.mubr.f32.mxu0 %v5098
  %v5100 = vand.u32 %v53, 4294901760
  %5101 = vmatmul.mubr.f32.gmra.mxu0 %v5100
  %v5102 = vpop.f32.mrf.mxu0
  %v5103 = vadd.f32 %v4814, %v5102
  %v5104 = vpop.f32.mrf.mxu0
  %v5105 = vadd.f32 %v4816, %v5104
  %v5106 = vand.u32 %v59, 4294901760
  %5107 = vmatprep.mubr.f32.mxu0 %v5106
  %v5108 = vand.u32 %v58, 4294901760
  %5109 = vmatmul.mubr.f32.gmra.mxu0 %v5108
  %v5110 = vpop.f32.mrf.mxu0
  %v5111 = vadd.f32 %v4822, %v5110
  %v5112 = vpop.f32.mrf.mxu0
  %v5113 = vadd.f32 %v4824, %v5112
  %v5114 = vand.u32 %v64, 4294901760
  %5115 = vmatprep.mubr.f32.mxu0 %v5114
  %v5116 = vand.u32 %v63, 4294901760
  %5117 = vmatmul.mubr.f32.gmra.mxu0 %v5116
  %v5118 = vpop.f32.mrf.mxu0
  %v5119 = vadd.f32 %v4830, %v5118
  %v5120 = vpop.f32.mrf.mxu0
  %v5121 = vadd.f32 %v4832, %v5120
  %v5122 = vand.u32 %v69, 4294901760
  %5123 = vmatprep.mubr.f32.mxu0 %v5122
  %v5124 = vand.u32 %v68, 4294901760
  %5125 = vmatmul.mubr.f32.gmra.mxu0 %v5124
  %v5126 = vpop.f32.mrf.mxu0
  %v5127 = vadd.f32 %v4838, %v5126
  %v5128 = vpop.f32.mrf.mxu0
  %v5129 = vadd.f32 %v4840, %v5128
  %v5130 = vand.u32 %v74, 4294901760
  %5131 = vmatprep.mubr.f32.mxu0 %v5130
  %v5132 = vand.u32 %v73, 4294901760
  %5133 = vmatmul.mubr.f32.gmra.mxu0 %v5132
  %v5134 = vpop.f32.mrf.mxu0
  %v5135 = vadd.f32 %v4846, %v5134
  %v5136 = vpop.f32.mrf.mxu0
  %v5137 = vadd.f32 %v4848, %v5136
  %v5138 = vand.u32 %v79, 4294901760
  %5139 = vmatprep.mubr.f32.mxu0 %v5138
  %v5140 = vand.u32 %v78, 4294901760
  %5141 = vmatmul.mubr.f32.gmra.mxu0 %v5140
  %v5142 = vpop.f32.mrf.mxu0
  %v5143 = vadd.f32 %v4854, %v5142
  %v5144 = vpop.f32.mrf.mxu0
  %v5145 = vadd.f32 %v4856, %v5144
  %v5146 = vand.u32 %v84, 4294901760
  %5147 = vmatprep.mubr.f32.mxu0 %v5146
  %v5148 = vand.u32 %v83, 4294901760
  %5149 = vmatmul.mubr.f32.gmra.mxu0 %v5148
  %v5150 = vpop.f32.mrf.mxu0
  %v5151 = vadd.f32 %v4862, %v5150
  %v5152 = vpop.f32.mrf.mxu0
  %v5153 = vadd.f32 %v4864, %v5152
  %v5154 = vand.u32 %v89, 4294901760
  %5155 = vmatprep.mubr.f32.mxu0 %v5154
  %v5156 = vand.u32 %v88, 4294901760
  %5157 = vmatmul.mubr.f32.gmra.mxu0 %v5156
  %v5158 = vpop.f32.mrf.mxu0
  %v5159 = vadd.f32 %v4870, %v5158
  %v5160 = vpop.f32.mrf.mxu0
  %v5161 = vadd.f32 %v4872, %v5160
  %v5162 = vand.u32 %v94, 4294901760
  %5163 = vmatprep.mubr.f32.mxu0 %v5162
  %v5164 = vand.u32 %v93, 4294901760
  %5165 = vmatmul.mubr.f32.gmra.mxu0 %v5164
  %v5166 = vpop.f32.mrf.mxu0
  %v5167 = vadd.f32 %v4878, %v5166
  %v5168 = vpop.f32.mrf.mxu0
  %v5169 = vadd.f32 %v4880, %v5168
  %v5170 = vand.u32 %v99, 4294901760
  %5171 = vmatprep.mubr.f32.mxu0 %v5170
  %v5172 = vand.u32 %v98, 4294901760
  %5173 = vmatmul.mubr.f32.gmra.mxu0 %v5172
  %v5174 = vpop.f32.mrf.mxu0
  %v5175 = vadd.f32 %v4886, %v5174
  %v5176 = vpop.f32.mrf.mxu0
  %v5177 = vadd.f32 %v4888, %v5176
  %v5178 = vand.u32 %v104, 4294901760
  %5179 = vmatprep.mubr.f32.mxu0 %v5178
  %v5180 = vand.u32 %v103, 4294901760
  %5181 = vmatmul.mubr.f32.gmra.mxu0 %v5180
  %v5182 = vpop.f32.mrf.mxu0
  %v5183 = vadd.f32 %v4894, %v5182
  %v5184 = vpop.f32.mrf.mxu0
  %v5185 = vadd.f32 %v4896, %v5184
  %v5186 = vand.u32 %v109, 4294901760
  %5187 = vmatprep.mubr.f32.mxu0 %v5186
  %v5188 = vand.u32 %v108, 4294901760
  %5189 = vmatmul.mubr.f32.gmra.mxu0 %v5188
  %v5190 = vpop.f32.mrf.mxu0
  %v5191 = vadd.f32 %v4902, %v5190
  %v5192 = vpop.f32.mrf.mxu0
  %v5193 = vadd.f32 %v4904, %v5192
  %5194 = vdwg.mxu0
  %v5195 = vand.u32 %v270, 4294901760
  %5196 = vmatprep.subr.mxu0 %v5195
  %v5197 = vand.u32 %v269, 4294901760
  %5198 = vmatpush1.msra.mxu0 %v5197
  %v5199 = vand.u32 %v268, 4294901760
  %5200 = vmatprep.subr.mxu0 %v5199
  %v5201 = vand.u32 %v267, 4294901760
  %5202 = vmatpush1.msra.mxu0 %v5201
  %v5203 = vand.u32 %v266, 4294901760
  %5204 = vmatprep.subr.mxu0 %v5203
  %v5205 = vand.u32 %v265, 4294901760
  %5206 = vmatpush1.msra.mxu0 %v5205
  %v5207 = vand.u32 %v264, 4294901760
  %5208 = vmatprep.subr.mxu0 %v5207
  %v5209 = vand.u32 %v263, 4294901760
  %5210 = vmatpush1.msra.mxu0 %v5209
  %v5211 = vand.u32 %v262, 4294901760
  %5212 = vmatprep.subr.mxu0 %v5211
  %v5213 = vand.u32 %v261, 4294901760
  %5214 = vmatpush1.msra.mxu0 %v5213
  %v5215 = vand.u32 %v260, 4294901760
  %5216 = vmatprep.subr.mxu0 %v5215
  %v5217 = vand.u32 %v259, 4294901760
  %5218 = vmatpush1.msra.mxu0 %v5217
  %v5219 = vand.u32 %v258, 4294901760
  %5220 = vmatprep.subr.mxu0 %v5219
  %v5221 = vand.u32 %v257, 4294901760
  %5222 = vmatpush1.msra.mxu0 %v5221
  %v5223 = vand.u32 %v256, 4294901760
  %5224 = vmatprep.subr.mxu0 %v5223
  %v5225 = vand.u32 %v255, 4294901760
  %5226 = vmatpush1.msra.mxu0 %v5225
  %v5227 = vand.u32 %v254, 4294901760
  %5228 = vmatprep.subr.mxu0 %v5227
  %v5229 = vand.u32 %v253, 4294901760
  %5230 = vmatpush1.msra.mxu0 %v5229
  %v5231 = vand.u32 %v252, 4294901760
  %5232 = vmatprep.subr.mxu0 %v5231
  %v5233 = vand.u32 %v251, 4294901760
  %5234 = vmatpush1.msra.mxu0 %v5233
  %v5235 = vand.u32 %v250, 4294901760
  %5236 = vmatprep.subr.mxu0 %v5235
  %v5237 = vand.u32 %v249, 4294901760
  %5238 = vmatpush1.msra.mxu0 %v5237
  %v5239 = vand.u32 %v248, 4294901760
  %5240 = vmatprep.subr.mxu0 %v5239
  %v5241 = vand.u32 %v247, 4294901760
  %5242 = vmatpush1.msra.mxu0 %v5241
  %v5243 = vand.u32 %v246, 4294901760
  %5244 = vmatprep.subr.mxu0 %v5243
  %v5245 = vand.u32 %v245, 4294901760
  %5246 = vmatpush1.msra.mxu0 %v5245
  %v5247 = vand.u32 %v244, 4294901760
  %5248 = vmatprep.subr.mxu0 %v5247
  %v5249 = vand.u32 %v243, 4294901760
  %5250 = vmatpush1.msra.mxu0 %v5249
  %v5251 = vand.u32 %v242, 4294901760
  %5252 = vmatprep.subr.mxu0 %v5251
  %v5253 = vand.u32 %v241, 4294901760
  %5254 = vmatpush1.msra.mxu0 %v5253
  %v5255 = vand.u32 %v240, 4294901760
  %5256 = vmatprep.subr.mxu0 %v5255
  %v5257 = vand.u32 %v239, 4294901760
  %5258 = vmatpush1.msra.mxu0 %v5257
  %5259 = vmatprep.subr.mxu0 0.0
  %5260 = vmatpush2.msra.mxu0 0.0
  %5261 = vmatprep.subr.mxu0 0.0
  %5262 = vmatpush2.msra.mxu0 0.0
  %5263 = vmatprep.subr.mxu0 0.0
  %5264 = vmatpush2.msra.mxu0 0.0
  %5265 = vmatprep.subr.mxu0 0.0
  %5266 = vmatpush2.msra.mxu0 0.0
  %5267 = vmatprep.subr.mxu0 0.0
  %5268 = vmatpush2.msra.mxu0 0.0
  %5269 = vmatprep.subr.mxu0 0.0
  %5270 = vmatpush2.msra.mxu0 0.0
  %5271 = vmatprep.subr.mxu0 0.0
  %5272 = vmatpush2.msra.mxu0 0.0
  %5273 = vmatprep.subr.mxu0 0.0
  %5274 = vmatpush2.msra.mxu0 0.0
  %5275 = vmatprep.subr.mxu0 0.0
  %5276 = vmatpush2.msra.mxu0 0.0
  %5277 = vmatprep.subr.mxu0 0.0
  %5278 = vmatpush2.msra.mxu0 0.0
  %5279 = vmatprep.subr.mxu0 0.0
  %5280 = vmatpush2.msra.mxu0 0.0
  %5281 = vmatprep.subr.mxu0 0.0
  %5282 = vmatpush2.msra.mxu0 0.0
  %5283 = vmatprep.subr.mxu0 0.0
  %5284 = vmatpush2.msra.mxu0 0.0
  %5285 = vmatprep.subr.mxu0 0.0
  %5286 = vmatpush2.msra.mxu0 0.0
  %5287 = vmatprep.subr.mxu0 0.0
  %5288 = vmatpush2.msra.mxu0 0.0
  %5289 = vmatprep.subr.mxu0 0.0
  %5290 = vmatpush2.msra.mxu0 0.0
  %5291 = vmatprep.mubr.f32.mxu0 0.0
  %v5292 = vand.u32 %v15, 4294901760
  %v5293 = vsub.f32 %v15, %v5292
  %v5294 = vand.u32 %v5293, 4294901760
  %v5295 = vsub.f32 %v5293, %v5294
  %v5296 = vand.u32 %v5295, 4294901760
  %5297 = vmatmul.mubr.f32.gmra.mxu0 %v5296
  %v5298 = vpop.f32.mrf.mxu0
  %v5299 = vadd.f32 %v5039, %v5298
  %v5300 = vpop.f32.mrf.mxu0
  %v5301 = vadd.f32 %v5041, %v5300
  %5302 = vmatprep.mubr.f32.mxu0 0.0
  %v5303 = vand.u32 %v20, 4294901760
  %v5304 = vsub.f32 %v20, %v5303
  %v5305 = vand.u32 %v5304, 4294901760
  %v5306 = vsub.f32 %v5304, %v5305
  %v5307 = vand.u32 %v5306, 4294901760
  %5308 = vmatmul.mubr.f32.gmra.mxu0 %v5307
  %v5309 = vpop.f32.mrf.mxu0
  %v5310 = vadd.f32 %v5047, %v5309
  %v5311 = vpop.f32.mrf.mxu0
  %v5312 = vadd.f32 %v5049, %v5311
  %5313 = vmatprep.mubr.f32.mxu0 0.0
  %v5314 = vand.u32 %v25, 4294901760
  %v5315 = vsub.f32 %v25, %v5314
  %v5316 = vand.u32 %v5315, 4294901760
  %v5317 = vsub.f32 %v5315, %v5316
  %v5318 = vand.u32 %v5317, 4294901760
  %5319 = vmatmul.mubr.f32.gmra.mxu0 %v5318
  %v5320 = vpop.f32.mrf.mxu0
  %v5321 = vadd.f32 %v5055, %v5320
  %v5322 = vpop.f32.mrf.mxu0
  %v5323 = vadd.f32 %v5057, %v5322
  %5324 = vmatprep.mubr.f32.mxu0 0.0
  %v5325 = vand.u32 %v30, 4294901760
  %v5326 = vsub.f32 %v30, %v5325
  %v5327 = vand.u32 %v5326, 4294901760
  %v5328 = vsub.f32 %v5326, %v5327
  %v5329 = vand.u32 %v5328, 4294901760
  %5330 = vmatmul.mubr.f32.gmra.mxu0 %v5329
  %v5331 = vpop.f32.mrf.mxu0
  %v5332 = vadd.f32 %v5063, %v5331
  %v5333 = vpop.f32.mrf.mxu0
  %v5334 = vadd.f32 %v5065, %v5333
  %5335 = vmatprep.mubr.f32.mxu0 0.0
  %v5336 = vand.u32 %v35, 4294901760
  %v5337 = vsub.f32 %v35, %v5336
  %v5338 = vand.u32 %v5337, 4294901760
  %v5339 = vsub.f32 %v5337, %v5338
  %v5340 = vand.u32 %v5339, 4294901760
  %5341 = vmatmul.mubr.f32.gmra.mxu0 %v5340
  %v5342 = vpop.f32.mrf.mxu0
  %v5343 = vadd.f32 %v5071, %v5342
  %v5344 = vpop.f32.mrf.mxu0
  %v5345 = vadd.f32 %v5073, %v5344
  %5346 = vmatprep.mubr.f32.mxu0 0.0
  %v5347 = vand.u32 %v40, 4294901760
  %v5348 = vsub.f32 %v40, %v5347
  %v5349 = vand.u32 %v5348, 4294901760
  %v5350 = vsub.f32 %v5348, %v5349
  %v5351 = vand.u32 %v5350, 4294901760
  %5352 = vmatmul.mubr.f32.gmra.mxu0 %v5351
  %v5353 = vpop.f32.mrf.mxu0
  %v5354 = vadd.f32 %v5079, %v5353
  %v5355 = vpop.f32.mrf.mxu0
  %v5356 = vadd.f32 %v5081, %v5355
  %5357 = vmatprep.mubr.f32.mxu0 0.0
  %v5358 = vand.u32 %v45, 4294901760
  %v5359 = vsub.f32 %v45, %v5358
  %v5360 = vand.u32 %v5359, 4294901760
  %v5361 = vsub.f32 %v5359, %v5360
  %v5362 = vand.u32 %v5361, 4294901760
  %5363 = vmatmul.mubr.f32.gmra.mxu0 %v5362
  %v5364 = vpop.f32.mrf.mxu0
  %v5365 = vadd.f32 %v5087, %v5364
  %v5366 = vpop.f32.mrf.mxu0
  %v5367 = vadd.f32 %v5089, %v5366
  %5368 = vmatprep.mubr.f32.mxu0 0.0
  %v5369 = vand.u32 %v50, 4294901760
  %v5370 = vsub.f32 %v50, %v5369
  %v5371 = vand.u32 %v5370, 4294901760
  %v5372 = vsub.f32 %v5370, %v5371
  %v5373 = vand.u32 %v5372, 4294901760
  %5374 = vmatmul.mubr.f32.gmra.mxu0 %v5373
  %v5375 = vpop.f32.mrf.mxu0
  %v5376 = vadd.f32 %v5095, %v5375
  %v5377 = vpop.f32.mrf.mxu0
  %v5378 = vadd.f32 %v5097, %v5377
  %5379 = vmatprep.mubr.f32.mxu0 0.0
  %v5380 = vand.u32 %v55, 4294901760
  %v5381 = vsub.f32 %v55, %v5380
  %v5382 = vand.u32 %v5381, 4294901760
  %v5383 = vsub.f32 %v5381, %v5382
  %v5384 = vand.u32 %v5383, 4294901760
  %5385 = vmatmul.mubr.f32.gmra.mxu0 %v5384
  %v5386 = vpop.f32.mrf.mxu0
  %v5387 = vadd.f32 %v5103, %v5386
  %v5388 = vpop.f32.mrf.mxu0
  %v5389 = vadd.f32 %v5105, %v5388
  %5390 = vmatprep.mubr.f32.mxu0 0.0
  %v5391 = vand.u32 %v60, 4294901760
  %v5392 = vsub.f32 %v60, %v5391
  %v5393 = vand.u32 %v5392, 4294901760
  %v5394 = vsub.f32 %v5392, %v5393
  %v5395 = vand.u32 %v5394, 4294901760
  %5396 = vmatmul.mubr.f32.gmra.mxu0 %v5395
  %v5397 = vpop.f32.mrf.mxu0
  %v5398 = vadd.f32 %v5111, %v5397
  %v5399 = vpop.f32.mrf.mxu0
  %v5400 = vadd.f32 %v5113, %v5399
  %5401 = vmatprep.mubr.f32.mxu0 0.0
  %v5402 = vand.u32 %v65, 4294901760
  %v5403 = vsub.f32 %v65, %v5402
  %v5404 = vand.u32 %v5403, 4294901760
  %v5405 = vsub.f32 %v5403, %v5404
  %v5406 = vand.u32 %v5405, 4294901760
  %5407 = vmatmul.mubr.f32.gmra.mxu0 %v5406
  %v5408 = vpop.f32.mrf.mxu0
  %v5409 = vadd.f32 %v5119, %v5408
  %v5410 = vpop.f32.mrf.mxu0
  %v5411 = vadd.f32 %v5121, %v5410
  %5412 = vmatprep.mubr.f32.mxu0 0.0
  %v5413 = vand.u32 %v70, 4294901760
  %v5414 = vsub.f32 %v70, %v5413
  %v5415 = vand.u32 %v5414, 4294901760
  %v5416 = vsub.f32 %v5414, %v5415
  %v5417 = vand.u32 %v5416, 4294901760
  %5418 = vmatmul.mubr.f32.gmra.mxu0 %v5417
  %v5419 = vpop.f32.mrf.mxu0
  %v5420 = vadd.f32 %v5127, %v5419
  %v5421 = vpop.f32.mrf.mxu0
  %v5422 = vadd.f32 %v5129, %v5421
  %5423 = vmatprep.mubr.f32.mxu0 0.0
  %v5424 = vand.u32 %v75, 4294901760
  %v5425 = vsub.f32 %v75, %v5424
  %v5426 = vand.u32 %v5425, 4294901760
  %v5427 = vsub.f32 %v5425, %v5426
  %v5428 = vand.u32 %v5427, 4294901760
  %5429 = vmatmul.mubr.f32.gmra.mxu0 %v5428
  %v5430 = vpop.f32.mrf.mxu0
  %v5431 = vadd.f32 %v5135, %v5430
  %v5432 = vpop.f32.mrf.mxu0
  %v5433 = vadd.f32 %v5137, %v5432
  %5434 = vmatprep.mubr.f32.mxu0 0.0
  %v5435 = vand.u32 %v80, 4294901760
  %v5436 = vsub.f32 %v80, %v5435
  %v5437 = vand.u32 %v5436, 4294901760
  %v5438 = vsub.f32 %v5436, %v5437
  %v5439 = vand.u32 %v5438, 4294901760
  %5440 = vmatmul.mubr.f32.gmra.mxu0 %v5439
  %v5441 = vpop.f32.mrf.mxu0
  %v5442 = vadd.f32 %v5143, %v5441
  %v5443 = vpop.f32.mrf.mxu0
  %v5444 = vadd.f32 %v5145, %v5443
  %5445 = vmatprep.mubr.f32.mxu0 0.0
  %v5446 = vand.u32 %v85, 4294901760
  %v5447 = vsub.f32 %v85, %v5446
  %v5448 = vand.u32 %v5447, 4294901760
  %v5449 = vsub.f32 %v5447, %v5448
  %v5450 = vand.u32 %v5449, 4294901760
  %5451 = vmatmul.mubr.f32.gmra.mxu0 %v5450
  %v5452 = vpop.f32.mrf.mxu0
  %v5453 = vadd.f32 %v5151, %v5452
  %v5454 = vpop.f32.mrf.mxu0
  %v5455 = vadd.f32 %v5153, %v5454
  %5456 = vmatprep.mubr.f32.mxu0 0.0
  %v5457 = vand.u32 %v90, 4294901760
  %v5458 = vsub.f32 %v90, %v5457
  %v5459 = vand.u32 %v5458, 4294901760
  %v5460 = vsub.f32 %v5458, %v5459
  %v5461 = vand.u32 %v5460, 4294901760
  %5462 = vmatmul.mubr.f32.gmra.mxu0 %v5461
  %v5463 = vpop.f32.mrf.mxu0
  %v5464 = vadd.f32 %v5159, %v5463
  %v5465 = vpop.f32.mrf.mxu0
  %v5466 = vadd.f32 %v5161, %v5465
  %5467 = vmatprep.mubr.f32.mxu0 0.0
  %v5468 = vand.u32 %v95, 4294901760
  %v5469 = vsub.f32 %v95, %v5468
  %v5470 = vand.u32 %v5469, 4294901760
  %v5471 = vsub.f32 %v5469, %v5470
  %v5472 = vand.u32 %v5471, 4294901760
  %5473 = vmatmul.mubr.f32.gmra.mxu0 %v5472
  %v5474 = vpop.f32.mrf.mxu0
  %v5475 = vadd.f32 %v5167, %v5474
  %v5476 = vpop.f32.mrf.mxu0
  %v5477 = vadd.f32 %v5169, %v5476
  %5478 = vmatprep.mubr.f32.mxu0 0.0
  %v5479 = vand.u32 %v100, 4294901760
  %v5480 = vsub.f32 %v100, %v5479
  %v5481 = vand.u32 %v5480, 4294901760
  %v5482 = vsub.f32 %v5480, %v5481
  %v5483 = vand.u32 %v5482, 4294901760
  %5484 = vmatmul.mubr.f32.gmra.mxu0 %v5483
  %v5485 = vpop.f32.mrf.mxu0
  %v5486 = vadd.f32 %v5175, %v5485
  %v5487 = vpop.f32.mrf.mxu0
  %v5488 = vadd.f32 %v5177, %v5487
  %5489 = vmatprep.mubr.f32.mxu0 0.0
  %v5490 = vand.u32 %v105, 4294901760
  %v5491 = vsub.f32 %v105, %v5490
  %v5492 = vand.u32 %v5491, 4294901760
  %v5493 = vsub.f32 %v5491, %v5492
  %v5494 = vand.u32 %v5493, 4294901760
  %5495 = vmatmul.mubr.f32.gmra.mxu0 %v5494
  %v5496 = vpop.f32.mrf.mxu0
  %v5497 = vadd.f32 %v5183, %v5496
  %v5498 = vpop.f32.mrf.mxu0
  %v5499 = vadd.f32 %v5185, %v5498
  %5500 = vmatprep.mubr.f32.mxu0 0.0
  %v5501 = vand.u32 %v110, 4294901760
  %v5502 = vsub.f32 %v110, %v5501
  %v5503 = vand.u32 %v5502, 4294901760
  %v5504 = vsub.f32 %v5502, %v5503
  %v5505 = vand.u32 %v5504, 4294901760
  %5506 = vmatmul.mubr.f32.gmra.mxu0 %v5505
  %v5507 = vpop.f32.mrf.mxu0
  %v5508 = vadd.f32 %v5191, %v5507
  %v5509 = vpop.f32.mrf.mxu0
  %v5510 = vadd.f32 %v5193, %v5509
  %5511 = vdwg.mxu0
  %v5512 = vand.u32 %v270, 4294901760
  %v5513 = vsub.f32 %v270, %v5512
  %v5514 = vand.u32 %v5513, 4294901760
  %v5515 = vsub.f32 %v5513, %v5514
  %v5516 = vand.u32 %v5515, 4294901760
  %5517 = vmatprep.subr.mxu0 %v5516
  %v5518 = vand.u32 %v269, 4294901760
  %v5519 = vsub.f32 %v269, %v5518
  %v5520 = vand.u32 %v5519, 4294901760
  %v5521 = vsub.f32 %v5519, %v5520
  %v5522 = vand.u32 %v5521, 4294901760
  %5523 = vmatpush1.msra.mxu0 %v5522
  %v5524 = vand.u32 %v268, 4294901760
  %v5525 = vsub.f32 %v268, %v5524
  %v5526 = vand.u32 %v5525, 4294901760
  %v5527 = vsub.f32 %v5525, %v5526
  %v5528 = vand.u32 %v5527, 4294901760
  %5529 = vmatprep.subr.mxu0 %v5528
  %v5530 = vand.u32 %v267, 4294901760
  %v5531 = vsub.f32 %v267, %v5530
  %v5532 = vand.u32 %v5531, 4294901760
  %v5533 = vsub.f32 %v5531, %v5532
  %v5534 = vand.u32 %v5533, 4294901760
  %5535 = vmatpush1.msra.mxu0 %v5534
  %v5536 = vand.u32 %v266, 4294901760
  %v5537 = vsub.f32 %v266, %v5536
  %v5538 = vand.u32 %v5537, 4294901760
  %v5539 = vsub.f32 %v5537, %v5538
  %v5540 = vand.u32 %v5539, 4294901760
  %5541 = vmatprep.subr.mxu0 %v5540
  %v5542 = vand.u32 %v265, 4294901760
  %v5543 = vsub.f32 %v265, %v5542
  %v5544 = vand.u32 %v5543, 4294901760
  %v5545 = vsub.f32 %v5543, %v5544
  %v5546 = vand.u32 %v5545, 4294901760
  %5547 = vmatpush1.msra.mxu0 %v5546
  %v5548 = vand.u32 %v264, 4294901760
  %v5549 = vsub.f32 %v264, %v5548
  %v5550 = vand.u32 %v5549, 4294901760
  %v5551 = vsub.f32 %v5549, %v5550
  %v5552 = vand.u32 %v5551, 4294901760
  %5553 = vmatprep.subr.mxu0 %v5552
  %v5554 = vand.u32 %v263, 4294901760
  %v5555 = vsub.f32 %v263, %v5554
  %v5556 = vand.u32 %v5555, 4294901760
  %v5557 = vsub.f32 %v5555, %v5556
  %v5558 = vand.u32 %v5557, 4294901760
  %5559 = vmatpush1.msra.mxu0 %v5558
  %v5560 = vand.u32 %v262, 4294901760
  %v5561 = vsub.f32 %v262, %v5560
  %v5562 = vand.u32 %v5561, 4294901760
  %v5563 = vsub.f32 %v5561, %v5562
  %v5564 = vand.u32 %v5563, 4294901760
  %5565 = vmatprep.subr.mxu0 %v5564
  %v5566 = vand.u32 %v261, 4294901760
  %v5567 = vsub.f32 %v261, %v5566
  %v5568 = vand.u32 %v5567, 4294901760
  %v5569 = vsub.f32 %v5567, %v5568
  %v5570 = vand.u32 %v5569, 4294901760
  %5571 = vmatpush1.msra.mxu0 %v5570
  %v5572 = vand.u32 %v260, 4294901760
  %v5573 = vsub.f32 %v260, %v5572
  %v5574 = vand.u32 %v5573, 4294901760
  %v5575 = vsub.f32 %v5573, %v5574
  %v5576 = vand.u32 %v5575, 4294901760
  %5577 = vmatprep.subr.mxu0 %v5576
  %v5578 = vand.u32 %v259, 4294901760
  %v5579 = vsub.f32 %v259, %v5578
  %v5580 = vand.u32 %v5579, 4294901760
  %v5581 = vsub.f32 %v5579, %v5580
  %v5582 = vand.u32 %v5581, 4294901760
  %5583 = vmatpush1.msra.mxu0 %v5582
  %v5584 = vand.u32 %v258, 4294901760
  %v5585 = vsub.f32 %v258, %v5584
  %v5586 = vand.u32 %v5585, 4294901760
  %v5587 = vsub.f32 %v5585, %v5586
  %v5588 = vand.u32 %v5587, 4294901760
  %5589 = vmatprep.subr.mxu0 %v5588
  %v5590 = vand.u32 %v257, 4294901760
  %v5591 = vsub.f32 %v257, %v5590
  %v5592 = vand.u32 %v5591, 4294901760
  %v5593 = vsub.f32 %v5591, %v5592
  %v5594 = vand.u32 %v5593, 4294901760
  %5595 = vmatpush1.msra.mxu0 %v5594
  %v5596 = vand.u32 %v256, 4294901760
  %v5597 = vsub.f32 %v256, %v5596
  %v5598 = vand.u32 %v5597, 4294901760
  %v5599 = vsub.f32 %v5597, %v5598
  %v5600 = vand.u32 %v5599, 4294901760
  %5601 = vmatprep.subr.mxu0 %v5600
  %v5602 = vand.u32 %v255, 4294901760
  %v5603 = vsub.f32 %v255, %v5602
  %v5604 = vand.u32 %v5603, 4294901760
  %v5605 = vsub.f32 %v5603, %v5604
  %v5606 = vand.u32 %v5605, 4294901760
  %5607 = vmatpush1.msra.mxu0 %v5606
  %v5608 = vand.u32 %v254, 4294901760
  %v5609 = vsub.f32 %v254, %v5608
  %v5610 = vand.u32 %v5609, 4294901760
  %v5611 = vsub.f32 %v5609, %v5610
  %v5612 = vand.u32 %v5611, 4294901760
  %5613 = vmatprep.subr.mxu0 %v5612
  %v5614 = vand.u32 %v253, 4294901760
  %v5615 = vsub.f32 %v253, %v5614
  %v5616 = vand.u32 %v5615, 4294901760
  %v5617 = vsub.f32 %v5615, %v5616
  %v5618 = vand.u32 %v5617, 4294901760
  %5619 = vmatpush1.msra.mxu0 %v5618
  %v5620 = vand.u32 %v252, 4294901760
  %v5621 = vsub.f32 %v252, %v5620
  %v5622 = vand.u32 %v5621, 4294901760
  %v5623 = vsub.f32 %v5621, %v5622
  %v5624 = vand.u32 %v5623, 4294901760
  %5625 = vmatprep.subr.mxu0 %v5624
  %v5626 = vand.u32 %v251, 4294901760
  %v5627 = vsub.f32 %v251, %v5626
  %v5628 = vand.u32 %v5627, 4294901760
  %v5629 = vsub.f32 %v5627, %v5628
  %v5630 = vand.u32 %v5629, 4294901760
  %5631 = vmatpush1.msra.mxu0 %v5630
  %v5632 = vand.u32 %v250, 4294901760
  %v5633 = vsub.f32 %v250, %v5632
  %v5634 = vand.u32 %v5633, 4294901760
  %v5635 = vsub.f32 %v5633, %v5634
  %v5636 = vand.u32 %v5635, 4294901760
  %5637 = vmatprep.subr.mxu0 %v5636
  %v5638 = vand.u32 %v249, 4294901760
  %v5639 = vsub.f32 %v249, %v5638
  %v5640 = vand.u32 %v5639, 4294901760
  %v5641 = vsub.f32 %v5639, %v5640
  %v5642 = vand.u32 %v5641, 4294901760
  %5643 = vmatpush1.msra.mxu0 %v5642
  %v5644 = vand.u32 %v248, 4294901760
  %v5645 = vsub.f32 %v248, %v5644
  %v5646 = vand.u32 %v5645, 4294901760
  %v5647 = vsub.f32 %v5645, %v5646
  %v5648 = vand.u32 %v5647, 4294901760
  %5649 = vmatprep.subr.mxu0 %v5648
  %v5650 = vand.u32 %v247, 4294901760
  %v5651 = vsub.f32 %v247, %v5650
  %v5652 = vand.u32 %v5651, 4294901760
  %v5653 = vsub.f32 %v5651, %v5652
  %v5654 = vand.u32 %v5653, 4294901760
  %5655 = vmatpush1.msra.mxu0 %v5654
  %v5656 = vand.u32 %v246, 4294901760
  %v5657 = vsub.f32 %v246, %v5656
  %v5658 = vand.u32 %v5657, 4294901760
  %v5659 = vsub.f32 %v5657, %v5658
  %v5660 = vand.u32 %v5659, 4294901760
  %5661 = vmatprep.subr.mxu0 %v5660
  %v5662 = vand.u32 %v245, 4294901760
  %v5663 = vsub.f32 %v245, %v5662
  %v5664 = vand.u32 %v5663, 4294901760
  %v5665 = vsub.f32 %v5663, %v5664
  %v5666 = vand.u32 %v5665, 4294901760
  %5667 = vmatpush1.msra.mxu0 %v5666
  %v5668 = vand.u32 %v244, 4294901760
  %v5669 = vsub.f32 %v244, %v5668
  %v5670 = vand.u32 %v5669, 4294901760
  %v5671 = vsub.f32 %v5669, %v5670
  %v5672 = vand.u32 %v5671, 4294901760
  %5673 = vmatprep.subr.mxu0 %v5672
  %v5674 = vand.u32 %v243, 4294901760
  %v5675 = vsub.f32 %v243, %v5674
  %v5676 = vand.u32 %v5675, 4294901760
  %v5677 = vsub.f32 %v5675, %v5676
  %v5678 = vand.u32 %v5677, 4294901760
  %5679 = vmatpush1.msra.mxu0 %v5678
  %v5680 = vand.u32 %v242, 4294901760
  %v5681 = vsub.f32 %v242, %v5680
  %v5682 = vand.u32 %v5681, 4294901760
  %v5683 = vsub.f32 %v5681, %v5682
  %v5684 = vand.u32 %v5683, 4294901760
  %5685 = vmatprep.subr.mxu0 %v5684
  %v5686 = vand.u32 %v241, 4294901760
  %v5687 = vsub.f32 %v241, %v5686
  %v5688 = vand.u32 %v5687, 4294901760
  %v5689 = vsub.f32 %v5687, %v5688
  %v5690 = vand.u32 %v5689, 4294901760
  %5691 = vmatpush1.msra.mxu0 %v5690
  %v5692 = vand.u32 %v240, 4294901760
  %v5693 = vsub.f32 %v240, %v5692
  %v5694 = vand.u32 %v5693, 4294901760
  %v5695 = vsub.f32 %v5693, %v5694
  %v5696 = vand.u32 %v5695, 4294901760
  %5697 = vmatprep.subr.mxu0 %v5696
  %v5698 = vand.u32 %v239, 4294901760
  %v5699 = vsub.f32 %v239, %v5698
  %v5700 = vand.u32 %v5699, 4294901760
  %v5701 = vsub.f32 %v5699, %v5700
  %v5702 = vand.u32 %v5701, 4294901760
  %5703 = vmatpush1.msra.mxu0 %v5702
  %5704 = vmatprep.subr.mxu0 0.0
  %5705 = vmatpush2.msra.mxu0 0.0
  %5706 = vmatprep.subr.mxu0 0.0
  %5707 = vmatpush2.msra.mxu0 0.0
  %5708 = vmatprep.subr.mxu0 0.0
  %5709 = vmatpush2.msra.mxu0 0.0
  %5710 = vmatprep.subr.mxu0 0.0
  %5711 = vmatpush2.msra.mxu0 0.0
  %5712 = vmatprep.subr.mxu0 0.0
  %5713 = vmatpush2.msra.mxu0 0.0
  %5714 = vmatprep.subr.mxu0 0.0
  %5715 = vmatpush2.msra.mxu0 0.0
  %5716 = vmatprep.subr.mxu0 0.0
  %5717 = vmatpush2.msra.mxu0 0.0
  %5718 = vmatprep.subr.mxu0 0.0
  %5719 = vmatpush2.msra.mxu0 0.0
  %5720 = vmatprep.subr.mxu0 0.0
  %5721 = vmatpush2.msra.mxu0 0.0
  %5722 = vmatprep.subr.mxu0 0.0
  %5723 = vmatpush2.msra.mxu0 0.0
  %5724 = vmatprep.subr.mxu0 0.0
  %5725 = vmatpush2.msra.mxu0 0.0
  %5726 = vmatprep.subr.mxu0 0.0
  %5727 = vmatpush2.msra.mxu0 0.0
  %5728 = vmatprep.subr.mxu0 0.0
  %5729 = vmatpush2.msra.mxu0 0.0
  %5730 = vmatprep.subr.mxu0 0.0
  %5731 = vmatpush2.msra.mxu0 0.0
  %5732 = vmatprep.subr.mxu0 0.0
  %5733 = vmatpush2.msra.mxu0 0.0
  %5734 = vmatprep.subr.mxu0 0.0
  %5735 = vmatpush2.msra.mxu0 0.0
  %5736 = vmatprep.mubr.f32.mxu0 0.0
  %v5737 = vand.u32 %v15, 4294901760
  %5738 = vmatmul.mubr.f32.gmra.mxu0 %v5737
  %v5739 = vpop.f32.mrf.mxu0
  %v5740 = vadd.f32 %v5299, %v5739
  %v5741 = vpop.f32.mrf.mxu0
  %v5742 = vadd.f32 %v5301, %v5741
  %5743 = vmatprep.mubr.f32.mxu0 0.0
  %v5744 = vand.u32 %v20, 4294901760
  %5745 = vmatmul.mubr.f32.gmra.mxu0 %v5744
  %v5746 = vpop.f32.mrf.mxu0
  %v5747 = vadd.f32 %v5310, %v5746
  %v5748 = vpop.f32.mrf.mxu0
  %v5749 = vadd.f32 %v5312, %v5748
  %5750 = vmatprep.mubr.f32.mxu0 0.0
  %v5751 = vand.u32 %v25, 4294901760
  %5752 = vmatmul.mubr.f32.gmra.mxu0 %v5751
  %v5753 = vpop.f32.mrf.mxu0
  %v5754 = vadd.f32 %v5321, %v5753
  %v5755 = vpop.f32.mrf.mxu0
  %v5756 = vadd.f32 %v5323, %v5755
  %5757 = vmatprep.mubr.f32.mxu0 0.0
  %v5758 = vand.u32 %v30, 4294901760
  %5759 = vmatmul.mubr.f32.gmra.mxu0 %v5758
  %v5760 = vpop.f32.mrf.mxu0
  %v5761 = vadd.f32 %v5332, %v5760
  %v5762 = vpop.f32.mrf.mxu0
  %v5763 = vadd.f32 %v5334, %v5762
  %5764 = vmatprep.mubr.f32.mxu0 0.0
  %v5765 = vand.u32 %v35, 4294901760
  %5766 = vmatmul.mubr.f32.gmra.mxu0 %v5765
  %v5767 = vpop.f32.mrf.mxu0
  %v5768 = vadd.f32 %v5343, %v5767
  %v5769 = vpop.f32.mrf.mxu0
  %v5770 = vadd.f32 %v5345, %v5769
  %5771 = vmatprep.mubr.f32.mxu0 0.0
  %v5772 = vand.u32 %v40, 4294901760
  %5773 = vmatmul.mubr.f32.gmra.mxu0 %v5772
  %v5774 = vpop.f32.mrf.mxu0
  %v5775 = vadd.f32 %v5354, %v5774
  %v5776 = vpop.f32.mrf.mxu0
  %v5777 = vadd.f32 %v5356, %v5776
  %5778 = vmatprep.mubr.f32.mxu0 0.0
  %v5779 = vand.u32 %v45, 4294901760
  %5780 = vmatmul.mubr.f32.gmra.mxu0 %v5779
  %v5781 = vpop.f32.mrf.mxu0
  %v5782 = vadd.f32 %v5365, %v5781
  %v5783 = vpop.f32.mrf.mxu0
  %v5784 = vadd.f32 %v5367, %v5783
  %5785 = vmatprep.mubr.f32.mxu0 0.0
  %v5786 = vand.u32 %v50, 4294901760
  %5787 = vmatmul.mubr.f32.gmra.mxu0 %v5786
  %v5788 = vpop.f32.mrf.mxu0
  %v5789 = vadd.f32 %v5376, %v5788
  %v5790 = vpop.f32.mrf.mxu0
  %v5791 = vadd.f32 %v5378, %v5790
  %5792 = vmatprep.mubr.f32.mxu0 0.0
  %v5793 = vand.u32 %v55, 4294901760
  %5794 = vmatmul.mubr.f32.gmra.mxu0 %v5793
  %v5795 = vpop.f32.mrf.mxu0
  %v5796 = vadd.f32 %v5387, %v5795
  %v5797 = vpop.f32.mrf.mxu0
  %v5798 = vadd.f32 %v5389, %v5797
  %5799 = vmatprep.mubr.f32.mxu0 0.0
  %v5800 = vand.u32 %v60, 4294901760
  %5801 = vmatmul.mubr.f32.gmra.mxu0 %v5800
  %v5802 = vpop.f32.mrf.mxu0
  %v5803 = vadd.f32 %v5398, %v5802
  %v5804 = vpop.f32.mrf.mxu0
  %v5805 = vadd.f32 %v5400, %v5804
  %5806 = vmatprep.mubr.f32.mxu0 0.0
  %v5807 = vand.u32 %v65, 4294901760
  %5808 = vmatmul.mubr.f32.gmra.mxu0 %v5807
  %v5809 = vpop.f32.mrf.mxu0
  %v5810 = vadd.f32 %v5409, %v5809
  %v5811 = vpop.f32.mrf.mxu0
  %v5812 = vadd.f32 %v5411, %v5811
  %5813 = vmatprep.mubr.f32.mxu0 0.0
  %v5814 = vand.u32 %v70, 4294901760
  %5815 = vmatmul.mubr.f32.gmra.mxu0 %v5814
  %v5816 = vpop.f32.mrf.mxu0
  %v5817 = vadd.f32 %v5420, %v5816
  %v5818 = vpop.f32.mrf.mxu0
  %v5819 = vadd.f32 %v5422, %v5818
  %5820 = vmatprep.mubr.f32.mxu0 0.0
  %v5821 = vand.u32 %v75, 4294901760
  %5822 = vmatmul.mubr.f32.gmra.mxu0 %v5821
  %v5823 = vpop.f32.mrf.mxu0
  %v5824 = vadd.f32 %v5431, %v5823
  %v5825 = vpop.f32.mrf.mxu0
  %v5826 = vadd.f32 %v5433, %v5825
  %5827 = vmatprep.mubr.f32.mxu0 0.0
  %v5828 = vand.u32 %v80, 4294901760
  %5829 = vmatmul.mubr.f32.gmra.mxu0 %v5828
  %v5830 = vpop.f32.mrf.mxu0
  %v5831 = vadd.f32 %v5442, %v5830
  %v5832 = vpop.f32.mrf.mxu0
  %v5833 = vadd.f32 %v5444, %v5832
  %5834 = vmatprep.mubr.f32.mxu0 0.0
  %v5835 = vand.u32 %v85, 4294901760
  %5836 = vmatmul.mubr.f32.gmra.mxu0 %v5835
  %v5837 = vpop.f32.mrf.mxu0
  %v5838 = vadd.f32 %v5453, %v5837
  %v5839 = vpop.f32.mrf.mxu0
  %v5840 = vadd.f32 %v5455, %v5839
  %5841 = vmatprep.mubr.f32.mxu0 0.0
  %v5842 = vand.u32 %v90, 4294901760
  %5843 = vmatmul.mubr.f32.gmra.mxu0 %v5842
  %v5844 = vpop.f32.mrf.mxu0
  %v5845 = vadd.f32 %v5464, %v5844
  %v5846 = vpop.f32.mrf.mxu0
  %v5847 = vadd.f32 %v5466, %v5846
  %5848 = vmatprep.mubr.f32.mxu0 0.0
  %v5849 = vand.u32 %v95, 4294901760
  %5850 = vmatmul.mubr.f32.gmra.mxu0 %v5849
  %v5851 = vpop.f32.mrf.mxu0
  %v5852 = vadd.f32 %v5475, %v5851
  %v5853 = vpop.f32.mrf.mxu0
  %v5854 = vadd.f32 %v5477, %v5853
  %5855 = vmatprep.mubr.f32.mxu0 0.0
  %v5856 = vand.u32 %v100, 4294901760
  %5857 = vmatmul.mubr.f32.gmra.mxu0 %v5856
  %v5858 = vpop.f32.mrf.mxu0
  %v5859 = vadd.f32 %v5486, %v5858
  %v5860 = vpop.f32.mrf.mxu0
  %v5861 = vadd.f32 %v5488, %v5860
  %5862 = vmatprep.mubr.f32.mxu0 0.0
  %v5863 = vand.u32 %v105, 4294901760
  %5864 = vmatmul.mubr.f32.gmra.mxu0 %v5863
  %v5865 = vpop.f32.mrf.mxu0
  %v5866 = vadd.f32 %v5497, %v5865
  %v5867 = vpop.f32.mrf.mxu0
  %v5868 = vadd.f32 %v5499, %v5867
  %5869 = vmatprep.mubr.f32.mxu0 0.0
  %v5870 = vand.u32 %v110, 4294901760
  %5871 = vmatmul.mubr.f32.gmra.mxu0 %v5870
  %v5872 = vpop.f32.mrf.mxu0
  %v5873 = vadd.f32 %v5508, %v5872
  %v5874 = vpop.f32.mrf.mxu0
  %v5875 = vadd.f32 %v5510, %v5874
  %5876 = vdwg.mxu0
  %v5877 = vand.u32 %v270, 4294901760
  %v5878 = vsub.f32 %v270, %v5877
  %5879 = vmatprep.subr.mxu0 %v5878
  %v5880 = vand.u32 %v269, 4294901760
  %v5881 = vsub.f32 %v269, %v5880
  %5882 = vmatpush1.msra.mxu0 %v5881
  %v5883 = vand.u32 %v268, 4294901760
  %v5884 = vsub.f32 %v268, %v5883
  %5885 = vmatprep.subr.mxu0 %v5884
  %v5886 = vand.u32 %v267, 4294901760
  %v5887 = vsub.f32 %v267, %v5886
  %5888 = vmatpush1.msra.mxu0 %v5887
  %v5889 = vand.u32 %v266, 4294901760
  %v5890 = vsub.f32 %v266, %v5889
  %5891 = vmatprep.subr.mxu0 %v5890
  %v5892 = vand.u32 %v265, 4294901760
  %v5893 = vsub.f32 %v265, %v5892
  %5894 = vmatpush1.msra.mxu0 %v5893
  %v5895 = vand.u32 %v264, 4294901760
  %v5896 = vsub.f32 %v264, %v5895
  %5897 = vmatprep.subr.mxu0 %v5896
  %v5898 = vand.u32 %v263, 4294901760
  %v5899 = vsub.f32 %v263, %v5898
  %5900 = vmatpush1.msra.mxu0 %v5899
  %v5901 = vand.u32 %v262, 4294901760
  %v5902 = vsub.f32 %v262, %v5901
  %5903 = vmatprep.subr.mxu0 %v5902
  %v5904 = vand.u32 %v261, 4294901760
  %v5905 = vsub.f32 %v261, %v5904
  %5906 = vmatpush1.msra.mxu0 %v5905
  %v5907 = vand.u32 %v260, 4294901760
  %v5908 = vsub.f32 %v260, %v5907
  %5909 = vmatprep.subr.mxu0 %v5908
  %v5910 = vand.u32 %v259, 4294901760
  %v5911 = vsub.f32 %v259, %v5910
  %5912 = vmatpush1.msra.mxu0 %v5911
  %v5913 = vand.u32 %v258, 4294901760
  %v5914 = vsub.f32 %v258, %v5913
  %5915 = vmatprep.subr.mxu0 %v5914
  %v5916 = vand.u32 %v257, 4294901760
  %v5917 = vsub.f32 %v257, %v5916
  %5918 = vmatpush1.msra.mxu0 %v5917
  %v5919 = vand.u32 %v256, 4294901760
  %v5920 = vsub.f32 %v256, %v5919
  %5921 = vmatprep.subr.mxu0 %v5920
  %v5922 = vand.u32 %v255, 4294901760
  %v5923 = vsub.f32 %v255, %v5922
  %5924 = vmatpush1.msra.mxu0 %v5923
  %v5925 = vand.u32 %v254, 4294901760
  %v5926 = vsub.f32 %v254, %v5925
  %5927 = vmatprep.subr.mxu0 %v5926
  %v5928 = vand.u32 %v253, 4294901760
  %v5929 = vsub.f32 %v253, %v5928
  %5930 = vmatpush1.msra.mxu0 %v5929
  %v5931 = vand.u32 %v252, 4294901760
  %v5932 = vsub.f32 %v252, %v5931
  %5933 = vmatprep.subr.mxu0 %v5932
  %v5934 = vand.u32 %v251, 4294901760
  %v5935 = vsub.f32 %v251, %v5934
  %5936 = vmatpush1.msra.mxu0 %v5935
  %v5937 = vand.u32 %v250, 4294901760
  %v5938 = vsub.f32 %v250, %v5937
  %5939 = vmatprep.subr.mxu0 %v5938
  %v5940 = vand.u32 %v249, 4294901760
  %v5941 = vsub.f32 %v249, %v5940
  %5942 = vmatpush1.msra.mxu0 %v5941
  %v5943 = vand.u32 %v248, 4294901760
  %v5944 = vsub.f32 %v248, %v5943
  %5945 = vmatprep.subr.mxu0 %v5944
  %v5946 = vand.u32 %v247, 4294901760
  %v5947 = vsub.f32 %v247, %v5946
  %5948 = vmatpush1.msra.mxu0 %v5947
  %v5949 = vand.u32 %v246, 4294901760
  %v5950 = vsub.f32 %v246, %v5949
  %5951 = vmatprep.subr.mxu0 %v5950
  %v5952 = vand.u32 %v245, 4294901760
  %v5953 = vsub.f32 %v245, %v5952
  %5954 = vmatpush1.msra.mxu0 %v5953
  %v5955 = vand.u32 %v244, 4294901760
  %v5956 = vsub.f32 %v244, %v5955
  %5957 = vmatprep.subr.mxu0 %v5956
  %v5958 = vand.u32 %v243, 4294901760
  %v5959 = vsub.f32 %v243, %v5958
  %5960 = vmatpush1.msra.mxu0 %v5959
  %v5961 = vand.u32 %v242, 4294901760
  %v5962 = vsub.f32 %v242, %v5961
  %5963 = vmatprep.subr.mxu0 %v5962
  %v5964 = vand.u32 %v241, 4294901760
  %v5965 = vsub.f32 %v241, %v5964
  %5966 = vmatpush1.msra.mxu0 %v5965
  %v5967 = vand.u32 %v240, 4294901760
  %v5968 = vsub.f32 %v240, %v5967
  %5969 = vmatprep.subr.mxu0 %v5968
  %v5970 = vand.u32 %v239, 4294901760
  %v5971 = vsub.f32 %v239, %v5970
  %5972 = vmatpush1.msra.mxu0 %v5971
  %5973 = vmatprep.subr.mxu0 0.0
  %5974 = vmatpush2.msra.mxu0 0.0
  %5975 = vmatprep.subr.mxu0 0.0
  %5976 = vmatpush2.msra.mxu0 0.0
  %5977 = vmatprep.subr.mxu0 0.0
  %5978 = vmatpush2.msra.mxu0 0.0
  %5979 = vmatprep.subr.mxu0 0.0
  %5980 = vmatpush2.msra.mxu0 0.0
  %5981 = vmatprep.subr.mxu0 0.0
  %5982 = vmatpush2.msra.mxu0 0.0
  %5983 = vmatprep.subr.mxu0 0.0
  %5984 = vmatpush2.msra.mxu0 0.0
  %5985 = vmatprep.subr.mxu0 0.0
  %5986 = vmatpush2.msra.mxu0 0.0
  %5987 = vmatprep.subr.mxu0 0.0
  %5988 = vmatpush2.msra.mxu0 0.0
  %5989 = vmatprep.subr.mxu0 0.0
  %5990 = vmatpush2.msra.mxu0 0.0
  %5991 = vmatprep.subr.mxu0 0.0
  %5992 = vmatpush2.msra.mxu0 0.0
  %5993 = vmatprep.subr.mxu0 0.0
  %5994 = vmatpush2.msra.mxu0 0.0
  %5995 = vmatprep.subr.mxu0 0.0
  %5996 = vmatpush2.msra.mxu0 0.0
  %5997 = vmatprep.subr.mxu0 0.0
  %5998 = vmatpush2.msra.mxu0 0.0
  %5999 = vmatprep.subr.mxu0 0.0
  %6000 = vmatpush2.msra.mxu0 0.0
  %6001 = vmatprep.subr.mxu0 0.0
  %6002 = vmatpush2.msra.mxu0 0.0
  %6003 = vmatprep.subr.mxu0 0.0
  %6004 = vmatpush2.msra.mxu0 0.0
  %6005 = vmatprep.mubr.f32.mxu0 0.0
  %v6006 = vand.u32 %v15, 4294901760
  %v6007 = vsub.f32 %v15, %v6006
  %6008 = vmatmul.mubr.f32.gmra.mxu0 %v6007
  %v6009 = vpop.f32.mrf.mxu0
  %v6010 = vadd.f32 %v5740, %v6009
  %v6011 = vpop.f32.mrf.mxu0
  %v6012 = vadd.f32 %v5742, %v6011
  %6013 = vmatprep.mubr.f32.mxu0 0.0
  %v6014 = vand.u32 %v20, 4294901760
  %v6015 = vsub.f32 %v20, %v6014
  %6016 = vmatmul.mubr.f32.gmra.mxu0 %v6015
  %v6017 = vpop.f32.mrf.mxu0
  %v6018 = vadd.f32 %v5747, %v6017
  %v6019 = vpop.f32.mrf.mxu0
  %v6020 = vadd.f32 %v5749, %v6019
  %6021 = vmatprep.mubr.f32.mxu0 0.0
  %v6022 = vand.u32 %v25, 4294901760
  %v6023 = vsub.f32 %v25, %v6022
  %6024 = vmatmul.mubr.f32.gmra.mxu0 %v6023
  %v6025 = vpop.f32.mrf.mxu0
  %v6026 = vadd.f32 %v5754, %v6025
  %v6027 = vpop.f32.mrf.mxu0
  %v6028 = vadd.f32 %v5756, %v6027
  %6029 = vmatprep.mubr.f32.mxu0 0.0
  %v6030 = vand.u32 %v30, 4294901760
  %v6031 = vsub.f32 %v30, %v6030
  %6032 = vmatmul.mubr.f32.gmra.mxu0 %v6031
  %v6033 = vpop.f32.mrf.mxu0
  %v6034 = vadd.f32 %v5761, %v6033
  %v6035 = vpop.f32.mrf.mxu0
  %v6036 = vadd.f32 %v5763, %v6035
  %6037 = vmatprep.mubr.f32.mxu0 0.0
  %v6038 = vand.u32 %v35, 4294901760
  %v6039 = vsub.f32 %v35, %v6038
  %6040 = vmatmul.mubr.f32.gmra.mxu0 %v6039
  %v6041 = vpop.f32.mrf.mxu0
  %v6042 = vadd.f32 %v5768, %v6041
  %v6043 = vpop.f32.mrf.mxu0
  %v6044 = vadd.f32 %v5770, %v6043
  %6045 = vmatprep.mubr.f32.mxu0 0.0
  %v6046 = vand.u32 %v40, 4294901760
  %v6047 = vsub.f32 %v40, %v6046
  %6048 = vmatmul.mubr.f32.gmra.mxu0 %v6047
  %v6049 = vpop.f32.mrf.mxu0
  %v6050 = vadd.f32 %v5775, %v6049
  %v6051 = vpop.f32.mrf.mxu0
  %v6052 = vadd.f32 %v5777, %v6051
  %6053 = vmatprep.mubr.f32.mxu0 0.0
  %v6054 = vand.u32 %v45, 4294901760
  %v6055 = vsub.f32 %v45, %v6054
  %6056 = vmatmul.mubr.f32.gmra.mxu0 %v6055
  %v6057 = vpop.f32.mrf.mxu0
  %v6058 = vadd.f32 %v5782, %v6057
  %v6059 = vpop.f32.mrf.mxu0
  %v6060 = vadd.f32 %v5784, %v6059
  %6061 = vmatprep.mubr.f32.mxu0 0.0
  %v6062 = vand.u32 %v50, 4294901760
  %v6063 = vsub.f32 %v50, %v6062
  %6064 = vmatmul.mubr.f32.gmra.mxu0 %v6063
  %v6065 = vpop.f32.mrf.mxu0
  %v6066 = vadd.f32 %v5789, %v6065
  %v6067 = vpop.f32.mrf.mxu0
  %v6068 = vadd.f32 %v5791, %v6067
  %6069 = vmatprep.mubr.f32.mxu0 0.0
  %v6070 = vand.u32 %v55, 4294901760
  %v6071 = vsub.f32 %v55, %v6070
  %6072 = vmatmul.mubr.f32.gmra.mxu0 %v6071
  %v6073 = vpop.f32.mrf.mxu0
  %v6074 = vadd.f32 %v5796, %v6073
  %v6075 = vpop.f32.mrf.mxu0
  %v6076 = vadd.f32 %v5798, %v6075
  %6077 = vmatprep.mubr.f32.mxu0 0.0
  %v6078 = vand.u32 %v60, 4294901760
  %v6079 = vsub.f32 %v60, %v6078
  %6080 = vmatmul.mubr.f32.gmra.mxu0 %v6079
  %v6081 = vpop.f32.mrf.mxu0
  %v6082 = vadd.f32 %v5803, %v6081
  %v6083 = vpop.f32.mrf.mxu0
  %v6084 = vadd.f32 %v5805, %v6083
  %6085 = vmatprep.mubr.f32.mxu0 0.0
  %v6086 = vand.u32 %v65, 4294901760
  %v6087 = vsub.f32 %v65, %v6086
  %6088 = vmatmul.mubr.f32.gmra.mxu0 %v6087
  %v6089 = vpop.f32.mrf.mxu0
  %v6090 = vadd.f32 %v5810, %v6089
  %v6091 = vpop.f32.mrf.mxu0
  %v6092 = vadd.f32 %v5812, %v6091
  %6093 = vmatprep.mubr.f32.mxu0 0.0
  %v6094 = vand.u32 %v70, 4294901760
  %v6095 = vsub.f32 %v70, %v6094
  %6096 = vmatmul.mubr.f32.gmra.mxu0 %v6095
  %v6097 = vpop.f32.mrf.mxu0
  %v6098 = vadd.f32 %v5817, %v6097
  %v6099 = vpop.f32.mrf.mxu0
  %v6100 = vadd.f32 %v5819, %v6099
  %6101 = vmatprep.mubr.f32.mxu0 0.0
  %v6102 = vand.u32 %v75, 4294901760
  %v6103 = vsub.f32 %v75, %v6102
  %6104 = vmatmul.mubr.f32.gmra.mxu0 %v6103
  %v6105 = vpop.f32.mrf.mxu0
  %v6106 = vadd.f32 %v5824, %v6105
  %v6107 = vpop.f32.mrf.mxu0
  %v6108 = vadd.f32 %v5826, %v6107
  %6109 = vmatprep.mubr.f32.mxu0 0.0
  %v6110 = vand.u32 %v80, 4294901760
  %v6111 = vsub.f32 %v80, %v6110
  %6112 = vmatmul.mubr.f32.gmra.mxu0 %v6111
  %v6113 = vpop.f32.mrf.mxu0
  %v6114 = vadd.f32 %v5831, %v6113
  %v6115 = vpop.f32.mrf.mxu0
  %v6116 = vadd.f32 %v5833, %v6115
  %6117 = vmatprep.mubr.f32.mxu0 0.0
  %v6118 = vand.u32 %v85, 4294901760
  %v6119 = vsub.f32 %v85, %v6118
  %6120 = vmatmul.mubr.f32.gmra.mxu0 %v6119
  %v6121 = vpop.f32.mrf.mxu0
  %v6122 = vadd.f32 %v5838, %v6121
  %v6123 = vpop.f32.mrf.mxu0
  %v6124 = vadd.f32 %v5840, %v6123
  %6125 = vmatprep.mubr.f32.mxu0 0.0
  %v6126 = vand.u32 %v90, 4294901760
  %v6127 = vsub.f32 %v90, %v6126
  %6128 = vmatmul.mubr.f32.gmra.mxu0 %v6127
  %v6129 = vpop.f32.mrf.mxu0
  %v6130 = vadd.f32 %v5845, %v6129
  %v6131 = vpop.f32.mrf.mxu0
  %v6132 = vadd.f32 %v5847, %v6131
  %6133 = vmatprep.mubr.f32.mxu0 0.0
  %v6134 = vand.u32 %v95, 4294901760
  %v6135 = vsub.f32 %v95, %v6134
  %6136 = vmatmul.mubr.f32.gmra.mxu0 %v6135
  %v6137 = vpop.f32.mrf.mxu0
  %v6138 = vadd.f32 %v5852, %v6137
  %v6139 = vpop.f32.mrf.mxu0
  %v6140 = vadd.f32 %v5854, %v6139
  %6141 = vmatprep.mubr.f32.mxu0 0.0
  %v6142 = vand.u32 %v100, 4294901760
  %v6143 = vsub.f32 %v100, %v6142
  %6144 = vmatmul.mubr.f32.gmra.mxu0 %v6143
  %v6145 = vpop.f32.mrf.mxu0
  %v6146 = vadd.f32 %v5859, %v6145
  %v6147 = vpop.f32.mrf.mxu0
  %v6148 = vadd.f32 %v5861, %v6147
  %6149 = vmatprep.mubr.f32.mxu0 0.0
  %v6150 = vand.u32 %v105, 4294901760
  %v6151 = vsub.f32 %v105, %v6150
  %6152 = vmatmul.mubr.f32.gmra.mxu0 %v6151
  %v6153 = vpop.f32.mrf.mxu0
  %v6154 = vadd.f32 %v5866, %v6153
  %v6155 = vpop.f32.mrf.mxu0
  %v6156 = vadd.f32 %v5868, %v6155
  %6157 = vmatprep.mubr.f32.mxu0 0.0
  %v6158 = vand.u32 %v110, 4294901760
  %v6159 = vsub.f32 %v110, %v6158
  %6160 = vmatmul.mubr.f32.gmra.mxu0 %v6159
  %v6161 = vpop.f32.mrf.mxu0
  %v6162 = vadd.f32 %v5873, %v6161
  %v6163 = vpop.f32.mrf.mxu0
  %v6164 = vadd.f32 %v5875, %v6163
  %6165 = vdwg.mxu0
  %v6166 = vand.u32 %v270, 4294901760
  %6167 = vmatprep.subr.mxu0 %v6166
  %v6168 = vand.u32 %v269, 4294901760
  %6169 = vmatpush1.msra.mxu0 %v6168
  %v6170 = vand.u32 %v268, 4294901760
  %6171 = vmatprep.subr.mxu0 %v6170
  %v6172 = vand.u32 %v267, 4294901760
  %6173 = vmatpush1.msra.mxu0 %v6172
  %v6174 = vand.u32 %v266, 4294901760
  %6175 = vmatprep.subr.mxu0 %v6174
  %v6176 = vand.u32 %v265, 4294901760
  %6177 = vmatpush1.msra.mxu0 %v6176
  %v6178 = vand.u32 %v264, 4294901760
  %6179 = vmatprep.subr.mxu0 %v6178
  %v6180 = vand.u32 %v263, 4294901760
  %6181 = vmatpush1.msra.mxu0 %v6180
  %v6182 = vand.u32 %v262, 4294901760
  %6183 = vmatprep.subr.mxu0 %v6182
  %v6184 = vand.u32 %v261, 4294901760
  %6185 = vmatpush1.msra.mxu0 %v6184
  %v6186 = vand.u32 %v260, 4294901760
  %6187 = vmatprep.subr.mxu0 %v6186
  %v6188 = vand.u32 %v259, 4294901760
  %6189 = vmatpush1.msra.mxu0 %v6188
  %v6190 = vand.u32 %v258, 4294901760
  %6191 = vmatprep.subr.mxu0 %v6190
  %v6192 = vand.u32 %v257, 4294901760
  %6193 = vmatpush1.msra.mxu0 %v6192
  %v6194 = vand.u32 %v256, 4294901760
  %6195 = vmatprep.subr.mxu0 %v6194
  %v6196 = vand.u32 %v255, 4294901760
  %6197 = vmatpush1.msra.mxu0 %v6196
  %v6198 = vand.u32 %v254, 4294901760
  %6199 = vmatprep.subr.mxu0 %v6198
  %v6200 = vand.u32 %v253, 4294901760
  %6201 = vmatpush1.msra.mxu0 %v6200
  %v6202 = vand.u32 %v252, 4294901760
  %6203 = vmatprep.subr.mxu0 %v6202
  %v6204 = vand.u32 %v251, 4294901760
  %6205 = vmatpush1.msra.mxu0 %v6204
  %v6206 = vand.u32 %v250, 4294901760
  %6207 = vmatprep.subr.mxu0 %v6206
  %v6208 = vand.u32 %v249, 4294901760
  %6209 = vmatpush1.msra.mxu0 %v6208
  %v6210 = vand.u32 %v248, 4294901760
  %6211 = vmatprep.subr.mxu0 %v6210
  %v6212 = vand.u32 %v247, 4294901760
  %6213 = vmatpush1.msra.mxu0 %v6212
  %v6214 = vand.u32 %v246, 4294901760
  %6215 = vmatprep.subr.mxu0 %v6214
  %v6216 = vand.u32 %v245, 4294901760
  %6217 = vmatpush1.msra.mxu0 %v6216
  %v6218 = vand.u32 %v244, 4294901760
  %6219 = vmatprep.subr.mxu0 %v6218
  %v6220 = vand.u32 %v243, 4294901760
  %6221 = vmatpush1.msra.mxu0 %v6220
  %v6222 = vand.u32 %v242, 4294901760
  %6223 = vmatprep.subr.mxu0 %v6222
  %v6224 = vand.u32 %v241, 4294901760
  %6225 = vmatpush1.msra.mxu0 %v6224
  %v6226 = vand.u32 %v240, 4294901760
  %6227 = vmatprep.subr.mxu0 %v6226
  %v6228 = vand.u32 %v239, 4294901760
  %6229 = vmatpush1.msra.mxu0 %v6228
  %6230 = vmatprep.subr.mxu0 0.0
  %6231 = vmatpush2.msra.mxu0 0.0
  %6232 = vmatprep.subr.mxu0 0.0
  %6233 = vmatpush2.msra.mxu0 0.0
  %6234 = vmatprep.subr.mxu0 0.0
  %6235 = vmatpush2.msra.mxu0 0.0
  %6236 = vmatprep.subr.mxu0 0.0
  %6237 = vmatpush2.msra.mxu0 0.0
  %6238 = vmatprep.subr.mxu0 0.0
  %6239 = vmatpush2.msra.mxu0 0.0
  %6240 = vmatprep.subr.mxu0 0.0
  %6241 = vmatpush2.msra.mxu0 0.0
  %6242 = vmatprep.subr.mxu0 0.0
  %6243 = vmatpush2.msra.mxu0 0.0
  %6244 = vmatprep.subr.mxu0 0.0
  %6245 = vmatpush2.msra.mxu0 0.0
  %6246 = vmatprep.subr.mxu0 0.0
  %6247 = vmatpush2.msra.mxu0 0.0
  %6248 = vmatprep.subr.mxu0 0.0
  %6249 = vmatpush2.msra.mxu0 0.0
  %6250 = vmatprep.subr.mxu0 0.0
  %6251 = vmatpush2.msra.mxu0 0.0
  %6252 = vmatprep.subr.mxu0 0.0
  %6253 = vmatpush2.msra.mxu0 0.0
  %6254 = vmatprep.subr.mxu0 0.0
  %6255 = vmatpush2.msra.mxu0 0.0
  %6256 = vmatprep.subr.mxu0 0.0
  %6257 = vmatpush2.msra.mxu0 0.0
  %6258 = vmatprep.subr.mxu0 0.0
  %6259 = vmatpush2.msra.mxu0 0.0
  %6260 = vmatprep.subr.mxu0 0.0
  %6261 = vmatpush2.msra.mxu0 0.0
  %6262 = vmatprep.mubr.f32.mxu0 0.0
  %v6263 = vand.u32 %v15, 4294901760
  %v6264 = vsub.f32 %v15, %v6263
  %v6265 = vand.u32 %v6264, 4294901760
  %6266 = vmatmul.mubr.f32.gmra.mxu0 %v6265
  %v6267 = vpop.f32.mrf.mxu0
  %v6268 = vadd.f32 %v6010, %v6267
  %v6269 = vpop.f32.mrf.mxu0
  %v6270 = vadd.f32 %v6012, %v6269
  %6271 = vmatprep.mubr.f32.mxu0 0.0
  %v6272 = vand.u32 %v20, 4294901760
  %v6273 = vsub.f32 %v20, %v6272
  %v6274 = vand.u32 %v6273, 4294901760
  %6275 = vmatmul.mubr.f32.gmra.mxu0 %v6274
  %v6276 = vpop.f32.mrf.mxu0
  %v6277 = vadd.f32 %v6018, %v6276
  %v6278 = vpop.f32.mrf.mxu0
  %v6279 = vadd.f32 %v6020, %v6278
  %6280 = vmatprep.mubr.f32.mxu0 0.0
  %v6281 = vand.u32 %v25, 4294901760
  %v6282 = vsub.f32 %v25, %v6281
  %v6283 = vand.u32 %v6282, 4294901760
  %6284 = vmatmul.mubr.f32.gmra.mxu0 %v6283
  %v6285 = vpop.f32.mrf.mxu0
  %v6286 = vadd.f32 %v6026, %v6285
  %v6287 = vpop.f32.mrf.mxu0
  %v6288 = vadd.f32 %v6028, %v6287
  %6289 = vmatprep.mubr.f32.mxu0 0.0
  %v6290 = vand.u32 %v30, 4294901760
  %v6291 = vsub.f32 %v30, %v6290
  %v6292 = vand.u32 %v6291, 4294901760
  %6293 = vmatmul.mubr.f32.gmra.mxu0 %v6292
  %v6294 = vpop.f32.mrf.mxu0
  %v6295 = vadd.f32 %v6034, %v6294
  %v6296 = vpop.f32.mrf.mxu0
  %v6297 = vadd.f32 %v6036, %v6296
  %6298 = vmatprep.mubr.f32.mxu0 0.0
  %v6299 = vand.u32 %v35, 4294901760
  %v6300 = vsub.f32 %v35, %v6299
  %v6301 = vand.u32 %v6300, 4294901760
  %6302 = vmatmul.mubr.f32.gmra.mxu0 %v6301
  %v6303 = vpop.f32.mrf.mxu0
  %v6304 = vadd.f32 %v6042, %v6303
  %v6305 = vpop.f32.mrf.mxu0
  %v6306 = vadd.f32 %v6044, %v6305
  %6307 = vmatprep.mubr.f32.mxu0 0.0
  %v6308 = vand.u32 %v40, 4294901760
  %v6309 = vsub.f32 %v40, %v6308
  %v6310 = vand.u32 %v6309, 4294901760
  %6311 = vmatmul.mubr.f32.gmra.mxu0 %v6310
  %v6312 = vpop.f32.mrf.mxu0
  %v6313 = vadd.f32 %v6050, %v6312
  %v6314 = vpop.f32.mrf.mxu0
  %v6315 = vadd.f32 %v6052, %v6314
  %6316 = vmatprep.mubr.f32.mxu0 0.0
  %v6317 = vand.u32 %v45, 4294901760
  %v6318 = vsub.f32 %v45, %v6317
  %v6319 = vand.u32 %v6318, 4294901760
  %6320 = vmatmul.mubr.f32.gmra.mxu0 %v6319
  %v6321 = vpop.f32.mrf.mxu0
  %v6322 = vadd.f32 %v6058, %v6321
  %v6323 = vpop.f32.mrf.mxu0
  %v6324 = vadd.f32 %v6060, %v6323
  %6325 = vmatprep.mubr.f32.mxu0 0.0
  %v6326 = vand.u32 %v50, 4294901760
  %v6327 = vsub.f32 %v50, %v6326
  %v6328 = vand.u32 %v6327, 4294901760
  %6329 = vmatmul.mubr.f32.gmra.mxu0 %v6328
  %v6330 = vpop.f32.mrf.mxu0
  %v6331 = vadd.f32 %v6066, %v6330
  %v6332 = vpop.f32.mrf.mxu0
  %v6333 = vadd.f32 %v6068, %v6332
  %6334 = vmatprep.mubr.f32.mxu0 0.0
  %v6335 = vand.u32 %v55, 4294901760
  %v6336 = vsub.f32 %v55, %v6335
  %v6337 = vand.u32 %v6336, 4294901760
  %6338 = vmatmul.mubr.f32.gmra.mxu0 %v6337
  %v6339 = vpop.f32.mrf.mxu0
  %v6340 = vadd.f32 %v6074, %v6339
  %v6341 = vpop.f32.mrf.mxu0
  %v6342 = vadd.f32 %v6076, %v6341
  %6343 = vmatprep.mubr.f32.mxu0 0.0
  %v6344 = vand.u32 %v60, 4294901760
  %v6345 = vsub.f32 %v60, %v6344
  %v6346 = vand.u32 %v6345, 4294901760
  %6347 = vmatmul.mubr.f32.gmra.mxu0 %v6346
  %v6348 = vpop.f32.mrf.mxu0
  %v6349 = vadd.f32 %v6082, %v6348
  %v6350 = vpop.f32.mrf.mxu0
  %v6351 = vadd.f32 %v6084, %v6350
  %6352 = vmatprep.mubr.f32.mxu0 0.0
  %v6353 = vand.u32 %v65, 4294901760
  %v6354 = vsub.f32 %v65, %v6353
  %v6355 = vand.u32 %v6354, 4294901760
  %6356 = vmatmul.mubr.f32.gmra.mxu0 %v6355
  %v6357 = vpop.f32.mrf.mxu0
  %v6358 = vadd.f32 %v6090, %v6357
  %v6359 = vpop.f32.mrf.mxu0
  %v6360 = vadd.f32 %v6092, %v6359
  %6361 = vmatprep.mubr.f32.mxu0 0.0
  %v6362 = vand.u32 %v70, 4294901760
  %v6363 = vsub.f32 %v70, %v6362
  %v6364 = vand.u32 %v6363, 4294901760
  %6365 = vmatmul.mubr.f32.gmra.mxu0 %v6364
  %v6366 = vpop.f32.mrf.mxu0
  %v6367 = vadd.f32 %v6098, %v6366
  %v6368 = vpop.f32.mrf.mxu0
  %v6369 = vadd.f32 %v6100, %v6368
  %6370 = vmatprep.mubr.f32.mxu0 0.0
  %v6371 = vand.u32 %v75, 4294901760
  %v6372 = vsub.f32 %v75, %v6371
  %v6373 = vand.u32 %v6372, 4294901760
  %6374 = vmatmul.mubr.f32.gmra.mxu0 %v6373
  %v6375 = vpop.f32.mrf.mxu0
  %v6376 = vadd.f32 %v6106, %v6375
  %v6377 = vpop.f32.mrf.mxu0
  %v6378 = vadd.f32 %v6108, %v6377
  %6379 = vmatprep.mubr.f32.mxu0 0.0
  %v6380 = vand.u32 %v80, 4294901760
  %v6381 = vsub.f32 %v80, %v6380
  %v6382 = vand.u32 %v6381, 4294901760
  %6383 = vmatmul.mubr.f32.gmra.mxu0 %v6382
  %v6384 = vpop.f32.mrf.mxu0
  %v6385 = vadd.f32 %v6114, %v6384
  %v6386 = vpop.f32.mrf.mxu0
  %v6387 = vadd.f32 %v6116, %v6386
  %6388 = vmatprep.mubr.f32.mxu0 0.0
  %v6389 = vand.u32 %v85, 4294901760
  %v6390 = vsub.f32 %v85, %v6389
  %v6391 = vand.u32 %v6390, 4294901760
  %6392 = vmatmul.mubr.f32.gmra.mxu0 %v6391
  %v6393 = vpop.f32.mrf.mxu0
  %v6394 = vadd.f32 %v6122, %v6393
  %v6395 = vpop.f32.mrf.mxu0
  %v6396 = vadd.f32 %v6124, %v6395
  %6397 = vmatprep.mubr.f32.mxu0 0.0
  %v6398 = vand.u32 %v90, 4294901760
  %v6399 = vsub.f32 %v90, %v6398
  %v6400 = vand.u32 %v6399, 4294901760
  %6401 = vmatmul.mubr.f32.gmra.mxu0 %v6400
  %v6402 = vpop.f32.mrf.mxu0
  %v6403 = vadd.f32 %v6130, %v6402
  %v6404 = vpop.f32.mrf.mxu0
  %v6405 = vadd.f32 %v6132, %v6404
  %6406 = vmatprep.mubr.f32.mxu0 0.0
  %v6407 = vand.u32 %v95, 4294901760
  %v6408 = vsub.f32 %v95, %v6407
  %v6409 = vand.u32 %v6408, 4294901760
  %6410 = vmatmul.mubr.f32.gmra.mxu0 %v6409
  %v6411 = vpop.f32.mrf.mxu0
  %v6412 = vadd.f32 %v6138, %v6411
  %v6413 = vpop.f32.mrf.mxu0
  %v6414 = vadd.f32 %v6140, %v6413
  %6415 = vmatprep.mubr.f32.mxu0 0.0
  %v6416 = vand.u32 %v100, 4294901760
  %v6417 = vsub.f32 %v100, %v6416
  %v6418 = vand.u32 %v6417, 4294901760
  %6419 = vmatmul.mubr.f32.gmra.mxu0 %v6418
  %v6420 = vpop.f32.mrf.mxu0
  %v6421 = vadd.f32 %v6146, %v6420
  %v6422 = vpop.f32.mrf.mxu0
  %v6423 = vadd.f32 %v6148, %v6422
  %6424 = vmatprep.mubr.f32.mxu0 0.0
  %v6425 = vand.u32 %v105, 4294901760
  %v6426 = vsub.f32 %v105, %v6425
  %v6427 = vand.u32 %v6426, 4294901760
  %6428 = vmatmul.mubr.f32.gmra.mxu0 %v6427
  %v6429 = vpop.f32.mrf.mxu0
  %v6430 = vadd.f32 %v6154, %v6429
  %v6431 = vpop.f32.mrf.mxu0
  %v6432 = vadd.f32 %v6156, %v6431
  %6433 = vmatprep.mubr.f32.mxu0 0.0
  %v6434 = vand.u32 %v110, 4294901760
  %v6435 = vsub.f32 %v110, %v6434
  %v6436 = vand.u32 %v6435, 4294901760
  %6437 = vmatmul.mubr.f32.gmra.mxu0 %v6436
  %v6438 = vpop.f32.mrf.mxu0
  %v6439 = vadd.f32 %v6162, %v6438
  %v6440 = vpop.f32.mrf.mxu0
  %v6441 = vadd.f32 %v6164, %v6440
  %6442 = vdwg.mxu0
  %v6443 = vand.u32 %v270, 4294901760
  %v6444 = vsub.f32 %v270, %v6443
  %v6445 = vand.u32 %v6444, 4294901760
  %6446 = vmatprep.subr.mxu0 %v6445
  %v6447 = vand.u32 %v269, 4294901760
  %v6448 = vsub.f32 %v269, %v6447
  %v6449 = vand.u32 %v6448, 4294901760
  %6450 = vmatpush1.msra.mxu0 %v6449
  %v6451 = vand.u32 %v268, 4294901760
  %v6452 = vsub.f32 %v268, %v6451
  %v6453 = vand.u32 %v6452, 4294901760
  %6454 = vmatprep.subr.mxu0 %v6453
  %v6455 = vand.u32 %v267, 4294901760
  %v6456 = vsub.f32 %v267, %v6455
  %v6457 = vand.u32 %v6456, 4294901760
  %6458 = vmatpush1.msra.mxu0 %v6457
  %v6459 = vand.u32 %v266, 4294901760
  %v6460 = vsub.f32 %v266, %v6459
  %v6461 = vand.u32 %v6460, 4294901760
  %6462 = vmatprep.subr.mxu0 %v6461
  %v6463 = vand.u32 %v265, 4294901760
  %v6464 = vsub.f32 %v265, %v6463
  %v6465 = vand.u32 %v6464, 4294901760
  %6466 = vmatpush1.msra.mxu0 %v6465
  %v6467 = vand.u32 %v264, 4294901760
  %v6468 = vsub.f32 %v264, %v6467
  %v6469 = vand.u32 %v6468, 4294901760
  %6470 = vmatprep.subr.mxu0 %v6469
  %v6471 = vand.u32 %v263, 4294901760
  %v6472 = vsub.f32 %v263, %v6471
  %v6473 = vand.u32 %v6472, 4294901760
  %6474 = vmatpush1.msra.mxu0 %v6473
  %v6475 = vand.u32 %v262, 4294901760
  %v6476 = vsub.f32 %v262, %v6475
  %v6477 = vand.u32 %v6476, 4294901760
  %6478 = vmatprep.subr.mxu0 %v6477
  %v6479 = vand.u32 %v261, 4294901760
  %v6480 = vsub.f32 %v261, %v6479
  %v6481 = vand.u32 %v6480, 4294901760
  %6482 = vmatpush1.msra.mxu0 %v6481
  %v6483 = vand.u32 %v260, 4294901760
  %v6484 = vsub.f32 %v260, %v6483
  %v6485 = vand.u32 %v6484, 4294901760
  %6486 = vmatprep.subr.mxu0 %v6485
  %v6487 = vand.u32 %v259, 4294901760
  %v6488 = vsub.f32 %v259, %v6487
  %v6489 = vand.u32 %v6488, 4294901760
  %6490 = vmatpush1.msra.mxu0 %v6489
  %v6491 = vand.u32 %v258, 4294901760
  %v6492 = vsub.f32 %v258, %v6491
  %v6493 = vand.u32 %v6492, 4294901760
  %6494 = vmatprep.subr.mxu0 %v6493
  %v6495 = vand.u32 %v257, 4294901760
  %v6496 = vsub.f32 %v257, %v6495
  %v6497 = vand.u32 %v6496, 4294901760
  %6498 = vmatpush1.msra.mxu0 %v6497
  %v6499 = vand.u32 %v256, 4294901760
  %v6500 = vsub.f32 %v256, %v6499
  %v6501 = vand.u32 %v6500, 4294901760
  %6502 = vmatprep.subr.mxu0 %v6501
  %v6503 = vand.u32 %v255, 4294901760
  %v6504 = vsub.f32 %v255, %v6503
  %v6505 = vand.u32 %v6504, 4294901760
  %6506 = vmatpush1.msra.mxu0 %v6505
  %v6507 = vand.u32 %v254, 4294901760
  %v6508 = vsub.f32 %v254, %v6507
  %v6509 = vand.u32 %v6508, 4294901760
  %6510 = vmatprep.subr.mxu0 %v6509
  %v6511 = vand.u32 %v253, 4294901760
  %v6512 = vsub.f32 %v253, %v6511
  %v6513 = vand.u32 %v6512, 4294901760
  %6514 = vmatpush1.msra.mxu0 %v6513
  %v6515 = vand.u32 %v252, 4294901760
  %v6516 = vsub.f32 %v252, %v6515
  %v6517 = vand.u32 %v6516, 4294901760
  %6518 = vmatprep.subr.mxu0 %v6517
  %v6519 = vand.u32 %v251, 4294901760
  %v6520 = vsub.f32 %v251, %v6519
  %v6521 = vand.u32 %v6520, 4294901760
  %6522 = vmatpush1.msra.mxu0 %v6521
  %v6523 = vand.u32 %v250, 4294901760
  %v6524 = vsub.f32 %v250, %v6523
  %v6525 = vand.u32 %v6524, 4294901760
  %6526 = vmatprep.subr.mxu0 %v6525
  %v6527 = vand.u32 %v249, 4294901760
  %v6528 = vsub.f32 %v249, %v6527
  %v6529 = vand.u32 %v6528, 4294901760
  %6530 = vmatpush1.msra.mxu0 %v6529
  %v6531 = vand.u32 %v248, 4294901760
  %v6532 = vsub.f32 %v248, %v6531
  %v6533 = vand.u32 %v6532, 4294901760
  %6534 = vmatprep.subr.mxu0 %v6533
  %v6535 = vand.u32 %v247, 4294901760
  %v6536 = vsub.f32 %v247, %v6535
  %v6537 = vand.u32 %v6536, 4294901760
  %6538 = vmatpush1.msra.mxu0 %v6537
  %v6539 = vand.u32 %v246, 4294901760
  %v6540 = vsub.f32 %v246, %v6539
  %v6541 = vand.u32 %v6540, 4294901760
  %6542 = vmatprep.subr.mxu0 %v6541
  %v6543 = vand.u32 %v245, 4294901760
  %v6544 = vsub.f32 %v245, %v6543
  %v6545 = vand.u32 %v6544, 4294901760
  %6546 = vmatpush1.msra.mxu0 %v6545
  %v6547 = vand.u32 %v244, 4294901760
  %v6548 = vsub.f32 %v244, %v6547
  %v6549 = vand.u32 %v6548, 4294901760
  %6550 = vmatprep.subr.mxu0 %v6549
  %v6551 = vand.u32 %v243, 4294901760
  %v6552 = vsub.f32 %v243, %v6551
  %v6553 = vand.u32 %v6552, 4294901760
  %6554 = vmatpush1.msra.mxu0 %v6553
  %v6555 = vand.u32 %v242, 4294901760
  %v6556 = vsub.f32 %v242, %v6555
  %v6557 = vand.u32 %v6556, 4294901760
  %6558 = vmatprep.subr.mxu0 %v6557
  %v6559 = vand.u32 %v241, 4294901760
  %v6560 = vsub.f32 %v241, %v6559
  %v6561 = vand.u32 %v6560, 4294901760
  %6562 = vmatpush1.msra.mxu0 %v6561
  %v6563 = vand.u32 %v240, 4294901760
  %v6564 = vsub.f32 %v240, %v6563
  %v6565 = vand.u32 %v6564, 4294901760
  %6566 = vmatprep.subr.mxu0 %v6565
  %v6567 = vand.u32 %v239, 4294901760
  %v6568 = vsub.f32 %v239, %v6567
  %v6569 = vand.u32 %v6568, 4294901760
  %6570 = vmatpush1.msra.mxu0 %v6569
  %6571 = vmatprep.subr.mxu0 0.0
  %6572 = vmatpush2.msra.mxu0 0.0
  %6573 = vmatprep.subr.mxu0 0.0
  %6574 = vmatpush2.msra.mxu0 0.0
  %6575 = vmatprep.subr.mxu0 0.0
  %6576 = vmatpush2.msra.mxu0 0.0
  %6577 = vmatprep.subr.mxu0 0.0
  %6578 = vmatpush2.msra.mxu0 0.0
  %6579 = vmatprep.subr.mxu0 0.0
  %6580 = vmatpush2.msra.mxu0 0.0
  %6581 = vmatprep.subr.mxu0 0.0
  %6582 = vmatpush2.msra.mxu0 0.0
  %6583 = vmatprep.subr.mxu0 0.0
  %6584 = vmatpush2.msra.mxu0 0.0
  %6585 = vmatprep.subr.mxu0 0.0
  %6586 = vmatpush2.msra.mxu0 0.0
  %6587 = vmatprep.subr.mxu0 0.0
  %6588 = vmatpush2.msra.mxu0 0.0
  %6589 = vmatprep.subr.mxu0 0.0
  %6590 = vmatpush2.msra.mxu0 0.0
  %6591 = vmatprep.subr.mxu0 0.0
  %6592 = vmatpush2.msra.mxu0 0.0
  %6593 = vmatprep.subr.mxu0 0.0
  %6594 = vmatpush2.msra.mxu0 0.0
  %6595 = vmatprep.subr.mxu0 0.0
  %6596 = vmatpush2.msra.mxu0 0.0
  %6597 = vmatprep.subr.mxu0 0.0
  %6598 = vmatpush2.msra.mxu0 0.0
  %6599 = vmatprep.subr.mxu0 0.0
  %6600 = vmatpush2.msra.mxu0 0.0
  %6601 = vmatprep.subr.mxu0 0.0
  %6602 = vmatpush2.msra.mxu0 0.0
  %6603 = vmatprep.mubr.f32.mxu0 0.0
  %v6604 = vand.u32 %v15, 4294901760
  %6605 = vmatmul.mubr.f32.gmra.mxu0 %v6604
  %v6606 = vpop.f32.mrf.mxu0
  %v6607 = vadd.f32 %v6268, %v6606
  %v6608 = vpop.f32.mrf.mxu0
  %v6609 = vadd.f32 %v6270, %v6608
  %6610 = vmatprep.mubr.f32.mxu0 0.0
  %v6611 = vand.u32 %v20, 4294901760
  %6612 = vmatmul.mubr.f32.gmra.mxu0 %v6611
  %v6613 = vpop.f32.mrf.mxu0
  %v6614 = vadd.f32 %v6277, %v6613
  %v6615 = vpop.f32.mrf.mxu0
  %v6616 = vadd.f32 %v6279, %v6615
  %6617 = vmatprep.mubr.f32.mxu0 0.0
  %v6618 = vand.u32 %v25, 4294901760
  %6619 = vmatmul.mubr.f32.gmra.mxu0 %v6618
  %v6620 = vpop.f32.mrf.mxu0
  %v6621 = vadd.f32 %v6286, %v6620
  %v6622 = vpop.f32.mrf.mxu0
  %v6623 = vadd.f32 %v6288, %v6622
  %6624 = vmatprep.mubr.f32.mxu0 0.0
  %v6625 = vand.u32 %v30, 4294901760
  %6626 = vmatmul.mubr.f32.gmra.mxu0 %v6625
  %v6627 = vpop.f32.mrf.mxu0
  %v6628 = vadd.f32 %v6295, %v6627
  %v6629 = vpop.f32.mrf.mxu0
  %v6630 = vadd.f32 %v6297, %v6629
  %6631 = vmatprep.mubr.f32.mxu0 0.0
  %v6632 = vand.u32 %v35, 4294901760
  %6633 = vmatmul.mubr.f32.gmra.mxu0 %v6632
  %v6634 = vpop.f32.mrf.mxu0
  %v6635 = vadd.f32 %v6304, %v6634
  %v6636 = vpop.f32.mrf.mxu0
  %v6637 = vadd.f32 %v6306, %v6636
  %6638 = vmatprep.mubr.f32.mxu0 0.0
  %v6639 = vand.u32 %v40, 4294901760
  %6640 = vmatmul.mubr.f32.gmra.mxu0 %v6639
  %v6641 = vpop.f32.mrf.mxu0
  %v6642 = vadd.f32 %v6313, %v6641
  %v6643 = vpop.f32.mrf.mxu0
  %v6644 = vadd.f32 %v6315, %v6643
  %6645 = vmatprep.mubr.f32.mxu0 0.0
  %v6646 = vand.u32 %v45, 4294901760
  %6647 = vmatmul.mubr.f32.gmra.mxu0 %v6646
  %v6648 = vpop.f32.mrf.mxu0
  %v6649 = vadd.f32 %v6322, %v6648
  %v6650 = vpop.f32.mrf.mxu0
  %v6651 = vadd.f32 %v6324, %v6650
  %6652 = vmatprep.mubr.f32.mxu0 0.0
  %v6653 = vand.u32 %v50, 4294901760
  %6654 = vmatmul.mubr.f32.gmra.mxu0 %v6653
  %v6655 = vpop.f32.mrf.mxu0
  %v6656 = vadd.f32 %v6331, %v6655
  %v6657 = vpop.f32.mrf.mxu0
  %v6658 = vadd.f32 %v6333, %v6657
  %6659 = vmatprep.mubr.f32.mxu0 0.0
  %v6660 = vand.u32 %v55, 4294901760
  %6661 = vmatmul.mubr.f32.gmra.mxu0 %v6660
  %v6662 = vpop.f32.mrf.mxu0
  %v6663 = vadd.f32 %v6340, %v6662
  %v6664 = vpop.f32.mrf.mxu0
  %v6665 = vadd.f32 %v6342, %v6664
  %6666 = vmatprep.mubr.f32.mxu0 0.0
  %v6667 = vand.u32 %v60, 4294901760
  %6668 = vmatmul.mubr.f32.gmra.mxu0 %v6667
  %v6669 = vpop.f32.mrf.mxu0
  %v6670 = vadd.f32 %v6349, %v6669
  %v6671 = vpop.f32.mrf.mxu0
  %v6672 = vadd.f32 %v6351, %v6671
  %6673 = vmatprep.mubr.f32.mxu0 0.0
  %v6674 = vand.u32 %v65, 4294901760
  %6675 = vmatmul.mubr.f32.gmra.mxu0 %v6674
  %v6676 = vpop.f32.mrf.mxu0
  %v6677 = vadd.f32 %v6358, %v6676
  %v6678 = vpop.f32.mrf.mxu0
  %v6679 = vadd.f32 %v6360, %v6678
  %6680 = vmatprep.mubr.f32.mxu0 0.0
  %v6681 = vand.u32 %v70, 4294901760
  %6682 = vmatmul.mubr.f32.gmra.mxu0 %v6681
  %v6683 = vpop.f32.mrf.mxu0
  %v6684 = vadd.f32 %v6367, %v6683
  %v6685 = vpop.f32.mrf.mxu0
  %v6686 = vadd.f32 %v6369, %v6685
  %6687 = vmatprep.mubr.f32.mxu0 0.0
  %v6688 = vand.u32 %v75, 4294901760
  %6689 = vmatmul.mubr.f32.gmra.mxu0 %v6688
  %v6690 = vpop.f32.mrf.mxu0
  %v6691 = vadd.f32 %v6376, %v6690
  %v6692 = vpop.f32.mrf.mxu0
  %v6693 = vadd.f32 %v6378, %v6692
  %6694 = vmatprep.mubr.f32.mxu0 0.0
  %v6695 = vand.u32 %v80, 4294901760
  %6696 = vmatmul.mubr.f32.gmra.mxu0 %v6695
  %v6697 = vpop.f32.mrf.mxu0
  %v6698 = vadd.f32 %v6385, %v6697
  %v6699 = vpop.f32.mrf.mxu0
  %v6700 = vadd.f32 %v6387, %v6699
  %6701 = vmatprep.mubr.f32.mxu0 0.0
  %v6702 = vand.u32 %v85, 4294901760
  %6703 = vmatmul.mubr.f32.gmra.mxu0 %v6702
  %v6704 = vpop.f32.mrf.mxu0
  %v6705 = vadd.f32 %v6394, %v6704
  %v6706 = vpop.f32.mrf.mxu0
  %v6707 = vadd.f32 %v6396, %v6706
  %6708 = vmatprep.mubr.f32.mxu0 0.0
  %v6709 = vand.u32 %v90, 4294901760
  %6710 = vmatmul.mubr.f32.gmra.mxu0 %v6709
  %v6711 = vpop.f32.mrf.mxu0
  %v6712 = vadd.f32 %v6403, %v6711
  %v6713 = vpop.f32.mrf.mxu0
  %v6714 = vadd.f32 %v6405, %v6713
  %6715 = vmatprep.mubr.f32.mxu0 0.0
  %v6716 = vand.u32 %v95, 4294901760
  %6717 = vmatmul.mubr.f32.gmra.mxu0 %v6716
  %v6718 = vpop.f32.mrf.mxu0
  %v6719 = vadd.f32 %v6412, %v6718
  %v6720 = vpop.f32.mrf.mxu0
  %v6721 = vadd.f32 %v6414, %v6720
  %6722 = vmatprep.mubr.f32.mxu0 0.0
  %v6723 = vand.u32 %v100, 4294901760
  %6724 = vmatmul.mubr.f32.gmra.mxu0 %v6723
  %v6725 = vpop.f32.mrf.mxu0
  %v6726 = vadd.f32 %v6421, %v6725
  %v6727 = vpop.f32.mrf.mxu0
  %v6728 = vadd.f32 %v6423, %v6727
  %6729 = vmatprep.mubr.f32.mxu0 0.0
  %v6730 = vand.u32 %v105, 4294901760
  %6731 = vmatmul.mubr.f32.gmra.mxu0 %v6730
  %v6732 = vpop.f32.mrf.mxu0
  %v6733 = vadd.f32 %v6430, %v6732
  %v6734 = vpop.f32.mrf.mxu0
  %v6735 = vadd.f32 %v6432, %v6734
  %6736 = vmatprep.mubr.f32.mxu0 0.0
  %v6737 = vand.u32 %v110, 4294901760
  %6738 = vmatmul.mubr.f32.gmra.mxu0 %v6737
  %v6739 = vpop.f32.mrf.mxu0
  %v6740 = vadd.f32 %v6439, %v6739
  %v6741 = vpop.f32.mrf.mxu0
  %v6742 = vadd.f32 %v6441, %v6741
  %6743 = vdwg.mxu0
  %v6744 = vand.u32 %v270, 4294901760
  %6745 = vmatprep.subr.mxu0 %v6744
  %v6746 = vand.u32 %v269, 4294901760
  %6747 = vmatpush1.msra.mxu0 %v6746
  %v6748 = vand.u32 %v268, 4294901760
  %6749 = vmatprep.subr.mxu0 %v6748
  %v6750 = vand.u32 %v267, 4294901760
  %6751 = vmatpush1.msra.mxu0 %v6750
  %v6752 = vand.u32 %v266, 4294901760
  %6753 = vmatprep.subr.mxu0 %v6752
  %v6754 = vand.u32 %v265, 4294901760
  %6755 = vmatpush1.msra.mxu0 %v6754
  %v6756 = vand.u32 %v264, 4294901760
  %6757 = vmatprep.subr.mxu0 %v6756
  %v6758 = vand.u32 %v263, 4294901760
  %6759 = vmatpush1.msra.mxu0 %v6758
  %v6760 = vand.u32 %v262, 4294901760
  %6761 = vmatprep.subr.mxu0 %v6760
  %v6762 = vand.u32 %v261, 4294901760
  %6763 = vmatpush1.msra.mxu0 %v6762
  %v6764 = vand.u32 %v260, 4294901760
  %6765 = vmatprep.subr.mxu0 %v6764
  %v6766 = vand.u32 %v259, 4294901760
  %6767 = vmatpush1.msra.mxu0 %v6766
  %v6768 = vand.u32 %v258, 4294901760
  %6769 = vmatprep.subr.mxu0 %v6768
  %v6770 = vand.u32 %v257, 4294901760
  %6771 = vmatpush1.msra.mxu0 %v6770
  %v6772 = vand.u32 %v256, 4294901760
  %6773 = vmatprep.subr.mxu0 %v6772
  %v6774 = vand.u32 %v255, 4294901760
  %6775 = vmatpush1.msra.mxu0 %v6774
  %v6776 = vand.u32 %v254, 4294901760
  %6777 = vmatprep.subr.mxu0 %v6776
  %v6778 = vand.u32 %v253, 4294901760
  %6779 = vmatpush1.msra.mxu0 %v6778
  %v6780 = vand.u32 %v252, 4294901760
  %6781 = vmatprep.subr.mxu0 %v6780
  %v6782 = vand.u32 %v251, 4294901760
  %6783 = vmatpush1.msra.mxu0 %v6782
  %v6784 = vand.u32 %v250, 4294901760
  %6785 = vmatprep.subr.mxu0 %v6784
  %v6786 = vand.u32 %v249, 4294901760
  %6787 = vmatpush1.msra.mxu0 %v6786
  %v6788 = vand.u32 %v248, 4294901760
  %6789 = vmatprep.subr.mxu0 %v6788
  %v6790 = vand.u32 %v247, 4294901760
  %6791 = vmatpush1.msra.mxu0 %v6790
  %v6792 = vand.u32 %v246, 4294901760
  %6793 = vmatprep.subr.mxu0 %v6792
  %v6794 = vand.u32 %v245, 4294901760
  %6795 = vmatpush1.msra.mxu0 %v6794
  %v6796 = vand.u32 %v244, 4294901760
  %6797 = vmatprep.subr.mxu0 %v6796
  %v6798 = vand.u32 %v243, 4294901760
  %6799 = vmatpush1.msra.mxu0 %v6798
  %v6800 = vand.u32 %v242, 4294901760
  %6801 = vmatprep.subr.mxu0 %v6800
  %v6802 = vand.u32 %v241, 4294901760
  %6803 = vmatpush1.msra.mxu0 %v6802
  %v6804 = vand.u32 %v240, 4294901760
  %6805 = vmatprep.subr.mxu0 %v6804
  %v6806 = vand.u32 %v239, 4294901760
  %6807 = vmatpush1.msra.mxu0 %v6806
  %6808 = vmatprep.subr.mxu0 0.0
  %6809 = vmatpush2.msra.mxu0 0.0
  %6810 = vmatprep.subr.mxu0 0.0
  %6811 = vmatpush2.msra.mxu0 0.0
  %6812 = vmatprep.subr.mxu0 0.0
  %6813 = vmatpush2.msra.mxu0 0.0
  %6814 = vmatprep.subr.mxu0 0.0
  %6815 = vmatpush2.msra.mxu0 0.0
  %6816 = vmatprep.subr.mxu0 0.0
  %6817 = vmatpush2.msra.mxu0 0.0
  %6818 = vmatprep.subr.mxu0 0.0
  %6819 = vmatpush2.msra.mxu0 0.0
  %6820 = vmatprep.subr.mxu0 0.0
  %6821 = vmatpush2.msra.mxu0 0.0
  %6822 = vmatprep.subr.mxu0 0.0
  %6823 = vmatpush2.msra.mxu0 0.0
  %6824 = vmatprep.subr.mxu0 0.0
  %6825 = vmatpush2.msra.mxu0 0.0
  %6826 = vmatprep.subr.mxu0 0.0
  %6827 = vmatpush2.msra.mxu0 0.0
  %6828 = vmatprep.subr.mxu0 0.0
  %6829 = vmatpush2.msra.mxu0 0.0
  %6830 = vmatprep.subr.mxu0 0.0
  %6831 = vmatpush2.msra.mxu0 0.0
  %6832 = vmatprep.subr.mxu0 0.0
  %6833 = vmatpush2.msra.mxu0 0.0
  %6834 = vmatprep.subr.mxu0 0.0
  %6835 = vmatpush2.msra.mxu0 0.0
  %6836 = vmatprep.subr.mxu0 0.0
  %6837 = vmatpush2.msra.mxu0 0.0
  %6838 = vmatprep.subr.mxu0 0.0
  %6839 = vmatpush2.msra.mxu0 0.0
  %6840 = vmatprep.mubr.f32.mxu0 0.0
  %v6841 = vand.u32 %v15, 4294901760
  %6842 = vmatmul.mubr.f32.gmra.mxu0 %v6841
  %v6843 = vpop.f32.mrf.mxu0
  %v6844 = vadd.f32 %v6607, %v6843
  %v6845 = vpop.f32.mrf.mxu0
  %v6846 = vadd.f32 %v6609, %v6845
  %6847 = vmatprep.mubr.f32.mxu0 0.0
  %v6848 = vand.u32 %v20, 4294901760
  %6849 = vmatmul.mubr.f32.gmra.mxu0 %v6848
  %v6850 = vpop.f32.mrf.mxu0
  %v6851 = vadd.f32 %v6614, %v6850
  %v6852 = vpop.f32.mrf.mxu0
  %v6853 = vadd.f32 %v6616, %v6852
  %6854 = vmatprep.mubr.f32.mxu0 0.0
  %v6855 = vand.u32 %v25, 4294901760
  %6856 = vmatmul.mubr.f32.gmra.mxu0 %v6855
  %v6857 = vpop.f32.mrf.mxu0
  %v6858 = vadd.f32 %v6621, %v6857
  %v6859 = vpop.f32.mrf.mxu0
  %v6860 = vadd.f32 %v6623, %v6859
  %6861 = vmatprep.mubr.f32.mxu0 0.0
  %v6862 = vand.u32 %v30, 4294901760
  %6863 = vmatmul.mubr.f32.gmra.mxu0 %v6862
  %v6864 = vpop.f32.mrf.mxu0
  %v6865 = vadd.f32 %v6628, %v6864
  %v6866 = vpop.f32.mrf.mxu0
  %v6867 = vadd.f32 %v6630, %v6866
  %6868 = vmatprep.mubr.f32.mxu0 0.0
  %v6869 = vand.u32 %v35, 4294901760
  %6870 = vmatmul.mubr.f32.gmra.mxu0 %v6869
  %v6871 = vpop.f32.mrf.mxu0
  %v6872 = vadd.f32 %v6635, %v6871
  %v6873 = vpop.f32.mrf.mxu0
  %v6874 = vadd.f32 %v6637, %v6873
  %6875 = vmatprep.mubr.f32.mxu0 0.0
  %v6876 = vand.u32 %v40, 4294901760
  %6877 = vmatmul.mubr.f32.gmra.mxu0 %v6876
  %v6878 = vpop.f32.mrf.mxu0
  %v6879 = vadd.f32 %v6642, %v6878
  %v6880 = vpop.f32.mrf.mxu0
  %v6881 = vadd.f32 %v6644, %v6880
  %6882 = vmatprep.mubr.f32.mxu0 0.0
  %v6883 = vand.u32 %v45, 4294901760
  %6884 = vmatmul.mubr.f32.gmra.mxu0 %v6883
  %v6885 = vpop.f32.mrf.mxu0
  %v6886 = vadd.f32 %v6649, %v6885
  %v6887 = vpop.f32.mrf.mxu0
  %v6888 = vadd.f32 %v6651, %v6887
  %6889 = vmatprep.mubr.f32.mxu0 0.0
  %v6890 = vand.u32 %v50, 4294901760
  %6891 = vmatmul.mubr.f32.gmra.mxu0 %v6890
  %v6892 = vpop.f32.mrf.mxu0
  %v6893 = vadd.f32 %v6656, %v6892
  %v6894 = vpop.f32.mrf.mxu0
  %v6895 = vadd.f32 %v6658, %v6894
  %6896 = vmatprep.mubr.f32.mxu0 0.0
  %v6897 = vand.u32 %v55, 4294901760
  %6898 = vmatmul.mubr.f32.gmra.mxu0 %v6897
  %v6899 = vpop.f32.mrf.mxu0
  %v6900 = vadd.f32 %v6663, %v6899
  %v6901 = vpop.f32.mrf.mxu0
  %v6902 = vadd.f32 %v6665, %v6901
  %6903 = vmatprep.mubr.f32.mxu0 0.0
  %v6904 = vand.u32 %v60, 4294901760
  %6905 = vmatmul.mubr.f32.gmra.mxu0 %v6904
  %v6906 = vpop.f32.mrf.mxu0
  %v6907 = vadd.f32 %v6670, %v6906
  %v6908 = vpop.f32.mrf.mxu0
  %v6909 = vadd.f32 %v6672, %v6908
  %6910 = vmatprep.mubr.f32.mxu0 0.0
  %v6911 = vand.u32 %v65, 4294901760
  %6912 = vmatmul.mubr.f32.gmra.mxu0 %v6911
  %v6913 = vpop.f32.mrf.mxu0
  %v6914 = vadd.f32 %v6677, %v6913
  %v6915 = vpop.f32.mrf.mxu0
  %v6916 = vadd.f32 %v6679, %v6915
  %6917 = vmatprep.mubr.f32.mxu0 0.0
  %v6918 = vand.u32 %v70, 4294901760
  %6919 = vmatmul.mubr.f32.gmra.mxu0 %v6918
  %v6920 = vpop.f32.mrf.mxu0
  %v6921 = vadd.f32 %v6684, %v6920
  %v6922 = vpop.f32.mrf.mxu0
  %v6923 = vadd.f32 %v6686, %v6922
  %6924 = vmatprep.mubr.f32.mxu0 0.0
  %v6925 = vand.u32 %v75, 4294901760
  %6926 = vmatmul.mubr.f32.gmra.mxu0 %v6925
  %v6927 = vpop.f32.mrf.mxu0
  %v6928 = vadd.f32 %v6691, %v6927
  %v6929 = vpop.f32.mrf.mxu0
  %v6930 = vadd.f32 %v6693, %v6929
  %6931 = vmatprep.mubr.f32.mxu0 0.0
  %v6932 = vand.u32 %v80, 4294901760
  %6933 = vmatmul.mubr.f32.gmra.mxu0 %v6932
  %v6934 = vpop.f32.mrf.mxu0
  %v6935 = vadd.f32 %v6698, %v6934
  %v6936 = vpop.f32.mrf.mxu0
  %v6937 = vadd.f32 %v6700, %v6936
  %6938 = vmatprep.mubr.f32.mxu0 0.0
  %v6939 = vand.u32 %v85, 4294901760
  %6940 = vmatmul.mubr.f32.gmra.mxu0 %v6939
  %v6941 = vpop.f32.mrf.mxu0
  %v6942 = vadd.f32 %v6705, %v6941
  %v6943 = vpop.f32.mrf.mxu0
  %v6944 = vadd.f32 %v6707, %v6943
  %6945 = vmatprep.mubr.f32.mxu0 0.0
  %v6946 = vand.u32 %v90, 4294901760
  %6947 = vmatmul.mubr.f32.gmra.mxu0 %v6946
  %v6948 = vpop.f32.mrf.mxu0
  %v6949 = vadd.f32 %v6712, %v6948
  %v6950 = vpop.f32.mrf.mxu0
  %v6951 = vadd.f32 %v6714, %v6950
  %6952 = vmatprep.mubr.f32.mxu0 0.0
  %v6953 = vand.u32 %v95, 4294901760
  %6954 = vmatmul.mubr.f32.gmra.mxu0 %v6953
  %v6955 = vpop.f32.mrf.mxu0
  %v6956 = vadd.f32 %v6719, %v6955
  %v6957 = vpop.f32.mrf.mxu0
  %v6958 = vadd.f32 %v6721, %v6957
  %6959 = vmatprep.mubr.f32.mxu0 0.0
  %v6960 = vand.u32 %v100, 4294901760
  %6961 = vmatmul.mubr.f32.gmra.mxu0 %v6960
  %v6962 = vpop.f32.mrf.mxu0
  %v6963 = vadd.f32 %v6726, %v6962
  %v6964 = vpop.f32.mrf.mxu0
  %v6965 = vadd.f32 %v6728, %v6964
  %6966 = vmatprep.mubr.f32.mxu0 0.0
  %v6967 = vand.u32 %v105, 4294901760
  %6968 = vmatmul.mubr.f32.gmra.mxu0 %v6967
  %v6969 = vpop.f32.mrf.mxu0
  %v6970 = vadd.f32 %v6733, %v6969
  %v6971 = vpop.f32.mrf.mxu0
  %v6972 = vadd.f32 %v6735, %v6971
  %6973 = vmatprep.mubr.f32.mxu0 0.0
  %v6974 = vand.u32 %v110, 4294901760
  %6975 = vmatmul.mubr.f32.gmra.mxu0 %v6974
  %v6976 = vpop.f32.mrf.mxu0
  %v6977 = vadd.f32 %v6740, %v6976
  %v6978 = vpop.f32.mrf.mxu0
  %v6979 = vadd.f32 %v6742, %v6978
  %6980 = vdwg.mxu0
  %6981 = vst [vmem:[%s2] sm:$0xff] %v6844
  %vm6982 = vcmask 556032
  %6983 = vst.msk [vmem:[%s2 + $0x8] sm:$0xff] %vm6982, %v6846
  %6984 = vst [vmem:[%s2 + $0x10] sm:$0xff] %v6851
  %6985 = vst.msk [vmem:[%s2 + $0x18] sm:$0xff] %vm6982, %v6853
  %6986 = vst [vmem:[%s2 + $0x20] sm:$0xff] %v6858
  %6987 = vst.msk [vmem:[%s2 + $0x28] sm:$0xff] %vm6982, %v6860
  %6988 = vst [vmem:[%s2 + $0x30] sm:$0xff] %v6865
  %6989 = vst.msk [vmem:[%s2 + $0x38] sm:$0xff] %vm6982, %v6867
  %6990 = vst [vmem:[%s2 + $0x40] sm:$0xff] %v6872
  %6991 = vst.msk [vmem:[%s2 + $0x48] sm:$0xff] %vm6982, %v6874
  %6992 = vst [vmem:[%s2 + $0x50] sm:$0xff] %v6879
  %6993 = vst.msk [vmem:[%s2 + $0x58] sm:$0xff] %vm6982, %v6881
  %6994 = vst [vmem:[%s2 + $0x60] sm:$0xff] %v6886
  %6995 = vst.msk [vmem:[%s2 + $0x68] sm:$0xff] %vm6982, %v6888
  %6996 = vst [vmem:[%s2 + $0x70] sm:$0xff] %v6893
  %6997 = vst.msk [vmem:[%s2 + $0x78] sm:$0xff] %vm6982, %v6895
  %6998 = vst [vmem:[%s2 + $0x80] sm:$0xff] %v6900
  %6999 = vst.msk [vmem:[%s2 + $0x88] sm:$0xff] %vm6982, %v6902
  %7000 = vst [vmem:[%s2 + $0x90] sm:$0xff] %v6907
  %7001 = vst.msk [vmem:[%s2 + $0x98] sm:$0xff] %vm6982, %v6909
  %7002 = vst [vmem:[%s2 + $0xa0] sm:$0xff] %v6914
  %7003 = vst.msk [vmem:[%s2 + $0xa8] sm:$0xff] %vm6982, %v6916
  %7004 = vst [vmem:[%s2 + $0xb0] sm:$0xff] %v6921
  %7005 = vst.msk [vmem:[%s2 + $0xb8] sm:$0xff] %vm6982, %v6923
  %7006 = vst [vmem:[%s2 + $0xc0] sm:$0xff] %v6928
  %7007 = vst.msk [vmem:[%s2 + $0xc8] sm:$0xff] %vm6982, %v6930
  %7008 = vst [vmem:[%s2 + $0xd0] sm:$0xff] %v6935
  %7009 = vst.msk [vmem:[%s2 + $0xd8] sm:$0xff] %vm6982, %v6937
  %7010 = vst [vmem:[%s2 + $0xe0] sm:$0xff] %v6942
  %7011 = vst.msk [vmem:[%s2 + $0xe8] sm:$0xff] %vm6982, %v6944
  %7012 = vst [vmem:[%s2 + $0xf0] sm:$0xff] %v6949
  %7013 = vst.msk [vmem:[%s2 + $0xf8] sm:$0xff] %vm6982, %v6951
  %7014 = vst [vmem:[%s2 + $0x100] sm:$0xff] %v6956
  %7015 = vst.msk [vmem:[%s2 + $0x108] sm:$0xff] %vm6982, %v6958
  %7016 = vst [vmem:[%s2 + $0x110] sm:$0xff] %v6963
  %7017 = vst.msk [vmem:[%s2 + $0x118] sm:$0xff] %vm6982, %v6965
  %7018 = vst [vmem:[%s2 + $0x120] sm:$0xff] %v6970
  %7019 = vst.msk [vmem:[%s2 + $0x128] sm:$0xff] %vm6982, %v6972
  %7020 = vst [vmem:[%s2 + $0x130] sm:$0xff] %v6977
  %7021 = vst.msk [vmem:[%s2 + $0x138] sm:$0xff] %vm6982, %v6979
  // Predicated region
  $region10: #{mul_conv2d_1x1.1} parent=0 // pred_check
    _
  $region11: #{mul_conv2d_1x1.1} parent=0 // pred_check_branch
    %7023 = sbr.rel (0) target = $region13
  $region12: #{mul_conv2d_1x1.1} parent=0 // pred_region
    _
  $region13: #{mul_conv2d_1x1.1} parent=0 // pred_fallthru
    _
  // Predicated region
  $region14: #{mul_conv2d_1x1.1} parent=0 // pred_check
    _
  $region15: #{mul_conv2d_1x1.1} parent=0 // pred_check_branch
    %7025 = sbr.rel (0) target = $region17
  $region16: #{mul_conv2d_1x1.1} parent=0 // pred_region
    _
  $region17: #{mul_conv2d_1x1.1} parent=0 // pred_fallthru
    _

</llo_original>
